<compile_context>
chip_gen: v6e
topology: v6e:2x2x1
jax: 0.10.0
libtpu: 0.0.40
codegen_flags: <defaults>
</compile_context>

<pallas_src>
import functools

import jax
import jax.numpy as jnp
from jax.experimental import pallas as pl
from jax.experimental.pallas import tpu as pltpu

BN_EPS = 1e-5
_VMEM_LIMIT = 32 * 1024 * 1024  # explicit: covers v5e's 16 MiB scoped default too


def _round_up(x, m):
    return ((x + m - 1) // m) * m


def _conv_taps(x_ref, xh_ref, w_ref, *, th, wo, cin):
    """Fused-im2col conv for one (th x wo)-pixel output tile.

    x_ref : (1, th, 4, Wc, cin)  block of input row-pairs; dim2 = 2*row_parity + col_parity
    xh_ref: (1, 1,  4, Wc, cin)  next row-pair (halo row; only row-parity 0 is used)
    w_ref : (9, cin, cpad)       per-tap weights, tap index = 3*kh + kw
    Returns a (th*wo, cpad) f32 accumulator.
    """
    acc = None
    for kh in range(3):
        for kw in range(3):
            cp = 1 if kw == 1 else 0                       # column parity of col 2*wo+kw
            cs = pl.ds(1, wo) if kw == 2 else pl.ds(0, wo)  # contiguous column window
            if kh < 2:
                t = x_ref[0, :, 2 * kh + cp, cs, :]                 # (th, wo, cin)
            else:
                halo = xh_ref[0, :, cp, cs, :]                      # (1, wo, cin)
                if th == 1:
                    t = halo
                else:
                    body = x_ref[0, pl.ds(1, th - 1), cp, cs, :]    # (th-1, wo, cin)
                    t = jnp.concatenate([body, halo], axis=0)       # (th, wo, cin)
            lhs = t.reshape(th * wo, cin)
            d = jnp.dot(lhs, w_ref[3 * kh + kw],
                        preferred_element_type=jnp.float32)
            acc = d if acc is None else acc + d
    return acc


def _stats_kernel(x_ref, xh_ref, w_ref, o_ref, *, th, wo, cin, ho_valid):
    acc = _conv_taps(x_ref, xh_ref, w_ref, th=th, wo=wo, cin=cin)
    if ho_valid is not None:
        # Only needed when Ho % th != 0: rows belonging to H-padding output rows
        # can see real input pixels, so mask them out of the batch statistics.
        row = jax.lax.broadcasted_iota(jnp.int32, (th * wo, 1), 0) // wo
        valid = row < (ho_valid - pl.program_id(1) * th)
        acc = jnp.where(valid, acc, 0.0)
    o_ref[0, 0:1, :] = jnp.sum(acc, axis=0, keepdims=True)
    o_ref[0, 1:2, :] = jnp.sum(acc * acc, axis=0, keepdims=True)


def _apply_kernel(x_ref, xh_ref, w_ref, scale_ref, shift_ref, o_ref, *, th, wo, cin):
    acc = _conv_taps(x_ref, xh_ref, w_ref, th=th, wo=wo, cin=cin)
    y = acc * scale_ref[...] + shift_ref[...]          # one FMA/elem on the VPU
    o_ref[0, :, :] = jnp.maximum(y, 0.0).astype(o_ref.dtype)


def down_forward(x, weight, gamma, beta, *, tile_h=8,
                 out_dtype=jnp.bfloat16, output_format="NCHW"):
    """x: (N, C_in, H, W) f32 NCHW. weight: (C_out, C_in, 3, 3). Returns NCHW (or NHWC)."""
    N, C_in, H, W = x.shape
    C_out = weight.shape[0]
    Ho = (H - 3) // 2 + 1
    Wo = (W - 3) // 2 + 1
    m_true = N * Ho * Wo

    th = max(1, min(tile_h, Ho))          # output rows per grid step (M-tile = th*Wo)
    n_hb = pl.cdiv(Ho, th)
    ho_pad = n_hb * th

    C_pad = _round_up(C_out, 128)         # lane-dense output channels (unmasked lanes)
    Wc = (W + 1) // 2
    Wp = 2 * Wc
    Hp = 2 * ho_pad + 2                   # main blocks cover rows [0, 2*ho_pad) + halo pair

    # ---- input rearrangement: ONE cheap XLA pass; replaces the 9x im2col matrix ----
    # xq[n, hp, 2*rp+cp, j, c] = x_nhwc[n, 2*hp + rp, 2*j + cp, c]  (bf16 operands)
    x_nhwc = jnp.transpose(x, (0, 2, 3, 1)).astype(jnp.bfloat16)
    x_nhwc = jnp.pad(x_nhwc, ((0, 0), (0, Hp - H), (0, Wp - W), (0, 0)))
    xq = x_nhwc.reshape(N, Hp // 2, 2, Wc, 2, C_in)
    xq = xq.transpose(0, 1, 2, 4, 3, 5).reshape(N, Hp // 2, 4, Wc, C_in)

    # per-tap weights (tap = 3*kh + kw), zero-padded to a lane-dense C_out
    w_taps = jnp.transpose(weight, (2, 3, 1, 0)).reshape(9, C_in, C_out)
    w_taps = jnp.pad(w_taps, ((0, 0), (0, 0), (0, C_pad - C_out))).astype(jnp.bfloat16)

    grid = (N, n_hb)
    # Raise to pipeline_mode=pl.Buffered(3) if xprof shows exposed DMA at large tile_h.
    x_spec = pl.BlockSpec((1, th, 4, Wc, C_in), lambda n, i: (n, i, 0, 0, 0))
    xh_spec = pl.BlockSpec((1, 1, 4, Wc, C_in), lambda n, i: (n, (i + 1) * th, 0, 0, 0))
    w_spec = pl.BlockSpec((9, C_in, C_pad), lambda n, i: (0, 0, 0),
                          pipeline_mode=pl.Buffered(1))       # resident, single buffer
    params = pltpu.CompilerParams(
        dimension_semantics=("parallel", "parallel"),          # megacore-friendly (v7x)
        vmem_limit_bytes=_VMEM_LIMIT)

    x_bytes = xq.size * 2
    w_bytes = w_taps.size * 2
    conv_flops = 2 * N * ho_pad * Wo * 9 * C_in * C_pad

    # ---- pass 1: per-tile partial batch statistics (fully parallel grid) ----
    stats_kernel = functools.partial(
        _stats_kernel, th=th, wo=Wo, cin=C_in,
        ho_valid=Ho if (Ho % th) else None)
    stats = pl.pallas_call(
        stats_kernel,
        out_shape=jax.ShapeDtypeStruct((N * n_hb, 2, C_pad), jnp.float32),
        grid_spec=pltpu.PrefetchScalarGridSpec(
            num_scalar_prefetch=0,
            grid=grid,
            in_specs=[x_spec, xh_spec, w_spec],
            out_specs=pl.BlockSpec((1, 2, C_pad), lambda n, i: (n * n_hb + i, 0, 0)),
        ),
        compiler_params=params,
        cost_estimate=pl.CostEstimate(
            flops=conv_flops, transcendentals=0,
            bytes_accessed=x_bytes + w_bytes + N * n_hb * 2 * C_pad * 4),
    )(xq, xq, w_taps)

    # ---- tiny XLA epilogue: pairwise-reduce partials, fold BN into scale/shift ----
    s = jnp.sum(stats[:, 0, :C_out], axis=0)
    q = jnp.sum(stats[:, 1, :C_out], axis=0)
    mean = s / m_true
    # NOTE: variance as E[y^2] - E[y]^2 in f32 can cancel when |mean| >> std; for a
    # conv feeding BN this is benign in practice, but a shifted (two-pass) variance
    # would be the robust alternative if that regime ever matters.
    var = jnp.maximum(q / m_true - mean * mean, 0.0)
    inv_std = jax.lax.rsqrt(var + BN_EPS)
    scale = gamma.astype(jnp.float32) * inv_std
    shift = beta.astype(jnp.float32) - mean * scale
    scale = jnp.pad(scale, (0, C_pad - C_out)).reshape(1, C_pad)
    shift = jnp.pad(shift, (0, C_pad - C_out)).reshape(1, C_pad)

    sb_spec = pl.BlockSpec((1, C_pad), lambda n, i: (0, 0),
                           pipeline_mode=pl.Buffered(1))       # resident, single buffer

    # ---- pass 2: conv (recomputed) + BN affine + ReLU, lane-dense bf16 tiles ----
    # Recompute (re-reads ~1x raw input) is cheaper than an f32 C_pad-wide conv
    # cache round trip for small C_out; see TODO above for the opposite regime.
    apply_kernel = functools.partial(_apply_kernel, th=th, wo=Wo, cin=C_in)
    out_flat = pl.pallas_call(
        apply_kernel,
        out_shape=jax.ShapeDtypeStruct((N * n_hb, th * Wo, C_pad), out_dtype),
        grid_spec=pltpu.PrefetchScalarGridSpec(
            num_scalar_prefetch=0,
            grid=grid,
            in_specs=[x_spec, xh_spec, w_spec, sb_spec, sb_spec],
            out_specs=pl.BlockSpec((1, th * Wo, C_pad),
                                   lambda n, i: (n * n_hb + i, 0, 0)),
        ),
        compiler_params=params,
        cost_estimate=pl.CostEstimate(
            flops=conv_flops + 3 * N * ho_pad * Wo * C_pad,
            transcendentals=0,
            bytes_accessed=(x_bytes + w_bytes + 2 * C_pad * 4
                            + N * ho_pad * Wo * C_pad * jnp.dtype(out_dtype).itemsize)),
    )(xq, xq, w_taps, scale, shift)

    out = out_flat.reshape(N, ho_pad, Wo, C_pad)[:, :Ho, :, :C_out]   # drop padding
    if output_format == "NHWC":
        return out                      # skips the transpose for NHWC consumers
    return jnp.transpose(out, (0, 3, 1, 2))   # NCHW to match the PyTorch module


def _reference(x, weight, gamma, beta):
    # Pure-JAX reference with the same operand precision as the kernel
    # (bf16 conv operands, f32 accumulation and BN arithmetic).
    xb = x.astype(jnp.bfloat16).astype(jnp.float32)
    wb = weight.astype(jnp.bfloat16).astype(jnp.float32)
    conv = jax.lax.conv_general_dilated(
        xb, wb, window_strides=(2, 2), padding="VALID",
        dimension_numbers=("NCHW", "OIHW", "NCHW"))
    mean = conv.mean(axis=(0, 2, 3), keepdims=True)
    var = ((conv - mean) ** 2).mean(axis=(0, 2, 3), keepdims=True)
    xn = (conv - mean) * jax.lax.rsqrt(var + BN_EPS)
    y = xn * gamma.reshape(1, -1, 1, 1) + beta.reshape(1, -1, 1, 1)
    return jnp.maximum(y, 0.0)


if __name__ == "__main__":
    key = jax.random.PRNGKey(0)
    k_x, k_w, k_g, k_b = jax.random.split(key, 4)

    N, C_in, H, W = 2, 4, 16, 16
    C_out = 8

    x = jax.random.normal(k_x, (N, C_in, H, W), dtype=jnp.float32)
    weight = jax.random.normal(k_w, (C_out, C_in, 3, 3), dtype=jnp.float32) * 0.1
    gamma = 1.0 + 0.1 * jax.random.normal(k_g, (C_out,), dtype=jnp.float32)
    beta = 0.1 * jax.random.normal(k_b, (C_out,), dtype=jnp.float32)

    fwd = jax.jit(lambda a, b, c, d: down_forward(a, b, c, d))
    out = fwd(x, weight, gamma, beta)
    jax.block_until_ready(out)

    ref = _reference(x, weight, gamma, beta)
    assert out.shape == (N, C_out, 7, 7), out.shape
    out_f32 = out.astype(jnp.float32)
    err = float(jnp.max(jnp.abs(out_f32 - ref)))
    assert jnp.allclose(out_f32, ref, atol=2e-2, rtol=2e-2), err

    print("KERNEL_OK")
</pallas_src>

<mosaic_0001>
module attributes {stable_mosaic.version = 11 : i64} {
  func.func @_stats_kernel(%arg0: i32, %arg1: i32, %arg2: memref<1x7x4x8x4xbf16, #tpu.memory_space<vmem>>, %arg3: memref<1x1x4x8x4xbf16, #tpu.memory_space<vmem>>, %arg4: memref<9x4x128xbf16, #tpu.memory_space<vmem>>, %arg5: memref<1x2x128xf32, #tpu.memory_space<vmem>>) attributes {dimension_semantics = [#tpu.dimension_semantics<parallel>, #tpu.dimension_semantics<parallel>], iteration_bounds = array<i64: 2, 1>, scalar_prefetch = 0 : i64, scratch_operands = 0 : i64, tpu.core_type = #tpu.core_type<tc>, window_params = [{transform_indices = @transform_0, window_bounds = array<i64: 1, 7, 4, 8, 4>}, {transform_indices = @transform_1, window_bounds = array<i64: 1, 1, 4, 8, 4>}, {pipeline_mode = #tpu.pipeline_mode<synchronous>, transform_indices = @transform_2, window_bounds = array<i64: 9, 4, 128>}, {transform_indices = @transform_3, window_bounds = array<i64: 1, 2, 128>}]} {
    %c0 = arith.constant 0 : index
    %c0_0 = arith.constant 0 : index
    %c0_1 = arith.constant 0 : index
    %c0_2 = arith.constant 0 : index
    %c0_3 = arith.constant 0 : index
    %0 = vector.load %arg2[%c0, %c0_0, %c0_1, %c0_2, %c0_3] : memref<1x7x4x8x4xbf16, #tpu.memory_space<vmem>>, vector<1x7x1x7x4xbf16>
    %1 = vector.shape_cast %0 : vector<1x7x1x7x4xbf16> to vector<7x7x4xbf16>
    %2 = vector.shape_cast %1 : vector<7x7x4xbf16> to vector<49x4xbf16>
    %c0_4 = arith.constant 0 : index
    %c0_5 = arith.constant 0 : index
    %c0_6 = arith.constant 0 : index
    %3 = vector.load %arg4[%c0_4, %c0_5, %c0_6] : memref<9x4x128xbf16, #tpu.memory_space<vmem>>, vector<1x4x128xbf16>
    %4 = vector.shape_cast %3 : vector<1x4x128xbf16> to vector<4x128xbf16>
    %cst = arith.constant dense<0.000000e+00> : vector<49x128xf32>
    %5 = tpu.matmul %2, %4, %cst {dimension_numbers = #tpu.dot_dimension_numbers<[1], [0], [0], [1], [0, 0, 1, 1], [], []>} : vector<49x4xbf16>, vector<4x128xbf16>, vector<49x128xf32> -> vector<49x128xf32>
    %c0_7 = arith.constant 0 : index
    %c0_8 = arith.constant 0 : index
    %c1 = arith.constant 1 : index
    %c0_9 = arith.constant 0 : index
    %c0_10 = arith.constant 0 : index
    %6 = vector.load %arg2[%c0_7, %c0_8, %c1, %c0_9, %c0_10] : memref<1x7x4x8x4xbf16, #tpu.memory_space<vmem>>, vector<1x7x1x7x4xbf16>
    %7 = vector.shape_cast %6 : vector<1x7x1x7x4xbf16> to vector<7x7x4xbf16>
    %8 = vector.shape_cast %7 : vector<7x7x4xbf16> to vector<49x4xbf16>
    %c1_11 = arith.constant 1 : index
    %c0_12 = arith.constant 0 : index
    %c0_13 = arith.constant 0 : index
    %9 = vector.load %arg4[%c1_11, %c0_12, %c0_13] : memref<9x4x128xbf16, #tpu.memory_space<vmem>>, vector<1x4x128xbf16>
    %10 = vector.shape_cast %9 : vector<1x4x128xbf16> to vector<4x128xbf16>
    %cst_14 = arith.constant dense<0.000000e+00> : vector<49x128xf32>
    %11 = tpu.matmul %8, %10, %cst_14 {dimension_numbers = #tpu.dot_dimension_numbers<[1], [0], [0], [1], [0, 0, 1, 1], [], []>} : vector<49x4xbf16>, vector<4x128xbf16>, vector<49x128xf32> -> vector<49x128xf32>
    %12 = arith.addf %5, %11 : vector<49x128xf32>
    %c0_15 = arith.constant 0 : index
    %c0_16 = arith.constant 0 : index
    %c0_17 = arith.constant 0 : index
    %c1_18 = arith.constant 1 : index
    %c0_19 = arith.constant 0 : index
    %13 = vector.load %arg2[%c0_15, %c0_16, %c0_17, %c1_18, %c0_19] : memref<1x7x4x8x4xbf16, #tpu.memory_space<vmem>>, vector<1x7x1x7x4xbf16>
    %14 = vector.shape_cast %13 : vector<1x7x1x7x4xbf16> to vector<7x7x4xbf16>
    %15 = vector.shape_cast %14 : vector<7x7x4xbf16> to vector<49x4xbf16>
    %c2 = arith.constant 2 : index
    %c0_20 = arith.constant 0 : index
    %c0_21 = arith.constant 0 : index
    %16 = vector.load %arg4[%c2, %c0_20, %c0_21] : memref<9x4x128xbf16, #tpu.memory_space<vmem>>, vector<1x4x128xbf16>
    %17 = vector.shape_cast %16 : vector<1x4x128xbf16> to vector<4x128xbf16>
    %cst_22 = arith.constant dense<0.000000e+00> : vector<49x128xf32>
    %18 = tpu.matmul %15, %17, %cst_22 {dimension_numbers = #tpu.dot_dimension_numbers<[1], [0], [0], [1], [0, 0, 1, 1], [], []>} : vector<49x4xbf16>, vector<4x128xbf16>, vector<49x128xf32> -> vector<49x128xf32>
    %19 = arith.addf %12, %18 : vector<49x128xf32>
    %c0_23 = arith.constant 0 : index
    %c0_24 = arith.constant 0 : index
    %c2_25 = arith.constant 2 : index
    %c0_26 = arith.constant 0 : index
    %c0_27 = arith.constant 0 : index
    %20 = vector.load %arg2[%c0_23, %c0_24, %c2_25, %c0_26, %c0_27] : memref<1x7x4x8x4xbf16, #tpu.memory_space<vmem>>, vector<1x7x1x7x4xbf16>
    %21 = vector.shape_cast %20 : vector<1x7x1x7x4xbf16> to vector<7x7x4xbf16>
    %22 = vector.shape_cast %21 : vector<7x7x4xbf16> to vector<49x4xbf16>
    %c3 = arith.constant 3 : index
    %c0_28 = arith.constant 0 : index
    %c0_29 = arith.constant 0 : index
    %23 = vector.load %arg4[%c3, %c0_28, %c0_29] : memref<9x4x128xbf16, #tpu.memory_space<vmem>>, vector<1x4x128xbf16>
    %24 = vector.shape_cast %23 : vector<1x4x128xbf16> to vector<4x128xbf16>
    %cst_30 = arith.constant dense<0.000000e+00> : vector<49x128xf32>
    %25 = tpu.matmul %22, %24, %cst_30 {dimension_numbers = #tpu.dot_dimension_numbers<[1], [0], [0], [1], [0, 0, 1, 1], [], []>} : vector<49x4xbf16>, vector<4x128xbf16>, vector<49x128xf32> -> vector<49x128xf32>
    %26 = arith.addf %19, %25 : vector<49x128xf32>
    %c0_31 = arith.constant 0 : index
    %c0_32 = arith.constant 0 : index
    %c3_33 = arith.constant 3 : index
    %c0_34 = arith.constant 0 : index
    %c0_35 = arith.constant 0 : index
    %27 = vector.load %arg2[%c0_31, %c0_32, %c3_33, %c0_34, %c0_35] : memref<1x7x4x8x4xbf16, #tpu.memory_space<vmem>>, vector<1x7x1x7x4xbf16>
    %28 = vector.shape_cast %27 : vector<1x7x1x7x4xbf16> to vector<7x7x4xbf16>
    %29 = vector.shape_cast %28 : vector<7x7x4xbf16> to vector<49x4xbf16>
    %c4 = arith.constant 4 : index
    %c0_36 = arith.constant 0 : index
    %c0_37 = arith.constant 0 : index
    %30 = vector.load %arg4[%c4, %c0_36, %c0_37] : memref<9x4x128xbf16, #tpu.memory_space<vmem>>, vector<1x4x128xbf16>
    %31 = vector.shape_cast %30 : vector<1x4x128xbf16> to vector<4x128xbf16>
    %cst_38 = arith.constant dense<0.000000e+00> : vector<49x128xf32>
    %32 = tpu.matmul %29, %31, %cst_38 {dimension_numbers = #tpu.dot_dimension_numbers<[1], [0], [0], [1], [0, 0, 1, 1], [], []>} : vector<49x4xbf16>, vector<4x128xbf16>, vector<49x128xf32> -> vector<49x128xf32>
    %33 = arith.addf %26, %32 : vector<49x128xf32>
    %c0_39 = arith.constant 0 : index
    %c0_40 = arith.constant 0 : index
    %c2_41 = arith.constant 2 : index
    %c1_42 = arith.constant 1 : index
    %c0_43 = arith.constant 0 : index
    %34 = vector.load %arg2[%c0_39, %c0_40, %c2_41, %c1_42, %c0_43] : memref<1x7x4x8x4xbf16, #tpu.memory_space<vmem>>, vector<1x7x1x7x4xbf16>
    %35 = vector.shape_cast %34 : vector<1x7x1x7x4xbf16> to vector<7x7x4xbf16>
    %36 = vector.shape_cast %35 : vector<7x7x4xbf16> to vector<49x4xbf16>
    %c5 = arith.constant 5 : index
    %c0_44 = arith.constant 0 : index
    %c0_45 = arith.constant 0 : index
    %37 = vector.load %arg4[%c5, %c0_44, %c0_45] : memref<9x4x128xbf16, #tpu.memory_space<vmem>>, vector<1x4x128xbf16>
    %38 = vector.shape_cast %37 : vector<1x4x128xbf16> to vector<4x128xbf16>
    %cst_46 = arith.constant dense<0.000000e+00> : vector<49x128xf32>
    %39 = tpu.matmul %36, %38, %cst_46 {dimension_numbers = #tpu.dot_dimension_numbers<[1], [0], [0], [1], [0, 0, 1, 1], [], []>} : vector<49x4xbf16>, vector<4x128xbf16>, vector<49x128xf32> -> vector<49x128xf32>
    %40 = arith.addf %33, %39 : vector<49x128xf32>
    %c0_47 = arith.constant 0 : index
    %c0_48 = arith.constant 0 : index
    %c0_49 = arith.constant 0 : index
    %c0_50 = arith.constant 0 : index
    %c0_51 = arith.constant 0 : index
    %41 = vector.load %arg3[%c0_47, %c0_48, %c0_49, %c0_50, %c0_51] : memref<1x1x4x8x4xbf16, #tpu.memory_space<vmem>>, vector<1x1x1x7x4xbf16>
    %42 = vector.shape_cast %41 : vector<1x1x1x7x4xbf16> to vector<1x7x4xbf16>
    %c0_52 = arith.constant 0 : index
    %c1_53 = arith.constant 1 : index
    %c0_54 = arith.constant 0 : index
    %c0_55 = arith.constant 0 : index
    %c0_56 = arith.constant 0 : index
    %43 = vector.load %arg2[%c0_52, %c1_53, %c0_54, %c0_55, %c0_56] : memref<1x7x4x8x4xbf16, #tpu.memory_space<vmem>>, vector<1x6x1x7x4xbf16>
    %44 = vector.shape_cast %43 : vector<1x6x1x7x4xbf16> to vector<6x7x4xbf16>
    %45 = tpu.concatenate %44, %42 in 0 : vector<6x7x4xbf16>, vector<1x7x4xbf16> -> vector<7x7x4xbf16>
    %46 = vector.shape_cast %45 : vector<7x7x4xbf16> to vector<49x4xbf16>
    %c6 = arith.constant 6 : index
    %c0_57 = arith.constant 0 : index
    %c0_58 = arith.constant 0 : index
    %47 = vector.load %arg4[%c6, %c0_57, %c0_58] : memref<9x4x128xbf16, #tpu.memory_space<vmem>>, vector<1x4x128xbf16>
    %48 = vector.shape_cast %47 : vector<1x4x128xbf16> to vector<4x128xbf16>
    %cst_59 = arith.constant dense<0.000000e+00> : vector<49x128xf32>
    %49 = tpu.matmul %46, %48, %cst_59 {dimension_numbers = #tpu.dot_dimension_numbers<[1], [0], [0], [1], [0, 0, 1, 1], [], []>} : vector<49x4xbf16>, vector<4x128xbf16>, vector<49x128xf32> -> vector<49x128xf32>
    %50 = arith.addf %40, %49 : vector<49x128xf32>
    %c0_60 = arith.constant 0 : index
    %c0_61 = arith.constant 0 : index
    %c1_62 = arith.constant 1 : index
    %c0_63 = arith.constant 0 : index
    %c0_64 = arith.constant 0 : index
    %51 = vector.load %arg3[%c0_60, %c0_61, %c1_62, %c0_63, %c0_64] : memref<1x1x4x8x4xbf16, #tpu.memory_space<vmem>>, vector<1x1x1x7x4xbf16>
    %52 = vector.shape_cast %51 : vector<1x1x1x7x4xbf16> to vector<1x7x4xbf16>
    %c0_65 = arith.constant 0 : index
    %c1_66 = arith.constant 1 : index
    %c1_67 = arith.constant 1 : index
    %c0_68 = arith.constant 0 : index
    %c0_69 = arith.constant 0 : index
    %53 = vector.load %arg2[%c0_65, %c1_66, %c1_67, %c0_68, %c0_69] : memref<1x7x4x8x4xbf16, #tpu.memory_space<vmem>>, vector<1x6x1x7x4xbf16>
    %54 = vector.shape_cast %53 : vector<1x6x1x7x4xbf16> to vector<6x7x4xbf16>
    %55 = tpu.concatenate %54, %52 in 0 : vector<6x7x4xbf16>, vector<1x7x4xbf16> -> vector<7x7x4xbf16>
    %56 = vector.shape_cast %55 : vector<7x7x4xbf16> to vector<49x4xbf16>
    %c7 = arith.constant 7 : index
    %c0_70 = arith.constant 0 : index
    %c0_71 = arith.constant 0 : index
    %57 = vector.load %arg4[%c7, %c0_70, %c0_71] : memref<9x4x128xbf16, #tpu.memory_space<vmem>>, vector<1x4x128xbf16>
    %58 = vector.shape_cast %57 : vector<1x4x128xbf16> to vector<4x128xbf16>
    %cst_72 = arith.constant dense<0.000000e+00> : vector<49x128xf32>
    %59 = tpu.matmul %56, %58, %cst_72 {dimension_numbers = #tpu.dot_dimension_numbers<[1], [0], [0], [1], [0, 0, 1, 1], [], []>} : vector<49x4xbf16>, vector<4x128xbf16>, vector<49x128xf32> -> vector<49x128xf32>
    %60 = arith.addf %50, %59 : vector<49x128xf32>
    %c0_73 = arith.constant 0 : index
    %c0_74 = arith.constant 0 : index
    %c0_75 = arith.constant 0 : index
    %c1_76 = arith.constant 1 : index
    %c0_77 = arith.constant 0 : index
    %61 = vector.load %arg3[%c0_73, %c0_74, %c0_75, %c1_76, %c0_77] : memref<1x1x4x8x4xbf16, #tpu.memory_space<vmem>>, vector<1x1x1x7x4xbf16>
    %62 = vector.shape_cast %61 : vector<1x1x1x7x4xbf16> to vector<1x7x4xbf16>
    %c0_78 = arith.constant 0 : index
    %c1_79 = arith.constant 1 : index
    %c0_80 = arith.constant 0 : index
    %c1_81 = arith.constant 1 : index
    %c0_82 = arith.constant 0 : index
    %63 = vector.load %arg2[%c0_78, %c1_79, %c0_80, %c1_81, %c0_82] : memref<1x7x4x8x4xbf16, #tpu.memory_space<vmem>>, vector<1x6x1x7x4xbf16>
    %64 = vector.shape_cast %63 : vector<1x6x1x7x4xbf16> to vector<6x7x4xbf16>
    %65 = tpu.concatenate %64, %62 in 0 : vector<6x7x4xbf16>, vector<1x7x4xbf16> -> vector<7x7x4xbf16>
    %66 = vector.shape_cast %65 : vector<7x7x4xbf16> to vector<49x4xbf16>
    %c8 = arith.constant 8 : index
    %c0_83 = arith.constant 0 : index
    %c0_84 = arith.constant 0 : index
    %67 = vector.load %arg4[%c8, %c0_83, %c0_84] : memref<9x4x128xbf16, #tpu.memory_space<vmem>>, vector<1x4x128xbf16>
    %68 = vector.shape_cast %67 : vector<1x4x128xbf16> to vector<4x128xbf16>
    %cst_85 = arith.constant dense<0.000000e+00> : vector<49x128xf32>
    %69 = tpu.matmul %66, %68, %cst_85 {dimension_numbers = #tpu.dot_dimension_numbers<[1], [0], [0], [1], [0, 0, 1, 1], [], []>} : vector<49x4xbf16>, vector<4x128xbf16>, vector<49x128xf32> -> vector<49x128xf32>
    %70 = arith.addf %60, %69 : vector<49x128xf32>
    %cst_86 = arith.constant dense<0.000000e+00> : vector<128xf32>
    %71 = vector.multi_reduction <add>, %70, %cst_86 [0] : vector<49x128xf32> to vector<128xf32>
    %72 = vector.shape_cast %71 : vector<128xf32> to vector<1x128xf32>
    %c0_87 = arith.constant 0 : index
    %c0_88 = arith.constant 0 : index
    %c0_89 = arith.constant 0 : index
    %73 = vector.load %arg5[%c0_87, %c0_88, %c0_89] : memref<1x2x128xf32, #tpu.memory_space<vmem>>, vector<1x1x128xf32>
    %74 = vector.shape_cast %73 : vector<1x1x128xf32> to vector<1x128xf32>
    %75 = vector.shape_cast %72 : vector<1x128xf32> to vector<1x1x128xf32>
    tpu.vector_store %arg5[%c0_87, %c0_88, %c0_89], %75 {strides = array<i32>} : memref<1x2x128xf32, #tpu.memory_space<vmem>>, vector<1x1x128xf32>,
    %76 = arith.mulf %70, %70 : vector<49x128xf32>
    %cst_90 = arith.constant dense<0.000000e+00> : vector<128xf32>
    %77 = vector.multi_reduction <add>, %76, %cst_90 [0] : vector<49x128xf32> to vector<128xf32>
    %78 = vector.shape_cast %77 : vector<128xf32> to vector<1x128xf32>
    %c0_91 = arith.constant 0 : index
    %c1_92 = arith.constant 1 : index
    %c0_93 = arith.constant 0 : index
    %79 = vector.load %arg5[%c0_91, %c1_92, %c0_93] : memref<1x2x128xf32, #tpu.memory_space<vmem>>, vector<1x1x128xf32>
    %80 = vector.shape_cast %79 : vector<1x1x128xf32> to vector<1x128xf32>
    %81 = vector.shape_cast %78 : vector<1x128xf32> to vector<1x1x128xf32>
    tpu.vector_store %arg5[%c0_91, %c1_92, %c0_93], %81 {strides = array<i32>} : memref<1x2x128xf32, #tpu.memory_space<vmem>>, vector<1x1x128xf32>,
    return
  }
  func.func @transform_0(%arg0: i32, %arg1: i32) -> (i32, i32, i32, i32, i32) {
    %c0_i32 = arith.constant 0 : i32
    %c0_i32_0 = arith.constant 0 : i32
    %c0_i32_1 = arith.constant 0 : i32
    %c0_i32_2 = arith.constant 0 : i32
    return %arg0, %arg1, %c0_i32, %c0_i32_0, %c0_i32_1 : i32, i32, i32, i32, i32
  }
  func.func @transform_1(%arg0: i32, %arg1: i32) -> (i32, i32, i32, i32, i32) {
    %c1_i32 = arith.constant 1 : i32
    %0 = arith.addi %arg1, %c1_i32 : i32
    %c7_i32 = arith.constant 7 : i32
    %1 = arith.muli %0, %c7_i32 : i32
    %c0_i32 = arith.constant 0 : i32
    %c0_i32_0 = arith.constant 0 : i32
    %c0_i32_1 = arith.constant 0 : i32
    %c0_i32_2 = arith.constant 0 : i32
    return %arg0, %1, %c0_i32, %c0_i32_0, %c0_i32_1 : i32, i32, i32, i32, i32
  }
  func.func @transform_2(%arg0: i32, %arg1: i32) -> (i32, i32, i32) {
    %c0_i32 = arith.constant 0 : i32
    %c0_i32_0 = arith.constant 0 : i32
    %c0_i32_1 = arith.constant 0 : i32
    %c0_i32_2 = arith.constant 0 : i32
    return %c0_i32, %c0_i32_0, %c0_i32_1 : i32, i32, i32
  }
  func.func @transform_3(%arg0: i32, %arg1: i32) -> (i32, i32, i32) {
    %c1_i32 = arith.constant 1 : i32
    %0 = arith.muli %arg0, %c1_i32 : i32
    %1 = arith.addi %0, %arg1 : i32
    %c0_i32 = arith.constant 0 : i32
    %c0_i32_0 = arith.constant 0 : i32
    %c0_i32_1 = arith.constant 0 : i32
    return %1, %c0_i32, %c0_i32_0 : i32, i32, i32
  }
}

module attributes {stable_mosaic.version = 11 : i64} {
  func.func @_apply_kernel(%arg0: i32, %arg1: i32, %arg2: memref<1x7x4x8x4xbf16, #tpu.memory_space<vmem>>, %arg3: memref<1x1x4x8x4xbf16, #tpu.memory_space<vmem>>, %arg4: memref<9x4x128xbf16, #tpu.memory_space<vmem>>, %arg5: memref<1x128xf32, #tpu.memory_space<vmem>>, %arg6: memref<1x128xf32, #tpu.memory_space<vmem>>, %arg7: memref<1x49x128xbf16, #tpu.memory_space<vmem>>) attributes {dimension_semantics = [#tpu.dimension_semantics<parallel>, #tpu.dimension_semantics<parallel>], iteration_bounds = array<i64: 2, 1>, scalar_prefetch = 0 : i64, scratch_operands = 0 : i64, tpu.core_type = #tpu.core_type<tc>, window_params = [{transform_indices = @transform_0, window_bounds = array<i64: 1, 7, 4, 8, 4>}, {transform_indices = @transform_1, window_bounds = array<i64: 1, 1, 4, 8, 4>}, {pipeline_mode = #tpu.pipeline_mode<synchronous>, transform_indices = @transform_2, window_bounds = array<i64: 9, 4, 128>}, {pipeline_mode = #tpu.pipeline_mode<synchronous>, transform_indices = @transform_3, window_bounds = array<i64: 1, 128>}, {pipeline_mode = #tpu.pipeline_mode<synchronous>, transform_indices = @transform_4, window_bounds = array<i64: 1, 128>}, {transform_indices = @transform_5, window_bounds = array<i64: 1, 49, 128>}]} {
    %c0 = arith.constant 0 : index
    %c0_0 = arith.constant 0 : index
    %c0_1 = arith.constant 0 : index
    %c0_2 = arith.constant 0 : index
    %c0_3 = arith.constant 0 : index
    %0 = vector.load %arg2[%c0, %c0_0, %c0_1, %c0_2, %c0_3] : memref<1x7x4x8x4xbf16, #tpu.memory_space<vmem>>, vector<1x7x1x7x4xbf16>
    %1 = vector.shape_cast %0 : vector<1x7x1x7x4xbf16> to vector<7x7x4xbf16>
    %2 = vector.shape_cast %1 : vector<7x7x4xbf16> to vector<49x4xbf16>
    %c0_4 = arith.constant 0 : index
    %c0_5 = arith.constant 0 : index
    %c0_6 = arith.constant 0 : index
    %3 = vector.load %arg4[%c0_4, %c0_5, %c0_6] : memref<9x4x128xbf16, #tpu.memory_space<vmem>>, vector<1x4x128xbf16>
    %4 = vector.shape_cast %3 : vector<1x4x128xbf16> to vector<4x128xbf16>
    %cst = arith.constant dense<0.000000e+00> : vector<49x128xf32>
    %5 = tpu.matmul %2, %4, %cst {dimension_numbers = #tpu.dot_dimension_numbers<[1], [0], [0], [1], [0, 0, 1, 1], [], []>} : vector<49x4xbf16>, vector<4x128xbf16>, vector<49x128xf32> -> vector<49x128xf32>
    %c0_7 = arith.constant 0 : index
    %c0_8 = arith.constant 0 : index
    %c1 = arith.constant 1 : index
    %c0_9 = arith.constant 0 : index
    %c0_10 = arith.constant 0 : index
    %6 = vector.load %arg2[%c0_7, %c0_8, %c1, %c0_9, %c0_10] : memref<1x7x4x8x4xbf16, #tpu.memory_space<vmem>>, vector<1x7x1x7x4xbf16>
    %7 = vector.shape_cast %6 : vector<1x7x1x7x4xbf16> to vector<7x7x4xbf16>
    %8 = vector.shape_cast %7 : vector<7x7x4xbf16> to vector<49x4xbf16>
    %c1_11 = arith.constant 1 : index
    %c0_12 = arith.constant 0 : index
    %c0_13 = arith.constant 0 : index
    %9 = vector.load %arg4[%c1_11, %c0_12, %c0_13] : memref<9x4x128xbf16, #tpu.memory_space<vmem>>, vector<1x4x128xbf16>
    %10 = vector.shape_cast %9 : vector<1x4x128xbf16> to vector<4x128xbf16>
    %cst_14 = arith.constant dense<0.000000e+00> : vector<49x128xf32>
    %11 = tpu.matmul %8, %10, %cst_14 {dimension_numbers = #tpu.dot_dimension_numbers<[1], [0], [0], [1], [0, 0, 1, 1], [], []>} : vector<49x4xbf16>, vector<4x128xbf16>, vector<49x128xf32> -> vector<49x128xf32>
    %12 = arith.addf %5, %11 : vector<49x128xf32>
    %c0_15 = arith.constant 0 : index
    %c0_16 = arith.constant 0 : index
    %c0_17 = arith.constant 0 : index
    %c1_18 = arith.constant 1 : index
    %c0_19 = arith.constant 0 : index
    %13 = vector.load %arg2[%c0_15, %c0_16, %c0_17, %c1_18, %c0_19] : memref<1x7x4x8x4xbf16, #tpu.memory_space<vmem>>, vector<1x7x1x7x4xbf16>
    %14 = vector.shape_cast %13 : vector<1x7x1x7x4xbf16> to vector<7x7x4xbf16>
    %15 = vector.shape_cast %14 : vector<7x7x4xbf16> to vector<49x4xbf16>
    %c2 = arith.constant 2 : index
    %c0_20 = arith.constant 0 : index
    %c0_21 = arith.constant 0 : index
    %16 = vector.load %arg4[%c2, %c0_20, %c0_21] : memref<9x4x128xbf16, #tpu.memory_space<vmem>>, vector<1x4x128xbf16>
    %17 = vector.shape_cast %16 : vector<1x4x128xbf16> to vector<4x128xbf16>
    %cst_22 = arith.constant dense<0.000000e+00> : vector<49x128xf32>
    %18 = tpu.matmul %15, %17, %cst_22 {dimension_numbers = #tpu.dot_dimension_numbers<[1], [0], [0], [1], [0, 0, 1, 1], [], []>} : vector<49x4xbf16>, vector<4x128xbf16>, vector<49x128xf32> -> vector<49x128xf32>
    %19 = arith.addf %12, %18 : vector<49x128xf32>
    %c0_23 = arith.constant 0 : index
    %c0_24 = arith.constant 0 : index
    %c2_25 = arith.constant 2 : index
    %c0_26 = arith.constant 0 : index
    %c0_27 = arith.constant 0 : index
    %20 = vector.load %arg2[%c0_23, %c0_24, %c2_25, %c0_26, %c0_27] : memref<1x7x4x8x4xbf16, #tpu.memory_space<vmem>>, vector<1x7x1x7x4xbf16>
    %21 = vector.shape_cast %20 : vector<1x7x1x7x4xbf16> to vector<7x7x4xbf16>
    %22 = vector.shape_cast %21 : vector<7x7x4xbf16> to vector<49x4xbf16>
    %c3 = arith.constant 3 : index
    %c0_28 = arith.constant 0 : index
    %c0_29 = arith.constant 0 : index
    %23 = vector.load %arg4[%c3, %c0_28, %c0_29] : memref<9x4x128xbf16, #tpu.memory_space<vmem>>, vector<1x4x128xbf16>
    %24 = vector.shape_cast %23 : vector<1x4x128xbf16> to vector<4x128xbf16>
    %cst_30 = arith.constant dense<0.000000e+00> : vector<49x128xf32>
    %25 = tpu.matmul %22, %24, %cst_30 {dimension_numbers = #tpu.dot_dimension_numbers<[1], [0], [0], [1], [0, 0, 1, 1], [], []>} : vector<49x4xbf16>, vector<4x128xbf16>, vector<49x128xf32> -> vector<49x128xf32>
    %26 = arith.addf %19, %25 : vector<49x128xf32>
    %c0_31 = arith.constant 0 : index
    %c0_32 = arith.constant 0 : index
    %c3_33 = arith.constant 3 : index
    %c0_34 = arith.constant 0 : index
    %c0_35 = arith.constant 0 : index
    %27 = vector.load %arg2[%c0_31, %c0_32, %c3_33, %c0_34, %c0_35] : memref<1x7x4x8x4xbf16, #tpu.memory_space<vmem>>, vector<1x7x1x7x4xbf16>
    %28 = vector.shape_cast %27 : vector<1x7x1x7x4xbf16> to vector<7x7x4xbf16>
    %29 = vector.shape_cast %28 : vector<7x7x4xbf16> to vector<49x4xbf16>
    %c4 = arith.constant 4 : index
    %c0_36 = arith.constant 0 : index
    %c0_37 = arith.constant 0 : index
    %30 = vector.load %arg4[%c4, %c0_36, %c0_37] : memref<9x4x128xbf16, #tpu.memory_space<vmem>>, vector<1x4x128xbf16>
    %31 = vector.shape_cast %30 : vector<1x4x128xbf16> to vector<4x128xbf16>
    %cst_38 = arith.constant dense<0.000000e+00> : vector<49x128xf32>
    %32 = tpu.matmul %29, %31, %cst_38 {dimension_numbers = #tpu.dot_dimension_numbers<[1], [0], [0], [1], [0, 0, 1, 1], [], []>} : vector<49x4xbf16>, vector<4x128xbf16>, vector<49x128xf32> -> vector<49x128xf32>
    %33 = arith.addf %26, %32 : vector<49x128xf32>
    %c0_39 = arith.constant 0 : index
    %c0_40 = arith.constant 0 : index
    %c2_41 = arith.constant 2 : index
    %c1_42 = arith.constant 1 : index
    %c0_43 = arith.constant 0 : index
    %34 = vector.load %arg2[%c0_39, %c0_40, %c2_41, %c1_42, %c0_43] : memref<1x7x4x8x4xbf16, #tpu.memory_space<vmem>>, vector<1x7x1x7x4xbf16>
    %35 = vector.shape_cast %34 : vector<1x7x1x7x4xbf16> to vector<7x7x4xbf16>
    %36 = vector.shape_cast %35 : vector<7x7x4xbf16> to vector<49x4xbf16>
    %c5 = arith.constant 5 : index
    %c0_44 = arith.constant 0 : index
    %c0_45 = arith.constant 0 : index
    %37 = vector.load %arg4[%c5, %c0_44, %c0_45] : memref<9x4x128xbf16, #tpu.memory_space<vmem>>, vector<1x4x128xbf16>
    %38 = vector.shape_cast %37 : vector<1x4x128xbf16> to vector<4x128xbf16>
    %cst_46 = arith.constant dense<0.000000e+00> : vector<49x128xf32>
    %39 = tpu.matmul %36, %38, %cst_46 {dimension_numbers = #tpu.dot_dimension_numbers<[1], [0], [0], [1], [0, 0, 1, 1], [], []>} : vector<49x4xbf16>, vector<4x128xbf16>, vector<49x128xf32> -> vector<49x128xf32>
    %40 = arith.addf %33, %39 : vector<49x128xf32>
    %c0_47 = arith.constant 0 : index
    %c0_48 = arith.constant 0 : index
    %c0_49 = arith.constant 0 : index
    %c0_50 = arith.constant 0 : index
    %c0_51 = arith.constant 0 : index
    %41 = vector.load %arg3[%c0_47, %c0_48, %c0_49, %c0_50, %c0_51] : memref<1x1x4x8x4xbf16, #tpu.memory_space<vmem>>, vector<1x1x1x7x4xbf16>
    %42 = vector.shape_cast %41 : vector<1x1x1x7x4xbf16> to vector<1x7x4xbf16>
    %c0_52 = arith.constant 0 : index
    %c1_53 = arith.constant 1 : index
    %c0_54 = arith.constant 0 : index
    %c0_55 = arith.constant 0 : index
    %c0_56 = arith.constant 0 : index
    %43 = vector.load %arg2[%c0_52, %c1_53, %c0_54, %c0_55, %c0_56] : memref<1x7x4x8x4xbf16, #tpu.memory_space<vmem>>, vector<1x6x1x7x4xbf16>
    %44 = vector.shape_cast %43 : vector<1x6x1x7x4xbf16> to vector<6x7x4xbf16>
    %45 = tpu.concatenate %44, %42 in 0 : vector<6x7x4xbf16>, vector<1x7x4xbf16> -> vector<7x7x4xbf16>
    %46 = vector.shape_cast %45 : vector<7x7x4xbf16> to vector<49x4xbf16>
    %c6 = arith.constant 6 : index
    %c0_57 = arith.constant 0 : index
    %c0_58 = arith.constant 0 : index
    %47 = vector.load %arg4[%c6, %c0_57, %c0_58] : memref<9x4x128xbf16, #tpu.memory_space<vmem>>, vector<1x4x128xbf16>
    %48 = vector.shape_cast %47 : vector<1x4x128xbf16> to vector<4x128xbf16>
    %cst_59 = arith.constant dense<0.000000e+00> : vector<49x128xf32>
    %49 = tpu.matmul %46, %48, %cst_59 {dimension_numbers = #tpu.dot_dimension_numbers<[1], [0], [0], [1], [0, 0, 1, 1], [], []>} : vector<49x4xbf16>, vector<4x128xbf16>, vector<49x128xf32> -> vector<49x128xf32>
    %50 = arith.addf %40, %49 : vector<49x128xf32>
    %c0_60 = arith.constant 0 : index
    %c0_61 = arith.constant 0 : index
    %c1_62 = arith.constant 1 : index
    %c0_63 = arith.constant 0 : index
    %c0_64 = arith.constant 0 : index
    %51 = vector.load %arg3[%c0_60, %c0_61, %c1_62, %c0_63, %c0_64] : memref<1x1x4x8x4xbf16, #tpu.memory_space<vmem>>, vector<1x1x1x7x4xbf16>
    %52 = vector.shape_cast %51 : vector<1x1x1x7x4xbf16> to vector<1x7x4xbf16>
    %c0_65 = arith.constant 0 : index
    %c1_66 = arith.constant 1 : index
    %c1_67 = arith.constant 1 : index
    %c0_68 = arith.constant 0 : index
    %c0_69 = arith.constant 0 : index
    %53 = vector.load %arg2[%c0_65, %c1_66, %c1_67, %c0_68, %c0_69] : memref<1x7x4x8x4xbf16, #tpu.memory_space<vmem>>, vector<1x6x1x7x4xbf16>
    %54 = vector.shape_cast %53 : vector<1x6x1x7x4xbf16> to vector<6x7x4xbf16>
    %55 = tpu.concatenate %54, %52 in 0 : vector<6x7x4xbf16>, vector<1x7x4xbf16> -> vector<7x7x4xbf16>
    %56 = vector.shape_cast %55 : vector<7x7x4xbf16> to vector<49x4xbf16>
    %c7 = arith.constant 7 : index
    %c0_70 = arith.constant 0 : index
    %c0_71 = arith.constant 0 : index
    %57 = vector.load %arg4[%c7, %c0_70, %c0_71] : memref<9x4x128xbf16, #tpu.memory_space<vmem>>, vector<1x4x128xbf16>
    %58 = vector.shape_cast %57 : vector<1x4x128xbf16> to vector<4x128xbf16>
    %cst_72 = arith.constant dense<0.000000e+00> : vector<49x128xf32>
    %59 = tpu.matmul %56, %58, %cst_72 {dimension_numbers = #tpu.dot_dimension_numbers<[1], [0], [0], [1], [0, 0, 1, 1], [], []>} : vector<49x4xbf16>, vector<4x128xbf16>, vector<49x128xf32> -> vector<49x128xf32>
    %60 = arith.addf %50, %59 : vector<49x128xf32>
    %c0_73 = arith.constant 0 : index
    %c0_74 = arith.constant 0 : index
    %c0_75 = arith.constant 0 : index
    %c1_76 = arith.constant 1 : index
    %c0_77 = arith.constant 0 : index
    %61 = vector.load %arg3[%c0_73, %c0_74, %c0_75, %c1_76, %c0_77] : memref<1x1x4x8x4xbf16, #tpu.memory_space<vmem>>, vector<1x1x1x7x4xbf16>
    %62 = vector.shape_cast %61 : vector<1x1x1x7x4xbf16> to vector<1x7x4xbf16>
    %c0_78 = arith.constant 0 : index
    %c1_79 = arith.constant 1 : index
    %c0_80 = arith.constant 0 : index
    %c1_81 = arith.constant 1 : index
    %c0_82 = arith.constant 0 : index
    %63 = vector.load %arg2[%c0_78, %c1_79, %c0_80, %c1_81, %c0_82] : memref<1x7x4x8x4xbf16, #tpu.memory_space<vmem>>, vector<1x6x1x7x4xbf16>
    %64 = vector.shape_cast %63 : vector<1x6x1x7x4xbf16> to vector<6x7x4xbf16>
    %65 = tpu.concatenate %64, %62 in 0 : vector<6x7x4xbf16>, vector<1x7x4xbf16> -> vector<7x7x4xbf16>
    %66 = vector.shape_cast %65 : vector<7x7x4xbf16> to vector<49x4xbf16>
    %c8 = arith.constant 8 : index
    %c0_83 = arith.constant 0 : index
    %c0_84 = arith.constant 0 : index
    %67 = vector.load %arg4[%c8, %c0_83, %c0_84] : memref<9x4x128xbf16, #tpu.memory_space<vmem>>, vector<1x4x128xbf16>
    %68 = vector.shape_cast %67 : vector<1x4x128xbf16> to vector<4x128xbf16>
    %cst_85 = arith.constant dense<0.000000e+00> : vector<49x128xf32>
    %69 = tpu.matmul %66, %68, %cst_85 {dimension_numbers = #tpu.dot_dimension_numbers<[1], [0], [0], [1], [0, 0, 1, 1], [], []>} : vector<49x4xbf16>, vector<4x128xbf16>, vector<49x128xf32> -> vector<49x128xf32>
    %70 = arith.addf %60, %69 : vector<49x128xf32>
    %c0_86 = arith.constant 0 : index
    %c0_87 = arith.constant 0 : index
    %71 = vector.load %arg5[%c0_86, %c0_87] : memref<1x128xf32, #tpu.memory_space<vmem>>, vector<1x128xf32>
    %72 = vector.broadcast %71 : vector<1x128xf32> to vector<49x128xf32>
    %73 = arith.mulf %70, %72 : vector<49x128xf32>
    %c0_88 = arith.constant 0 : index
    %c0_89 = arith.constant 0 : index
    %74 = vector.load %arg6[%c0_88, %c0_89] : memref<1x128xf32, #tpu.memory_space<vmem>>, vector<1x128xf32>
    %75 = vector.broadcast %74 : vector<1x128xf32> to vector<49x128xf32>
    %76 = arith.addf %73, %75 : vector<49x128xf32>
    %cst_90 = arith.constant 0.000000e+00 : f32
    %77 = vector.broadcast %cst_90 : f32 to vector<49x128xf32>
    %78 = arith.maximumf %76, %77 : vector<49x128xf32>
    %79 = arith.truncf %78 : vector<49x128xf32> to vector<49x128xbf16>
    %c0_91 = arith.constant 0 : index
    %c0_92 = arith.constant 0 : index
    %c0_93 = arith.constant 0 : index
    %80 = vector.load %arg7[%c0_91, %c0_92, %c0_93] : memref<1x49x128xbf16, #tpu.memory_space<vmem>>, vector<1x49x128xbf16>
    %81 = vector.shape_cast %80 : vector<1x49x128xbf16> to vector<49x128xbf16>
    %82 = vector.shape_cast %79 : vector<49x128xbf16> to vector<1x49x128xbf16>
    tpu.vector_store %arg7[%c0_91, %c0_92, %c0_93], %82 {strides = array<i32>} : memref<1x49x128xbf16, #tpu.memory_space<vmem>>, vector<1x49x128xbf16>,
    return
  }
  func.func @transform_0(%arg0: i32, %arg1: i32) -> (i32, i32, i32, i32, i32) {
    %c0_i32 = arith.constant 0 : i32
    %c0_i32_0 = arith.constant 0 : i32
    %c0_i32_1 = arith.constant 0 : i32
    %c0_i32_2 = arith.constant 0 : i32
    return %arg0, %arg1, %c0_i32, %c0_i32_0, %c0_i32_1 : i32, i32, i32, i32, i32
  }
  func.func @transform_1(%arg0: i32, %arg1: i32) -> (i32, i32, i32, i32, i32) {
    %c1_i32 = arith.constant 1 : i32
    %0 = arith.addi %arg1, %c1_i32 : i32
    %c7_i32 = arith.constant 7 : i32
    %1 = arith.muli %0, %c7_i32 : i32
    %c0_i32 = arith.constant 0 : i32
    %c0_i32_0 = arith.constant 0 : i32
    %c0_i32_1 = arith.constant 0 : i32
    %c0_i32_2 = arith.constant 0 : i32
    return %arg0, %1, %c0_i32, %c0_i32_0, %c0_i32_1 : i32, i32, i32, i32, i32
  }
  func.func @transform_2(%arg0: i32, %arg1: i32) -> (i32, i32, i32) {
    %c0_i32 = arith.constant 0 : i32
    %c0_i32_0 = arith.constant 0 : i32
    %c0_i32_1 = arith.constant 0 : i32
    %c0_i32_2 = arith.constant 0 : i32
    return %c0_i32, %c0_i32_0, %c0_i32_1 : i32, i32, i32
  }
  func.func @transform_3(%arg0: i32, %arg1: i32) -> (i32, i32) {
    %c0_i32 = arith.constant 0 : i32
    %c0_i32_0 = arith.constant 0 : i32
    %c0_i32_1 = arith.constant 0 : i32
    return %c0_i32, %c0_i32_0 : i32, i32
  }
  func.func @transform_4(%arg0: i32, %arg1: i32) -> (i32, i32) {
    %c0_i32 = arith.constant 0 : i32
    %c0_i32_0 = arith.constant 0 : i32
    %c0_i32_1 = arith.constant 0 : i32
    return %c0_i32, %c0_i32_0 : i32, i32
  }
  func.func @transform_5(%arg0: i32, %arg1: i32) -> (i32, i32, i32) {
    %c1_i32 = arith.constant 1 : i32
    %0 = arith.muli %arg0, %c1_i32 : i32
    %1 = arith.addi %0, %arg1 : i32
    %c0_i32 = arith.constant 0 : i32
    %c0_i32_0 = arith.constant 0 : i32
    %c0_i32_1 = arith.constant 0 : i32
    return %1, %c0_i32, %c0_i32_0 : i32, i32, i32
  }
}

</mosaic_0001>

<llo_original>
// kernel: _lambda_.3
$region0: #{_lambda_.3}
  #allocation0 [shape = 'u32[]', space=smem, size = 0x4, offset = 0x4, fixed_abs, tag = 'smem constant byte address 0x4 - core index']
  #allocation1 [shape = 'u32[144,128]{1,0:T(1,128)}', space=vmem, size = 0x12000, scoped, tag = 'internal scratch']
  %s0 = inlined_call_operand.vmem [shape: bf16[2,8,4,8,4], index: 0, kind: input, shape index: {}, may-alias: {0,1}]
  %s1 = inlined_call_operand.vmem [shape: bf16[2,8,4,8,4], index: 1, kind: input, shape index: {}, may-alias: {0,1}]
  %s2 = inlined_call_operand.vmem [shape: bf16[9,4,128], index: 2, kind: input, shape index: {}]
  %s3 = inlined_call_operand.vmem [shape: f32[1,128], index: 3, kind: input, shape index: {}]
  %s4 = inlined_call_operand.vmem [shape: f32[1,128], index: 4, kind: input, shape index: {}]
  %s5 = inlined_call_operand.vmem [shape: bf16[2,49,128], index: 5, kind: output, shape index: {}]
  %s6 = sld [smem:[#allocation0]]
  $region53: #{_lambda_.3} parent=0
    _
  %s8 = ssub.s32 1, %s6
  %s9 = scalar_select 0, %s8, %s6
  loop: start=0, step=1, limit=4
  $region2: #{_lambda_.3} parent=0 // loop_pre_header
    _
  $region3: #{_lambda_.3} parent=0 // loop_header
    %s11 = sphi 0, %s15
    %p12 = scmp.ge.s32.totalorder %s11, 4
    %s18 = sphi 0, %s30
    %s19 = sphi 0, %s26
    %s20 = sphi 0, %s18
    %s21 = sphi 0, %s19
    %s22 = sphi 0, %s20
    %s23 = sphi 0, %s21
    %s35 = sphi 0, %s37
    %s38 = sphi 0, %s35
    %s39 = sphi 0, %s38
    %s55 = sphi 0, %s39
    %s67 = sphi 0, %s69
    %s70 = sphi 0, %s67
    %s71 = sphi 0, %s70
    %s87 = sphi 0, %s71
    %s91 = sphi 0, %s91
    %s93 = sphi 0, %s91
    %s94 = sphi 0, %s93
    %s108 = sphi 0, %s94
    %s112 = sphi 0, %s112
    %s114 = sphi 0, %s112
    %s115 = sphi 0, %s114
    %s129 = sphi 0, %s115
    %s133 = sphi 0, %s133
    %s135 = sphi 0, %s133
    %s136 = sphi 0, %s135
    %s150 = sphi 0, %s136
    %s158 = sphi 0, %s160
    %s161 = sphi 0, %s158
    %s162 = sphi 0, %s161
    %s178 = sphi 0, %s162
  $region4: #{_lambda_.3} parent=0 // loop_header_branch
    %14 = sbr.rel (%p12) target = $region8
  $region5: #{_lambda_.3} parent=0 // loop_body
    %s16 = ssub.s32 %s11, 1
    %s17 = ssub.s32 %s11, 2
    %s24 = sadd.s32 1, %s19
    %p25 = scmp.ge.s32.totalorder %s24, 1
    %s26 = scalar_select %p25, 0, %s24
    %s27 = sadd.s32 1, %s18
    %s28 = scalar_select %p25, %s27, %s18
    %p29 = scmp.ge.s32.totalorder %s28, 2
    %s30 = scalar_select %p29, 0, %s28
    %s31 = ssub.s32 %s18, %s30
    %s32 = ssub.s32 %s19, %s26
    %s33 = sor.u32 %s31, %s32
    %p34 = scmp.eq.s32.totalorder %s33, 0
    %s36 = sadd.s32 %s35, 1
    %s37 = scalar_select %p34, %s35, %s36
    %p40 = pneg %p34
    %p41 = scmp.eq.s32.totalorder %s11, 1
    %p42 = por %p40, %p41
    %p43 = scmp.ne.s32.totalorder %s35, %s38
    %p44 = scmp.eq.s32.totalorder %s11, 0
    %p45 = por %p43, %p44
    %p46 = scmp.ne.s32.totalorder %s35, %s38
    %p47 = scmp.eq.s32.totalorder %s16, 1
    %p48 = por %p46, %p47
    %p49 = scmp.ne.s32.totalorder %s38, %s39
    %p50 = scmp.eq.s32.totalorder %s16, 0
    %p51 = por %p49, %p50
    %p52 = scmp.ne.s32.totalorder %s38, %s39
    %p53 = scmp.eq.s32.totalorder %s17, 1
    %p54 = por %p52, %p53
    %p56 = scmp.ne.s32.totalorder %s39, %s55
    %p57 = scmp.eq.s32.totalorder %s17, 0
    %p58 = por %p56, %p57
    %s59 = sadd.s32 %s19, 1
    %s60 = smul.u32 %s59, 7
    %s61 = sadd.s32 %s26, 1
    %s62 = smul.u32 %s61, 7
    %s63 = ssub.s32 %s18, %s30
    %s64 = ssub.s32 %s60, %s62
    %s65 = sor.u32 %s63, %s64
    %p66 = scmp.eq.s32.totalorder %s65, 0
    %s68 = sadd.s32 %s67, 1
    %s69 = scalar_select %p66, %s67, %s68
    %p72 = pneg %p66
    %p73 = scmp.eq.s32.totalorder %s11, 1
    %p74 = por %p72, %p73
    %p75 = scmp.ne.s32.totalorder %s67, %s70
    %p76 = scmp.eq.s32.totalorder %s11, 0
    %p77 = por %p75, %p76
    %p78 = scmp.ne.s32.totalorder %s67, %s70
    %p79 = scmp.eq.s32.totalorder %s16, 1
    %p80 = por %p78, %p79
    %p81 = scmp.ne.s32.totalorder %s70, %s71
    %p82 = scmp.eq.s32.totalorder %s16, 0
    %p83 = por %p81, %p82
    %p84 = scmp.ne.s32.totalorder %s70, %s71
    %p85 = scmp.eq.s32.totalorder %s17, 1
    %p86 = por %p84, %p85
    %p88 = scmp.ne.s32.totalorder %s71, %s87
    %p89 = scmp.eq.s32.totalorder %s17, 0
    %p90 = por %p88, %p89
    %s92 = sadd.s32 %s91, 1
    %p95 = scmp.eq.s32.totalorder %s11, 1
    %p96 = scmp.ne.s32.totalorder %s91, %s93
    %p97 = scmp.eq.s32.totalorder %s11, 0
    %p98 = por %p96, %p97
    %p99 = scmp.ne.s32.totalorder %s91, %s93
    %p100 = scmp.eq.s32.totalorder %s16, 1
    %p101 = por %p99, %p100
    %p102 = scmp.ne.s32.totalorder %s93, %s94
    %p103 = scmp.eq.s32.totalorder %s16, 0
    %p104 = por %p102, %p103
    %p105 = scmp.ne.s32.totalorder %s93, %s94
    %p106 = scmp.eq.s32.totalorder %s17, 1
    %p107 = por %p105, %p106
    %p109 = scmp.ne.s32.totalorder %s94, %s108
    %p110 = scmp.eq.s32.totalorder %s17, 0
    %p111 = por %p109, %p110
    %s113 = sadd.s32 %s112, 1
    %p116 = scmp.eq.s32.totalorder %s11, 1
    %p117 = scmp.ne.s32.totalorder %s112, %s114
    %p118 = scmp.eq.s32.totalorder %s11, 0
    %p119 = por %p117, %p118
    %p120 = scmp.ne.s32.totalorder %s112, %s114
    %p121 = scmp.eq.s32.totalorder %s16, 1
    %p122 = por %p120, %p121
    %p123 = scmp.ne.s32.totalorder %s114, %s115
    %p124 = scmp.eq.s32.totalorder %s16, 0
    %p125 = por %p123, %p124
    %p126 = scmp.ne.s32.totalorder %s114, %s115
    %p127 = scmp.eq.s32.totalorder %s17, 1
    %p128 = por %p126, %p127
    %p130 = scmp.ne.s32.totalorder %s115, %s129
    %p131 = scmp.eq.s32.totalorder %s17, 0
    %p132 = por %p130, %p131
    %s134 = sadd.s32 %s133, 1
    %p137 = scmp.eq.s32.totalorder %s11, 1
    %p138 = scmp.ne.s32.totalorder %s133, %s135
    %p139 = scmp.eq.s32.totalorder %s11, 0
    %p140 = por %p138, %p139
    %p141 = scmp.ne.s32.totalorder %s133, %s135
    %p142 = scmp.eq.s32.totalorder %s16, 1
    %p143 = por %p141, %p142
    %p144 = scmp.ne.s32.totalorder %s135, %s136
    %p145 = scmp.eq.s32.totalorder %s16, 0
    %p146 = por %p144, %p145
    %p147 = scmp.ne.s32.totalorder %s135, %s136
    %p148 = scmp.eq.s32.totalorder %s17, 1
    %p149 = por %p147, %p148
    %p151 = scmp.ne.s32.totalorder %s136, %s150
    %p152 = scmp.eq.s32.totalorder %s17, 0
    %p153 = por %p151, %p152
    %s154 = sadd.s32 %s18, %s19
    %s155 = sadd.s32 %s30, %s26
    %s156 = ssub.s32 %s154, %s155
    %p157 = scmp.eq.s32.totalorder %s156, 0
    %s159 = sadd.s32 %s158, 1
    %s160 = scalar_select %p157, %s158, %s159
    %p163 = pneg %p157
    %p164 = scmp.eq.s32.totalorder %s11, 1
    %p165 = por %p163, %p164
    %p166 = scmp.ne.s32.totalorder %s158, %s161
    %p167 = scmp.eq.s32.totalorder %s11, 0
    %p168 = por %p166, %p167
    %p169 = scmp.ne.s32.totalorder %s158, %s161
    %p170 = scmp.eq.s32.totalorder %s16, 1
    %p171 = por %p169, %p170
    %p172 = scmp.ne.s32.totalorder %s161, %s162
    %p173 = scmp.eq.s32.totalorder %s16, 0
    %p174 = por %p172, %p173
    %p175 = scmp.ne.s32.totalorder %s161, %s162
    %p176 = scmp.eq.s32.totalorder %s17, 1
    %p177 = por %p175, %p176
    %p179 = scmp.ne.s32.totalorder %s162, %s178
    %p180 = scmp.eq.s32.totalorder %s17, 0
    %p181 = por %p179, %p180
    %p182 = scmp.le.s32.totalorder 1, %s11
    %p183 = scmp.lt.s32.totalorder %s11, 3
    %p184 = pnand %p182, %p183
    %p185 = pneg %p184
    // Predicated region
    $region9: #{_lambda_.3} parent=5 // pred_check
      _
    $region10: #{_lambda_.3} parent=5 // pred_check_branch
      %187 = sbr.rel (%p184) target = $region12
    $region11: #{_lambda_.3} parent=5 // pred_region
      %s188 = ssub.s32 %s11, 1
      // Predicated region
      $region13: #{_lambda_.3} parent=11 // pred_check
        %p189 = pneg %p104
      $region14: #{_lambda_.3} parent=11 // pred_check_branch
        %191 = sbr.rel (%p189) target = $region16
      $region15: #{_lambda_.3} parent=11 // pred_region
        _
      $region16: #{_lambda_.3} parent=11 // pred_fallthru
        _
      // Predicated region
      $region17: #{_lambda_.3} parent=11 // pred_check
        %p192 = pneg %p125
      $region18: #{_lambda_.3} parent=11 // pred_check_branch
        %194 = sbr.rel (%p192) target = $region20
      $region19: #{_lambda_.3} parent=11 // pred_region
        _
      $region20: #{_lambda_.3} parent=11 // pred_fallthru
        _
      // Predicated region
      $region21: #{_lambda_.3} parent=11 // pred_check
        %p195 = pneg %p146
      $region22: #{_lambda_.3} parent=11 // pred_check_branch
        %197 = sbr.rel (%p195) target = $region24
      $region23: #{_lambda_.3} parent=11 // pred_region
        _
      $region24: #{_lambda_.3} parent=11 // pred_fallthru
        _
    $region12: #{_lambda_.3} parent=5 // pred_fallthru
      _
    %p198 = scmp.lt.s32.totalorder %s11, 2
    // Predicated region
    $region25: #{_lambda_.3} parent=5 // pred_check
      %p199 = pneg %p198
    $region26: #{_lambda_.3} parent=5 // pred_check_branch
      %201 = sbr.rel (%p199) target = $region28
    $region27: #{_lambda_.3} parent=5 // pred_region
      // Predicated region
      $region29: #{_lambda_.3} parent=27 // pred_check
        %p202 = pneg %p45
      $region30: #{_lambda_.3} parent=27 // pred_check_branch
        %204 = sbr.rel (%p202) target = $region32
      $region31: #{_lambda_.3} parent=27 // pred_region
        %s205 = smul.u32 7, %s19
        %s206 = ssub.s32 8, %s205
        %p207 = scmp.lt.s32.totalorder %s206, 7
        %s208 = scalar_select %p207, %s206, 7
        %s209 = smul.u32 64, %s208
        %s210 = smul.u32 %s209, 4
        %p211 = scmp.lt.s32.totalorder %s18, 1
        %s212 = scalar_select %p211, %s18, 1
        %p213 = scmp.lt.s32.totalorder %s205, 7
        %s214 = scalar_select %p213, %s205, 7
        %s215 = smul.addr %s214, 4
        %s216 = smul.addr %s212, 32
        %s217 = sadd.s32 %s215, %s216
        %s218 = smul.addr %s217, 4
        %s219 = scalar_lea.vmem %s0, %s218
        %s220 = smul.u32 7, %s19
        %s221 = ssub.s32 8, %s220
        %p222 = scmp.lt.s32.totalorder %s221, 7
        %s223 = scalar_select %p222, %s221, 7
        %s224 = smul.u32 64, %s223
        %s225 = smul.u32 %s224, 4
      $region32: #{_lambda_.3} parent=27 // pred_fallthru
        _
      // Predicated region
      $region33: #{_lambda_.3} parent=27 // pred_check
        %p226 = pneg %p77
      $region34: #{_lambda_.3} parent=27 // pred_check_branch
        %228 = sbr.rel (%p226) target = $region36
      $region35: #{_lambda_.3} parent=27 // pred_region
        %s229 = sadd.s32 %s19, 1
        %s230 = smul.u32 %s229, 7
        %p231 = scmp.lt.s32.totalorder %s18, 1
        %s232 = scalar_select %p231, %s18, 1
        %p233 = scmp.lt.s32.totalorder %s230, 7
        %s234 = scalar_select %p233, %s230, 7
        %s235 = smul.addr %s234, 4
        %s236 = smul.addr %s232, 32
        %s237 = sadd.s32 %s235, %s236
        %s238 = smul.addr %s237, 4
        %s239 = scalar_lea.vmem %s1, %s238
        %s240 = sadd.s32 %s19, 1
        %s241 = smul.u32 %s240, 7
      $region36: #{_lambda_.3} parent=27 // pred_fallthru
        _
    $region28: #{_lambda_.3} parent=5 // pred_fallthru
      _
    %p242 = scmp.le.s32.totalorder 1, %s11
    %p243 = scmp.lt.s32.totalorder %s11, 3
    %p244 = pnand %p242, %p243
    %p245 = pneg %p244
    // Predicated region
    $region37: #{_lambda_.3} parent=5 // pred_check
      _
    $region38: #{_lambda_.3} parent=5 // pred_check_branch
      %247 = sbr.rel (%p244) target = $region40
    $region39: #{_lambda_.3} parent=5 // pred_region
      %s248 = ssub.s32 %s11, 1
      %s249 = smul.u32 7, %s21
      %s250 = ssub.s32 8, %s249
      %p251 = scmp.lt.s32.totalorder %s250, 7
      %s252 = scalar_select %p251, %s250, 7
      %s253 = smul.u32 64, %s252
      %s254 = smul.u32 %s253, 4
      %p255 = scmp.lt.s32.totalorder %s20, 1
      %s256 = scalar_select %p255, %s20, 1
      %p257 = scmp.lt.s32.totalorder %s249, 7
      %s258 = scalar_select %p257, %s249, 7
      %s259 = smul.addr %s258, 4
      %s260 = smul.addr %s256, 32
      %s261 = sadd.s32 %s259, %s260
      %s262 = smul.addr %s261, 4
      %s263 = scalar_lea.vmem %s0, %s262
      %p264 = pneg %p51
      %p265 = pneg %p48
      %s266 = sadd.s32 %s21, 1
      %s267 = smul.u32 %s266, 7
      %p268 = scmp.lt.s32.totalorder %s20, 1
      %s269 = scalar_select %p268, %s20, 1
      %p270 = scmp.lt.s32.totalorder %s267, 7
      %s271 = scalar_select %p270, %s267, 7
      %s272 = smul.addr %s271, 4
      %s273 = smul.addr %s269, 32
      %s274 = sadd.s32 %s272, %s273
      %s275 = smul.addr %s274, 4
      %s276 = scalar_lea.vmem %s1, %s275
      %p277 = pneg %p83
      %p278 = pneg %p80
      %p279 = pneg %p104
      %p280 = pneg %p101
      %p281 = pneg %p125
      %p282 = pneg %p122
      %p283 = pneg %p146
      %p284 = pneg %p143
      %p285 = pneg %p174
      %p286 = pneg %p171
      %s287 = sadd.s32 %s20, %s21
      %p288 = scmp.lt.s32.totalorder %s287, 1
      %s289 = scalar_select %p288, %s287, 1
      %s290 = smul.addr %s289, 7
      %s291 = smul.addr %s290, 4
      %s292 = scalar_lea.vmem %s5, %s291
      %s293 = smul.u32 7, %s21
      %s294 = ssub.s32 8, %s293
      %p295 = scmp.lt.s32.totalorder %s294, 7
      %s296 = scalar_select %p295, %s294, 7
      %s297 = smul.u32 64, %s296
      %s298 = smul.u32 %s297, 4
      %p299 = scmp.lt.s32.totalorder %s20, 1
      %s300 = scalar_select %p299, %s20, 1
      %p301 = scmp.lt.s32.totalorder %s293, 7
      %s302 = scalar_select %p301, %s293, 7
      %s303 = smul.addr %s302, 4
      %s304 = smul.addr %s300, 32
      %s305 = sadd.s32 %s303, %s304
      %s306 = smul.addr %s305, 4
      %s307 = scalar_lea.vmem %s0, %s306
      %s308 = smul.u32 7, %s21
      %s309 = ssub.s32 8, %s308
      %p310 = scmp.lt.s32.totalorder %s309, 7
      %s311 = scalar_select %p310, %s309, 7
      %s312 = smul.u32 64, %s311
      %s313 = smul.u32 %s312, 4
      %s314 = sadd.s32 %s21, 1
      %s315 = smul.u32 %s314, 7
      %p316 = scmp.lt.s32.totalorder %s20, 1
      %s317 = scalar_select %p316, %s20, 1
      %p318 = scmp.lt.s32.totalorder %s315, 7
      %s319 = scalar_select %p318, %s315, 7
      %s320 = smul.addr %s319, 4
      %s321 = smul.addr %s317, 32
      %s322 = sadd.s32 %s320, %s321
      %s323 = smul.addr %s322, 4
      %s324 = scalar_lea.vmem %s1, %s323
      %s325 = sadd.s32 %s21, 1
      %s326 = smul.u32 %s325, 7
      %s327 = sadd.s32 %s20, %s21
      %p328 = scmp.lt.s32.totalorder %s327, 1
      %s329 = scalar_select %p328, %s327, 1
      %s330 = smul.addr %s329, 7
      %s331 = smul.addr %s330, 4
      %s332 = scalar_lea.vmem %s5, %s331
      %s333 = sadd.s32 %s20, %s21
      %v335 = vld [vmem:[%s307] sm:$0xf]
      %v336 = vld [vmem:[%s307 + $0x10] sm:$0xf]
      %v337 = vld [vmem:[%s307 + $0x20] sm:$0xf]
      %v338 = vld [vmem:[%s307 + $0x30] sm:$0xf]
      %v339 = vld [vmem:[%s307 + $0x40] sm:$0xf]
      %v340 = vld [vmem:[%s307 + $0x50] sm:$0xf]
      %v341 = vld [vmem:[%s307 + $0x60] sm:$0xf]
      %v350 = vunpack.c.l.s4 1966171168
      %v351 = vunpack.c.0.s8 %v350
      %v352 = vlaneseq
      %v353 = vshrl.u32 %v352, 7
      %v354 = vsub.s32 %v351, %v353
      %v355 = vrot.slane %v335, %v354
      %v356 = vcombine.high %v355, %v355
      %v358 = vunpack.c.l.s4 1966171168
      %v359 = vunpack.c.0.s8 %v358
      %v360 = vlaneseq
      %v361 = vshrl.u32 %v360, 7
      %v362 = vsub.s32 %v359, %v361
      %v363 = vrot.slane %v355, %v362
      %v365 = vunpack.c.l.s4 1966171168
      %v366 = vunpack.c.0.s8 %v365
      %v367 = vlaneseq
      %v368 = vshrl.u32 %v367, 7
      %v369 = vsub.s32 %v366, %v368
      %v370 = vrot.slane %v356, %v369
      %v371 = vcombine.high %v363, %v363
      %v372 = vcombine.high %v370, %v370
      %v374 = vunpack.c.l.s4 1966171168
      %v375 = vunpack.c.0.s8 %v374
      %v376 = vlaneseq
      %v377 = vshrl.u32 %v376, 7
      %v378 = vsub.s32 %v375, %v377
      %v379 = vrot.slane %v336, %v378
      %v380 = vcombine.high %v379, %v379
      %v382 = vunpack.c.l.s4 1966171168
      %v383 = vunpack.c.0.s8 %v382
      %v384 = vlaneseq
      %v385 = vshrl.u32 %v384, 7
      %v386 = vsub.s32 %v383, %v385
      %v387 = vrot.slane %v379, %v386
      %v389 = vunpack.c.l.s4 1966171168
      %v390 = vunpack.c.0.s8 %v389
      %v391 = vlaneseq
      %v392 = vshrl.u32 %v391, 7
      %v393 = vsub.s32 %v390, %v392
      %v394 = vrot.slane %v380, %v393
      %v395 = vcombine.high %v387, %v387
      %v396 = vcombine.high %v394, %v394
      %v398 = vunpack.c.l.s4 1966171168
      %v399 = vunpack.c.0.s8 %v398
      %v400 = vlaneseq
      %v401 = vshrl.u32 %v400, 7
      %v402 = vsub.s32 %v399, %v401
      %v403 = vrot.slane %v337, %v402
      %v404 = vcombine.high %v403, %v403
      %v406 = vunpack.c.l.s4 1966171168
      %v407 = vunpack.c.0.s8 %v406
      %v408 = vlaneseq
      %v409 = vshrl.u32 %v408, 7
      %v410 = vsub.s32 %v407, %v409
      %v411 = vrot.slane %v403, %v410
      %v413 = vunpack.c.l.s4 1966171168
      %v414 = vunpack.c.0.s8 %v413
      %v415 = vlaneseq
      %v416 = vshrl.u32 %v415, 7
      %v417 = vsub.s32 %v414, %v416
      %v418 = vrot.slane %v404, %v417
      %v419 = vcombine.high %v411, %v411
      %v420 = vcombine.high %v418, %v418
      %v422 = vunpack.c.l.s4 1966171168
      %v423 = vunpack.c.0.s8 %v422
      %v424 = vlaneseq
      %v425 = vshrl.u32 %v424, 7
      %v426 = vsub.s32 %v423, %v425
      %v427 = vrot.slane %v338, %v426
      %v428 = vcombine.high %v427, %v427
      %v430 = vunpack.c.l.s4 1966171168
      %v431 = vunpack.c.0.s8 %v430
      %v432 = vlaneseq
      %v433 = vshrl.u32 %v432, 7
      %v434 = vsub.s32 %v431, %v433
      %v435 = vrot.slane %v427, %v434
      %v437 = vunpack.c.l.s4 1966171168
      %v438 = vunpack.c.0.s8 %v437
      %v439 = vlaneseq
      %v440 = vshrl.u32 %v439, 7
      %v441 = vsub.s32 %v438, %v440
      %v442 = vrot.slane %v428, %v441
      %v443 = vcombine.high %v435, %v435
      %v444 = vcombine.high %v442, %v442
      %v446 = vunpack.c.l.s4 1966171168
      %v447 = vunpack.c.0.s8 %v446
      %v448 = vlaneseq
      %v449 = vshrl.u32 %v448, 7
      %v450 = vsub.s32 %v447, %v449
      %v451 = vrot.slane %v339, %v450
      %v452 = vcombine.high %v451, %v451
      %v454 = vunpack.c.l.s4 1966171168
      %v455 = vunpack.c.0.s8 %v454
      %v456 = vlaneseq
      %v457 = vshrl.u32 %v456, 7
      %v458 = vsub.s32 %v455, %v457
      %v459 = vrot.slane %v451, %v458
      %v461 = vunpack.c.l.s4 1966171168
      %v462 = vunpack.c.0.s8 %v461
      %v463 = vlaneseq
      %v464 = vshrl.u32 %v463, 7
      %v465 = vsub.s32 %v462, %v464
      %v466 = vrot.slane %v452, %v465
      %v467 = vcombine.high %v459, %v459
      %v468 = vcombine.high %v466, %v466
      %v470 = vunpack.c.l.s4 1966171168
      %v471 = vunpack.c.0.s8 %v470
      %v472 = vlaneseq
      %v473 = vshrl.u32 %v472, 7
      %v474 = vsub.s32 %v471, %v473
      %v475 = vrot.slane %v340, %v474
      %v476 = vcombine.high %v475, %v475
      %v478 = vunpack.c.l.s4 1966171168
      %v479 = vunpack.c.0.s8 %v478
      %v480 = vlaneseq
      %v481 = vshrl.u32 %v480, 7
      %v482 = vsub.s32 %v479, %v481
      %v483 = vrot.slane %v475, %v482
      %v485 = vunpack.c.l.s4 1966171168
      %v486 = vunpack.c.0.s8 %v485
      %v487 = vlaneseq
      %v488 = vshrl.u32 %v487, 7
      %v489 = vsub.s32 %v486, %v488
      %v490 = vrot.slane %v476, %v489
      %v491 = vcombine.high %v483, %v483
      %v492 = vcombine.high %v490, %v490
      %v494 = vunpack.c.l.s4 1966171168
      %v495 = vunpack.c.0.s8 %v494
      %v496 = vlaneseq
      %v497 = vshrl.u32 %v496, 7
      %v498 = vsub.s32 %v495, %v497
      %v499 = vrot.slane %v341, %v498
      %v500 = vcombine.high %v499, %v499
      %v502 = vunpack.c.l.s4 1966171168
      %v503 = vunpack.c.0.s8 %v502
      %v504 = vlaneseq
      %v505 = vshrl.u32 %v504, 7
      %v506 = vsub.s32 %v503, %v505
      %v507 = vrot.slane %v499, %v506
      %v509 = vunpack.c.l.s4 1966171168
      %v510 = vunpack.c.0.s8 %v509
      %v511 = vlaneseq
      %v512 = vshrl.u32 %v511, 7
      %v513 = vsub.s32 %v510, %v512
      %v514 = vrot.slane %v500, %v513
      %v515 = vcombine.high %v507, %v507
      %v516 = vcombine.high %v514, %v514
      %v517 = vunpack.i.l.s16 %v363
      %v518 = vunpack.i.h.s16 %v363
      %v519 = vunpack.i.l.s16 %v370
      %v520 = vunpack.i.h.s16 %v370
      %v521 = vunpack.i.l.s16 %v371
      %v522 = vunpack.i.h.s16 %v371
      %v523 = vunpack.i.l.s16 %v372
      %v524 = vunpack.i.l.s16 %v387
      %v525 = vunpack.i.h.s16 %v387
      %v526 = vunpack.i.l.s16 %v394
      %v527 = vunpack.i.h.s16 %v394
      %v528 = vunpack.i.l.s16 %v395
      %v529 = vunpack.i.h.s16 %v395
      %v530 = vunpack.i.l.s16 %v396
      %v531 = vunpack.i.l.s16 %v411
      %v532 = vunpack.i.h.s16 %v411
      %v533 = vunpack.i.l.s16 %v418
      %v534 = vunpack.i.h.s16 %v418
      %v535 = vunpack.i.l.s16 %v419
      %v536 = vunpack.i.h.s16 %v419
      %v537 = vunpack.i.l.s16 %v420
      %v538 = vunpack.i.l.s16 %v435
      %v539 = vunpack.i.h.s16 %v435
      %v540 = vunpack.i.l.s16 %v442
      %v541 = vunpack.i.h.s16 %v442
      %v542 = vunpack.i.l.s16 %v443
      %v543 = vunpack.i.h.s16 %v443
      %v544 = vunpack.i.l.s16 %v444
      %v545 = vunpack.i.l.s16 %v459
      %v546 = vunpack.i.h.s16 %v459
      %v547 = vunpack.i.l.s16 %v466
      %v548 = vunpack.i.h.s16 %v466
      %v549 = vunpack.i.l.s16 %v467
      %v550 = vunpack.i.h.s16 %v467
      %v551 = vunpack.i.l.s16 %v468
      %v552 = vunpack.i.l.s16 %v483
      %v553 = vunpack.i.h.s16 %v483
      %v554 = vunpack.i.l.s16 %v490
      %v555 = vunpack.i.h.s16 %v490
      %v556 = vunpack.i.l.s16 %v491
      %v557 = vunpack.i.h.s16 %v491
      %v558 = vunpack.i.l.s16 %v492
      %v559 = vunpack.i.l.s16 %v507
      %v560 = vunpack.i.h.s16 %v507
      %v561 = vunpack.i.l.s16 %v514
      %v562 = vunpack.i.h.s16 %v514
      %v563 = vunpack.i.l.s16 %v515
      %v564 = vunpack.i.h.s16 %v515
      %v565 = vunpack.i.l.s16 %v516
      %v566 = vld [vmem:[%s2] sm:$0x3]
      %s567 = scalar_lea.vmem %s307, 4
      %v568 = vld [vmem:[%s567] sm:$0xf]
      %v569 = vld [vmem:[%s567 + $0x10] sm:$0xf]
      %v570 = vld [vmem:[%s567 + $0x20] sm:$0xf]
      %v571 = vld [vmem:[%s567 + $0x30] sm:$0xf]
      %v572 = vld [vmem:[%s567 + $0x40] sm:$0xf]
      %v573 = vld [vmem:[%s567 + $0x50] sm:$0xf]
      %v574 = vld [vmem:[%s567 + $0x60] sm:$0xf]
      %v583 = vunpack.c.l.s4 1966171168
      %v584 = vunpack.c.0.s8 %v583
      %v585 = vlaneseq
      %v586 = vshrl.u32 %v585, 7
      %v587 = vsub.s32 %v584, %v586
      %v588 = vrot.slane %v568, %v587
      %v589 = vcombine.high %v588, %v588
      %v591 = vunpack.c.l.s4 1966171168
      %v592 = vunpack.c.0.s8 %v591
      %v593 = vlaneseq
      %v594 = vshrl.u32 %v593, 7
      %v595 = vsub.s32 %v592, %v594
      %v596 = vrot.slane %v588, %v595
      %v598 = vunpack.c.l.s4 1966171168
      %v599 = vunpack.c.0.s8 %v598
      %v600 = vlaneseq
      %v601 = vshrl.u32 %v600, 7
      %v602 = vsub.s32 %v599, %v601
      %v603 = vrot.slane %v589, %v602
      %v604 = vcombine.high %v596, %v596
      %v605 = vcombine.high %v603, %v603
      %v607 = vunpack.c.l.s4 1966171168
      %v608 = vunpack.c.0.s8 %v607
      %v609 = vlaneseq
      %v610 = vshrl.u32 %v609, 7
      %v611 = vsub.s32 %v608, %v610
      %v612 = vrot.slane %v569, %v611
      %v613 = vcombine.high %v612, %v612
      %v615 = vunpack.c.l.s4 1966171168
      %v616 = vunpack.c.0.s8 %v615
      %v617 = vlaneseq
      %v618 = vshrl.u32 %v617, 7
      %v619 = vsub.s32 %v616, %v618
      %v620 = vrot.slane %v612, %v619
      %v622 = vunpack.c.l.s4 1966171168
      %v623 = vunpack.c.0.s8 %v622
      %v624 = vlaneseq
      %v625 = vshrl.u32 %v624, 7
      %v626 = vsub.s32 %v623, %v625
      %v627 = vrot.slane %v613, %v626
      %v628 = vcombine.high %v620, %v620
      %v629 = vcombine.high %v627, %v627
      %v631 = vunpack.c.l.s4 1966171168
      %v632 = vunpack.c.0.s8 %v631
      %v633 = vlaneseq
      %v634 = vshrl.u32 %v633, 7
      %v635 = vsub.s32 %v632, %v634
      %v636 = vrot.slane %v570, %v635
      %v637 = vcombine.high %v636, %v636
      %v639 = vunpack.c.l.s4 1966171168
      %v640 = vunpack.c.0.s8 %v639
      %v641 = vlaneseq
      %v642 = vshrl.u32 %v641, 7
      %v643 = vsub.s32 %v640, %v642
      %v644 = vrot.slane %v636, %v643
      %v646 = vunpack.c.l.s4 1966171168
      %v647 = vunpack.c.0.s8 %v646
      %v648 = vlaneseq
      %v649 = vshrl.u32 %v648, 7
      %v650 = vsub.s32 %v647, %v649
      %v651 = vrot.slane %v637, %v650
      %v652 = vcombine.high %v644, %v644
      %v653 = vcombine.high %v651, %v651
      %v655 = vunpack.c.l.s4 1966171168
      %v656 = vunpack.c.0.s8 %v655
      %v657 = vlaneseq
      %v658 = vshrl.u32 %v657, 7
      %v659 = vsub.s32 %v656, %v658
      %v660 = vrot.slane %v571, %v659
      %v661 = vcombine.high %v660, %v660
      %v663 = vunpack.c.l.s4 1966171168
      %v664 = vunpack.c.0.s8 %v663
      %v665 = vlaneseq
      %v666 = vshrl.u32 %v665, 7
      %v667 = vsub.s32 %v664, %v666
      %v668 = vrot.slane %v660, %v667
      %v670 = vunpack.c.l.s4 1966171168
      %v671 = vunpack.c.0.s8 %v670
      %v672 = vlaneseq
      %v673 = vshrl.u32 %v672, 7
      %v674 = vsub.s32 %v671, %v673
      %v675 = vrot.slane %v661, %v674
      %v676 = vcombine.high %v668, %v668
      %v677 = vcombine.high %v675, %v675
      %v679 = vunpack.c.l.s4 1966171168
      %v680 = vunpack.c.0.s8 %v679
      %v681 = vlaneseq
      %v682 = vshrl.u32 %v681, 7
      %v683 = vsub.s32 %v680, %v682
      %v684 = vrot.slane %v572, %v683
      %v685 = vcombine.high %v684, %v684
      %v687 = vunpack.c.l.s4 1966171168
      %v688 = vunpack.c.0.s8 %v687
      %v689 = vlaneseq
      %v690 = vshrl.u32 %v689, 7
      %v691 = vsub.s32 %v688, %v690
      %v692 = vrot.slane %v684, %v691
      %v694 = vunpack.c.l.s4 1966171168
      %v695 = vunpack.c.0.s8 %v694
      %v696 = vlaneseq
      %v697 = vshrl.u32 %v696, 7
      %v698 = vsub.s32 %v695, %v697
      %v699 = vrot.slane %v685, %v698
      %v700 = vcombine.high %v692, %v692
      %v701 = vcombine.high %v699, %v699
      %v703 = vunpack.c.l.s4 1966171168
      %v704 = vunpack.c.0.s8 %v703
      %v705 = vlaneseq
      %v706 = vshrl.u32 %v705, 7
      %v707 = vsub.s32 %v704, %v706
      %v708 = vrot.slane %v573, %v707
      %v709 = vcombine.high %v708, %v708
      %v711 = vunpack.c.l.s4 1966171168
      %v712 = vunpack.c.0.s8 %v711
      %v713 = vlaneseq
      %v714 = vshrl.u32 %v713, 7
      %v715 = vsub.s32 %v712, %v714
      %v716 = vrot.slane %v708, %v715
      %v718 = vunpack.c.l.s4 1966171168
      %v719 = vunpack.c.0.s8 %v718
      %v720 = vlaneseq
      %v721 = vshrl.u32 %v720, 7
      %v722 = vsub.s32 %v719, %v721
      %v723 = vrot.slane %v709, %v722
      %v724 = vcombine.high %v716, %v716
      %v725 = vcombine.high %v723, %v723
      %v727 = vunpack.c.l.s4 1966171168
      %v728 = vunpack.c.0.s8 %v727
      %v729 = vlaneseq
      %v730 = vshrl.u32 %v729, 7
      %v731 = vsub.s32 %v728, %v730
      %v732 = vrot.slane %v574, %v731
      %v733 = vcombine.high %v732, %v732
      %v735 = vunpack.c.l.s4 1966171168
      %v736 = vunpack.c.0.s8 %v735
      %v737 = vlaneseq
      %v738 = vshrl.u32 %v737, 7
      %v739 = vsub.s32 %v736, %v738
      %v740 = vrot.slane %v732, %v739
      %v742 = vunpack.c.l.s4 1966171168
      %v743 = vunpack.c.0.s8 %v742
      %v744 = vlaneseq
      %v745 = vshrl.u32 %v744, 7
      %v746 = vsub.s32 %v743, %v745
      %v747 = vrot.slane %v733, %v746
      %v748 = vcombine.high %v740, %v740
      %v749 = vcombine.high %v747, %v747
      %v750 = vunpack.i.l.s16 %v596
      %v751 = vunpack.i.h.s16 %v596
      %v752 = vunpack.i.l.s16 %v603
      %v753 = vunpack.i.h.s16 %v603
      %v754 = vunpack.i.l.s16 %v604
      %v755 = vunpack.i.h.s16 %v604
      %v756 = vunpack.i.l.s16 %v605
      %v757 = vunpack.i.l.s16 %v620
      %v758 = vunpack.i.h.s16 %v620
      %v759 = vunpack.i.l.s16 %v627
      %v760 = vunpack.i.h.s16 %v627
      %v761 = vunpack.i.l.s16 %v628
      %v762 = vunpack.i.h.s16 %v628
      %v763 = vunpack.i.l.s16 %v629
      %v764 = vunpack.i.l.s16 %v644
      %v765 = vunpack.i.h.s16 %v644
      %v766 = vunpack.i.l.s16 %v651
      %v767 = vunpack.i.h.s16 %v651
      %v768 = vunpack.i.l.s16 %v652
      %v769 = vunpack.i.h.s16 %v652
      %v770 = vunpack.i.l.s16 %v653
      %v771 = vunpack.i.l.s16 %v668
      %v772 = vunpack.i.h.s16 %v668
      %v773 = vunpack.i.l.s16 %v675
      %v774 = vunpack.i.h.s16 %v675
      %v775 = vunpack.i.l.s16 %v676
      %v776 = vunpack.i.h.s16 %v676
      %v777 = vunpack.i.l.s16 %v677
      %v778 = vunpack.i.l.s16 %v692
      %v779 = vunpack.i.h.s16 %v692
      %v780 = vunpack.i.l.s16 %v699
      %v781 = vunpack.i.h.s16 %v699
      %v782 = vunpack.i.l.s16 %v700
      %v783 = vunpack.i.h.s16 %v700
      %v784 = vunpack.i.l.s16 %v701
      %v785 = vunpack.i.l.s16 %v716
      %v786 = vunpack.i.h.s16 %v716
      %v787 = vunpack.i.l.s16 %v723
      %v788 = vunpack.i.h.s16 %v723
      %v789 = vunpack.i.l.s16 %v724
      %v790 = vunpack.i.h.s16 %v724
      %v791 = vunpack.i.l.s16 %v725
      %v792 = vunpack.i.l.s16 %v740
      %v793 = vunpack.i.h.s16 %v740
      %v794 = vunpack.i.l.s16 %v747
      %v795 = vunpack.i.h.s16 %v747
      %v796 = vunpack.i.l.s16 %v748
      %v797 = vunpack.i.h.s16 %v748
      %v798 = vunpack.i.l.s16 %v749
      %s799 = scalar_lea.vmem %s2, 2
      %v800 = vld [vmem:[%s799] sm:$0x3]
      %v801 = vpack.i.b16 %v751, %v750
      %v802 = vpack.i.b16 %v753, %v752
      %v803 = vpack.i.b16 %v755, %v754
      %v804 = vpack.i.b16 %v757, %v756
      %v805 = vpack.i.b16 %v759, %v758
      %v806 = vpack.i.b16 %v761, %v760
      %v807 = vpack.i.b16 %v763, %v762
      %v808 = vpack.i.b16 %v765, %v764
      %v809 = vpack.i.b16 %v767, %v766
      %v810 = vpack.i.b16 %v769, %v768
      %v811 = vpack.i.b16 %v771, %v770
      %v812 = vpack.i.b16 %v773, %v772
      %v813 = vpack.i.b16 %v775, %v774
      %v814 = vpack.i.b16 %v777, %v776
      %v815 = vpack.i.b16 %v779, %v778
      %v816 = vpack.i.b16 %v781, %v780
      %v817 = vpack.i.b16 %v783, %v782
      %v818 = vpack.i.b16 %v785, %v784
      %v819 = vpack.i.b16 %v787, %v786
      %v820 = vpack.i.b16 %v789, %v788
      %v821 = vpack.i.b16 %v791, %v790
      %v822 = vpack.i.b16 %v793, %v792
      %v823 = vpack.i.b16 %v795, %v794
      %v824 = vpack.i.b16 %v797, %v796
      %v826 = vcombine.low %v801, %v802
      %v827 = vcombine.low %v803, %v804
      %v828 = vcombine.low %v805, %v806
      %v829 = vcombine.low %v807, %v808
      %v831 = vunpack.c.l.s4 1966171168
      %v832 = vunpack.c.0.s8 %v831
      %v833 = vlaneseq
      %v834 = vshrl.u32 %v833, 7
      %v835 = vsub.s32 %v832, %v834
      %v836 = vrot.slane %v826, %v835
      %v838 = vunpack.c.l.s4 1966171168
      %v839 = vunpack.c.0.s8 %v838
      %v840 = vlaneseq
      %v841 = vshrl.u32 %v840, 7
      %v842 = vsub.s32 %v839, %v841
      %v843 = vrot.slane %v827, %v842
      %v845 = vunpack.c.l.s4 1966171168
      %v846 = vunpack.c.0.s8 %v845
      %v847 = vlaneseq
      %v848 = vshrl.u32 %v847, 7
      %v849 = vsub.s32 %v846, %v848
      %v850 = vrot.slane %v828, %v849
      %v852 = vunpack.c.l.s4 1966171168
      %v853 = vunpack.c.0.s8 %v852
      %v854 = vlaneseq
      %v855 = vshrl.u32 %v854, 7
      %v856 = vsub.s32 %v853, %v855
      %v857 = vrot.slane %v829, %v856
      %v858 = vcombine.low %v836, %v843
      %v859 = vcombine.low %v850, %v857
      %v861 = vunpack.c.l.s4 1966171168
      %v862 = vunpack.c.0.s8 %v861
      %v863 = vlaneseq
      %v864 = vshrl.u32 %v863, 7
      %v865 = vsub.s32 %v862, %v864
      %v866 = vrot.slane %v858, %v865
      %v868 = vunpack.c.l.s4 1966171168
      %v869 = vunpack.c.0.s8 %v868
      %v870 = vlaneseq
      %v871 = vshrl.u32 %v870, 7
      %v872 = vsub.s32 %v869, %v871
      %v873 = vrot.slane %v859, %v872
      %v874 = vcombine.low %v866, %v873
      %v875 = vcombine.low %v809, %v810
      %v876 = vcombine.low %v811, %v812
      %v877 = vcombine.low %v813, %v814
      %v878 = vcombine.low %v815, %v816
      %v880 = vunpack.c.l.s4 1966171168
      %v881 = vunpack.c.0.s8 %v880
      %v882 = vlaneseq
      %v883 = vshrl.u32 %v882, 7
      %v884 = vsub.s32 %v881, %v883
      %v885 = vrot.slane %v875, %v884
      %v887 = vunpack.c.l.s4 1966171168
      %v888 = vunpack.c.0.s8 %v887
      %v889 = vlaneseq
      %v890 = vshrl.u32 %v889, 7
      %v891 = vsub.s32 %v888, %v890
      %v892 = vrot.slane %v876, %v891
      %v894 = vunpack.c.l.s4 1966171168
      %v895 = vunpack.c.0.s8 %v894
      %v896 = vlaneseq
      %v897 = vshrl.u32 %v896, 7
      %v898 = vsub.s32 %v895, %v897
      %v899 = vrot.slane %v877, %v898
      %v901 = vunpack.c.l.s4 1966171168
      %v902 = vunpack.c.0.s8 %v901
      %v903 = vlaneseq
      %v904 = vshrl.u32 %v903, 7
      %v905 = vsub.s32 %v902, %v904
      %v906 = vrot.slane %v878, %v905
      %v907 = vcombine.low %v885, %v892
      %v908 = vcombine.low %v899, %v906
      %v910 = vunpack.c.l.s4 1966171168
      %v911 = vunpack.c.0.s8 %v910
      %v912 = vlaneseq
      %v913 = vshrl.u32 %v912, 7
      %v914 = vsub.s32 %v911, %v913
      %v915 = vrot.slane %v907, %v914
      %v917 = vunpack.c.l.s4 1966171168
      %v918 = vunpack.c.0.s8 %v917
      %v919 = vlaneseq
      %v920 = vshrl.u32 %v919, 7
      %v921 = vsub.s32 %v918, %v920
      %v922 = vrot.slane %v908, %v921
      %v923 = vcombine.low %v915, %v922
      %v924 = vcombine.low %v817, %v818
      %v925 = vcombine.low %v819, %v820
      %v926 = vcombine.low %v821, %v822
      %v927 = vcombine.low %v823, %v824
      %v929 = vunpack.c.l.s4 1966171168
      %v930 = vunpack.c.0.s8 %v929
      %v931 = vlaneseq
      %v932 = vshrl.u32 %v931, 7
      %v933 = vsub.s32 %v930, %v932
      %v934 = vrot.slane %v924, %v933
      %v936 = vunpack.c.l.s4 1966171168
      %v937 = vunpack.c.0.s8 %v936
      %v938 = vlaneseq
      %v939 = vshrl.u32 %v938, 7
      %v940 = vsub.s32 %v937, %v939
      %v941 = vrot.slane %v925, %v940
      %v943 = vunpack.c.l.s4 1966171168
      %v944 = vunpack.c.0.s8 %v943
      %v945 = vlaneseq
      %v946 = vshrl.u32 %v945, 7
      %v947 = vsub.s32 %v944, %v946
      %v948 = vrot.slane %v926, %v947
      %v950 = vunpack.c.l.s4 1966171168
      %v951 = vunpack.c.0.s8 %v950
      %v952 = vlaneseq
      %v953 = vshrl.u32 %v952, 7
      %v954 = vsub.s32 %v951, %v953
      %v955 = vrot.slane %v927, %v954
      %v956 = vcombine.low %v934, %v941
      %v957 = vcombine.low %v948, %v955
      %v959 = vunpack.c.l.s4 1966171168
      %v960 = vunpack.c.0.s8 %v959
      %v961 = vlaneseq
      %v962 = vshrl.u32 %v961, 7
      %v963 = vsub.s32 %v960, %v962
      %v964 = vrot.slane %v956, %v963
      %v966 = vunpack.c.l.s4 1966171168
      %v967 = vunpack.c.0.s8 %v966
      %v968 = vlaneseq
      %v969 = vshrl.u32 %v968, 7
      %v970 = vsub.s32 %v967, %v969
      %v971 = vrot.slane %v957, %v970
      %v972 = vcombine.low %v964, %v971
      %v974 = vunpack.c.l.s4 1966171168
      %v975 = vunpack.c.0.s8 %v974
      %v976 = vlaneseq
      %v977 = vshrl.u32 %v976, 7
      %v978 = vsub.s32 %v975, %v977
      %v979 = vrot.slane %v798, %v978
      %v981 = vunpack.c.l.s4 1966171168
      %v982 = vunpack.c.0.s8 %v981
      %v983 = vlaneseq
      %v984 = vshrl.u32 %v983, 7
      %v985 = vsub.s32 %v982, %v984
      %v986 = vrot.slane %v979, %v985
      %vm987 = vcmask 31744
      %v989 = vsel %vm987, %v874, 0
      %v992 = vsel %vm987, %v923, 0
      %v995 = vsel %vm987, %v972, 0
      %v998 = vsel %vm987, %v986, 0
      %vm1000 = vcmask 1041408
      %v1002 = vsel %vm1000, %v800, 0
      %1004 = vmatprep.subr.bf16.mxu0 0
      %1005 = vmatpush1.bf16.msra.mxu0 0
      %1006 = vmatprep.subr.bf16.mxu0 0
      %1007 = vmatpush1.bf16.msra.mxu0 0
      %1008 = vmatprep.subr.bf16.mxu0 0
      %1009 = vmatpush1.bf16.msra.mxu0 0
      %1010 = vmatprep.subr.bf16.mxu0 0
      %1011 = vmatpush1.bf16.msra.mxu0 0
      %1012 = vmatprep.subr.bf16.mxu0 0
      %1013 = vmatpush1.bf16.msra.mxu0 0
      %1014 = vmatprep.subr.bf16.mxu0 0
      %1015 = vmatpush1.bf16.msra.mxu0 0
      %1016 = vmatprep.subr.bf16.mxu0 0
      %1017 = vmatpush1.bf16.msra.mxu0 0
      %1018 = vmatprep.subr.bf16.mxu0 0
      %1019 = vmatpush1.bf16.msra.mxu0 %v1002
      %1020 = vmatprep.subr.bf16.mxu0 0
      %1021 = vmatpush2.bf16.msra.mxu0 0
      %1022 = vmatprep.subr.bf16.mxu0 0
      %1023 = vmatpush2.bf16.msra.mxu0 0
      %1024 = vmatprep.subr.bf16.mxu0 0
      %1025 = vmatpush2.bf16.msra.mxu0 0
      %1026 = vmatprep.subr.bf16.mxu0 0
      %1027 = vmatpush2.bf16.msra.mxu0 0
      %1028 = vmatprep.subr.bf16.mxu0 0
      %1029 = vmatpush2.bf16.msra.mxu0 0
      %1030 = vmatprep.subr.bf16.mxu0 0
      %1031 = vmatpush2.bf16.msra.mxu0 0
      %1032 = vmatprep.subr.bf16.mxu0 0
      %1033 = vmatpush2.bf16.msra.mxu0 0
      %1034 = vmatprep.subr.bf16.mxu0 0
      %1035 = vmatpush2.bf16.msra.mxu0 0
      %1036 = vmatprep.mubr.bf16.mxu0 0
      %1037 = vmatmul.mubr.bf16.gmra.mxu0 %v989
      %v1038 = vpop.f32.mrf.mxu0
      %v1039 = vadd.f32 0.0, %v1038
      %v1040 = vpop.f32.mrf.mxu0
      %v1041 = vpop.f32.mrf.mxu0
      %v1042 = vadd.f32 0.0, %v1041
      %v1043 = vpop.f32.mrf.mxu0
      %1044 = vmatprep.mubr.bf16.mxu0 0
      %1045 = vmatmul.mubr.bf16.gmra.mxu0 %v992
      %v1046 = vpop.f32.mrf.mxu0
      %v1047 = vadd.f32 0.0, %v1046
      %v1048 = vpop.f32.mrf.mxu0
      %v1049 = vpop.f32.mrf.mxu0
      %v1050 = vadd.f32 0.0, %v1049
      %v1051 = vpop.f32.mrf.mxu0
      %1052 = vmatprep.mubr.bf16.mxu0 0
      %1053 = vmatmul.mubr.bf16.gmra.mxu0 %v995
      %v1054 = vpop.f32.mrf.mxu0
      %v1055 = vadd.f32 0.0, %v1054
      %v1056 = vpop.f32.mrf.mxu0
      %v1057 = vpop.f32.mrf.mxu0
      %v1058 = vadd.f32 0.0, %v1057
      %v1059 = vpop.f32.mrf.mxu0
      %1060 = vmatprep.mubr.bf16.mxu0 0
      %1061 = vmatmul.mubr.bf16.gmra.mxu0 %v998
      %v1062 = vpop.f32.mrf.mxu0
      %v1063 = vadd.f32 0.0, %v1062
      %v1064 = vpop.f32.mrf.mxu0
      %v1065 = vpop.f32.mrf.mxu0
      %v1066 = vpop.f32.mrf.mxu0
      %1067 = vdwg.mxu0
      %v1068 = vpack.i.b16 %v518, %v517
      %v1069 = vpack.i.b16 %v520, %v519
      %v1070 = vpack.i.b16 %v522, %v521
      %v1071 = vpack.i.b16 %v524, %v523
      %v1072 = vpack.i.b16 %v526, %v525
      %v1073 = vpack.i.b16 %v528, %v527
      %v1074 = vpack.i.b16 %v530, %v529
      %v1075 = vpack.i.b16 %v532, %v531
      %v1076 = vpack.i.b16 %v534, %v533
      %v1077 = vpack.i.b16 %v536, %v535
      %v1078 = vpack.i.b16 %v538, %v537
      %v1079 = vpack.i.b16 %v540, %v539
      %v1080 = vpack.i.b16 %v542, %v541
      %v1081 = vpack.i.b16 %v544, %v543
      %v1082 = vpack.i.b16 %v546, %v545
      %v1083 = vpack.i.b16 %v548, %v547
      %v1084 = vpack.i.b16 %v550, %v549
      %v1085 = vpack.i.b16 %v552, %v551
      %v1086 = vpack.i.b16 %v554, %v553
      %v1087 = vpack.i.b16 %v556, %v555
      %v1088 = vpack.i.b16 %v558, %v557
      %v1089 = vpack.i.b16 %v560, %v559
      %v1090 = vpack.i.b16 %v562, %v561
      %v1091 = vpack.i.b16 %v564, %v563
      %v1093 = vcombine.low %v1068, %v1069
      %v1094 = vcombine.low %v1070, %v1071
      %v1095 = vcombine.low %v1072, %v1073
      %v1096 = vcombine.low %v1074, %v1075
      %v1098 = vunpack.c.l.s4 1966171168
      %v1099 = vunpack.c.0.s8 %v1098
      %v1100 = vlaneseq
      %v1101 = vshrl.u32 %v1100, 7
      %v1102 = vsub.s32 %v1099, %v1101
      %v1103 = vrot.slane %v1093, %v1102
      %v1105 = vunpack.c.l.s4 1966171168
      %v1106 = vunpack.c.0.s8 %v1105
      %v1107 = vlaneseq
      %v1108 = vshrl.u32 %v1107, 7
      %v1109 = vsub.s32 %v1106, %v1108
      %v1110 = vrot.slane %v1094, %v1109
      %v1112 = vunpack.c.l.s4 1966171168
      %v1113 = vunpack.c.0.s8 %v1112
      %v1114 = vlaneseq
      %v1115 = vshrl.u32 %v1114, 7
      %v1116 = vsub.s32 %v1113, %v1115
      %v1117 = vrot.slane %v1095, %v1116
      %v1119 = vunpack.c.l.s4 1966171168
      %v1120 = vunpack.c.0.s8 %v1119
      %v1121 = vlaneseq
      %v1122 = vshrl.u32 %v1121, 7
      %v1123 = vsub.s32 %v1120, %v1122
      %v1124 = vrot.slane %v1096, %v1123
      %v1125 = vcombine.low %v1103, %v1110
      %v1126 = vcombine.low %v1117, %v1124
      %v1128 = vunpack.c.l.s4 1966171168
      %v1129 = vunpack.c.0.s8 %v1128
      %v1130 = vlaneseq
      %v1131 = vshrl.u32 %v1130, 7
      %v1132 = vsub.s32 %v1129, %v1131
      %v1133 = vrot.slane %v1125, %v1132
      %v1135 = vunpack.c.l.s4 1966171168
      %v1136 = vunpack.c.0.s8 %v1135
      %v1137 = vlaneseq
      %v1138 = vshrl.u32 %v1137, 7
      %v1139 = vsub.s32 %v1136, %v1138
      %v1140 = vrot.slane %v1126, %v1139
      %v1141 = vcombine.low %v1133, %v1140
      %v1142 = vcombine.low %v1076, %v1077
      %v1143 = vcombine.low %v1078, %v1079
      %v1144 = vcombine.low %v1080, %v1081
      %v1145 = vcombine.low %v1082, %v1083
      %v1147 = vunpack.c.l.s4 1966171168
      %v1148 = vunpack.c.0.s8 %v1147
      %v1149 = vlaneseq
      %v1150 = vshrl.u32 %v1149, 7
      %v1151 = vsub.s32 %v1148, %v1150
      %v1152 = vrot.slane %v1142, %v1151
      %v1154 = vunpack.c.l.s4 1966171168
      %v1155 = vunpack.c.0.s8 %v1154
      %v1156 = vlaneseq
      %v1157 = vshrl.u32 %v1156, 7
      %v1158 = vsub.s32 %v1155, %v1157
      %v1159 = vrot.slane %v1143, %v1158
      %v1161 = vunpack.c.l.s4 1966171168
      %v1162 = vunpack.c.0.s8 %v1161
      %v1163 = vlaneseq
      %v1164 = vshrl.u32 %v1163, 7
      %v1165 = vsub.s32 %v1162, %v1164
      %v1166 = vrot.slane %v1144, %v1165
      %v1168 = vunpack.c.l.s4 1966171168
      %v1169 = vunpack.c.0.s8 %v1168
      %v1170 = vlaneseq
      %v1171 = vshrl.u32 %v1170, 7
      %v1172 = vsub.s32 %v1169, %v1171
      %v1173 = vrot.slane %v1145, %v1172
      %v1174 = vcombine.low %v1152, %v1159
      %v1175 = vcombine.low %v1166, %v1173
      %v1177 = vunpack.c.l.s4 1966171168
      %v1178 = vunpack.c.0.s8 %v1177
      %v1179 = vlaneseq
      %v1180 = vshrl.u32 %v1179, 7
      %v1181 = vsub.s32 %v1178, %v1180
      %v1182 = vrot.slane %v1174, %v1181
      %v1184 = vunpack.c.l.s4 1966171168
      %v1185 = vunpack.c.0.s8 %v1184
      %v1186 = vlaneseq
      %v1187 = vshrl.u32 %v1186, 7
      %v1188 = vsub.s32 %v1185, %v1187
      %v1189 = vrot.slane %v1175, %v1188
      %v1190 = vcombine.low %v1182, %v1189
      %v1191 = vcombine.low %v1084, %v1085
      %v1192 = vcombine.low %v1086, %v1087
      %v1193 = vcombine.low %v1088, %v1089
      %v1194 = vcombine.low %v1090, %v1091
      %v1196 = vunpack.c.l.s4 1966171168
      %v1197 = vunpack.c.0.s8 %v1196
      %v1198 = vlaneseq
      %v1199 = vshrl.u32 %v1198, 7
      %v1200 = vsub.s32 %v1197, %v1199
      %v1201 = vrot.slane %v1191, %v1200
      %v1203 = vunpack.c.l.s4 1966171168
      %v1204 = vunpack.c.0.s8 %v1203
      %v1205 = vlaneseq
      %v1206 = vshrl.u32 %v1205, 7
      %v1207 = vsub.s32 %v1204, %v1206
      %v1208 = vrot.slane %v1192, %v1207
      %v1210 = vunpack.c.l.s4 1966171168
      %v1211 = vunpack.c.0.s8 %v1210
      %v1212 = vlaneseq
      %v1213 = vshrl.u32 %v1212, 7
      %v1214 = vsub.s32 %v1211, %v1213
      %v1215 = vrot.slane %v1193, %v1214
      %v1217 = vunpack.c.l.s4 1966171168
      %v1218 = vunpack.c.0.s8 %v1217
      %v1219 = vlaneseq
      %v1220 = vshrl.u32 %v1219, 7
      %v1221 = vsub.s32 %v1218, %v1220
      %v1222 = vrot.slane %v1194, %v1221
      %v1223 = vcombine.low %v1201, %v1208
      %v1224 = vcombine.low %v1215, %v1222
      %v1226 = vunpack.c.l.s4 1966171168
      %v1227 = vunpack.c.0.s8 %v1226
      %v1228 = vlaneseq
      %v1229 = vshrl.u32 %v1228, 7
      %v1230 = vsub.s32 %v1227, %v1229
      %v1231 = vrot.slane %v1223, %v1230
      %v1233 = vunpack.c.l.s4 1966171168
      %v1234 = vunpack.c.0.s8 %v1233
      %v1235 = vlaneseq
      %v1236 = vshrl.u32 %v1235, 7
      %v1237 = vsub.s32 %v1234, %v1236
      %v1238 = vrot.slane %v1224, %v1237
      %v1239 = vcombine.low %v1231, %v1238
      %v1241 = vunpack.c.l.s4 1966171168
      %v1242 = vunpack.c.0.s8 %v1241
      %v1243 = vlaneseq
      %v1244 = vshrl.u32 %v1243, 7
      %v1245 = vsub.s32 %v1242, %v1244
      %v1246 = vrot.slane %v565, %v1245
      %v1248 = vunpack.c.l.s4 1966171168
      %v1249 = vunpack.c.0.s8 %v1248
      %v1250 = vlaneseq
      %v1251 = vshrl.u32 %v1250, 7
      %v1252 = vsub.s32 %v1249, %v1251
      %v1253 = vrot.slane %v1246, %v1252
      %v1255 = vsel %vm987, %v1141, 0
      %v1258 = vsel %vm987, %v1190, 0
      %v1261 = vsel %vm987, %v1239, 0
      %v1264 = vsel %vm987, %v1253, 0
      %v1267 = vsel %vm1000, %v566, 0
      %1269 = vmatprep.subr.bf16.mxu0 0
      %1270 = vmatpush1.bf16.msra.mxu0 0
      %1271 = vmatprep.subr.bf16.mxu0 0
      %1272 = vmatpush1.bf16.msra.mxu0 0
      %1273 = vmatprep.subr.bf16.mxu0 0
      %1274 = vmatpush1.bf16.msra.mxu0 0
      %1275 = vmatprep.subr.bf16.mxu0 0
      %1276 = vmatpush1.bf16.msra.mxu0 0
      %1277 = vmatprep.subr.bf16.mxu0 0
      %1278 = vmatpush1.bf16.msra.mxu0 0
      %1279 = vmatprep.subr.bf16.mxu0 0
      %1280 = vmatpush1.bf16.msra.mxu0 0
      %1281 = vmatprep.subr.bf16.mxu0 0
      %1282 = vmatpush1.bf16.msra.mxu0 0
      %1283 = vmatprep.subr.bf16.mxu0 0
      %1284 = vmatpush1.bf16.msra.mxu0 %v1267
      %1285 = vmatprep.subr.bf16.mxu0 0
      %1286 = vmatpush2.bf16.msra.mxu0 0
      %1287 = vmatprep.subr.bf16.mxu0 0
      %1288 = vmatpush2.bf16.msra.mxu0 0
      %1289 = vmatprep.subr.bf16.mxu0 0
      %1290 = vmatpush2.bf16.msra.mxu0 0
      %1291 = vmatprep.subr.bf16.mxu0 0
      %1292 = vmatpush2.bf16.msra.mxu0 0
      %1293 = vmatprep.subr.bf16.mxu0 0
      %1294 = vmatpush2.bf16.msra.mxu0 0
      %1295 = vmatprep.subr.bf16.mxu0 0
      %1296 = vmatpush2.bf16.msra.mxu0 0
      %1297 = vmatprep.subr.bf16.mxu0 0
      %1298 = vmatpush2.bf16.msra.mxu0 0
      %1299 = vmatprep.subr.bf16.mxu0 0
      %1300 = vmatpush2.bf16.msra.mxu0 0
      %1301 = vmatprep.mubr.bf16.mxu0 0
      %1302 = vmatmul.mubr.bf16.gmra.mxu0 %v1255
      %v1303 = vpop.f32.mrf.mxu0
      %v1304 = vadd.f32 %v1039, %v1303
      %v1305 = vpop.f32.mrf.mxu0
      %v1306 = vpop.f32.mrf.mxu0
      %v1307 = vadd.f32 %v1042, %v1306
      %v1308 = vpop.f32.mrf.mxu0
      %1309 = vmatprep.mubr.bf16.mxu0 0
      %1310 = vmatmul.mubr.bf16.gmra.mxu0 %v1258
      %v1311 = vpop.f32.mrf.mxu0
      %v1312 = vadd.f32 %v1047, %v1311
      %v1313 = vpop.f32.mrf.mxu0
      %v1314 = vpop.f32.mrf.mxu0
      %v1315 = vadd.f32 %v1050, %v1314
      %v1316 = vpop.f32.mrf.mxu0
      %1317 = vmatprep.mubr.bf16.mxu0 0
      %1318 = vmatmul.mubr.bf16.gmra.mxu0 %v1261
      %v1319 = vpop.f32.mrf.mxu0
      %v1320 = vadd.f32 %v1055, %v1319
      %v1321 = vpop.f32.mrf.mxu0
      %v1322 = vpop.f32.mrf.mxu0
      %v1323 = vadd.f32 %v1058, %v1322
      %v1324 = vpop.f32.mrf.mxu0
      %1325 = vmatprep.mubr.bf16.mxu0 0
      %1326 = vmatmul.mubr.bf16.gmra.mxu0 %v1264
      %v1327 = vpop.f32.mrf.mxu0
      %v1328 = vadd.f32 %v1063, %v1327
      %v1329 = vpop.f32.mrf.mxu0
      %v1330 = vpop.f32.mrf.mxu0
      %v1331 = vpop.f32.mrf.mxu0
      %1332 = vdwg.mxu0
      %v1333 = vld [vmem:[%s307] sm:$0xf]
      %v1334 = vld [vmem:[%s307 + $0x10] sm:$0xf]
      %v1335 = vld [vmem:[%s307 + $0x20] sm:$0xf]
      %v1336 = vld [vmem:[%s307 + $0x30] sm:$0xf]
      %v1337 = vld [vmem:[%s307 + $0x40] sm:$0xf]
      %v1338 = vld [vmem:[%s307 + $0x50] sm:$0xf]
      %v1339 = vld [vmem:[%s307 + $0x60] sm:$0xf]
      %v1348 = vunpack.c.l.s4 1966171168
      %v1349 = vunpack.c.0.s8 %v1348
      %v1350 = vlaneseq
      %v1351 = vshrl.u32 %v1350, 7
      %v1352 = vsub.s32 %v1349, %v1351
      %v1353 = vrot.slane %v1333, %v1352
      %v1354 = vcombine.high %v1353, %v1353
      %v1356 = vunpack.c.l.s4 1966171168
      %v1357 = vunpack.c.0.s8 %v1356
      %v1358 = vlaneseq
      %v1359 = vshrl.u32 %v1358, 7
      %v1360 = vsub.s32 %v1357, %v1359
      %v1361 = vrot.slane %v1353, %v1360
      %v1363 = vunpack.c.l.s4 1966171168
      %v1364 = vunpack.c.0.s8 %v1363
      %v1365 = vlaneseq
      %v1366 = vshrl.u32 %v1365, 7
      %v1367 = vsub.s32 %v1364, %v1366
      %v1368 = vrot.slane %v1354, %v1367
      %v1369 = vcombine.high %v1361, %v1361
      %v1370 = vcombine.high %v1368, %v1368
      %v1372 = vunpack.c.l.s4 1966171168
      %v1373 = vunpack.c.0.s8 %v1372
      %v1374 = vlaneseq
      %v1375 = vshrl.u32 %v1374, 7
      %v1376 = vsub.s32 %v1373, %v1375
      %v1377 = vrot.slane %v1334, %v1376
      %v1378 = vcombine.high %v1377, %v1377
      %v1380 = vunpack.c.l.s4 1966171168
      %v1381 = vunpack.c.0.s8 %v1380
      %v1382 = vlaneseq
      %v1383 = vshrl.u32 %v1382, 7
      %v1384 = vsub.s32 %v1381, %v1383
      %v1385 = vrot.slane %v1377, %v1384
      %v1387 = vunpack.c.l.s4 1966171168
      %v1388 = vunpack.c.0.s8 %v1387
      %v1389 = vlaneseq
      %v1390 = vshrl.u32 %v1389, 7
      %v1391 = vsub.s32 %v1388, %v1390
      %v1392 = vrot.slane %v1378, %v1391
      %v1393 = vcombine.high %v1385, %v1385
      %v1394 = vcombine.high %v1392, %v1392
      %v1396 = vunpack.c.l.s4 1966171168
      %v1397 = vunpack.c.0.s8 %v1396
      %v1398 = vlaneseq
      %v1399 = vshrl.u32 %v1398, 7
      %v1400 = vsub.s32 %v1397, %v1399
      %v1401 = vrot.slane %v1335, %v1400
      %v1402 = vcombine.high %v1401, %v1401
      %v1404 = vunpack.c.l.s4 1966171168
      %v1405 = vunpack.c.0.s8 %v1404
      %v1406 = vlaneseq
      %v1407 = vshrl.u32 %v1406, 7
      %v1408 = vsub.s32 %v1405, %v1407
      %v1409 = vrot.slane %v1401, %v1408
      %v1411 = vunpack.c.l.s4 1966171168
      %v1412 = vunpack.c.0.s8 %v1411
      %v1413 = vlaneseq
      %v1414 = vshrl.u32 %v1413, 7
      %v1415 = vsub.s32 %v1412, %v1414
      %v1416 = vrot.slane %v1402, %v1415
      %v1417 = vcombine.high %v1409, %v1409
      %v1418 = vcombine.high %v1416, %v1416
      %v1420 = vunpack.c.l.s4 1966171168
      %v1421 = vunpack.c.0.s8 %v1420
      %v1422 = vlaneseq
      %v1423 = vshrl.u32 %v1422, 7
      %v1424 = vsub.s32 %v1421, %v1423
      %v1425 = vrot.slane %v1336, %v1424
      %v1426 = vcombine.high %v1425, %v1425
      %v1428 = vunpack.c.l.s4 1966171168
      %v1429 = vunpack.c.0.s8 %v1428
      %v1430 = vlaneseq
      %v1431 = vshrl.u32 %v1430, 7
      %v1432 = vsub.s32 %v1429, %v1431
      %v1433 = vrot.slane %v1425, %v1432
      %v1435 = vunpack.c.l.s4 1966171168
      %v1436 = vunpack.c.0.s8 %v1435
      %v1437 = vlaneseq
      %v1438 = vshrl.u32 %v1437, 7
      %v1439 = vsub.s32 %v1436, %v1438
      %v1440 = vrot.slane %v1426, %v1439
      %v1441 = vcombine.high %v1433, %v1433
      %v1442 = vcombine.high %v1440, %v1440
      %v1444 = vunpack.c.l.s4 1966171168
      %v1445 = vunpack.c.0.s8 %v1444
      %v1446 = vlaneseq
      %v1447 = vshrl.u32 %v1446, 7
      %v1448 = vsub.s32 %v1445, %v1447
      %v1449 = vrot.slane %v1337, %v1448
      %v1450 = vcombine.high %v1449, %v1449
      %v1452 = vunpack.c.l.s4 1966171168
      %v1453 = vunpack.c.0.s8 %v1452
      %v1454 = vlaneseq
      %v1455 = vshrl.u32 %v1454, 7
      %v1456 = vsub.s32 %v1453, %v1455
      %v1457 = vrot.slane %v1449, %v1456
      %v1459 = vunpack.c.l.s4 1966171168
      %v1460 = vunpack.c.0.s8 %v1459
      %v1461 = vlaneseq
      %v1462 = vshrl.u32 %v1461, 7
      %v1463 = vsub.s32 %v1460, %v1462
      %v1464 = vrot.slane %v1450, %v1463
      %v1465 = vcombine.high %v1457, %v1457
      %v1466 = vcombine.high %v1464, %v1464
      %v1468 = vunpack.c.l.s4 1966171168
      %v1469 = vunpack.c.0.s8 %v1468
      %v1470 = vlaneseq
      %v1471 = vshrl.u32 %v1470, 7
      %v1472 = vsub.s32 %v1469, %v1471
      %v1473 = vrot.slane %v1338, %v1472
      %v1474 = vcombine.high %v1473, %v1473
      %v1476 = vunpack.c.l.s4 1966171168
      %v1477 = vunpack.c.0.s8 %v1476
      %v1478 = vlaneseq
      %v1479 = vshrl.u32 %v1478, 7
      %v1480 = vsub.s32 %v1477, %v1479
      %v1481 = vrot.slane %v1473, %v1480
      %v1483 = vunpack.c.l.s4 1966171168
      %v1484 = vunpack.c.0.s8 %v1483
      %v1485 = vlaneseq
      %v1486 = vshrl.u32 %v1485, 7
      %v1487 = vsub.s32 %v1484, %v1486
      %v1488 = vrot.slane %v1474, %v1487
      %v1489 = vcombine.high %v1481, %v1481
      %v1490 = vcombine.high %v1488, %v1488
      %v1492 = vunpack.c.l.s4 1966171168
      %v1493 = vunpack.c.0.s8 %v1492
      %v1494 = vlaneseq
      %v1495 = vshrl.u32 %v1494, 7
      %v1496 = vsub.s32 %v1493, %v1495
      %v1497 = vrot.slane %v1339, %v1496
      %v1498 = vcombine.high %v1497, %v1497
      %v1500 = vunpack.c.l.s4 1966171168
      %v1501 = vunpack.c.0.s8 %v1500
      %v1502 = vlaneseq
      %v1503 = vshrl.u32 %v1502, 7
      %v1504 = vsub.s32 %v1501, %v1503
      %v1505 = vrot.slane %v1497, %v1504
      %v1507 = vunpack.c.l.s4 1966171168
      %v1508 = vunpack.c.0.s8 %v1507
      %v1509 = vlaneseq
      %v1510 = vshrl.u32 %v1509, 7
      %v1511 = vsub.s32 %v1508, %v1510
      %v1512 = vrot.slane %v1498, %v1511
      %v1513 = vcombine.high %v1505, %v1505
      %v1514 = vcombine.high %v1512, %v1512
      %v1515 = vunpack.i.h.s16 %v1361
      %v1516 = vunpack.i.l.s16 %v1368
      %v1517 = vunpack.i.h.s16 %v1368
      %v1518 = vunpack.i.l.s16 %v1369
      %v1519 = vunpack.i.h.s16 %v1369
      %v1520 = vunpack.i.l.s16 %v1370
      %v1521 = vunpack.i.h.s16 %v1370
      %v1522 = vunpack.i.h.s16 %v1385
      %v1523 = vunpack.i.l.s16 %v1392
      %v1524 = vunpack.i.h.s16 %v1392
      %v1525 = vunpack.i.l.s16 %v1393
      %v1526 = vunpack.i.h.s16 %v1393
      %v1527 = vunpack.i.l.s16 %v1394
      %v1528 = vunpack.i.h.s16 %v1394
      %v1529 = vunpack.i.h.s16 %v1409
      %v1530 = vunpack.i.l.s16 %v1416
      %v1531 = vunpack.i.h.s16 %v1416
      %v1532 = vunpack.i.l.s16 %v1417
      %v1533 = vunpack.i.h.s16 %v1417
      %v1534 = vunpack.i.l.s16 %v1418
      %v1535 = vunpack.i.h.s16 %v1418
      %v1536 = vunpack.i.h.s16 %v1433
      %v1537 = vunpack.i.l.s16 %v1440
      %v1538 = vunpack.i.h.s16 %v1440
      %v1539 = vunpack.i.l.s16 %v1441
      %v1540 = vunpack.i.h.s16 %v1441
      %v1541 = vunpack.i.l.s16 %v1442
      %v1542 = vunpack.i.h.s16 %v1442
      %v1543 = vunpack.i.h.s16 %v1457
      %v1544 = vunpack.i.l.s16 %v1464
      %v1545 = vunpack.i.h.s16 %v1464
      %v1546 = vunpack.i.l.s16 %v1465
      %v1547 = vunpack.i.h.s16 %v1465
      %v1548 = vunpack.i.l.s16 %v1466
      %v1549 = vunpack.i.h.s16 %v1466
      %v1550 = vunpack.i.h.s16 %v1481
      %v1551 = vunpack.i.l.s16 %v1488
      %v1552 = vunpack.i.h.s16 %v1488
      %v1553 = vunpack.i.l.s16 %v1489
      %v1554 = vunpack.i.h.s16 %v1489
      %v1555 = vunpack.i.l.s16 %v1490
      %v1556 = vunpack.i.h.s16 %v1490
      %v1557 = vunpack.i.h.s16 %v1505
      %v1558 = vunpack.i.l.s16 %v1512
      %v1559 = vunpack.i.h.s16 %v1512
      %v1560 = vunpack.i.l.s16 %v1513
      %v1561 = vunpack.i.h.s16 %v1513
      %v1562 = vunpack.i.l.s16 %v1514
      %v1563 = vunpack.i.h.s16 %v1514
      %s1564 = scalar_lea.vmem %s2, 4
      %v1565 = vld [vmem:[%s1564] sm:$0x3]
      %v1566 = vpack.i.b16 %v1516, %v1515
      %v1567 = vpack.i.b16 %v1518, %v1517
      %v1568 = vpack.i.b16 %v1520, %v1519
      %v1569 = vpack.i.b16 %v1522, %v1521
      %v1570 = vpack.i.b16 %v1524, %v1523
      %v1571 = vpack.i.b16 %v1526, %v1525
      %v1572 = vpack.i.b16 %v1528, %v1527
      %v1573 = vpack.i.b16 %v1530, %v1529
      %v1574 = vpack.i.b16 %v1532, %v1531
      %v1575 = vpack.i.b16 %v1534, %v1533
      %v1576 = vpack.i.b16 %v1536, %v1535
      %v1577 = vpack.i.b16 %v1538, %v1537
      %v1578 = vpack.i.b16 %v1540, %v1539
      %v1579 = vpack.i.b16 %v1542, %v1541
      %v1580 = vpack.i.b16 %v1544, %v1543
      %v1581 = vpack.i.b16 %v1546, %v1545
      %v1582 = vpack.i.b16 %v1548, %v1547
      %v1583 = vpack.i.b16 %v1550, %v1549
      %v1584 = vpack.i.b16 %v1552, %v1551
      %v1585 = vpack.i.b16 %v1554, %v1553
      %v1586 = vpack.i.b16 %v1556, %v1555
      %v1587 = vpack.i.b16 %v1558, %v1557
      %v1588 = vpack.i.b16 %v1560, %v1559
      %v1589 = vpack.i.b16 %v1562, %v1561
      %v1591 = vcombine.low %v1566, %v1567
      %v1592 = vcombine.low %v1568, %v1569
      %v1593 = vcombine.low %v1570, %v1571
      %v1594 = vcombine.low %v1572, %v1573
      %v1596 = vunpack.c.l.s4 1966171168
      %v1597 = vunpack.c.0.s8 %v1596
      %v1598 = vlaneseq
      %v1599 = vshrl.u32 %v1598, 7
      %v1600 = vsub.s32 %v1597, %v1599
      %v1601 = vrot.slane %v1591, %v1600
      %v1603 = vunpack.c.l.s4 1966171168
      %v1604 = vunpack.c.0.s8 %v1603
      %v1605 = vlaneseq
      %v1606 = vshrl.u32 %v1605, 7
      %v1607 = vsub.s32 %v1604, %v1606
      %v1608 = vrot.slane %v1592, %v1607
      %v1610 = vunpack.c.l.s4 1966171168
      %v1611 = vunpack.c.0.s8 %v1610
      %v1612 = vlaneseq
      %v1613 = vshrl.u32 %v1612, 7
      %v1614 = vsub.s32 %v1611, %v1613
      %v1615 = vrot.slane %v1593, %v1614
      %v1617 = vunpack.c.l.s4 1966171168
      %v1618 = vunpack.c.0.s8 %v1617
      %v1619 = vlaneseq
      %v1620 = vshrl.u32 %v1619, 7
      %v1621 = vsub.s32 %v1618, %v1620
      %v1622 = vrot.slane %v1594, %v1621
      %v1623 = vcombine.low %v1601, %v1608
      %v1624 = vcombine.low %v1615, %v1622
      %v1626 = vunpack.c.l.s4 1966171168
      %v1627 = vunpack.c.0.s8 %v1626
      %v1628 = vlaneseq
      %v1629 = vshrl.u32 %v1628, 7
      %v1630 = vsub.s32 %v1627, %v1629
      %v1631 = vrot.slane %v1623, %v1630
      %v1633 = vunpack.c.l.s4 1966171168
      %v1634 = vunpack.c.0.s8 %v1633
      %v1635 = vlaneseq
      %v1636 = vshrl.u32 %v1635, 7
      %v1637 = vsub.s32 %v1634, %v1636
      %v1638 = vrot.slane %v1624, %v1637
      %v1639 = vcombine.low %v1631, %v1638
      %v1640 = vcombine.low %v1574, %v1575
      %v1641 = vcombine.low %v1576, %v1577
      %v1642 = vcombine.low %v1578, %v1579
      %v1643 = vcombine.low %v1580, %v1581
      %v1645 = vunpack.c.l.s4 1966171168
      %v1646 = vunpack.c.0.s8 %v1645
      %v1647 = vlaneseq
      %v1648 = vshrl.u32 %v1647, 7
      %v1649 = vsub.s32 %v1646, %v1648
      %v1650 = vrot.slane %v1640, %v1649
      %v1652 = vunpack.c.l.s4 1966171168
      %v1653 = vunpack.c.0.s8 %v1652
      %v1654 = vlaneseq
      %v1655 = vshrl.u32 %v1654, 7
      %v1656 = vsub.s32 %v1653, %v1655
      %v1657 = vrot.slane %v1641, %v1656
      %v1659 = vunpack.c.l.s4 1966171168
      %v1660 = vunpack.c.0.s8 %v1659
      %v1661 = vlaneseq
      %v1662 = vshrl.u32 %v1661, 7
      %v1663 = vsub.s32 %v1660, %v1662
      %v1664 = vrot.slane %v1642, %v1663
      %v1666 = vunpack.c.l.s4 1966171168
      %v1667 = vunpack.c.0.s8 %v1666
      %v1668 = vlaneseq
      %v1669 = vshrl.u32 %v1668, 7
      %v1670 = vsub.s32 %v1667, %v1669
      %v1671 = vrot.slane %v1643, %v1670
      %v1672 = vcombine.low %v1650, %v1657
      %v1673 = vcombine.low %v1664, %v1671
      %v1675 = vunpack.c.l.s4 1966171168
      %v1676 = vunpack.c.0.s8 %v1675
      %v1677 = vlaneseq
      %v1678 = vshrl.u32 %v1677, 7
      %v1679 = vsub.s32 %v1676, %v1678
      %v1680 = vrot.slane %v1672, %v1679
      %v1682 = vunpack.c.l.s4 1966171168
      %v1683 = vunpack.c.0.s8 %v1682
      %v1684 = vlaneseq
      %v1685 = vshrl.u32 %v1684, 7
      %v1686 = vsub.s32 %v1683, %v1685
      %v1687 = vrot.slane %v1673, %v1686
      %v1688 = vcombine.low %v1680, %v1687
      %v1689 = vcombine.low %v1582, %v1583
      %v1690 = vcombine.low %v1584, %v1585
      %v1691 = vcombine.low %v1586, %v1587
      %v1692 = vcombine.low %v1588, %v1589
      %v1694 = vunpack.c.l.s4 1966171168
      %v1695 = vunpack.c.0.s8 %v1694
      %v1696 = vlaneseq
      %v1697 = vshrl.u32 %v1696, 7
      %v1698 = vsub.s32 %v1695, %v1697
      %v1699 = vrot.slane %v1689, %v1698
      %v1701 = vunpack.c.l.s4 1966171168
      %v1702 = vunpack.c.0.s8 %v1701
      %v1703 = vlaneseq
      %v1704 = vshrl.u32 %v1703, 7
      %v1705 = vsub.s32 %v1702, %v1704
      %v1706 = vrot.slane %v1690, %v1705
      %v1708 = vunpack.c.l.s4 1966171168
      %v1709 = vunpack.c.0.s8 %v1708
      %v1710 = vlaneseq
      %v1711 = vshrl.u32 %v1710, 7
      %v1712 = vsub.s32 %v1709, %v1711
      %v1713 = vrot.slane %v1691, %v1712
      %v1715 = vunpack.c.l.s4 1966171168
      %v1716 = vunpack.c.0.s8 %v1715
      %v1717 = vlaneseq
      %v1718 = vshrl.u32 %v1717, 7
      %v1719 = vsub.s32 %v1716, %v1718
      %v1720 = vrot.slane %v1692, %v1719
      %v1721 = vcombine.low %v1699, %v1706
      %v1722 = vcombine.low %v1713, %v1720
      %v1724 = vunpack.c.l.s4 1966171168
      %v1725 = vunpack.c.0.s8 %v1724
      %v1726 = vlaneseq
      %v1727 = vshrl.u32 %v1726, 7
      %v1728 = vsub.s32 %v1725, %v1727
      %v1729 = vrot.slane %v1721, %v1728
      %v1731 = vunpack.c.l.s4 1966171168
      %v1732 = vunpack.c.0.s8 %v1731
      %v1733 = vlaneseq
      %v1734 = vshrl.u32 %v1733, 7
      %v1735 = vsub.s32 %v1732, %v1734
      %v1736 = vrot.slane %v1722, %v1735
      %v1737 = vcombine.low %v1729, %v1736
      %v1739 = vunpack.c.l.s4 1966171168
      %v1740 = vunpack.c.0.s8 %v1739
      %v1741 = vlaneseq
      %v1742 = vshrl.u32 %v1741, 7
      %v1743 = vsub.s32 %v1740, %v1742
      %v1744 = vrot.slane %v1563, %v1743
      %v1746 = vunpack.c.l.s4 1966171168
      %v1747 = vunpack.c.0.s8 %v1746
      %v1748 = vlaneseq
      %v1749 = vshrl.u32 %v1748, 7
      %v1750 = vsub.s32 %v1747, %v1749
      %v1751 = vrot.slane %v1744, %v1750
      %v1753 = vsel %vm987, %v1639, 0
      %v1756 = vsel %vm987, %v1688, 0
      %v1759 = vsel %vm987, %v1737, 0
      %v1762 = vsel %vm987, %v1751, 0
      %v1765 = vsel %vm1000, %v1565, 0
      %1767 = vmatprep.subr.bf16.mxu0 0
      %1768 = vmatpush1.bf16.msra.mxu0 0
      %1769 = vmatprep.subr.bf16.mxu0 0
      %1770 = vmatpush1.bf16.msra.mxu0 0
      %1771 = vmatprep.subr.bf16.mxu0 0
      %1772 = vmatpush1.bf16.msra.mxu0 0
      %1773 = vmatprep.subr.bf16.mxu0 0
      %1774 = vmatpush1.bf16.msra.mxu0 0
      %1775 = vmatprep.subr.bf16.mxu0 0
      %1776 = vmatpush1.bf16.msra.mxu0 0
      %1777 = vmatprep.subr.bf16.mxu0 0
      %1778 = vmatpush1.bf16.msra.mxu0 0
      %1779 = vmatprep.subr.bf16.mxu0 0
      %1780 = vmatpush1.bf16.msra.mxu0 0
      %1781 = vmatprep.subr.bf16.mxu0 0
      %1782 = vmatpush1.bf16.msra.mxu0 %v1765
      %1783 = vmatprep.subr.bf16.mxu0 0
      %1784 = vmatpush2.bf16.msra.mxu0 0
      %1785 = vmatprep.subr.bf16.mxu0 0
      %1786 = vmatpush2.bf16.msra.mxu0 0
      %1787 = vmatprep.subr.bf16.mxu0 0
      %1788 = vmatpush2.bf16.msra.mxu0 0
      %1789 = vmatprep.subr.bf16.mxu0 0
      %1790 = vmatpush2.bf16.msra.mxu0 0
      %1791 = vmatprep.subr.bf16.mxu0 0
      %1792 = vmatpush2.bf16.msra.mxu0 0
      %1793 = vmatprep.subr.bf16.mxu0 0
      %1794 = vmatpush2.bf16.msra.mxu0 0
      %1795 = vmatprep.subr.bf16.mxu0 0
      %1796 = vmatpush2.bf16.msra.mxu0 0
      %1797 = vmatprep.subr.bf16.mxu0 0
      %1798 = vmatpush2.bf16.msra.mxu0 0
      %1799 = vmatprep.mubr.bf16.mxu0 0
      %1800 = vmatmul.mubr.bf16.gmra.mxu0 %v1753
      %v1801 = vpop.f32.mrf.mxu0
      %v1802 = vadd.f32 0.0, %v1801
      %v1803 = vpop.f32.mrf.mxu0
      %v1804 = vpop.f32.mrf.mxu0
      %v1805 = vadd.f32 0.0, %v1804
      %v1806 = vpop.f32.mrf.mxu0
      %1807 = vmatprep.mubr.bf16.mxu0 0
      %1808 = vmatmul.mubr.bf16.gmra.mxu0 %v1756
      %v1809 = vpop.f32.mrf.mxu0
      %v1810 = vadd.f32 0.0, %v1809
      %v1811 = vpop.f32.mrf.mxu0
      %v1812 = vpop.f32.mrf.mxu0
      %v1813 = vadd.f32 0.0, %v1812
      %v1814 = vpop.f32.mrf.mxu0
      %1815 = vmatprep.mubr.bf16.mxu0 0
      %1816 = vmatmul.mubr.bf16.gmra.mxu0 %v1759
      %v1817 = vpop.f32.mrf.mxu0
      %v1818 = vadd.f32 0.0, %v1817
      %v1819 = vpop.f32.mrf.mxu0
      %v1820 = vpop.f32.mrf.mxu0
      %v1821 = vadd.f32 0.0, %v1820
      %v1822 = vpop.f32.mrf.mxu0
      %1823 = vmatprep.mubr.bf16.mxu0 0
      %1824 = vmatmul.mubr.bf16.gmra.mxu0 %v1762
      %v1825 = vpop.f32.mrf.mxu0
      %v1826 = vadd.f32 0.0, %v1825
      %v1827 = vpop.f32.mrf.mxu0
      %v1828 = vpop.f32.mrf.mxu0
      %v1829 = vpop.f32.mrf.mxu0
      %1830 = vdwg.mxu0
      %v1831 = vadd.f32 %v1304, %v1802
      %v1832 = vadd.f32 %v1307, %v1805
      %v1833 = vadd.f32 %v1312, %v1810
      %v1834 = vadd.f32 %v1315, %v1813
      %v1835 = vadd.f32 %v1320, %v1818
      %v1836 = vadd.f32 %v1323, %v1821
      %v1837 = vadd.f32 %v1328, %v1826
      %s1838 = scalar_lea.vmem %s307, 8
      %v1839 = vld [vmem:[%s1838] sm:$0xf]
      %v1840 = vld [vmem:[%s1838 + $0x10] sm:$0xf]
      %v1841 = vld [vmem:[%s1838 + $0x20] sm:$0xf]
      %v1842 = vld [vmem:[%s1838 + $0x30] sm:$0xf]
      %v1843 = vld [vmem:[%s1838 + $0x40] sm:$0xf]
      %v1844 = vld [vmem:[%s1838 + $0x50] sm:$0xf]
      %v1845 = vld [vmem:[%s1838 + $0x60] sm:$0xf]
      %v1854 = vunpack.c.l.s4 1966171168
      %v1855 = vunpack.c.0.s8 %v1854
      %v1856 = vlaneseq
      %v1857 = vshrl.u32 %v1856, 7
      %v1858 = vsub.s32 %v1855, %v1857
      %v1859 = vrot.slane %v1839, %v1858
      %v1860 = vcombine.high %v1859, %v1859
      %v1862 = vunpack.c.l.s4 1966171168
      %v1863 = vunpack.c.0.s8 %v1862
      %v1864 = vlaneseq
      %v1865 = vshrl.u32 %v1864, 7
      %v1866 = vsub.s32 %v1863, %v1865
      %v1867 = vrot.slane %v1859, %v1866
      %v1869 = vunpack.c.l.s4 1966171168
      %v1870 = vunpack.c.0.s8 %v1869
      %v1871 = vlaneseq
      %v1872 = vshrl.u32 %v1871, 7
      %v1873 = vsub.s32 %v1870, %v1872
      %v1874 = vrot.slane %v1860, %v1873
      %v1875 = vcombine.high %v1867, %v1867
      %v1876 = vcombine.high %v1874, %v1874
      %v1878 = vunpack.c.l.s4 1966171168
      %v1879 = vunpack.c.0.s8 %v1878
      %v1880 = vlaneseq
      %v1881 = vshrl.u32 %v1880, 7
      %v1882 = vsub.s32 %v1879, %v1881
      %v1883 = vrot.slane %v1840, %v1882
      %v1884 = vcombine.high %v1883, %v1883
      %v1886 = vunpack.c.l.s4 1966171168
      %v1887 = vunpack.c.0.s8 %v1886
      %v1888 = vlaneseq
      %v1889 = vshrl.u32 %v1888, 7
      %v1890 = vsub.s32 %v1887, %v1889
      %v1891 = vrot.slane %v1883, %v1890
      %v1893 = vunpack.c.l.s4 1966171168
      %v1894 = vunpack.c.0.s8 %v1893
      %v1895 = vlaneseq
      %v1896 = vshrl.u32 %v1895, 7
      %v1897 = vsub.s32 %v1894, %v1896
      %v1898 = vrot.slane %v1884, %v1897
      %v1899 = vcombine.high %v1891, %v1891
      %v1900 = vcombine.high %v1898, %v1898
      %v1902 = vunpack.c.l.s4 1966171168
      %v1903 = vunpack.c.0.s8 %v1902
      %v1904 = vlaneseq
      %v1905 = vshrl.u32 %v1904, 7
      %v1906 = vsub.s32 %v1903, %v1905
      %v1907 = vrot.slane %v1841, %v1906
      %v1908 = vcombine.high %v1907, %v1907
      %v1910 = vunpack.c.l.s4 1966171168
      %v1911 = vunpack.c.0.s8 %v1910
      %v1912 = vlaneseq
      %v1913 = vshrl.u32 %v1912, 7
      %v1914 = vsub.s32 %v1911, %v1913
      %v1915 = vrot.slane %v1907, %v1914
      %v1917 = vunpack.c.l.s4 1966171168
      %v1918 = vunpack.c.0.s8 %v1917
      %v1919 = vlaneseq
      %v1920 = vshrl.u32 %v1919, 7
      %v1921 = vsub.s32 %v1918, %v1920
      %v1922 = vrot.slane %v1908, %v1921
      %v1923 = vcombine.high %v1915, %v1915
      %v1924 = vcombine.high %v1922, %v1922
      %v1926 = vunpack.c.l.s4 1966171168
      %v1927 = vunpack.c.0.s8 %v1926
      %v1928 = vlaneseq
      %v1929 = vshrl.u32 %v1928, 7
      %v1930 = vsub.s32 %v1927, %v1929
      %v1931 = vrot.slane %v1842, %v1930
      %v1932 = vcombine.high %v1931, %v1931
      %v1934 = vunpack.c.l.s4 1966171168
      %v1935 = vunpack.c.0.s8 %v1934
      %v1936 = vlaneseq
      %v1937 = vshrl.u32 %v1936, 7
      %v1938 = vsub.s32 %v1935, %v1937
      %v1939 = vrot.slane %v1931, %v1938
      %v1941 = vunpack.c.l.s4 1966171168
      %v1942 = vunpack.c.0.s8 %v1941
      %v1943 = vlaneseq
      %v1944 = vshrl.u32 %v1943, 7
      %v1945 = vsub.s32 %v1942, %v1944
      %v1946 = vrot.slane %v1932, %v1945
      %v1947 = vcombine.high %v1939, %v1939
      %v1948 = vcombine.high %v1946, %v1946
      %v1950 = vunpack.c.l.s4 1966171168
      %v1951 = vunpack.c.0.s8 %v1950
      %v1952 = vlaneseq
      %v1953 = vshrl.u32 %v1952, 7
      %v1954 = vsub.s32 %v1951, %v1953
      %v1955 = vrot.slane %v1843, %v1954
      %v1956 = vcombine.high %v1955, %v1955
      %v1958 = vunpack.c.l.s4 1966171168
      %v1959 = vunpack.c.0.s8 %v1958
      %v1960 = vlaneseq
      %v1961 = vshrl.u32 %v1960, 7
      %v1962 = vsub.s32 %v1959, %v1961
      %v1963 = vrot.slane %v1955, %v1962
      %v1965 = vunpack.c.l.s4 1966171168
      %v1966 = vunpack.c.0.s8 %v1965
      %v1967 = vlaneseq
      %v1968 = vshrl.u32 %v1967, 7
      %v1969 = vsub.s32 %v1966, %v1968
      %v1970 = vrot.slane %v1956, %v1969
      %v1971 = vcombine.high %v1963, %v1963
      %v1972 = vcombine.high %v1970, %v1970
      %v1974 = vunpack.c.l.s4 1966171168
      %v1975 = vunpack.c.0.s8 %v1974
      %v1976 = vlaneseq
      %v1977 = vshrl.u32 %v1976, 7
      %v1978 = vsub.s32 %v1975, %v1977
      %v1979 = vrot.slane %v1844, %v1978
      %v1980 = vcombine.high %v1979, %v1979
      %v1982 = vunpack.c.l.s4 1966171168
      %v1983 = vunpack.c.0.s8 %v1982
      %v1984 = vlaneseq
      %v1985 = vshrl.u32 %v1984, 7
      %v1986 = vsub.s32 %v1983, %v1985
      %v1987 = vrot.slane %v1979, %v1986
      %v1989 = vunpack.c.l.s4 1966171168
      %v1990 = vunpack.c.0.s8 %v1989
      %v1991 = vlaneseq
      %v1992 = vshrl.u32 %v1991, 7
      %v1993 = vsub.s32 %v1990, %v1992
      %v1994 = vrot.slane %v1980, %v1993
      %v1995 = vcombine.high %v1987, %v1987
      %v1996 = vcombine.high %v1994, %v1994
      %v1998 = vunpack.c.l.s4 1966171168
      %v1999 = vunpack.c.0.s8 %v1998
      %v2000 = vlaneseq
      %v2001 = vshrl.u32 %v2000, 7
      %v2002 = vsub.s32 %v1999, %v2001
      %v2003 = vrot.slane %v1845, %v2002
      %v2004 = vcombine.high %v2003, %v2003
      %v2006 = vunpack.c.l.s4 1966171168
      %v2007 = vunpack.c.0.s8 %v2006
      %v2008 = vlaneseq
      %v2009 = vshrl.u32 %v2008, 7
      %v2010 = vsub.s32 %v2007, %v2009
      %v2011 = vrot.slane %v2003, %v2010
      %v2013 = vunpack.c.l.s4 1966171168
      %v2014 = vunpack.c.0.s8 %v2013
      %v2015 = vlaneseq
      %v2016 = vshrl.u32 %v2015, 7
      %v2017 = vsub.s32 %v2014, %v2016
      %v2018 = vrot.slane %v2004, %v2017
      %v2019 = vcombine.high %v2011, %v2011
      %v2020 = vcombine.high %v2018, %v2018
      %v2021 = vunpack.i.l.s16 %v1867
      %v2022 = vunpack.i.h.s16 %v1867
      %v2023 = vunpack.i.l.s16 %v1874
      %v2024 = vunpack.i.h.s16 %v1874
      %v2025 = vunpack.i.l.s16 %v1875
      %v2026 = vunpack.i.h.s16 %v1875
      %v2027 = vunpack.i.l.s16 %v1876
      %v2028 = vunpack.i.l.s16 %v1891
      %v2029 = vunpack.i.h.s16 %v1891
      %v2030 = vunpack.i.l.s16 %v1898
      %v2031 = vunpack.i.h.s16 %v1898
      %v2032 = vunpack.i.l.s16 %v1899
      %v2033 = vunpack.i.h.s16 %v1899
      %v2034 = vunpack.i.l.s16 %v1900
      %v2035 = vunpack.i.l.s16 %v1915
      %v2036 = vunpack.i.h.s16 %v1915
      %v2037 = vunpack.i.l.s16 %v1922
      %v2038 = vunpack.i.h.s16 %v1922
      %v2039 = vunpack.i.l.s16 %v1923
      %v2040 = vunpack.i.h.s16 %v1923
      %v2041 = vunpack.i.l.s16 %v1924
      %v2042 = vunpack.i.l.s16 %v1939
      %v2043 = vunpack.i.h.s16 %v1939
      %v2044 = vunpack.i.l.s16 %v1946
      %v2045 = vunpack.i.h.s16 %v1946
      %v2046 = vunpack.i.l.s16 %v1947
      %v2047 = vunpack.i.h.s16 %v1947
      %v2048 = vunpack.i.l.s16 %v1948
      %v2049 = vunpack.i.l.s16 %v1963
      %v2050 = vunpack.i.h.s16 %v1963
      %v2051 = vunpack.i.l.s16 %v1970
      %v2052 = vunpack.i.h.s16 %v1970
      %v2053 = vunpack.i.l.s16 %v1971
      %v2054 = vunpack.i.h.s16 %v1971
      %v2055 = vunpack.i.l.s16 %v1972
      %v2056 = vunpack.i.l.s16 %v1987
      %v2057 = vunpack.i.h.s16 %v1987
      %v2058 = vunpack.i.l.s16 %v1994
      %v2059 = vunpack.i.h.s16 %v1994
      %v2060 = vunpack.i.l.s16 %v1995
      %v2061 = vunpack.i.h.s16 %v1995
      %v2062 = vunpack.i.l.s16 %v1996
      %v2063 = vunpack.i.l.s16 %v2011
      %v2064 = vunpack.i.h.s16 %v2011
      %v2065 = vunpack.i.l.s16 %v2018
      %v2066 = vunpack.i.h.s16 %v2018
      %v2067 = vunpack.i.l.s16 %v2019
      %v2068 = vunpack.i.h.s16 %v2019
      %v2069 = vunpack.i.l.s16 %v2020
      %s2070 = scalar_lea.vmem %s2, 6
      %v2071 = vld [vmem:[%s2070] sm:$0x3]
      %v2072 = vpack.i.b16 %v2022, %v2021
      %v2073 = vpack.i.b16 %v2024, %v2023
      %v2074 = vpack.i.b16 %v2026, %v2025
      %v2075 = vpack.i.b16 %v2028, %v2027
      %v2076 = vpack.i.b16 %v2030, %v2029
      %v2077 = vpack.i.b16 %v2032, %v2031
      %v2078 = vpack.i.b16 %v2034, %v2033
      %v2079 = vpack.i.b16 %v2036, %v2035
      %v2080 = vpack.i.b16 %v2038, %v2037
      %v2081 = vpack.i.b16 %v2040, %v2039
      %v2082 = vpack.i.b16 %v2042, %v2041
      %v2083 = vpack.i.b16 %v2044, %v2043
      %v2084 = vpack.i.b16 %v2046, %v2045
      %v2085 = vpack.i.b16 %v2048, %v2047
      %v2086 = vpack.i.b16 %v2050, %v2049
      %v2087 = vpack.i.b16 %v2052, %v2051
      %v2088 = vpack.i.b16 %v2054, %v2053
      %v2089 = vpack.i.b16 %v2056, %v2055
      %v2090 = vpack.i.b16 %v2058, %v2057
      %v2091 = vpack.i.b16 %v2060, %v2059
      %v2092 = vpack.i.b16 %v2062, %v2061
      %v2093 = vpack.i.b16 %v2064, %v2063
      %v2094 = vpack.i.b16 %v2066, %v2065
      %v2095 = vpack.i.b16 %v2068, %v2067
      %v2097 = vcombine.low %v2072, %v2073
      %v2098 = vcombine.low %v2074, %v2075
      %v2099 = vcombine.low %v2076, %v2077
      %v2100 = vcombine.low %v2078, %v2079
      %v2102 = vunpack.c.l.s4 1966171168
      %v2103 = vunpack.c.0.s8 %v2102
      %v2104 = vlaneseq
      %v2105 = vshrl.u32 %v2104, 7
      %v2106 = vsub.s32 %v2103, %v2105
      %v2107 = vrot.slane %v2097, %v2106
      %v2109 = vunpack.c.l.s4 1966171168
      %v2110 = vunpack.c.0.s8 %v2109
      %v2111 = vlaneseq
      %v2112 = vshrl.u32 %v2111, 7
      %v2113 = vsub.s32 %v2110, %v2112
      %v2114 = vrot.slane %v2098, %v2113
      %v2116 = vunpack.c.l.s4 1966171168
      %v2117 = vunpack.c.0.s8 %v2116
      %v2118 = vlaneseq
      %v2119 = vshrl.u32 %v2118, 7
      %v2120 = vsub.s32 %v2117, %v2119
      %v2121 = vrot.slane %v2099, %v2120
      %v2123 = vunpack.c.l.s4 1966171168
      %v2124 = vunpack.c.0.s8 %v2123
      %v2125 = vlaneseq
      %v2126 = vshrl.u32 %v2125, 7
      %v2127 = vsub.s32 %v2124, %v2126
      %v2128 = vrot.slane %v2100, %v2127
      %v2129 = vcombine.low %v2107, %v2114
      %v2130 = vcombine.low %v2121, %v2128
      %v2132 = vunpack.c.l.s4 1966171168
      %v2133 = vunpack.c.0.s8 %v2132
      %v2134 = vlaneseq
      %v2135 = vshrl.u32 %v2134, 7
      %v2136 = vsub.s32 %v2133, %v2135
      %v2137 = vrot.slane %v2129, %v2136
      %v2139 = vunpack.c.l.s4 1966171168
      %v2140 = vunpack.c.0.s8 %v2139
      %v2141 = vlaneseq
      %v2142 = vshrl.u32 %v2141, 7
      %v2143 = vsub.s32 %v2140, %v2142
      %v2144 = vrot.slane %v2130, %v2143
      %v2145 = vcombine.low %v2137, %v2144
      %v2146 = vcombine.low %v2080, %v2081
      %v2147 = vcombine.low %v2082, %v2083
      %v2148 = vcombine.low %v2084, %v2085
      %v2149 = vcombine.low %v2086, %v2087
      %v2151 = vunpack.c.l.s4 1966171168
      %v2152 = vunpack.c.0.s8 %v2151
      %v2153 = vlaneseq
      %v2154 = vshrl.u32 %v2153, 7
      %v2155 = vsub.s32 %v2152, %v2154
      %v2156 = vrot.slane %v2146, %v2155
      %v2158 = vunpack.c.l.s4 1966171168
      %v2159 = vunpack.c.0.s8 %v2158
      %v2160 = vlaneseq
      %v2161 = vshrl.u32 %v2160, 7
      %v2162 = vsub.s32 %v2159, %v2161
      %v2163 = vrot.slane %v2147, %v2162
      %v2165 = vunpack.c.l.s4 1966171168
      %v2166 = vunpack.c.0.s8 %v2165
      %v2167 = vlaneseq
      %v2168 = vshrl.u32 %v2167, 7
      %v2169 = vsub.s32 %v2166, %v2168
      %v2170 = vrot.slane %v2148, %v2169
      %v2172 = vunpack.c.l.s4 1966171168
      %v2173 = vunpack.c.0.s8 %v2172
      %v2174 = vlaneseq
      %v2175 = vshrl.u32 %v2174, 7
      %v2176 = vsub.s32 %v2173, %v2175
      %v2177 = vrot.slane %v2149, %v2176
      %v2178 = vcombine.low %v2156, %v2163
      %v2179 = vcombine.low %v2170, %v2177
      %v2181 = vunpack.c.l.s4 1966171168
      %v2182 = vunpack.c.0.s8 %v2181
      %v2183 = vlaneseq
      %v2184 = vshrl.u32 %v2183, 7
      %v2185 = vsub.s32 %v2182, %v2184
      %v2186 = vrot.slane %v2178, %v2185
      %v2188 = vunpack.c.l.s4 1966171168
      %v2189 = vunpack.c.0.s8 %v2188
      %v2190 = vlaneseq
      %v2191 = vshrl.u32 %v2190, 7
      %v2192 = vsub.s32 %v2189, %v2191
      %v2193 = vrot.slane %v2179, %v2192
      %v2194 = vcombine.low %v2186, %v2193
      %v2195 = vcombine.low %v2088, %v2089
      %v2196 = vcombine.low %v2090, %v2091
      %v2197 = vcombine.low %v2092, %v2093
      %v2198 = vcombine.low %v2094, %v2095
      %v2200 = vunpack.c.l.s4 1966171168
      %v2201 = vunpack.c.0.s8 %v2200
      %v2202 = vlaneseq
      %v2203 = vshrl.u32 %v2202, 7
      %v2204 = vsub.s32 %v2201, %v2203
      %v2205 = vrot.slane %v2195, %v2204
      %v2207 = vunpack.c.l.s4 1966171168
      %v2208 = vunpack.c.0.s8 %v2207
      %v2209 = vlaneseq
      %v2210 = vshrl.u32 %v2209, 7
      %v2211 = vsub.s32 %v2208, %v2210
      %v2212 = vrot.slane %v2196, %v2211
      %v2214 = vunpack.c.l.s4 1966171168
      %v2215 = vunpack.c.0.s8 %v2214
      %v2216 = vlaneseq
      %v2217 = vshrl.u32 %v2216, 7
      %v2218 = vsub.s32 %v2215, %v2217
      %v2219 = vrot.slane %v2197, %v2218
      %v2221 = vunpack.c.l.s4 1966171168
      %v2222 = vunpack.c.0.s8 %v2221
      %v2223 = vlaneseq
      %v2224 = vshrl.u32 %v2223, 7
      %v2225 = vsub.s32 %v2222, %v2224
      %v2226 = vrot.slane %v2198, %v2225
      %v2227 = vcombine.low %v2205, %v2212
      %v2228 = vcombine.low %v2219, %v2226
      %v2230 = vunpack.c.l.s4 1966171168
      %v2231 = vunpack.c.0.s8 %v2230
      %v2232 = vlaneseq
      %v2233 = vshrl.u32 %v2232, 7
      %v2234 = vsub.s32 %v2231, %v2233
      %v2235 = vrot.slane %v2227, %v2234
      %v2237 = vunpack.c.l.s4 1966171168
      %v2238 = vunpack.c.0.s8 %v2237
      %v2239 = vlaneseq
      %v2240 = vshrl.u32 %v2239, 7
      %v2241 = vsub.s32 %v2238, %v2240
      %v2242 = vrot.slane %v2228, %v2241
      %v2243 = vcombine.low %v2235, %v2242
      %v2245 = vunpack.c.l.s4 1966171168
      %v2246 = vunpack.c.0.s8 %v2245
      %v2247 = vlaneseq
      %v2248 = vshrl.u32 %v2247, 7
      %v2249 = vsub.s32 %v2246, %v2248
      %v2250 = vrot.slane %v2069, %v2249
      %v2252 = vunpack.c.l.s4 1966171168
      %v2253 = vunpack.c.0.s8 %v2252
      %v2254 = vlaneseq
      %v2255 = vshrl.u32 %v2254, 7
      %v2256 = vsub.s32 %v2253, %v2255
      %v2257 = vrot.slane %v2250, %v2256
      %v2259 = vsel %vm987, %v2145, 0
      %v2262 = vsel %vm987, %v2194, 0
      %v2265 = vsel %vm987, %v2243, 0
      %v2268 = vsel %vm987, %v2257, 0
      %v2271 = vsel %vm1000, %v2071, 0
      %2273 = vmatprep.subr.bf16.mxu0 0
      %2274 = vmatpush1.bf16.msra.mxu0 0
      %2275 = vmatprep.subr.bf16.mxu0 0
      %2276 = vmatpush1.bf16.msra.mxu0 0
      %2277 = vmatprep.subr.bf16.mxu0 0
      %2278 = vmatpush1.bf16.msra.mxu0 0
      %2279 = vmatprep.subr.bf16.mxu0 0
      %2280 = vmatpush1.bf16.msra.mxu0 0
      %2281 = vmatprep.subr.bf16.mxu0 0
      %2282 = vmatpush1.bf16.msra.mxu0 0
      %2283 = vmatprep.subr.bf16.mxu0 0
      %2284 = vmatpush1.bf16.msra.mxu0 0
      %2285 = vmatprep.subr.bf16.mxu0 0
      %2286 = vmatpush1.bf16.msra.mxu0 0
      %2287 = vmatprep.subr.bf16.mxu0 0
      %2288 = vmatpush1.bf16.msra.mxu0 %v2271
      %2289 = vmatprep.subr.bf16.mxu0 0
      %2290 = vmatpush2.bf16.msra.mxu0 0
      %2291 = vmatprep.subr.bf16.mxu0 0
      %2292 = vmatpush2.bf16.msra.mxu0 0
      %2293 = vmatprep.subr.bf16.mxu0 0
      %2294 = vmatpush2.bf16.msra.mxu0 0
      %2295 = vmatprep.subr.bf16.mxu0 0
      %2296 = vmatpush2.bf16.msra.mxu0 0
      %2297 = vmatprep.subr.bf16.mxu0 0
      %2298 = vmatpush2.bf16.msra.mxu0 0
      %2299 = vmatprep.subr.bf16.mxu0 0
      %2300 = vmatpush2.bf16.msra.mxu0 0
      %2301 = vmatprep.subr.bf16.mxu0 0
      %2302 = vmatpush2.bf16.msra.mxu0 0
      %2303 = vmatprep.subr.bf16.mxu0 0
      %2304 = vmatpush2.bf16.msra.mxu0 0
      %2305 = vmatprep.mubr.bf16.mxu0 0
      %2306 = vmatmul.mubr.bf16.gmra.mxu0 %v2259
      %v2307 = vpop.f32.mrf.mxu0
      %v2308 = vadd.f32 0.0, %v2307
      %v2309 = vpop.f32.mrf.mxu0
      %v2310 = vpop.f32.mrf.mxu0
      %v2311 = vadd.f32 0.0, %v2310
      %v2312 = vpop.f32.mrf.mxu0
      %2313 = vmatprep.mubr.bf16.mxu0 0
      %2314 = vmatmul.mubr.bf16.gmra.mxu0 %v2262
      %v2315 = vpop.f32.mrf.mxu0
      %v2316 = vadd.f32 0.0, %v2315
      %v2317 = vpop.f32.mrf.mxu0
      %v2318 = vpop.f32.mrf.mxu0
      %v2319 = vadd.f32 0.0, %v2318
      %v2320 = vpop.f32.mrf.mxu0
      %2321 = vmatprep.mubr.bf16.mxu0 0
      %2322 = vmatmul.mubr.bf16.gmra.mxu0 %v2265
      %v2323 = vpop.f32.mrf.mxu0
      %v2324 = vadd.f32 0.0, %v2323
      %v2325 = vpop.f32.mrf.mxu0
      %v2326 = vpop.f32.mrf.mxu0
      %v2327 = vadd.f32 0.0, %v2326
      %v2328 = vpop.f32.mrf.mxu0
      %2329 = vmatprep.mubr.bf16.mxu0 0
      %2330 = vmatmul.mubr.bf16.gmra.mxu0 %v2268
      %v2331 = vpop.f32.mrf.mxu0
      %v2332 = vadd.f32 0.0, %v2331
      %v2333 = vpop.f32.mrf.mxu0
      %v2334 = vpop.f32.mrf.mxu0
      %v2335 = vpop.f32.mrf.mxu0
      %2336 = vdwg.mxu0
      %v2337 = vadd.f32 %v1831, %v2308
      %v2338 = vadd.f32 %v1832, %v2311
      %v2339 = vadd.f32 %v1833, %v2316
      %v2340 = vadd.f32 %v1834, %v2319
      %v2341 = vadd.f32 %v1835, %v2324
      %v2342 = vadd.f32 %v1836, %v2327
      %v2343 = vadd.f32 %v1837, %v2332
      %s2344 = scalar_lea.vmem %s307, 12
      %v2345 = vld [vmem:[%s2344] sm:$0xf]
      %v2346 = vld [vmem:[%s2344 + $0x10] sm:$0xf]
      %v2347 = vld [vmem:[%s2344 + $0x20] sm:$0xf]
      %v2348 = vld [vmem:[%s2344 + $0x30] sm:$0xf]
      %v2349 = vld [vmem:[%s2344 + $0x40] sm:$0xf]
      %v2350 = vld [vmem:[%s2344 + $0x50] sm:$0xf]
      %v2351 = vld [vmem:[%s2344 + $0x60] sm:$0xf]
      %v2360 = vunpack.c.l.s4 1966171168
      %v2361 = vunpack.c.0.s8 %v2360
      %v2362 = vlaneseq
      %v2363 = vshrl.u32 %v2362, 7
      %v2364 = vsub.s32 %v2361, %v2363
      %v2365 = vrot.slane %v2345, %v2364
      %v2366 = vcombine.high %v2365, %v2365
      %v2368 = vunpack.c.l.s4 1966171168
      %v2369 = vunpack.c.0.s8 %v2368
      %v2370 = vlaneseq
      %v2371 = vshrl.u32 %v2370, 7
      %v2372 = vsub.s32 %v2369, %v2371
      %v2373 = vrot.slane %v2365, %v2372
      %v2375 = vunpack.c.l.s4 1966171168
      %v2376 = vunpack.c.0.s8 %v2375
      %v2377 = vlaneseq
      %v2378 = vshrl.u32 %v2377, 7
      %v2379 = vsub.s32 %v2376, %v2378
      %v2380 = vrot.slane %v2366, %v2379
      %v2381 = vcombine.high %v2373, %v2373
      %v2382 = vcombine.high %v2380, %v2380
      %v2384 = vunpack.c.l.s4 1966171168
      %v2385 = vunpack.c.0.s8 %v2384
      %v2386 = vlaneseq
      %v2387 = vshrl.u32 %v2386, 7
      %v2388 = vsub.s32 %v2385, %v2387
      %v2389 = vrot.slane %v2346, %v2388
      %v2390 = vcombine.high %v2389, %v2389
      %v2392 = vunpack.c.l.s4 1966171168
      %v2393 = vunpack.c.0.s8 %v2392
      %v2394 = vlaneseq
      %v2395 = vshrl.u32 %v2394, 7
      %v2396 = vsub.s32 %v2393, %v2395
      %v2397 = vrot.slane %v2389, %v2396
      %v2399 = vunpack.c.l.s4 1966171168
      %v2400 = vunpack.c.0.s8 %v2399
      %v2401 = vlaneseq
      %v2402 = vshrl.u32 %v2401, 7
      %v2403 = vsub.s32 %v2400, %v2402
      %v2404 = vrot.slane %v2390, %v2403
      %v2405 = vcombine.high %v2397, %v2397
      %v2406 = vcombine.high %v2404, %v2404
      %v2408 = vunpack.c.l.s4 1966171168
      %v2409 = vunpack.c.0.s8 %v2408
      %v2410 = vlaneseq
      %v2411 = vshrl.u32 %v2410, 7
      %v2412 = vsub.s32 %v2409, %v2411
      %v2413 = vrot.slane %v2347, %v2412
      %v2414 = vcombine.high %v2413, %v2413
      %v2416 = vunpack.c.l.s4 1966171168
      %v2417 = vunpack.c.0.s8 %v2416
      %v2418 = vlaneseq
      %v2419 = vshrl.u32 %v2418, 7
      %v2420 = vsub.s32 %v2417, %v2419
      %v2421 = vrot.slane %v2413, %v2420
      %v2423 = vunpack.c.l.s4 1966171168
      %v2424 = vunpack.c.0.s8 %v2423
      %v2425 = vlaneseq
      %v2426 = vshrl.u32 %v2425, 7
      %v2427 = vsub.s32 %v2424, %v2426
      %v2428 = vrot.slane %v2414, %v2427
      %v2429 = vcombine.high %v2421, %v2421
      %v2430 = vcombine.high %v2428, %v2428
      %v2432 = vunpack.c.l.s4 1966171168
      %v2433 = vunpack.c.0.s8 %v2432
      %v2434 = vlaneseq
      %v2435 = vshrl.u32 %v2434, 7
      %v2436 = vsub.s32 %v2433, %v2435
      %v2437 = vrot.slane %v2348, %v2436
      %v2438 = vcombine.high %v2437, %v2437
      %v2440 = vunpack.c.l.s4 1966171168
      %v2441 = vunpack.c.0.s8 %v2440
      %v2442 = vlaneseq
      %v2443 = vshrl.u32 %v2442, 7
      %v2444 = vsub.s32 %v2441, %v2443
      %v2445 = vrot.slane %v2437, %v2444
      %v2447 = vunpack.c.l.s4 1966171168
      %v2448 = vunpack.c.0.s8 %v2447
      %v2449 = vlaneseq
      %v2450 = vshrl.u32 %v2449, 7
      %v2451 = vsub.s32 %v2448, %v2450
      %v2452 = vrot.slane %v2438, %v2451
      %v2453 = vcombine.high %v2445, %v2445
      %v2454 = vcombine.high %v2452, %v2452
      %v2456 = vunpack.c.l.s4 1966171168
      %v2457 = vunpack.c.0.s8 %v2456
      %v2458 = vlaneseq
      %v2459 = vshrl.u32 %v2458, 7
      %v2460 = vsub.s32 %v2457, %v2459
      %v2461 = vrot.slane %v2349, %v2460
      %v2462 = vcombine.high %v2461, %v2461
      %v2464 = vunpack.c.l.s4 1966171168
      %v2465 = vunpack.c.0.s8 %v2464
      %v2466 = vlaneseq
      %v2467 = vshrl.u32 %v2466, 7
      %v2468 = vsub.s32 %v2465, %v2467
      %v2469 = vrot.slane %v2461, %v2468
      %v2471 = vunpack.c.l.s4 1966171168
      %v2472 = vunpack.c.0.s8 %v2471
      %v2473 = vlaneseq
      %v2474 = vshrl.u32 %v2473, 7
      %v2475 = vsub.s32 %v2472, %v2474
      %v2476 = vrot.slane %v2462, %v2475
      %v2477 = vcombine.high %v2469, %v2469
      %v2478 = vcombine.high %v2476, %v2476
      %v2480 = vunpack.c.l.s4 1966171168
      %v2481 = vunpack.c.0.s8 %v2480
      %v2482 = vlaneseq
      %v2483 = vshrl.u32 %v2482, 7
      %v2484 = vsub.s32 %v2481, %v2483
      %v2485 = vrot.slane %v2350, %v2484
      %v2486 = vcombine.high %v2485, %v2485
      %v2488 = vunpack.c.l.s4 1966171168
      %v2489 = vunpack.c.0.s8 %v2488
      %v2490 = vlaneseq
      %v2491 = vshrl.u32 %v2490, 7
      %v2492 = vsub.s32 %v2489, %v2491
      %v2493 = vrot.slane %v2485, %v2492
      %v2495 = vunpack.c.l.s4 1966171168
      %v2496 = vunpack.c.0.s8 %v2495
      %v2497 = vlaneseq
      %v2498 = vshrl.u32 %v2497, 7
      %v2499 = vsub.s32 %v2496, %v2498
      %v2500 = vrot.slane %v2486, %v2499
      %v2501 = vcombine.high %v2493, %v2493
      %v2502 = vcombine.high %v2500, %v2500
      %v2504 = vunpack.c.l.s4 1966171168
      %v2505 = vunpack.c.0.s8 %v2504
      %v2506 = vlaneseq
      %v2507 = vshrl.u32 %v2506, 7
      %v2508 = vsub.s32 %v2505, %v2507
      %v2509 = vrot.slane %v2351, %v2508
      %v2510 = vcombine.high %v2509, %v2509
      %v2512 = vunpack.c.l.s4 1966171168
      %v2513 = vunpack.c.0.s8 %v2512
      %v2514 = vlaneseq
      %v2515 = vshrl.u32 %v2514, 7
      %v2516 = vsub.s32 %v2513, %v2515
      %v2517 = vrot.slane %v2509, %v2516
      %v2519 = vunpack.c.l.s4 1966171168
      %v2520 = vunpack.c.0.s8 %v2519
      %v2521 = vlaneseq
      %v2522 = vshrl.u32 %v2521, 7
      %v2523 = vsub.s32 %v2520, %v2522
      %v2524 = vrot.slane %v2510, %v2523
      %v2525 = vcombine.high %v2517, %v2517
      %v2526 = vcombine.high %v2524, %v2524
      %v2527 = vunpack.i.l.s16 %v2373
      %v2528 = vunpack.i.h.s16 %v2373
      %v2529 = vunpack.i.l.s16 %v2380
      %v2530 = vunpack.i.h.s16 %v2380
      %v2531 = vunpack.i.l.s16 %v2381
      %v2532 = vunpack.i.h.s16 %v2381
      %v2533 = vunpack.i.l.s16 %v2382
      %v2534 = vunpack.i.l.s16 %v2397
      %v2535 = vunpack.i.h.s16 %v2397
      %v2536 = vunpack.i.l.s16 %v2404
      %v2537 = vunpack.i.h.s16 %v2404
      %v2538 = vunpack.i.l.s16 %v2405
      %v2539 = vunpack.i.h.s16 %v2405
      %v2540 = vunpack.i.l.s16 %v2406
      %v2541 = vunpack.i.l.s16 %v2421
      %v2542 = vunpack.i.h.s16 %v2421
      %v2543 = vunpack.i.l.s16 %v2428
      %v2544 = vunpack.i.h.s16 %v2428
      %v2545 = vunpack.i.l.s16 %v2429
      %v2546 = vunpack.i.h.s16 %v2429
      %v2547 = vunpack.i.l.s16 %v2430
      %v2548 = vunpack.i.l.s16 %v2445
      %v2549 = vunpack.i.h.s16 %v2445
      %v2550 = vunpack.i.l.s16 %v2452
      %v2551 = vunpack.i.h.s16 %v2452
      %v2552 = vunpack.i.l.s16 %v2453
      %v2553 = vunpack.i.h.s16 %v2453
      %v2554 = vunpack.i.l.s16 %v2454
      %v2555 = vunpack.i.l.s16 %v2469
      %v2556 = vunpack.i.h.s16 %v2469
      %v2557 = vunpack.i.l.s16 %v2476
      %v2558 = vunpack.i.h.s16 %v2476
      %v2559 = vunpack.i.l.s16 %v2477
      %v2560 = vunpack.i.h.s16 %v2477
      %v2561 = vunpack.i.l.s16 %v2478
      %v2562 = vunpack.i.l.s16 %v2493
      %v2563 = vunpack.i.h.s16 %v2493
      %v2564 = vunpack.i.l.s16 %v2500
      %v2565 = vunpack.i.h.s16 %v2500
      %v2566 = vunpack.i.l.s16 %v2501
      %v2567 = vunpack.i.h.s16 %v2501
      %v2568 = vunpack.i.l.s16 %v2502
      %v2569 = vunpack.i.l.s16 %v2517
      %v2570 = vunpack.i.h.s16 %v2517
      %v2571 = vunpack.i.l.s16 %v2524
      %v2572 = vunpack.i.h.s16 %v2524
      %v2573 = vunpack.i.l.s16 %v2525
      %v2574 = vunpack.i.h.s16 %v2525
      %v2575 = vunpack.i.l.s16 %v2526
      %s2576 = scalar_lea.vmem %s2, 8
      %v2577 = vld [vmem:[%s2576] sm:$0x3]
      %v2578 = vpack.i.b16 %v2528, %v2527
      %v2579 = vpack.i.b16 %v2530, %v2529
      %v2580 = vpack.i.b16 %v2532, %v2531
      %v2581 = vpack.i.b16 %v2534, %v2533
      %v2582 = vpack.i.b16 %v2536, %v2535
      %v2583 = vpack.i.b16 %v2538, %v2537
      %v2584 = vpack.i.b16 %v2540, %v2539
      %v2585 = vpack.i.b16 %v2542, %v2541
      %v2586 = vpack.i.b16 %v2544, %v2543
      %v2587 = vpack.i.b16 %v2546, %v2545
      %v2588 = vpack.i.b16 %v2548, %v2547
      %v2589 = vpack.i.b16 %v2550, %v2549
      %v2590 = vpack.i.b16 %v2552, %v2551
      %v2591 = vpack.i.b16 %v2554, %v2553
      %v2592 = vpack.i.b16 %v2556, %v2555
      %v2593 = vpack.i.b16 %v2558, %v2557
      %v2594 = vpack.i.b16 %v2560, %v2559
      %v2595 = vpack.i.b16 %v2562, %v2561
      %v2596 = vpack.i.b16 %v2564, %v2563
      %v2597 = vpack.i.b16 %v2566, %v2565
      %v2598 = vpack.i.b16 %v2568, %v2567
      %v2599 = vpack.i.b16 %v2570, %v2569
      %v2600 = vpack.i.b16 %v2572, %v2571
      %v2601 = vpack.i.b16 %v2574, %v2573
      %v2603 = vcombine.low %v2578, %v2579
      %v2604 = vcombine.low %v2580, %v2581
      %v2605 = vcombine.low %v2582, %v2583
      %v2606 = vcombine.low %v2584, %v2585
      %v2608 = vunpack.c.l.s4 1966171168
      %v2609 = vunpack.c.0.s8 %v2608
      %v2610 = vlaneseq
      %v2611 = vshrl.u32 %v2610, 7
      %v2612 = vsub.s32 %v2609, %v2611
      %v2613 = vrot.slane %v2603, %v2612
      %v2615 = vunpack.c.l.s4 1966171168
      %v2616 = vunpack.c.0.s8 %v2615
      %v2617 = vlaneseq
      %v2618 = vshrl.u32 %v2617, 7
      %v2619 = vsub.s32 %v2616, %v2618
      %v2620 = vrot.slane %v2604, %v2619
      %v2622 = vunpack.c.l.s4 1966171168
      %v2623 = vunpack.c.0.s8 %v2622
      %v2624 = vlaneseq
      %v2625 = vshrl.u32 %v2624, 7
      %v2626 = vsub.s32 %v2623, %v2625
      %v2627 = vrot.slane %v2605, %v2626
      %v2629 = vunpack.c.l.s4 1966171168
      %v2630 = vunpack.c.0.s8 %v2629
      %v2631 = vlaneseq
      %v2632 = vshrl.u32 %v2631, 7
      %v2633 = vsub.s32 %v2630, %v2632
      %v2634 = vrot.slane %v2606, %v2633
      %v2635 = vcombine.low %v2613, %v2620
      %v2636 = vcombine.low %v2627, %v2634
      %v2638 = vunpack.c.l.s4 1966171168
      %v2639 = vunpack.c.0.s8 %v2638
      %v2640 = vlaneseq
      %v2641 = vshrl.u32 %v2640, 7
      %v2642 = vsub.s32 %v2639, %v2641
      %v2643 = vrot.slane %v2635, %v2642
      %v2645 = vunpack.c.l.s4 1966171168
      %v2646 = vunpack.c.0.s8 %v2645
      %v2647 = vlaneseq
      %v2648 = vshrl.u32 %v2647, 7
      %v2649 = vsub.s32 %v2646, %v2648
      %v2650 = vrot.slane %v2636, %v2649
      %v2651 = vcombine.low %v2643, %v2650
      %v2652 = vcombine.low %v2586, %v2587
      %v2653 = vcombine.low %v2588, %v2589
      %v2654 = vcombine.low %v2590, %v2591
      %v2655 = vcombine.low %v2592, %v2593
      %v2657 = vunpack.c.l.s4 1966171168
      %v2658 = vunpack.c.0.s8 %v2657
      %v2659 = vlaneseq
      %v2660 = vshrl.u32 %v2659, 7
      %v2661 = vsub.s32 %v2658, %v2660
      %v2662 = vrot.slane %v2652, %v2661
      %v2664 = vunpack.c.l.s4 1966171168
      %v2665 = vunpack.c.0.s8 %v2664
      %v2666 = vlaneseq
      %v2667 = vshrl.u32 %v2666, 7
      %v2668 = vsub.s32 %v2665, %v2667
      %v2669 = vrot.slane %v2653, %v2668
      %v2671 = vunpack.c.l.s4 1966171168
      %v2672 = vunpack.c.0.s8 %v2671
      %v2673 = vlaneseq
      %v2674 = vshrl.u32 %v2673, 7
      %v2675 = vsub.s32 %v2672, %v2674
      %v2676 = vrot.slane %v2654, %v2675
      %v2678 = vunpack.c.l.s4 1966171168
      %v2679 = vunpack.c.0.s8 %v2678
      %v2680 = vlaneseq
      %v2681 = vshrl.u32 %v2680, 7
      %v2682 = vsub.s32 %v2679, %v2681
      %v2683 = vrot.slane %v2655, %v2682
      %v2684 = vcombine.low %v2662, %v2669
      %v2685 = vcombine.low %v2676, %v2683
      %v2687 = vunpack.c.l.s4 1966171168
      %v2688 = vunpack.c.0.s8 %v2687
      %v2689 = vlaneseq
      %v2690 = vshrl.u32 %v2689, 7
      %v2691 = vsub.s32 %v2688, %v2690
      %v2692 = vrot.slane %v2684, %v2691
      %v2694 = vunpack.c.l.s4 1966171168
      %v2695 = vunpack.c.0.s8 %v2694
      %v2696 = vlaneseq
      %v2697 = vshrl.u32 %v2696, 7
      %v2698 = vsub.s32 %v2695, %v2697
      %v2699 = vrot.slane %v2685, %v2698
      %v2700 = vcombine.low %v2692, %v2699
      %v2701 = vcombine.low %v2594, %v2595
      %v2702 = vcombine.low %v2596, %v2597
      %v2703 = vcombine.low %v2598, %v2599
      %v2704 = vcombine.low %v2600, %v2601
      %v2706 = vunpack.c.l.s4 1966171168
      %v2707 = vunpack.c.0.s8 %v2706
      %v2708 = vlaneseq
      %v2709 = vshrl.u32 %v2708, 7
      %v2710 = vsub.s32 %v2707, %v2709
      %v2711 = vrot.slane %v2701, %v2710
      %v2713 = vunpack.c.l.s4 1966171168
      %v2714 = vunpack.c.0.s8 %v2713
      %v2715 = vlaneseq
      %v2716 = vshrl.u32 %v2715, 7
      %v2717 = vsub.s32 %v2714, %v2716
      %v2718 = vrot.slane %v2702, %v2717
      %v2720 = vunpack.c.l.s4 1966171168
      %v2721 = vunpack.c.0.s8 %v2720
      %v2722 = vlaneseq
      %v2723 = vshrl.u32 %v2722, 7
      %v2724 = vsub.s32 %v2721, %v2723
      %v2725 = vrot.slane %v2703, %v2724
      %v2727 = vunpack.c.l.s4 1966171168
      %v2728 = vunpack.c.0.s8 %v2727
      %v2729 = vlaneseq
      %v2730 = vshrl.u32 %v2729, 7
      %v2731 = vsub.s32 %v2728, %v2730
      %v2732 = vrot.slane %v2704, %v2731
      %v2733 = vcombine.low %v2711, %v2718
      %v2734 = vcombine.low %v2725, %v2732
      %v2736 = vunpack.c.l.s4 1966171168
      %v2737 = vunpack.c.0.s8 %v2736
      %v2738 = vlaneseq
      %v2739 = vshrl.u32 %v2738, 7
      %v2740 = vsub.s32 %v2737, %v2739
      %v2741 = vrot.slane %v2733, %v2740
      %v2743 = vunpack.c.l.s4 1966171168
      %v2744 = vunpack.c.0.s8 %v2743
      %v2745 = vlaneseq
      %v2746 = vshrl.u32 %v2745, 7
      %v2747 = vsub.s32 %v2744, %v2746
      %v2748 = vrot.slane %v2734, %v2747
      %v2749 = vcombine.low %v2741, %v2748
      %v2751 = vunpack.c.l.s4 1966171168
      %v2752 = vunpack.c.0.s8 %v2751
      %v2753 = vlaneseq
      %v2754 = vshrl.u32 %v2753, 7
      %v2755 = vsub.s32 %v2752, %v2754
      %v2756 = vrot.slane %v2575, %v2755
      %v2758 = vunpack.c.l.s4 1966171168
      %v2759 = vunpack.c.0.s8 %v2758
      %v2760 = vlaneseq
      %v2761 = vshrl.u32 %v2760, 7
      %v2762 = vsub.s32 %v2759, %v2761
      %v2763 = vrot.slane %v2756, %v2762
      %v2765 = vsel %vm987, %v2651, 0
      %v2768 = vsel %vm987, %v2700, 0
      %v2771 = vsel %vm987, %v2749, 0
      %v2774 = vsel %vm987, %v2763, 0
      %v2777 = vsel %vm1000, %v2577, 0
      %2779 = vmatprep.subr.bf16.mxu0 0
      %2780 = vmatpush1.bf16.msra.mxu0 0
      %2781 = vmatprep.subr.bf16.mxu0 0
      %2782 = vmatpush1.bf16.msra.mxu0 0
      %2783 = vmatprep.subr.bf16.mxu0 0
      %2784 = vmatpush1.bf16.msra.mxu0 0
      %2785 = vmatprep.subr.bf16.mxu0 0
      %2786 = vmatpush1.bf16.msra.mxu0 0
      %2787 = vmatprep.subr.bf16.mxu0 0
      %2788 = vmatpush1.bf16.msra.mxu0 0
      %2789 = vmatprep.subr.bf16.mxu0 0
      %2790 = vmatpush1.bf16.msra.mxu0 0
      %2791 = vmatprep.subr.bf16.mxu0 0
      %2792 = vmatpush1.bf16.msra.mxu0 0
      %2793 = vmatprep.subr.bf16.mxu0 0
      %2794 = vmatpush1.bf16.msra.mxu0 %v2777
      %2795 = vmatprep.subr.bf16.mxu0 0
      %2796 = vmatpush2.bf16.msra.mxu0 0
      %2797 = vmatprep.subr.bf16.mxu0 0
      %2798 = vmatpush2.bf16.msra.mxu0 0
      %2799 = vmatprep.subr.bf16.mxu0 0
      %2800 = vmatpush2.bf16.msra.mxu0 0
      %2801 = vmatprep.subr.bf16.mxu0 0
      %2802 = vmatpush2.bf16.msra.mxu0 0
      %2803 = vmatprep.subr.bf16.mxu0 0
      %2804 = vmatpush2.bf16.msra.mxu0 0
      %2805 = vmatprep.subr.bf16.mxu0 0
      %2806 = vmatpush2.bf16.msra.mxu0 0
      %2807 = vmatprep.subr.bf16.mxu0 0
      %2808 = vmatpush2.bf16.msra.mxu0 0
      %2809 = vmatprep.subr.bf16.mxu0 0
      %2810 = vmatpush2.bf16.msra.mxu0 0
      %2811 = vmatprep.mubr.bf16.mxu0 0
      %2812 = vmatmul.mubr.bf16.gmra.mxu0 %v2765
      %v2813 = vpop.f32.mrf.mxu0
      %v2814 = vadd.f32 0.0, %v2813
      %v2815 = vpop.f32.mrf.mxu0
      %v2816 = vpop.f32.mrf.mxu0
      %v2817 = vadd.f32 0.0, %v2816
      %v2818 = vpop.f32.mrf.mxu0
      %2819 = vmatprep.mubr.bf16.mxu0 0
      %2820 = vmatmul.mubr.bf16.gmra.mxu0 %v2768
      %v2821 = vpop.f32.mrf.mxu0
      %v2822 = vadd.f32 0.0, %v2821
      %v2823 = vpop.f32.mrf.mxu0
      %v2824 = vpop.f32.mrf.mxu0
      %v2825 = vadd.f32 0.0, %v2824
      %v2826 = vpop.f32.mrf.mxu0
      %2827 = vmatprep.mubr.bf16.mxu0 0
      %2828 = vmatmul.mubr.bf16.gmra.mxu0 %v2771
      %v2829 = vpop.f32.mrf.mxu0
      %v2830 = vadd.f32 0.0, %v2829
      %v2831 = vpop.f32.mrf.mxu0
      %v2832 = vpop.f32.mrf.mxu0
      %v2833 = vadd.f32 0.0, %v2832
      %v2834 = vpop.f32.mrf.mxu0
      %2835 = vmatprep.mubr.bf16.mxu0 0
      %2836 = vmatmul.mubr.bf16.gmra.mxu0 %v2774
      %v2837 = vpop.f32.mrf.mxu0
      %v2838 = vadd.f32 0.0, %v2837
      %v2839 = vpop.f32.mrf.mxu0
      %v2840 = vpop.f32.mrf.mxu0
      %v2841 = vpop.f32.mrf.mxu0
      %2842 = vdwg.mxu0
      %v2843 = vadd.f32 %v2337, %v2814
      %v2844 = vadd.f32 %v2338, %v2817
      %v2845 = vadd.f32 %v2339, %v2822
      %v2846 = vadd.f32 %v2340, %v2825
      %v2847 = vadd.f32 %v2341, %v2830
      %v2848 = vadd.f32 %v2342, %v2833
      %v2849 = vadd.f32 %v2343, %v2838
      %v2850 = vld [vmem:[%s1838] sm:$0xf]
      %v2851 = vld [vmem:[%s1838 + $0x10] sm:$0xf]
      %v2852 = vld [vmem:[%s1838 + $0x20] sm:$0xf]
      %v2853 = vld [vmem:[%s1838 + $0x30] sm:$0xf]
      %v2854 = vld [vmem:[%s1838 + $0x40] sm:$0xf]
      %v2855 = vld [vmem:[%s1838 + $0x50] sm:$0xf]
      %v2856 = vld [vmem:[%s1838 + $0x60] sm:$0xf]
      %v2865 = vunpack.c.l.s4 1966171168
      %v2866 = vunpack.c.0.s8 %v2865
      %v2867 = vlaneseq
      %v2868 = vshrl.u32 %v2867, 7
      %v2869 = vsub.s32 %v2866, %v2868
      %v2870 = vrot.slane %v2850, %v2869
      %v2871 = vcombine.high %v2870, %v2870
      %v2873 = vunpack.c.l.s4 1966171168
      %v2874 = vunpack.c.0.s8 %v2873
      %v2875 = vlaneseq
      %v2876 = vshrl.u32 %v2875, 7
      %v2877 = vsub.s32 %v2874, %v2876
      %v2878 = vrot.slane %v2870, %v2877
      %v2880 = vunpack.c.l.s4 1966171168
      %v2881 = vunpack.c.0.s8 %v2880
      %v2882 = vlaneseq
      %v2883 = vshrl.u32 %v2882, 7
      %v2884 = vsub.s32 %v2881, %v2883
      %v2885 = vrot.slane %v2871, %v2884
      %v2886 = vcombine.high %v2878, %v2878
      %v2887 = vcombine.high %v2885, %v2885
      %v2889 = vunpack.c.l.s4 1966171168
      %v2890 = vunpack.c.0.s8 %v2889
      %v2891 = vlaneseq
      %v2892 = vshrl.u32 %v2891, 7
      %v2893 = vsub.s32 %v2890, %v2892
      %v2894 = vrot.slane %v2851, %v2893
      %v2895 = vcombine.high %v2894, %v2894
      %v2897 = vunpack.c.l.s4 1966171168
      %v2898 = vunpack.c.0.s8 %v2897
      %v2899 = vlaneseq
      %v2900 = vshrl.u32 %v2899, 7
      %v2901 = vsub.s32 %v2898, %v2900
      %v2902 = vrot.slane %v2894, %v2901
      %v2904 = vunpack.c.l.s4 1966171168
      %v2905 = vunpack.c.0.s8 %v2904
      %v2906 = vlaneseq
      %v2907 = vshrl.u32 %v2906, 7
      %v2908 = vsub.s32 %v2905, %v2907
      %v2909 = vrot.slane %v2895, %v2908
      %v2910 = vcombine.high %v2902, %v2902
      %v2911 = vcombine.high %v2909, %v2909
      %v2913 = vunpack.c.l.s4 1966171168
      %v2914 = vunpack.c.0.s8 %v2913
      %v2915 = vlaneseq
      %v2916 = vshrl.u32 %v2915, 7
      %v2917 = vsub.s32 %v2914, %v2916
      %v2918 = vrot.slane %v2852, %v2917
      %v2919 = vcombine.high %v2918, %v2918
      %v2921 = vunpack.c.l.s4 1966171168
      %v2922 = vunpack.c.0.s8 %v2921
      %v2923 = vlaneseq
      %v2924 = vshrl.u32 %v2923, 7
      %v2925 = vsub.s32 %v2922, %v2924
      %v2926 = vrot.slane %v2918, %v2925
      %v2928 = vunpack.c.l.s4 1966171168
      %v2929 = vunpack.c.0.s8 %v2928
      %v2930 = vlaneseq
      %v2931 = vshrl.u32 %v2930, 7
      %v2932 = vsub.s32 %v2929, %v2931
      %v2933 = vrot.slane %v2919, %v2932
      %v2934 = vcombine.high %v2926, %v2926
      %v2935 = vcombine.high %v2933, %v2933
      %v2937 = vunpack.c.l.s4 1966171168
      %v2938 = vunpack.c.0.s8 %v2937
      %v2939 = vlaneseq
      %v2940 = vshrl.u32 %v2939, 7
      %v2941 = vsub.s32 %v2938, %v2940
      %v2942 = vrot.slane %v2853, %v2941
      %v2943 = vcombine.high %v2942, %v2942
      %v2945 = vunpack.c.l.s4 1966171168
      %v2946 = vunpack.c.0.s8 %v2945
      %v2947 = vlaneseq
      %v2948 = vshrl.u32 %v2947, 7
      %v2949 = vsub.s32 %v2946, %v2948
      %v2950 = vrot.slane %v2942, %v2949
      %v2952 = vunpack.c.l.s4 1966171168
      %v2953 = vunpack.c.0.s8 %v2952
      %v2954 = vlaneseq
      %v2955 = vshrl.u32 %v2954, 7
      %v2956 = vsub.s32 %v2953, %v2955
      %v2957 = vrot.slane %v2943, %v2956
      %v2958 = vcombine.high %v2950, %v2950
      %v2959 = vcombine.high %v2957, %v2957
      %v2961 = vunpack.c.l.s4 1966171168
      %v2962 = vunpack.c.0.s8 %v2961
      %v2963 = vlaneseq
      %v2964 = vshrl.u32 %v2963, 7
      %v2965 = vsub.s32 %v2962, %v2964
      %v2966 = vrot.slane %v2854, %v2965
      %v2967 = vcombine.high %v2966, %v2966
      %v2969 = vunpack.c.l.s4 1966171168
      %v2970 = vunpack.c.0.s8 %v2969
      %v2971 = vlaneseq
      %v2972 = vshrl.u32 %v2971, 7
      %v2973 = vsub.s32 %v2970, %v2972
      %v2974 = vrot.slane %v2966, %v2973
      %v2976 = vunpack.c.l.s4 1966171168
      %v2977 = vunpack.c.0.s8 %v2976
      %v2978 = vlaneseq
      %v2979 = vshrl.u32 %v2978, 7
      %v2980 = vsub.s32 %v2977, %v2979
      %v2981 = vrot.slane %v2967, %v2980
      %v2982 = vcombine.high %v2974, %v2974
      %v2983 = vcombine.high %v2981, %v2981
      %v2985 = vunpack.c.l.s4 1966171168
      %v2986 = vunpack.c.0.s8 %v2985
      %v2987 = vlaneseq
      %v2988 = vshrl.u32 %v2987, 7
      %v2989 = vsub.s32 %v2986, %v2988
      %v2990 = vrot.slane %v2855, %v2989
      %v2991 = vcombine.high %v2990, %v2990
      %v2993 = vunpack.c.l.s4 1966171168
      %v2994 = vunpack.c.0.s8 %v2993
      %v2995 = vlaneseq
      %v2996 = vshrl.u32 %v2995, 7
      %v2997 = vsub.s32 %v2994, %v2996
      %v2998 = vrot.slane %v2990, %v2997
      %v3000 = vunpack.c.l.s4 1966171168
      %v3001 = vunpack.c.0.s8 %v3000
      %v3002 = vlaneseq
      %v3003 = vshrl.u32 %v3002, 7
      %v3004 = vsub.s32 %v3001, %v3003
      %v3005 = vrot.slane %v2991, %v3004
      %v3006 = vcombine.high %v2998, %v2998
      %v3007 = vcombine.high %v3005, %v3005
      %v3009 = vunpack.c.l.s4 1966171168
      %v3010 = vunpack.c.0.s8 %v3009
      %v3011 = vlaneseq
      %v3012 = vshrl.u32 %v3011, 7
      %v3013 = vsub.s32 %v3010, %v3012
      %v3014 = vrot.slane %v2856, %v3013
      %v3015 = vcombine.high %v3014, %v3014
      %v3017 = vunpack.c.l.s4 1966171168
      %v3018 = vunpack.c.0.s8 %v3017
      %v3019 = vlaneseq
      %v3020 = vshrl.u32 %v3019, 7
      %v3021 = vsub.s32 %v3018, %v3020
      %v3022 = vrot.slane %v3014, %v3021
      %v3024 = vunpack.c.l.s4 1966171168
      %v3025 = vunpack.c.0.s8 %v3024
      %v3026 = vlaneseq
      %v3027 = vshrl.u32 %v3026, 7
      %v3028 = vsub.s32 %v3025, %v3027
      %v3029 = vrot.slane %v3015, %v3028
      %v3030 = vcombine.high %v3022, %v3022
      %v3031 = vcombine.high %v3029, %v3029
      %v3032 = vunpack.i.h.s16 %v2878
      %v3033 = vunpack.i.l.s16 %v2885
      %v3034 = vunpack.i.h.s16 %v2885
      %v3035 = vunpack.i.l.s16 %v2886
      %v3036 = vunpack.i.h.s16 %v2886
      %v3037 = vunpack.i.l.s16 %v2887
      %v3038 = vunpack.i.h.s16 %v2887
      %v3039 = vunpack.i.h.s16 %v2902
      %v3040 = vunpack.i.l.s16 %v2909
      %v3041 = vunpack.i.h.s16 %v2909
      %v3042 = vunpack.i.l.s16 %v2910
      %v3043 = vunpack.i.h.s16 %v2910
      %v3044 = vunpack.i.l.s16 %v2911
      %v3045 = vunpack.i.h.s16 %v2911
      %v3046 = vunpack.i.h.s16 %v2926
      %v3047 = vunpack.i.l.s16 %v2933
      %v3048 = vunpack.i.h.s16 %v2933
      %v3049 = vunpack.i.l.s16 %v2934
      %v3050 = vunpack.i.h.s16 %v2934
      %v3051 = vunpack.i.l.s16 %v2935
      %v3052 = vunpack.i.h.s16 %v2935
      %v3053 = vunpack.i.h.s16 %v2950
      %v3054 = vunpack.i.l.s16 %v2957
      %v3055 = vunpack.i.h.s16 %v2957
      %v3056 = vunpack.i.l.s16 %v2958
      %v3057 = vunpack.i.h.s16 %v2958
      %v3058 = vunpack.i.l.s16 %v2959
      %v3059 = vunpack.i.h.s16 %v2959
      %v3060 = vunpack.i.h.s16 %v2974
      %v3061 = vunpack.i.l.s16 %v2981
      %v3062 = vunpack.i.h.s16 %v2981
      %v3063 = vunpack.i.l.s16 %v2982
      %v3064 = vunpack.i.h.s16 %v2982
      %v3065 = vunpack.i.l.s16 %v2983
      %v3066 = vunpack.i.h.s16 %v2983
      %v3067 = vunpack.i.h.s16 %v2998
      %v3068 = vunpack.i.l.s16 %v3005
      %v3069 = vunpack.i.h.s16 %v3005
      %v3070 = vunpack.i.l.s16 %v3006
      %v3071 = vunpack.i.h.s16 %v3006
      %v3072 = vunpack.i.l.s16 %v3007
      %v3073 = vunpack.i.h.s16 %v3007
      %v3074 = vunpack.i.h.s16 %v3022
      %v3075 = vunpack.i.l.s16 %v3029
      %v3076 = vunpack.i.h.s16 %v3029
      %v3077 = vunpack.i.l.s16 %v3030
      %v3078 = vunpack.i.h.s16 %v3030
      %v3079 = vunpack.i.l.s16 %v3031
      %v3080 = vunpack.i.h.s16 %v3031
      %s3081 = scalar_lea.vmem %s2, 10
      %v3082 = vld [vmem:[%s3081] sm:$0x3]
      %v3083 = vpack.i.b16 %v3033, %v3032
      %v3084 = vpack.i.b16 %v3035, %v3034
      %v3085 = vpack.i.b16 %v3037, %v3036
      %v3086 = vpack.i.b16 %v3039, %v3038
      %v3087 = vpack.i.b16 %v3041, %v3040
      %v3088 = vpack.i.b16 %v3043, %v3042
      %v3089 = vpack.i.b16 %v3045, %v3044
      %v3090 = vpack.i.b16 %v3047, %v3046
      %v3091 = vpack.i.b16 %v3049, %v3048
      %v3092 = vpack.i.b16 %v3051, %v3050
      %v3093 = vpack.i.b16 %v3053, %v3052
      %v3094 = vpack.i.b16 %v3055, %v3054
      %v3095 = vpack.i.b16 %v3057, %v3056
      %v3096 = vpack.i.b16 %v3059, %v3058
      %v3097 = vpack.i.b16 %v3061, %v3060
      %v3098 = vpack.i.b16 %v3063, %v3062
      %v3099 = vpack.i.b16 %v3065, %v3064
      %v3100 = vpack.i.b16 %v3067, %v3066
      %v3101 = vpack.i.b16 %v3069, %v3068
      %v3102 = vpack.i.b16 %v3071, %v3070
      %v3103 = vpack.i.b16 %v3073, %v3072
      %v3104 = vpack.i.b16 %v3075, %v3074
      %v3105 = vpack.i.b16 %v3077, %v3076
      %v3106 = vpack.i.b16 %v3079, %v3078
      %v3108 = vcombine.low %v3083, %v3084
      %v3109 = vcombine.low %v3085, %v3086
      %v3110 = vcombine.low %v3087, %v3088
      %v3111 = vcombine.low %v3089, %v3090
      %v3113 = vunpack.c.l.s4 1966171168
      %v3114 = vunpack.c.0.s8 %v3113
      %v3115 = vlaneseq
      %v3116 = vshrl.u32 %v3115, 7
      %v3117 = vsub.s32 %v3114, %v3116
      %v3118 = vrot.slane %v3108, %v3117
      %v3120 = vunpack.c.l.s4 1966171168
      %v3121 = vunpack.c.0.s8 %v3120
      %v3122 = vlaneseq
      %v3123 = vshrl.u32 %v3122, 7
      %v3124 = vsub.s32 %v3121, %v3123
      %v3125 = vrot.slane %v3109, %v3124
      %v3127 = vunpack.c.l.s4 1966171168
      %v3128 = vunpack.c.0.s8 %v3127
      %v3129 = vlaneseq
      %v3130 = vshrl.u32 %v3129, 7
      %v3131 = vsub.s32 %v3128, %v3130
      %v3132 = vrot.slane %v3110, %v3131
      %v3134 = vunpack.c.l.s4 1966171168
      %v3135 = vunpack.c.0.s8 %v3134
      %v3136 = vlaneseq
      %v3137 = vshrl.u32 %v3136, 7
      %v3138 = vsub.s32 %v3135, %v3137
      %v3139 = vrot.slane %v3111, %v3138
      %v3140 = vcombine.low %v3118, %v3125
      %v3141 = vcombine.low %v3132, %v3139
      %v3143 = vunpack.c.l.s4 1966171168
      %v3144 = vunpack.c.0.s8 %v3143
      %v3145 = vlaneseq
      %v3146 = vshrl.u32 %v3145, 7
      %v3147 = vsub.s32 %v3144, %v3146
      %v3148 = vrot.slane %v3140, %v3147
      %v3150 = vunpack.c.l.s4 1966171168
      %v3151 = vunpack.c.0.s8 %v3150
      %v3152 = vlaneseq
      %v3153 = vshrl.u32 %v3152, 7
      %v3154 = vsub.s32 %v3151, %v3153
      %v3155 = vrot.slane %v3141, %v3154
      %v3156 = vcombine.low %v3148, %v3155
      %v3157 = vcombine.low %v3091, %v3092
      %v3158 = vcombine.low %v3093, %v3094
      %v3159 = vcombine.low %v3095, %v3096
      %v3160 = vcombine.low %v3097, %v3098
      %v3162 = vunpack.c.l.s4 1966171168
      %v3163 = vunpack.c.0.s8 %v3162
      %v3164 = vlaneseq
      %v3165 = vshrl.u32 %v3164, 7
      %v3166 = vsub.s32 %v3163, %v3165
      %v3167 = vrot.slane %v3157, %v3166
      %v3169 = vunpack.c.l.s4 1966171168
      %v3170 = vunpack.c.0.s8 %v3169
      %v3171 = vlaneseq
      %v3172 = vshrl.u32 %v3171, 7
      %v3173 = vsub.s32 %v3170, %v3172
      %v3174 = vrot.slane %v3158, %v3173
      %v3176 = vunpack.c.l.s4 1966171168
      %v3177 = vunpack.c.0.s8 %v3176
      %v3178 = vlaneseq
      %v3179 = vshrl.u32 %v3178, 7
      %v3180 = vsub.s32 %v3177, %v3179
      %v3181 = vrot.slane %v3159, %v3180
      %v3183 = vunpack.c.l.s4 1966171168
      %v3184 = vunpack.c.0.s8 %v3183
      %v3185 = vlaneseq
      %v3186 = vshrl.u32 %v3185, 7
      %v3187 = vsub.s32 %v3184, %v3186
      %v3188 = vrot.slane %v3160, %v3187
      %v3189 = vcombine.low %v3167, %v3174
      %v3190 = vcombine.low %v3181, %v3188
      %v3192 = vunpack.c.l.s4 1966171168
      %v3193 = vunpack.c.0.s8 %v3192
      %v3194 = vlaneseq
      %v3195 = vshrl.u32 %v3194, 7
      %v3196 = vsub.s32 %v3193, %v3195
      %v3197 = vrot.slane %v3189, %v3196
      %v3199 = vunpack.c.l.s4 1966171168
      %v3200 = vunpack.c.0.s8 %v3199
      %v3201 = vlaneseq
      %v3202 = vshrl.u32 %v3201, 7
      %v3203 = vsub.s32 %v3200, %v3202
      %v3204 = vrot.slane %v3190, %v3203
      %v3205 = vcombine.low %v3197, %v3204
      %v3206 = vcombine.low %v3099, %v3100
      %v3207 = vcombine.low %v3101, %v3102
      %v3208 = vcombine.low %v3103, %v3104
      %v3209 = vcombine.low %v3105, %v3106
      %v3211 = vunpack.c.l.s4 1966171168
      %v3212 = vunpack.c.0.s8 %v3211
      %v3213 = vlaneseq
      %v3214 = vshrl.u32 %v3213, 7
      %v3215 = vsub.s32 %v3212, %v3214
      %v3216 = vrot.slane %v3206, %v3215
      %v3218 = vunpack.c.l.s4 1966171168
      %v3219 = vunpack.c.0.s8 %v3218
      %v3220 = vlaneseq
      %v3221 = vshrl.u32 %v3220, 7
      %v3222 = vsub.s32 %v3219, %v3221
      %v3223 = vrot.slane %v3207, %v3222
      %v3225 = vunpack.c.l.s4 1966171168
      %v3226 = vunpack.c.0.s8 %v3225
      %v3227 = vlaneseq
      %v3228 = vshrl.u32 %v3227, 7
      %v3229 = vsub.s32 %v3226, %v3228
      %v3230 = vrot.slane %v3208, %v3229
      %v3232 = vunpack.c.l.s4 1966171168
      %v3233 = vunpack.c.0.s8 %v3232
      %v3234 = vlaneseq
      %v3235 = vshrl.u32 %v3234, 7
      %v3236 = vsub.s32 %v3233, %v3235
      %v3237 = vrot.slane %v3209, %v3236
      %v3238 = vcombine.low %v3216, %v3223
      %v3239 = vcombine.low %v3230, %v3237
      %v3241 = vunpack.c.l.s4 1966171168
      %v3242 = vunpack.c.0.s8 %v3241
      %v3243 = vlaneseq
      %v3244 = vshrl.u32 %v3243, 7
      %v3245 = vsub.s32 %v3242, %v3244
      %v3246 = vrot.slane %v3238, %v3245
      %v3248 = vunpack.c.l.s4 1966171168
      %v3249 = vunpack.c.0.s8 %v3248
      %v3250 = vlaneseq
      %v3251 = vshrl.u32 %v3250, 7
      %v3252 = vsub.s32 %v3249, %v3251
      %v3253 = vrot.slane %v3239, %v3252
      %v3254 = vcombine.low %v3246, %v3253
      %v3256 = vunpack.c.l.s4 1966171168
      %v3257 = vunpack.c.0.s8 %v3256
      %v3258 = vlaneseq
      %v3259 = vshrl.u32 %v3258, 7
      %v3260 = vsub.s32 %v3257, %v3259
      %v3261 = vrot.slane %v3080, %v3260
      %v3263 = vunpack.c.l.s4 1966171168
      %v3264 = vunpack.c.0.s8 %v3263
      %v3265 = vlaneseq
      %v3266 = vshrl.u32 %v3265, 7
      %v3267 = vsub.s32 %v3264, %v3266
      %v3268 = vrot.slane %v3261, %v3267
      %v3270 = vsel %vm987, %v3156, 0
      %v3273 = vsel %vm987, %v3205, 0
      %v3276 = vsel %vm987, %v3254, 0
      %v3279 = vsel %vm987, %v3268, 0
      %v3282 = vsel %vm1000, %v3082, 0
      %3284 = vmatprep.subr.bf16.mxu0 0
      %3285 = vmatpush1.bf16.msra.mxu0 0
      %3286 = vmatprep.subr.bf16.mxu0 0
      %3287 = vmatpush1.bf16.msra.mxu0 0
      %3288 = vmatprep.subr.bf16.mxu0 0
      %3289 = vmatpush1.bf16.msra.mxu0 0
      %3290 = vmatprep.subr.bf16.mxu0 0
      %3291 = vmatpush1.bf16.msra.mxu0 0
      %3292 = vmatprep.subr.bf16.mxu0 0
      %3293 = vmatpush1.bf16.msra.mxu0 0
      %3294 = vmatprep.subr.bf16.mxu0 0
      %3295 = vmatpush1.bf16.msra.mxu0 0
      %3296 = vmatprep.subr.bf16.mxu0 0
      %3297 = vmatpush1.bf16.msra.mxu0 0
      %3298 = vmatprep.subr.bf16.mxu0 0
      %3299 = vmatpush1.bf16.msra.mxu0 %v3282
      %3300 = vmatprep.subr.bf16.mxu0 0
      %3301 = vmatpush2.bf16.msra.mxu0 0
      %3302 = vmatprep.subr.bf16.mxu0 0
      %3303 = vmatpush2.bf16.msra.mxu0 0
      %3304 = vmatprep.subr.bf16.mxu0 0
      %3305 = vmatpush2.bf16.msra.mxu0 0
      %3306 = vmatprep.subr.bf16.mxu0 0
      %3307 = vmatpush2.bf16.msra.mxu0 0
      %3308 = vmatprep.subr.bf16.mxu0 0
      %3309 = vmatpush2.bf16.msra.mxu0 0
      %3310 = vmatprep.subr.bf16.mxu0 0
      %3311 = vmatpush2.bf16.msra.mxu0 0
      %3312 = vmatprep.subr.bf16.mxu0 0
      %3313 = vmatpush2.bf16.msra.mxu0 0
      %3314 = vmatprep.subr.bf16.mxu0 0
      %3315 = vmatpush2.bf16.msra.mxu0 0
      %3316 = vmatprep.mubr.bf16.mxu0 0
      %3317 = vmatmul.mubr.bf16.gmra.mxu0 %v3270
      %v3318 = vpop.f32.mrf.mxu0
      %v3319 = vadd.f32 0.0, %v3318
      %v3320 = vpop.f32.mrf.mxu0
      %v3321 = vpop.f32.mrf.mxu0
      %v3322 = vadd.f32 0.0, %v3321
      %v3323 = vpop.f32.mrf.mxu0
      %3324 = vmatprep.mubr.bf16.mxu0 0
      %3325 = vmatmul.mubr.bf16.gmra.mxu0 %v3273
      %v3326 = vpop.f32.mrf.mxu0
      %v3327 = vadd.f32 0.0, %v3326
      %v3328 = vpop.f32.mrf.mxu0
      %v3329 = vpop.f32.mrf.mxu0
      %v3330 = vadd.f32 0.0, %v3329
      %v3331 = vpop.f32.mrf.mxu0
      %3332 = vmatprep.mubr.bf16.mxu0 0
      %3333 = vmatmul.mubr.bf16.gmra.mxu0 %v3276
      %v3334 = vpop.f32.mrf.mxu0
      %v3335 = vadd.f32 0.0, %v3334
      %v3336 = vpop.f32.mrf.mxu0
      %v3337 = vpop.f32.mrf.mxu0
      %v3338 = vadd.f32 0.0, %v3337
      %v3339 = vpop.f32.mrf.mxu0
      %3340 = vmatprep.mubr.bf16.mxu0 0
      %3341 = vmatmul.mubr.bf16.gmra.mxu0 %v3279
      %v3342 = vpop.f32.mrf.mxu0
      %v3343 = vadd.f32 0.0, %v3342
      %v3344 = vpop.f32.mrf.mxu0
      %v3345 = vpop.f32.mrf.mxu0
      %v3346 = vpop.f32.mrf.mxu0
      %3347 = vdwg.mxu0
      %v3348 = vadd.f32 %v2843, %v3319
      %v3349 = vadd.f32 %v2844, %v3322
      %v3350 = vadd.f32 %v2845, %v3327
      %v3351 = vadd.f32 %v2846, %v3330
      %v3352 = vadd.f32 %v2847, %v3335
      %v3353 = vadd.f32 %v2848, %v3338
      %v3354 = vadd.f32 %v2849, %v3343
      %v3355 = vld [vmem:[%s324] sm:$0xf]
      %s3356 = scalar_lea.vmem %s307, 16
      %v3357 = vld [vmem:[%s3356] sm:$0xf]
      %v3358 = vld [vmem:[%s3356 + $0x10] sm:$0xf]
      %v3359 = vld [vmem:[%s3356 + $0x20] sm:$0xf]
      %v3360 = vld [vmem:[%s3356 + $0x30] sm:$0xf]
      %v3361 = vld [vmem:[%s3356 + $0x40] sm:$0xf]
      %v3362 = vld [vmem:[%s3356 + $0x50] sm:$0xf]
      %v3371 = vunpack.c.l.s4 1966171168
      %v3372 = vunpack.c.0.s8 %v3371
      %v3373 = vlaneseq
      %v3374 = vshrl.u32 %v3373, 7
      %v3375 = vsub.s32 %v3372, %v3374
      %v3376 = vrot.slane %v3357, %v3375
      %v3377 = vcombine.high %v3376, %v3376
      %v3379 = vunpack.c.l.s4 1966171168
      %v3380 = vunpack.c.0.s8 %v3379
      %v3381 = vlaneseq
      %v3382 = vshrl.u32 %v3381, 7
      %v3383 = vsub.s32 %v3380, %v3382
      %v3384 = vrot.slane %v3376, %v3383
      %v3386 = vunpack.c.l.s4 1966171168
      %v3387 = vunpack.c.0.s8 %v3386
      %v3388 = vlaneseq
      %v3389 = vshrl.u32 %v3388, 7
      %v3390 = vsub.s32 %v3387, %v3389
      %v3391 = vrot.slane %v3377, %v3390
      %v3392 = vcombine.high %v3384, %v3384
      %v3393 = vcombine.high %v3391, %v3391
      %v3395 = vunpack.c.l.s4 1966171168
      %v3396 = vunpack.c.0.s8 %v3395
      %v3397 = vlaneseq
      %v3398 = vshrl.u32 %v3397, 7
      %v3399 = vsub.s32 %v3396, %v3398
      %v3400 = vrot.slane %v3358, %v3399
      %v3401 = vcombine.high %v3400, %v3400
      %v3403 = vunpack.c.l.s4 1966171168
      %v3404 = vunpack.c.0.s8 %v3403
      %v3405 = vlaneseq
      %v3406 = vshrl.u32 %v3405, 7
      %v3407 = vsub.s32 %v3404, %v3406
      %v3408 = vrot.slane %v3400, %v3407
      %v3410 = vunpack.c.l.s4 1966171168
      %v3411 = vunpack.c.0.s8 %v3410
      %v3412 = vlaneseq
      %v3413 = vshrl.u32 %v3412, 7
      %v3414 = vsub.s32 %v3411, %v3413
      %v3415 = vrot.slane %v3401, %v3414
      %v3416 = vcombine.high %v3408, %v3408
      %v3417 = vcombine.high %v3415, %v3415
      %v3419 = vunpack.c.l.s4 1966171168
      %v3420 = vunpack.c.0.s8 %v3419
      %v3421 = vlaneseq
      %v3422 = vshrl.u32 %v3421, 7
      %v3423 = vsub.s32 %v3420, %v3422
      %v3424 = vrot.slane %v3359, %v3423
      %v3425 = vcombine.high %v3424, %v3424
      %v3427 = vunpack.c.l.s4 1966171168
      %v3428 = vunpack.c.0.s8 %v3427
      %v3429 = vlaneseq
      %v3430 = vshrl.u32 %v3429, 7
      %v3431 = vsub.s32 %v3428, %v3430
      %v3432 = vrot.slane %v3424, %v3431
      %v3434 = vunpack.c.l.s4 1966171168
      %v3435 = vunpack.c.0.s8 %v3434
      %v3436 = vlaneseq
      %v3437 = vshrl.u32 %v3436, 7
      %v3438 = vsub.s32 %v3435, %v3437
      %v3439 = vrot.slane %v3425, %v3438
      %v3440 = vcombine.high %v3432, %v3432
      %v3441 = vcombine.high %v3439, %v3439
      %v3443 = vunpack.c.l.s4 1966171168
      %v3444 = vunpack.c.0.s8 %v3443
      %v3445 = vlaneseq
      %v3446 = vshrl.u32 %v3445, 7
      %v3447 = vsub.s32 %v3444, %v3446
      %v3448 = vrot.slane %v3360, %v3447
      %v3449 = vcombine.high %v3448, %v3448
      %v3451 = vunpack.c.l.s4 1966171168
      %v3452 = vunpack.c.0.s8 %v3451
      %v3453 = vlaneseq
      %v3454 = vshrl.u32 %v3453, 7
      %v3455 = vsub.s32 %v3452, %v3454
      %v3456 = vrot.slane %v3448, %v3455
      %v3458 = vunpack.c.l.s4 1966171168
      %v3459 = vunpack.c.0.s8 %v3458
      %v3460 = vlaneseq
      %v3461 = vshrl.u32 %v3460, 7
      %v3462 = vsub.s32 %v3459, %v3461
      %v3463 = vrot.slane %v3449, %v3462
      %v3464 = vcombine.high %v3456, %v3456
      %v3465 = vcombine.high %v3463, %v3463
      %v3467 = vunpack.c.l.s4 1966171168
      %v3468 = vunpack.c.0.s8 %v3467
      %v3469 = vlaneseq
      %v3470 = vshrl.u32 %v3469, 7
      %v3471 = vsub.s32 %v3468, %v3470
      %v3472 = vrot.slane %v3361, %v3471
      %v3473 = vcombine.high %v3472, %v3472
      %v3475 = vunpack.c.l.s4 1966171168
      %v3476 = vunpack.c.0.s8 %v3475
      %v3477 = vlaneseq
      %v3478 = vshrl.u32 %v3477, 7
      %v3479 = vsub.s32 %v3476, %v3478
      %v3480 = vrot.slane %v3472, %v3479
      %v3482 = vunpack.c.l.s4 1966171168
      %v3483 = vunpack.c.0.s8 %v3482
      %v3484 = vlaneseq
      %v3485 = vshrl.u32 %v3484, 7
      %v3486 = vsub.s32 %v3483, %v3485
      %v3487 = vrot.slane %v3473, %v3486
      %v3488 = vcombine.high %v3480, %v3480
      %v3489 = vcombine.high %v3487, %v3487
      %v3491 = vunpack.c.l.s4 1966171168
      %v3492 = vunpack.c.0.s8 %v3491
      %v3493 = vlaneseq
      %v3494 = vshrl.u32 %v3493, 7
      %v3495 = vsub.s32 %v3492, %v3494
      %v3496 = vrot.slane %v3362, %v3495
      %v3497 = vcombine.high %v3496, %v3496
      %v3499 = vunpack.c.l.s4 1966171168
      %v3500 = vunpack.c.0.s8 %v3499
      %v3501 = vlaneseq
      %v3502 = vshrl.u32 %v3501, 7
      %v3503 = vsub.s32 %v3500, %v3502
      %v3504 = vrot.slane %v3496, %v3503
      %v3506 = vunpack.c.l.s4 1966171168
      %v3507 = vunpack.c.0.s8 %v3506
      %v3508 = vlaneseq
      %v3509 = vshrl.u32 %v3508, 7
      %v3510 = vsub.s32 %v3507, %v3509
      %v3511 = vrot.slane %v3497, %v3510
      %v3512 = vcombine.high %v3504, %v3504
      %v3513 = vcombine.high %v3511, %v3511
      %v3515 = vunpack.c.l.s4 1966171168
      %v3516 = vunpack.c.0.s8 %v3515
      %v3517 = vlaneseq
      %v3518 = vshrl.u32 %v3517, 7
      %v3519 = vsub.s32 %v3516, %v3518
      %v3520 = vrot.slane %v3355, %v3519
      %v3521 = vcombine.high %v3520, %v3520
      %v3523 = vunpack.c.l.s4 1966171168
      %v3524 = vunpack.c.0.s8 %v3523
      %v3525 = vlaneseq
      %v3526 = vshrl.u32 %v3525, 7
      %v3527 = vsub.s32 %v3524, %v3526
      %v3528 = vrot.slane %v3520, %v3527
      %v3530 = vunpack.c.l.s4 1966171168
      %v3531 = vunpack.c.0.s8 %v3530
      %v3532 = vlaneseq
      %v3533 = vshrl.u32 %v3532, 7
      %v3534 = vsub.s32 %v3531, %v3533
      %v3535 = vrot.slane %v3521, %v3534
      %v3536 = vcombine.high %v3528, %v3528
      %v3537 = vcombine.high %v3535, %v3535
      %v3538 = vunpack.i.l.s16 %v3384
      %v3539 = vunpack.i.h.s16 %v3384
      %v3540 = vunpack.i.l.s16 %v3391
      %v3541 = vunpack.i.h.s16 %v3391
      %v3542 = vunpack.i.l.s16 %v3392
      %v3543 = vunpack.i.h.s16 %v3392
      %v3544 = vunpack.i.l.s16 %v3393
      %v3545 = vunpack.i.l.s16 %v3408
      %v3546 = vunpack.i.h.s16 %v3408
      %v3547 = vunpack.i.l.s16 %v3415
      %v3548 = vunpack.i.h.s16 %v3415
      %v3549 = vunpack.i.l.s16 %v3416
      %v3550 = vunpack.i.h.s16 %v3416
      %v3551 = vunpack.i.l.s16 %v3417
      %v3552 = vunpack.i.l.s16 %v3432
      %v3553 = vunpack.i.h.s16 %v3432
      %v3554 = vunpack.i.l.s16 %v3439
      %v3555 = vunpack.i.h.s16 %v3439
      %v3556 = vunpack.i.l.s16 %v3440
      %v3557 = vunpack.i.h.s16 %v3440
      %v3558 = vunpack.i.l.s16 %v3441
      %v3559 = vunpack.i.l.s16 %v3456
      %v3560 = vunpack.i.h.s16 %v3456
      %v3561 = vunpack.i.l.s16 %v3463
      %v3562 = vunpack.i.h.s16 %v3463
      %v3563 = vunpack.i.l.s16 %v3464
      %v3564 = vunpack.i.h.s16 %v3464
      %v3565 = vunpack.i.l.s16 %v3465
      %v3566 = vunpack.i.l.s16 %v3480
      %v3567 = vunpack.i.h.s16 %v3480
      %v3568 = vunpack.i.l.s16 %v3487
      %v3569 = vunpack.i.h.s16 %v3487
      %v3570 = vunpack.i.l.s16 %v3488
      %v3571 = vunpack.i.h.s16 %v3488
      %v3572 = vunpack.i.l.s16 %v3489
      %v3573 = vunpack.i.l.s16 %v3504
      %v3574 = vunpack.i.h.s16 %v3504
      %v3575 = vunpack.i.l.s16 %v3511
      %v3576 = vunpack.i.h.s16 %v3511
      %v3577 = vunpack.i.l.s16 %v3512
      %v3578 = vunpack.i.h.s16 %v3512
      %v3579 = vunpack.i.l.s16 %v3513
      %v3580 = vunpack.i.l.s16 %v3528
      %v3581 = vunpack.i.h.s16 %v3528
      %v3582 = vunpack.i.l.s16 %v3535
      %v3583 = vunpack.i.h.s16 %v3535
      %v3584 = vunpack.i.l.s16 %v3536
      %v3585 = vunpack.i.h.s16 %v3536
      %v3586 = vunpack.i.l.s16 %v3537
      %s3587 = scalar_lea.vmem %s2, 12
      %v3588 = vld [vmem:[%s3587] sm:$0x3]
      %v3589 = vpack.i.b16 %v3539, %v3538
      %v3590 = vpack.i.b16 %v3541, %v3540
      %v3591 = vpack.i.b16 %v3543, %v3542
      %v3592 = vpack.i.b16 %v3545, %v3544
      %v3593 = vpack.i.b16 %v3547, %v3546
      %v3594 = vpack.i.b16 %v3549, %v3548
      %v3595 = vpack.i.b16 %v3551, %v3550
      %v3596 = vpack.i.b16 %v3553, %v3552
      %v3597 = vpack.i.b16 %v3555, %v3554
      %v3598 = vpack.i.b16 %v3557, %v3556
      %v3599 = vpack.i.b16 %v3559, %v3558
      %v3600 = vpack.i.b16 %v3561, %v3560
      %v3601 = vpack.i.b16 %v3563, %v3562
      %v3602 = vpack.i.b16 %v3565, %v3564
      %v3603 = vpack.i.b16 %v3567, %v3566
      %v3604 = vpack.i.b16 %v3569, %v3568
      %v3605 = vpack.i.b16 %v3571, %v3570
      %v3606 = vpack.i.b16 %v3573, %v3572
      %v3607 = vpack.i.b16 %v3575, %v3574
      %v3608 = vpack.i.b16 %v3577, %v3576
      %v3609 = vpack.i.b16 %v3579, %v3578
      %v3610 = vpack.i.b16 %v3581, %v3580
      %v3611 = vpack.i.b16 %v3583, %v3582
      %v3612 = vpack.i.b16 %v3585, %v3584
      %v3614 = vcombine.low %v3589, %v3590
      %v3615 = vcombine.low %v3591, %v3592
      %v3616 = vcombine.low %v3593, %v3594
      %v3617 = vcombine.low %v3595, %v3596
      %v3619 = vunpack.c.l.s4 1966171168
      %v3620 = vunpack.c.0.s8 %v3619
      %v3621 = vlaneseq
      %v3622 = vshrl.u32 %v3621, 7
      %v3623 = vsub.s32 %v3620, %v3622
      %v3624 = vrot.slane %v3614, %v3623
      %v3626 = vunpack.c.l.s4 1966171168
      %v3627 = vunpack.c.0.s8 %v3626
      %v3628 = vlaneseq
      %v3629 = vshrl.u32 %v3628, 7
      %v3630 = vsub.s32 %v3627, %v3629
      %v3631 = vrot.slane %v3615, %v3630
      %v3633 = vunpack.c.l.s4 1966171168
      %v3634 = vunpack.c.0.s8 %v3633
      %v3635 = vlaneseq
      %v3636 = vshrl.u32 %v3635, 7
      %v3637 = vsub.s32 %v3634, %v3636
      %v3638 = vrot.slane %v3616, %v3637
      %v3640 = vunpack.c.l.s4 1966171168
      %v3641 = vunpack.c.0.s8 %v3640
      %v3642 = vlaneseq
      %v3643 = vshrl.u32 %v3642, 7
      %v3644 = vsub.s32 %v3641, %v3643
      %v3645 = vrot.slane %v3617, %v3644
      %v3646 = vcombine.low %v3624, %v3631
      %v3647 = vcombine.low %v3638, %v3645
      %v3649 = vunpack.c.l.s4 1966171168
      %v3650 = vunpack.c.0.s8 %v3649
      %v3651 = vlaneseq
      %v3652 = vshrl.u32 %v3651, 7
      %v3653 = vsub.s32 %v3650, %v3652
      %v3654 = vrot.slane %v3646, %v3653
      %v3656 = vunpack.c.l.s4 1966171168
      %v3657 = vunpack.c.0.s8 %v3656
      %v3658 = vlaneseq
      %v3659 = vshrl.u32 %v3658, 7
      %v3660 = vsub.s32 %v3657, %v3659
      %v3661 = vrot.slane %v3647, %v3660
      %v3662 = vcombine.low %v3654, %v3661
      %v3663 = vcombine.low %v3597, %v3598
      %v3664 = vcombine.low %v3599, %v3600
      %v3665 = vcombine.low %v3601, %v3602
      %v3666 = vcombine.low %v3603, %v3604
      %v3668 = vunpack.c.l.s4 1966171168
      %v3669 = vunpack.c.0.s8 %v3668
      %v3670 = vlaneseq
      %v3671 = vshrl.u32 %v3670, 7
      %v3672 = vsub.s32 %v3669, %v3671
      %v3673 = vrot.slane %v3663, %v3672
      %v3675 = vunpack.c.l.s4 1966171168
      %v3676 = vunpack.c.0.s8 %v3675
      %v3677 = vlaneseq
      %v3678 = vshrl.u32 %v3677, 7
      %v3679 = vsub.s32 %v3676, %v3678
      %v3680 = vrot.slane %v3664, %v3679
      %v3682 = vunpack.c.l.s4 1966171168
      %v3683 = vunpack.c.0.s8 %v3682
      %v3684 = vlaneseq
      %v3685 = vshrl.u32 %v3684, 7
      %v3686 = vsub.s32 %v3683, %v3685
      %v3687 = vrot.slane %v3665, %v3686
      %v3689 = vunpack.c.l.s4 1966171168
      %v3690 = vunpack.c.0.s8 %v3689
      %v3691 = vlaneseq
      %v3692 = vshrl.u32 %v3691, 7
      %v3693 = vsub.s32 %v3690, %v3692
      %v3694 = vrot.slane %v3666, %v3693
      %v3695 = vcombine.low %v3673, %v3680
      %v3696 = vcombine.low %v3687, %v3694
      %v3698 = vunpack.c.l.s4 1966171168
      %v3699 = vunpack.c.0.s8 %v3698
      %v3700 = vlaneseq
      %v3701 = vshrl.u32 %v3700, 7
      %v3702 = vsub.s32 %v3699, %v3701
      %v3703 = vrot.slane %v3695, %v3702
      %v3705 = vunpack.c.l.s4 1966171168
      %v3706 = vunpack.c.0.s8 %v3705
      %v3707 = vlaneseq
      %v3708 = vshrl.u32 %v3707, 7
      %v3709 = vsub.s32 %v3706, %v3708
      %v3710 = vrot.slane %v3696, %v3709
      %v3711 = vcombine.low %v3703, %v3710
      %v3712 = vcombine.low %v3605, %v3606
      %v3713 = vcombine.low %v3607, %v3608
      %v3714 = vcombine.low %v3609, %v3610
      %v3715 = vcombine.low %v3611, %v3612
      %v3717 = vunpack.c.l.s4 1966171168
      %v3718 = vunpack.c.0.s8 %v3717
      %v3719 = vlaneseq
      %v3720 = vshrl.u32 %v3719, 7
      %v3721 = vsub.s32 %v3718, %v3720
      %v3722 = vrot.slane %v3712, %v3721
      %v3724 = vunpack.c.l.s4 1966171168
      %v3725 = vunpack.c.0.s8 %v3724
      %v3726 = vlaneseq
      %v3727 = vshrl.u32 %v3726, 7
      %v3728 = vsub.s32 %v3725, %v3727
      %v3729 = vrot.slane %v3713, %v3728
      %v3731 = vunpack.c.l.s4 1966171168
      %v3732 = vunpack.c.0.s8 %v3731
      %v3733 = vlaneseq
      %v3734 = vshrl.u32 %v3733, 7
      %v3735 = vsub.s32 %v3732, %v3734
      %v3736 = vrot.slane %v3714, %v3735
      %v3738 = vunpack.c.l.s4 1966171168
      %v3739 = vunpack.c.0.s8 %v3738
      %v3740 = vlaneseq
      %v3741 = vshrl.u32 %v3740, 7
      %v3742 = vsub.s32 %v3739, %v3741
      %v3743 = vrot.slane %v3715, %v3742
      %v3744 = vcombine.low %v3722, %v3729
      %v3745 = vcombine.low %v3736, %v3743
      %v3747 = vunpack.c.l.s4 1966171168
      %v3748 = vunpack.c.0.s8 %v3747
      %v3749 = vlaneseq
      %v3750 = vshrl.u32 %v3749, 7
      %v3751 = vsub.s32 %v3748, %v3750
      %v3752 = vrot.slane %v3744, %v3751
      %v3754 = vunpack.c.l.s4 1966171168
      %v3755 = vunpack.c.0.s8 %v3754
      %v3756 = vlaneseq
      %v3757 = vshrl.u32 %v3756, 7
      %v3758 = vsub.s32 %v3755, %v3757
      %v3759 = vrot.slane %v3745, %v3758
      %v3760 = vcombine.low %v3752, %v3759
      %v3762 = vunpack.c.l.s4 1966171168
      %v3763 = vunpack.c.0.s8 %v3762
      %v3764 = vlaneseq
      %v3765 = vshrl.u32 %v3764, 7
      %v3766 = vsub.s32 %v3763, %v3765
      %v3767 = vrot.slane %v3586, %v3766
      %v3769 = vunpack.c.l.s4 1966171168
      %v3770 = vunpack.c.0.s8 %v3769
      %v3771 = vlaneseq
      %v3772 = vshrl.u32 %v3771, 7
      %v3773 = vsub.s32 %v3770, %v3772
      %v3774 = vrot.slane %v3767, %v3773
      %v3776 = vsel %vm987, %v3662, 0
      %v3779 = vsel %vm987, %v3711, 0
      %v3782 = vsel %vm987, %v3760, 0
      %v3785 = vsel %vm987, %v3774, 0
      %v3788 = vsel %vm1000, %v3588, 0
      %3790 = vmatprep.subr.bf16.mxu0 0
      %3791 = vmatpush1.bf16.msra.mxu0 0
      %3792 = vmatprep.subr.bf16.mxu0 0
      %3793 = vmatpush1.bf16.msra.mxu0 0
      %3794 = vmatprep.subr.bf16.mxu0 0
      %3795 = vmatpush1.bf16.msra.mxu0 0
      %3796 = vmatprep.subr.bf16.mxu0 0
      %3797 = vmatpush1.bf16.msra.mxu0 0
      %3798 = vmatprep.subr.bf16.mxu0 0
      %3799 = vmatpush1.bf16.msra.mxu0 0
      %3800 = vmatprep.subr.bf16.mxu0 0
      %3801 = vmatpush1.bf16.msra.mxu0 0
      %3802 = vmatprep.subr.bf16.mxu0 0
      %3803 = vmatpush1.bf16.msra.mxu0 0
      %3804 = vmatprep.subr.bf16.mxu0 0
      %3805 = vmatpush1.bf16.msra.mxu0 %v3788
      %3806 = vmatprep.subr.bf16.mxu0 0
      %3807 = vmatpush2.bf16.msra.mxu0 0
      %3808 = vmatprep.subr.bf16.mxu0 0
      %3809 = vmatpush2.bf16.msra.mxu0 0
      %3810 = vmatprep.subr.bf16.mxu0 0
      %3811 = vmatpush2.bf16.msra.mxu0 0
      %3812 = vmatprep.subr.bf16.mxu0 0
      %3813 = vmatpush2.bf16.msra.mxu0 0
      %3814 = vmatprep.subr.bf16.mxu0 0
      %3815 = vmatpush2.bf16.msra.mxu0 0
      %3816 = vmatprep.subr.bf16.mxu0 0
      %3817 = vmatpush2.bf16.msra.mxu0 0
      %3818 = vmatprep.subr.bf16.mxu0 0
      %3819 = vmatpush2.bf16.msra.mxu0 0
      %3820 = vmatprep.subr.bf16.mxu0 0
      %3821 = vmatpush2.bf16.msra.mxu0 0
      %3822 = vmatprep.mubr.bf16.mxu0 0
      %3823 = vmatmul.mubr.bf16.gmra.mxu0 %v3776
      %v3824 = vpop.f32.mrf.mxu0
      %v3825 = vadd.f32 0.0, %v3824
      %v3826 = vpop.f32.mrf.mxu0
      %v3827 = vpop.f32.mrf.mxu0
      %v3828 = vadd.f32 0.0, %v3827
      %v3829 = vpop.f32.mrf.mxu0
      %3830 = vmatprep.mubr.bf16.mxu0 0
      %3831 = vmatmul.mubr.bf16.gmra.mxu0 %v3779
      %v3832 = vpop.f32.mrf.mxu0
      %v3833 = vadd.f32 0.0, %v3832
      %v3834 = vpop.f32.mrf.mxu0
      %v3835 = vpop.f32.mrf.mxu0
      %v3836 = vadd.f32 0.0, %v3835
      %v3837 = vpop.f32.mrf.mxu0
      %3838 = vmatprep.mubr.bf16.mxu0 0
      %3839 = vmatmul.mubr.bf16.gmra.mxu0 %v3782
      %v3840 = vpop.f32.mrf.mxu0
      %v3841 = vadd.f32 0.0, %v3840
      %v3842 = vpop.f32.mrf.mxu0
      %v3843 = vpop.f32.mrf.mxu0
      %v3844 = vadd.f32 0.0, %v3843
      %v3845 = vpop.f32.mrf.mxu0
      %3846 = vmatprep.mubr.bf16.mxu0 0
      %3847 = vmatmul.mubr.bf16.gmra.mxu0 %v3785
      %v3848 = vpop.f32.mrf.mxu0
      %v3849 = vadd.f32 0.0, %v3848
      %v3850 = vpop.f32.mrf.mxu0
      %v3851 = vpop.f32.mrf.mxu0
      %v3852 = vpop.f32.mrf.mxu0
      %3853 = vdwg.mxu0
      %v3854 = vadd.f32 %v3348, %v3825
      %v3855 = vadd.f32 %v3349, %v3828
      %v3856 = vadd.f32 %v3350, %v3833
      %v3857 = vadd.f32 %v3351, %v3836
      %v3858 = vadd.f32 %v3352, %v3841
      %v3859 = vadd.f32 %v3353, %v3844
      %v3860 = vadd.f32 %v3354, %v3849
      %s3861 = scalar_lea.vmem %s324, 4
      %v3862 = vld [vmem:[%s3861] sm:$0xf]
      %s3863 = scalar_lea.vmem %s307, 20
      %v3864 = vld [vmem:[%s3863] sm:$0xf]
      %v3865 = vld [vmem:[%s3863 + $0x10] sm:$0xf]
      %v3866 = vld [vmem:[%s3863 + $0x20] sm:$0xf]
      %v3867 = vld [vmem:[%s3863 + $0x30] sm:$0xf]
      %v3868 = vld [vmem:[%s3863 + $0x40] sm:$0xf]
      %v3869 = vld [vmem:[%s3863 + $0x50] sm:$0xf]
      %v3878 = vunpack.c.l.s4 1966171168
      %v3879 = vunpack.c.0.s8 %v3878
      %v3880 = vlaneseq
      %v3881 = vshrl.u32 %v3880, 7
      %v3882 = vsub.s32 %v3879, %v3881
      %v3883 = vrot.slane %v3864, %v3882
      %v3884 = vcombine.high %v3883, %v3883
      %v3886 = vunpack.c.l.s4 1966171168
      %v3887 = vunpack.c.0.s8 %v3886
      %v3888 = vlaneseq
      %v3889 = vshrl.u32 %v3888, 7
      %v3890 = vsub.s32 %v3887, %v3889
      %v3891 = vrot.slane %v3883, %v3890
      %v3893 = vunpack.c.l.s4 1966171168
      %v3894 = vunpack.c.0.s8 %v3893
      %v3895 = vlaneseq
      %v3896 = vshrl.u32 %v3895, 7
      %v3897 = vsub.s32 %v3894, %v3896
      %v3898 = vrot.slane %v3884, %v3897
      %v3899 = vcombine.high %v3891, %v3891
      %v3900 = vcombine.high %v3898, %v3898
      %v3902 = vunpack.c.l.s4 1966171168
      %v3903 = vunpack.c.0.s8 %v3902
      %v3904 = vlaneseq
      %v3905 = vshrl.u32 %v3904, 7
      %v3906 = vsub.s32 %v3903, %v3905
      %v3907 = vrot.slane %v3865, %v3906
      %v3908 = vcombine.high %v3907, %v3907
      %v3910 = vunpack.c.l.s4 1966171168
      %v3911 = vunpack.c.0.s8 %v3910
      %v3912 = vlaneseq
      %v3913 = vshrl.u32 %v3912, 7
      %v3914 = vsub.s32 %v3911, %v3913
      %v3915 = vrot.slane %v3907, %v3914
      %v3917 = vunpack.c.l.s4 1966171168
      %v3918 = vunpack.c.0.s8 %v3917
      %v3919 = vlaneseq
      %v3920 = vshrl.u32 %v3919, 7
      %v3921 = vsub.s32 %v3918, %v3920
      %v3922 = vrot.slane %v3908, %v3921
      %v3923 = vcombine.high %v3915, %v3915
      %v3924 = vcombine.high %v3922, %v3922
      %v3926 = vunpack.c.l.s4 1966171168
      %v3927 = vunpack.c.0.s8 %v3926
      %v3928 = vlaneseq
      %v3929 = vshrl.u32 %v3928, 7
      %v3930 = vsub.s32 %v3927, %v3929
      %v3931 = vrot.slane %v3866, %v3930
      %v3932 = vcombine.high %v3931, %v3931
      %v3934 = vunpack.c.l.s4 1966171168
      %v3935 = vunpack.c.0.s8 %v3934
      %v3936 = vlaneseq
      %v3937 = vshrl.u32 %v3936, 7
      %v3938 = vsub.s32 %v3935, %v3937
      %v3939 = vrot.slane %v3931, %v3938
      %v3941 = vunpack.c.l.s4 1966171168
      %v3942 = vunpack.c.0.s8 %v3941
      %v3943 = vlaneseq
      %v3944 = vshrl.u32 %v3943, 7
      %v3945 = vsub.s32 %v3942, %v3944
      %v3946 = vrot.slane %v3932, %v3945
      %v3947 = vcombine.high %v3939, %v3939
      %v3948 = vcombine.high %v3946, %v3946
      %v3950 = vunpack.c.l.s4 1966171168
      %v3951 = vunpack.c.0.s8 %v3950
      %v3952 = vlaneseq
      %v3953 = vshrl.u32 %v3952, 7
      %v3954 = vsub.s32 %v3951, %v3953
      %v3955 = vrot.slane %v3867, %v3954
      %v3956 = vcombine.high %v3955, %v3955
      %v3958 = vunpack.c.l.s4 1966171168
      %v3959 = vunpack.c.0.s8 %v3958
      %v3960 = vlaneseq
      %v3961 = vshrl.u32 %v3960, 7
      %v3962 = vsub.s32 %v3959, %v3961
      %v3963 = vrot.slane %v3955, %v3962
      %v3965 = vunpack.c.l.s4 1966171168
      %v3966 = vunpack.c.0.s8 %v3965
      %v3967 = vlaneseq
      %v3968 = vshrl.u32 %v3967, 7
      %v3969 = vsub.s32 %v3966, %v3968
      %v3970 = vrot.slane %v3956, %v3969
      %v3971 = vcombine.high %v3963, %v3963
      %v3972 = vcombine.high %v3970, %v3970
      %v3974 = vunpack.c.l.s4 1966171168
      %v3975 = vunpack.c.0.s8 %v3974
      %v3976 = vlaneseq
      %v3977 = vshrl.u32 %v3976, 7
      %v3978 = vsub.s32 %v3975, %v3977
      %v3979 = vrot.slane %v3868, %v3978
      %v3980 = vcombine.high %v3979, %v3979
      %v3982 = vunpack.c.l.s4 1966171168
      %v3983 = vunpack.c.0.s8 %v3982
      %v3984 = vlaneseq
      %v3985 = vshrl.u32 %v3984, 7
      %v3986 = vsub.s32 %v3983, %v3985
      %v3987 = vrot.slane %v3979, %v3986
      %v3989 = vunpack.c.l.s4 1966171168
      %v3990 = vunpack.c.0.s8 %v3989
      %v3991 = vlaneseq
      %v3992 = vshrl.u32 %v3991, 7
      %v3993 = vsub.s32 %v3990, %v3992
      %v3994 = vrot.slane %v3980, %v3993
      %v3995 = vcombine.high %v3987, %v3987
      %v3996 = vcombine.high %v3994, %v3994
      %v3998 = vunpack.c.l.s4 1966171168
      %v3999 = vunpack.c.0.s8 %v3998
      %v4000 = vlaneseq
      %v4001 = vshrl.u32 %v4000, 7
      %v4002 = vsub.s32 %v3999, %v4001
      %v4003 = vrot.slane %v3869, %v4002
      %v4004 = vcombine.high %v4003, %v4003
      %v4006 = vunpack.c.l.s4 1966171168
      %v4007 = vunpack.c.0.s8 %v4006
      %v4008 = vlaneseq
      %v4009 = vshrl.u32 %v4008, 7
      %v4010 = vsub.s32 %v4007, %v4009
      %v4011 = vrot.slane %v4003, %v4010
      %v4013 = vunpack.c.l.s4 1966171168
      %v4014 = vunpack.c.0.s8 %v4013
      %v4015 = vlaneseq
      %v4016 = vshrl.u32 %v4015, 7
      %v4017 = vsub.s32 %v4014, %v4016
      %v4018 = vrot.slane %v4004, %v4017
      %v4019 = vcombine.high %v4011, %v4011
      %v4020 = vcombine.high %v4018, %v4018
      %v4022 = vunpack.c.l.s4 1966171168
      %v4023 = vunpack.c.0.s8 %v4022
      %v4024 = vlaneseq
      %v4025 = vshrl.u32 %v4024, 7
      %v4026 = vsub.s32 %v4023, %v4025
      %v4027 = vrot.slane %v3862, %v4026
      %v4028 = vcombine.high %v4027, %v4027
      %v4030 = vunpack.c.l.s4 1966171168
      %v4031 = vunpack.c.0.s8 %v4030
      %v4032 = vlaneseq
      %v4033 = vshrl.u32 %v4032, 7
      %v4034 = vsub.s32 %v4031, %v4033
      %v4035 = vrot.slane %v4027, %v4034
      %v4037 = vunpack.c.l.s4 1966171168
      %v4038 = vunpack.c.0.s8 %v4037
      %v4039 = vlaneseq
      %v4040 = vshrl.u32 %v4039, 7
      %v4041 = vsub.s32 %v4038, %v4040
      %v4042 = vrot.slane %v4028, %v4041
      %v4043 = vcombine.high %v4035, %v4035
      %v4044 = vcombine.high %v4042, %v4042
      %v4045 = vunpack.i.l.s16 %v3891
      %v4046 = vunpack.i.h.s16 %v3891
      %v4047 = vunpack.i.l.s16 %v3898
      %v4048 = vunpack.i.h.s16 %v3898
      %v4049 = vunpack.i.l.s16 %v3899
      %v4050 = vunpack.i.h.s16 %v3899
      %v4051 = vunpack.i.l.s16 %v3900
      %v4052 = vunpack.i.l.s16 %v3915
      %v4053 = vunpack.i.h.s16 %v3915
      %v4054 = vunpack.i.l.s16 %v3922
      %v4055 = vunpack.i.h.s16 %v3922
      %v4056 = vunpack.i.l.s16 %v3923
      %v4057 = vunpack.i.h.s16 %v3923
      %v4058 = vunpack.i.l.s16 %v3924
      %v4059 = vunpack.i.l.s16 %v3939
      %v4060 = vunpack.i.h.s16 %v3939
      %v4061 = vunpack.i.l.s16 %v3946
      %v4062 = vunpack.i.h.s16 %v3946
      %v4063 = vunpack.i.l.s16 %v3947
      %v4064 = vunpack.i.h.s16 %v3947
      %v4065 = vunpack.i.l.s16 %v3948
      %v4066 = vunpack.i.l.s16 %v3963
      %v4067 = vunpack.i.h.s16 %v3963
      %v4068 = vunpack.i.l.s16 %v3970
      %v4069 = vunpack.i.h.s16 %v3970
      %v4070 = vunpack.i.l.s16 %v3971
      %v4071 = vunpack.i.h.s16 %v3971
      %v4072 = vunpack.i.l.s16 %v3972
      %v4073 = vunpack.i.l.s16 %v3987
      %v4074 = vunpack.i.h.s16 %v3987
      %v4075 = vunpack.i.l.s16 %v3994
      %v4076 = vunpack.i.h.s16 %v3994
      %v4077 = vunpack.i.l.s16 %v3995
      %v4078 = vunpack.i.h.s16 %v3995
      %v4079 = vunpack.i.l.s16 %v3996
      %v4080 = vunpack.i.l.s16 %v4011
      %v4081 = vunpack.i.h.s16 %v4011
      %v4082 = vunpack.i.l.s16 %v4018
      %v4083 = vunpack.i.h.s16 %v4018
      %v4084 = vunpack.i.l.s16 %v4019
      %v4085 = vunpack.i.h.s16 %v4019
      %v4086 = vunpack.i.l.s16 %v4020
      %v4087 = vunpack.i.l.s16 %v4035
      %v4088 = vunpack.i.h.s16 %v4035
      %v4089 = vunpack.i.l.s16 %v4042
      %v4090 = vunpack.i.h.s16 %v4042
      %v4091 = vunpack.i.l.s16 %v4043
      %v4092 = vunpack.i.h.s16 %v4043
      %v4093 = vunpack.i.l.s16 %v4044
      %s4094 = scalar_lea.vmem %s2, 14
      %v4095 = vld [vmem:[%s4094] sm:$0x3]
      %v4096 = vpack.i.b16 %v4046, %v4045
      %v4097 = vpack.i.b16 %v4048, %v4047
      %v4098 = vpack.i.b16 %v4050, %v4049
      %v4099 = vpack.i.b16 %v4052, %v4051
      %v4100 = vpack.i.b16 %v4054, %v4053
      %v4101 = vpack.i.b16 %v4056, %v4055
      %v4102 = vpack.i.b16 %v4058, %v4057
      %v4103 = vpack.i.b16 %v4060, %v4059
      %v4104 = vpack.i.b16 %v4062, %v4061
      %v4105 = vpack.i.b16 %v4064, %v4063
      %v4106 = vpack.i.b16 %v4066, %v4065
      %v4107 = vpack.i.b16 %v4068, %v4067
      %v4108 = vpack.i.b16 %v4070, %v4069
      %v4109 = vpack.i.b16 %v4072, %v4071
      %v4110 = vpack.i.b16 %v4074, %v4073
      %v4111 = vpack.i.b16 %v4076, %v4075
      %v4112 = vpack.i.b16 %v4078, %v4077
      %v4113 = vpack.i.b16 %v4080, %v4079
      %v4114 = vpack.i.b16 %v4082, %v4081
      %v4115 = vpack.i.b16 %v4084, %v4083
      %v4116 = vpack.i.b16 %v4086, %v4085
      %v4117 = vpack.i.b16 %v4088, %v4087
      %v4118 = vpack.i.b16 %v4090, %v4089
      %v4119 = vpack.i.b16 %v4092, %v4091
      %v4121 = vcombine.low %v4096, %v4097
      %v4122 = vcombine.low %v4098, %v4099
      %v4123 = vcombine.low %v4100, %v4101
      %v4124 = vcombine.low %v4102, %v4103
      %v4126 = vunpack.c.l.s4 1966171168
      %v4127 = vunpack.c.0.s8 %v4126
      %v4128 = vlaneseq
      %v4129 = vshrl.u32 %v4128, 7
      %v4130 = vsub.s32 %v4127, %v4129
      %v4131 = vrot.slane %v4121, %v4130
      %v4133 = vunpack.c.l.s4 1966171168
      %v4134 = vunpack.c.0.s8 %v4133
      %v4135 = vlaneseq
      %v4136 = vshrl.u32 %v4135, 7
      %v4137 = vsub.s32 %v4134, %v4136
      %v4138 = vrot.slane %v4122, %v4137
      %v4140 = vunpack.c.l.s4 1966171168
      %v4141 = vunpack.c.0.s8 %v4140
      %v4142 = vlaneseq
      %v4143 = vshrl.u32 %v4142, 7
      %v4144 = vsub.s32 %v4141, %v4143
      %v4145 = vrot.slane %v4123, %v4144
      %v4147 = vunpack.c.l.s4 1966171168
      %v4148 = vunpack.c.0.s8 %v4147
      %v4149 = vlaneseq
      %v4150 = vshrl.u32 %v4149, 7
      %v4151 = vsub.s32 %v4148, %v4150
      %v4152 = vrot.slane %v4124, %v4151
      %v4153 = vcombine.low %v4131, %v4138
      %v4154 = vcombine.low %v4145, %v4152
      %v4156 = vunpack.c.l.s4 1966171168
      %v4157 = vunpack.c.0.s8 %v4156
      %v4158 = vlaneseq
      %v4159 = vshrl.u32 %v4158, 7
      %v4160 = vsub.s32 %v4157, %v4159
      %v4161 = vrot.slane %v4153, %v4160
      %v4163 = vunpack.c.l.s4 1966171168
      %v4164 = vunpack.c.0.s8 %v4163
      %v4165 = vlaneseq
      %v4166 = vshrl.u32 %v4165, 7
      %v4167 = vsub.s32 %v4164, %v4166
      %v4168 = vrot.slane %v4154, %v4167
      %v4169 = vcombine.low %v4161, %v4168
      %v4170 = vcombine.low %v4104, %v4105
      %v4171 = vcombine.low %v4106, %v4107
      %v4172 = vcombine.low %v4108, %v4109
      %v4173 = vcombine.low %v4110, %v4111
      %v4175 = vunpack.c.l.s4 1966171168
      %v4176 = vunpack.c.0.s8 %v4175
      %v4177 = vlaneseq
      %v4178 = vshrl.u32 %v4177, 7
      %v4179 = vsub.s32 %v4176, %v4178
      %v4180 = vrot.slane %v4170, %v4179
      %v4182 = vunpack.c.l.s4 1966171168
      %v4183 = vunpack.c.0.s8 %v4182
      %v4184 = vlaneseq
      %v4185 = vshrl.u32 %v4184, 7
      %v4186 = vsub.s32 %v4183, %v4185
      %v4187 = vrot.slane %v4171, %v4186
      %v4189 = vunpack.c.l.s4 1966171168
      %v4190 = vunpack.c.0.s8 %v4189
      %v4191 = vlaneseq
      %v4192 = vshrl.u32 %v4191, 7
      %v4193 = vsub.s32 %v4190, %v4192
      %v4194 = vrot.slane %v4172, %v4193
      %v4196 = vunpack.c.l.s4 1966171168
      %v4197 = vunpack.c.0.s8 %v4196
      %v4198 = vlaneseq
      %v4199 = vshrl.u32 %v4198, 7
      %v4200 = vsub.s32 %v4197, %v4199
      %v4201 = vrot.slane %v4173, %v4200
      %v4202 = vcombine.low %v4180, %v4187
      %v4203 = vcombine.low %v4194, %v4201
      %v4205 = vunpack.c.l.s4 1966171168
      %v4206 = vunpack.c.0.s8 %v4205
      %v4207 = vlaneseq
      %v4208 = vshrl.u32 %v4207, 7
      %v4209 = vsub.s32 %v4206, %v4208
      %v4210 = vrot.slane %v4202, %v4209
      %v4212 = vunpack.c.l.s4 1966171168
      %v4213 = vunpack.c.0.s8 %v4212
      %v4214 = vlaneseq
      %v4215 = vshrl.u32 %v4214, 7
      %v4216 = vsub.s32 %v4213, %v4215
      %v4217 = vrot.slane %v4203, %v4216
      %v4218 = vcombine.low %v4210, %v4217
      %v4219 = vcombine.low %v4112, %v4113
      %v4220 = vcombine.low %v4114, %v4115
      %v4221 = vcombine.low %v4116, %v4117
      %v4222 = vcombine.low %v4118, %v4119
      %v4224 = vunpack.c.l.s4 1966171168
      %v4225 = vunpack.c.0.s8 %v4224
      %v4226 = vlaneseq
      %v4227 = vshrl.u32 %v4226, 7
      %v4228 = vsub.s32 %v4225, %v4227
      %v4229 = vrot.slane %v4219, %v4228
      %v4231 = vunpack.c.l.s4 1966171168
      %v4232 = vunpack.c.0.s8 %v4231
      %v4233 = vlaneseq
      %v4234 = vshrl.u32 %v4233, 7
      %v4235 = vsub.s32 %v4232, %v4234
      %v4236 = vrot.slane %v4220, %v4235
      %v4238 = vunpack.c.l.s4 1966171168
      %v4239 = vunpack.c.0.s8 %v4238
      %v4240 = vlaneseq
      %v4241 = vshrl.u32 %v4240, 7
      %v4242 = vsub.s32 %v4239, %v4241
      %v4243 = vrot.slane %v4221, %v4242
      %v4245 = vunpack.c.l.s4 1966171168
      %v4246 = vunpack.c.0.s8 %v4245
      %v4247 = vlaneseq
      %v4248 = vshrl.u32 %v4247, 7
      %v4249 = vsub.s32 %v4246, %v4248
      %v4250 = vrot.slane %v4222, %v4249
      %v4251 = vcombine.low %v4229, %v4236
      %v4252 = vcombine.low %v4243, %v4250
      %v4254 = vunpack.c.l.s4 1966171168
      %v4255 = vunpack.c.0.s8 %v4254
      %v4256 = vlaneseq
      %v4257 = vshrl.u32 %v4256, 7
      %v4258 = vsub.s32 %v4255, %v4257
      %v4259 = vrot.slane %v4251, %v4258
      %v4261 = vunpack.c.l.s4 1966171168
      %v4262 = vunpack.c.0.s8 %v4261
      %v4263 = vlaneseq
      %v4264 = vshrl.u32 %v4263, 7
      %v4265 = vsub.s32 %v4262, %v4264
      %v4266 = vrot.slane %v4252, %v4265
      %v4267 = vcombine.low %v4259, %v4266
      %v4269 = vunpack.c.l.s4 1966171168
      %v4270 = vunpack.c.0.s8 %v4269
      %v4271 = vlaneseq
      %v4272 = vshrl.u32 %v4271, 7
      %v4273 = vsub.s32 %v4270, %v4272
      %v4274 = vrot.slane %v4093, %v4273
      %v4276 = vunpack.c.l.s4 1966171168
      %v4277 = vunpack.c.0.s8 %v4276
      %v4278 = vlaneseq
      %v4279 = vshrl.u32 %v4278, 7
      %v4280 = vsub.s32 %v4277, %v4279
      %v4281 = vrot.slane %v4274, %v4280
      %v4283 = vsel %vm987, %v4169, 0
      %v4286 = vsel %vm987, %v4218, 0
      %v4289 = vsel %vm987, %v4267, 0
      %v4292 = vsel %vm987, %v4281, 0
      %v4295 = vsel %vm1000, %v4095, 0
      %4297 = vmatprep.subr.bf16.mxu0 0
      %4298 = vmatpush1.bf16.msra.mxu0 0
      %4299 = vmatprep.subr.bf16.mxu0 0
      %4300 = vmatpush1.bf16.msra.mxu0 0
      %4301 = vmatprep.subr.bf16.mxu0 0
      %4302 = vmatpush1.bf16.msra.mxu0 0
      %4303 = vmatprep.subr.bf16.mxu0 0
      %4304 = vmatpush1.bf16.msra.mxu0 0
      %4305 = vmatprep.subr.bf16.mxu0 0
      %4306 = vmatpush1.bf16.msra.mxu0 0
      %4307 = vmatprep.subr.bf16.mxu0 0
      %4308 = vmatpush1.bf16.msra.mxu0 0
      %4309 = vmatprep.subr.bf16.mxu0 0
      %4310 = vmatpush1.bf16.msra.mxu0 0
      %4311 = vmatprep.subr.bf16.mxu0 0
      %4312 = vmatpush1.bf16.msra.mxu0 %v4295
      %4313 = vmatprep.subr.bf16.mxu0 0
      %4314 = vmatpush2.bf16.msra.mxu0 0
      %4315 = vmatprep.subr.bf16.mxu0 0
      %4316 = vmatpush2.bf16.msra.mxu0 0
      %4317 = vmatprep.subr.bf16.mxu0 0
      %4318 = vmatpush2.bf16.msra.mxu0 0
      %4319 = vmatprep.subr.bf16.mxu0 0
      %4320 = vmatpush2.bf16.msra.mxu0 0
      %4321 = vmatprep.subr.bf16.mxu0 0
      %4322 = vmatpush2.bf16.msra.mxu0 0
      %4323 = vmatprep.subr.bf16.mxu0 0
      %4324 = vmatpush2.bf16.msra.mxu0 0
      %4325 = vmatprep.subr.bf16.mxu0 0
      %4326 = vmatpush2.bf16.msra.mxu0 0
      %4327 = vmatprep.subr.bf16.mxu0 0
      %4328 = vmatpush2.bf16.msra.mxu0 0
      %4329 = vmatprep.mubr.bf16.mxu0 0
      %4330 = vmatmul.mubr.bf16.gmra.mxu0 %v4283
      %v4331 = vpop.f32.mrf.mxu0
      %v4332 = vadd.f32 0.0, %v4331
      %v4333 = vpop.f32.mrf.mxu0
      %v4334 = vpop.f32.mrf.mxu0
      %v4335 = vadd.f32 0.0, %v4334
      %v4336 = vpop.f32.mrf.mxu0
      %4337 = vmatprep.mubr.bf16.mxu0 0
      %4338 = vmatmul.mubr.bf16.gmra.mxu0 %v4286
      %v4339 = vpop.f32.mrf.mxu0
      %v4340 = vadd.f32 0.0, %v4339
      %v4341 = vpop.f32.mrf.mxu0
      %v4342 = vpop.f32.mrf.mxu0
      %v4343 = vadd.f32 0.0, %v4342
      %v4344 = vpop.f32.mrf.mxu0
      %4345 = vmatprep.mubr.bf16.mxu0 0
      %4346 = vmatmul.mubr.bf16.gmra.mxu0 %v4289
      %v4347 = vpop.f32.mrf.mxu0
      %v4348 = vadd.f32 0.0, %v4347
      %v4349 = vpop.f32.mrf.mxu0
      %v4350 = vpop.f32.mrf.mxu0
      %v4351 = vadd.f32 0.0, %v4350
      %v4352 = vpop.f32.mrf.mxu0
      %4353 = vmatprep.mubr.bf16.mxu0 0
      %4354 = vmatmul.mubr.bf16.gmra.mxu0 %v4292
      %v4355 = vpop.f32.mrf.mxu0
      %v4356 = vadd.f32 0.0, %v4355
      %v4357 = vpop.f32.mrf.mxu0
      %v4358 = vpop.f32.mrf.mxu0
      %v4359 = vpop.f32.mrf.mxu0
      %4360 = vdwg.mxu0
      %v4361 = vadd.f32 %v3854, %v4332
      %v4362 = vadd.f32 %v3855, %v4335
      %v4363 = vadd.f32 %v3856, %v4340
      %v4364 = vadd.f32 %v3857, %v4343
      %v4365 = vadd.f32 %v3858, %v4348
      %v4366 = vadd.f32 %v3859, %v4351
      %v4367 = vadd.f32 %v3860, %v4356
      %v4368 = vld [vmem:[%s324] sm:$0xf]
      %v4369 = vld [vmem:[%s3356] sm:$0xf]
      %v4370 = vld [vmem:[%s3356 + $0x10] sm:$0xf]
      %v4371 = vld [vmem:[%s3356 + $0x20] sm:$0xf]
      %v4372 = vld [vmem:[%s3356 + $0x30] sm:$0xf]
      %v4373 = vld [vmem:[%s3356 + $0x40] sm:$0xf]
      %v4374 = vld [vmem:[%s3356 + $0x50] sm:$0xf]
      %v4383 = vunpack.c.l.s4 1966171168
      %v4384 = vunpack.c.0.s8 %v4383
      %v4385 = vlaneseq
      %v4386 = vshrl.u32 %v4385, 7
      %v4387 = vsub.s32 %v4384, %v4386
      %v4388 = vrot.slane %v4369, %v4387
      %v4389 = vcombine.high %v4388, %v4388
      %v4391 = vunpack.c.l.s4 1966171168
      %v4392 = vunpack.c.0.s8 %v4391
      %v4393 = vlaneseq
      %v4394 = vshrl.u32 %v4393, 7
      %v4395 = vsub.s32 %v4392, %v4394
      %v4396 = vrot.slane %v4388, %v4395
      %v4398 = vunpack.c.l.s4 1966171168
      %v4399 = vunpack.c.0.s8 %v4398
      %v4400 = vlaneseq
      %v4401 = vshrl.u32 %v4400, 7
      %v4402 = vsub.s32 %v4399, %v4401
      %v4403 = vrot.slane %v4389, %v4402
      %v4404 = vcombine.high %v4396, %v4396
      %v4405 = vcombine.high %v4403, %v4403
      %v4407 = vunpack.c.l.s4 1966171168
      %v4408 = vunpack.c.0.s8 %v4407
      %v4409 = vlaneseq
      %v4410 = vshrl.u32 %v4409, 7
      %v4411 = vsub.s32 %v4408, %v4410
      %v4412 = vrot.slane %v4370, %v4411
      %v4413 = vcombine.high %v4412, %v4412
      %v4415 = vunpack.c.l.s4 1966171168
      %v4416 = vunpack.c.0.s8 %v4415
      %v4417 = vlaneseq
      %v4418 = vshrl.u32 %v4417, 7
      %v4419 = vsub.s32 %v4416, %v4418
      %v4420 = vrot.slane %v4412, %v4419
      %v4422 = vunpack.c.l.s4 1966171168
      %v4423 = vunpack.c.0.s8 %v4422
      %v4424 = vlaneseq
      %v4425 = vshrl.u32 %v4424, 7
      %v4426 = vsub.s32 %v4423, %v4425
      %v4427 = vrot.slane %v4413, %v4426
      %v4428 = vcombine.high %v4420, %v4420
      %v4429 = vcombine.high %v4427, %v4427
      %v4431 = vunpack.c.l.s4 1966171168
      %v4432 = vunpack.c.0.s8 %v4431
      %v4433 = vlaneseq
      %v4434 = vshrl.u32 %v4433, 7
      %v4435 = vsub.s32 %v4432, %v4434
      %v4436 = vrot.slane %v4371, %v4435
      %v4437 = vcombine.high %v4436, %v4436
      %v4439 = vunpack.c.l.s4 1966171168
      %v4440 = vunpack.c.0.s8 %v4439
      %v4441 = vlaneseq
      %v4442 = vshrl.u32 %v4441, 7
      %v4443 = vsub.s32 %v4440, %v4442
      %v4444 = vrot.slane %v4436, %v4443
      %v4446 = vunpack.c.l.s4 1966171168
      %v4447 = vunpack.c.0.s8 %v4446
      %v4448 = vlaneseq
      %v4449 = vshrl.u32 %v4448, 7
      %v4450 = vsub.s32 %v4447, %v4449
      %v4451 = vrot.slane %v4437, %v4450
      %v4452 = vcombine.high %v4444, %v4444
      %v4453 = vcombine.high %v4451, %v4451
      %v4455 = vunpack.c.l.s4 1966171168
      %v4456 = vunpack.c.0.s8 %v4455
      %v4457 = vlaneseq
      %v4458 = vshrl.u32 %v4457, 7
      %v4459 = vsub.s32 %v4456, %v4458
      %v4460 = vrot.slane %v4372, %v4459
      %v4461 = vcombine.high %v4460, %v4460
      %v4463 = vunpack.c.l.s4 1966171168
      %v4464 = vunpack.c.0.s8 %v4463
      %v4465 = vlaneseq
      %v4466 = vshrl.u32 %v4465, 7
      %v4467 = vsub.s32 %v4464, %v4466
      %v4468 = vrot.slane %v4460, %v4467
      %v4470 = vunpack.c.l.s4 1966171168
      %v4471 = vunpack.c.0.s8 %v4470
      %v4472 = vlaneseq
      %v4473 = vshrl.u32 %v4472, 7
      %v4474 = vsub.s32 %v4471, %v4473
      %v4475 = vrot.slane %v4461, %v4474
      %v4476 = vcombine.high %v4468, %v4468
      %v4477 = vcombine.high %v4475, %v4475
      %v4479 = vunpack.c.l.s4 1966171168
      %v4480 = vunpack.c.0.s8 %v4479
      %v4481 = vlaneseq
      %v4482 = vshrl.u32 %v4481, 7
      %v4483 = vsub.s32 %v4480, %v4482
      %v4484 = vrot.slane %v4373, %v4483
      %v4485 = vcombine.high %v4484, %v4484
      %v4487 = vunpack.c.l.s4 1966171168
      %v4488 = vunpack.c.0.s8 %v4487
      %v4489 = vlaneseq
      %v4490 = vshrl.u32 %v4489, 7
      %v4491 = vsub.s32 %v4488, %v4490
      %v4492 = vrot.slane %v4484, %v4491
      %v4494 = vunpack.c.l.s4 1966171168
      %v4495 = vunpack.c.0.s8 %v4494
      %v4496 = vlaneseq
      %v4497 = vshrl.u32 %v4496, 7
      %v4498 = vsub.s32 %v4495, %v4497
      %v4499 = vrot.slane %v4485, %v4498
      %v4500 = vcombine.high %v4492, %v4492
      %v4501 = vcombine.high %v4499, %v4499
      %v4503 = vunpack.c.l.s4 1966171168
      %v4504 = vunpack.c.0.s8 %v4503
      %v4505 = vlaneseq
      %v4506 = vshrl.u32 %v4505, 7
      %v4507 = vsub.s32 %v4504, %v4506
      %v4508 = vrot.slane %v4374, %v4507
      %v4509 = vcombine.high %v4508, %v4508
      %v4511 = vunpack.c.l.s4 1966171168
      %v4512 = vunpack.c.0.s8 %v4511
      %v4513 = vlaneseq
      %v4514 = vshrl.u32 %v4513, 7
      %v4515 = vsub.s32 %v4512, %v4514
      %v4516 = vrot.slane %v4508, %v4515
      %v4518 = vunpack.c.l.s4 1966171168
      %v4519 = vunpack.c.0.s8 %v4518
      %v4520 = vlaneseq
      %v4521 = vshrl.u32 %v4520, 7
      %v4522 = vsub.s32 %v4519, %v4521
      %v4523 = vrot.slane %v4509, %v4522
      %v4524 = vcombine.high %v4516, %v4516
      %v4525 = vcombine.high %v4523, %v4523
      %v4527 = vunpack.c.l.s4 1966171168
      %v4528 = vunpack.c.0.s8 %v4527
      %v4529 = vlaneseq
      %v4530 = vshrl.u32 %v4529, 7
      %v4531 = vsub.s32 %v4528, %v4530
      %v4532 = vrot.slane %v4368, %v4531
      %v4533 = vcombine.high %v4532, %v4532
      %v4535 = vunpack.c.l.s4 1966171168
      %v4536 = vunpack.c.0.s8 %v4535
      %v4537 = vlaneseq
      %v4538 = vshrl.u32 %v4537, 7
      %v4539 = vsub.s32 %v4536, %v4538
      %v4540 = vrot.slane %v4532, %v4539
      %v4542 = vunpack.c.l.s4 1966171168
      %v4543 = vunpack.c.0.s8 %v4542
      %v4544 = vlaneseq
      %v4545 = vshrl.u32 %v4544, 7
      %v4546 = vsub.s32 %v4543, %v4545
      %v4547 = vrot.slane %v4533, %v4546
      %v4548 = vcombine.high %v4540, %v4540
      %v4549 = vcombine.high %v4547, %v4547
      %v4550 = vunpack.i.h.s16 %v4396
      %v4551 = vunpack.i.l.s16 %v4403
      %v4552 = vunpack.i.h.s16 %v4403
      %v4553 = vunpack.i.l.s16 %v4404
      %v4554 = vunpack.i.h.s16 %v4404
      %v4555 = vunpack.i.l.s16 %v4405
      %v4556 = vunpack.i.h.s16 %v4405
      %v4557 = vunpack.i.h.s16 %v4420
      %v4558 = vunpack.i.l.s16 %v4427
      %v4559 = vunpack.i.h.s16 %v4427
      %v4560 = vunpack.i.l.s16 %v4428
      %v4561 = vunpack.i.h.s16 %v4428
      %v4562 = vunpack.i.l.s16 %v4429
      %v4563 = vunpack.i.h.s16 %v4429
      %v4564 = vunpack.i.h.s16 %v4444
      %v4565 = vunpack.i.l.s16 %v4451
      %v4566 = vunpack.i.h.s16 %v4451
      %v4567 = vunpack.i.l.s16 %v4452
      %v4568 = vunpack.i.h.s16 %v4452
      %v4569 = vunpack.i.l.s16 %v4453
      %v4570 = vunpack.i.h.s16 %v4453
      %v4571 = vunpack.i.h.s16 %v4468
      %v4572 = vunpack.i.l.s16 %v4475
      %v4573 = vunpack.i.h.s16 %v4475
      %v4574 = vunpack.i.l.s16 %v4476
      %v4575 = vunpack.i.h.s16 %v4476
      %v4576 = vunpack.i.l.s16 %v4477
      %v4577 = vunpack.i.h.s16 %v4477
      %v4578 = vunpack.i.h.s16 %v4492
      %v4579 = vunpack.i.l.s16 %v4499
      %v4580 = vunpack.i.h.s16 %v4499
      %v4581 = vunpack.i.l.s16 %v4500
      %v4582 = vunpack.i.h.s16 %v4500
      %v4583 = vunpack.i.l.s16 %v4501
      %v4584 = vunpack.i.h.s16 %v4501
      %v4585 = vunpack.i.h.s16 %v4516
      %v4586 = vunpack.i.l.s16 %v4523
      %v4587 = vunpack.i.h.s16 %v4523
      %v4588 = vunpack.i.l.s16 %v4524
      %v4589 = vunpack.i.h.s16 %v4524
      %v4590 = vunpack.i.l.s16 %v4525
      %v4591 = vunpack.i.h.s16 %v4525
      %v4592 = vunpack.i.h.s16 %v4540
      %v4593 = vunpack.i.l.s16 %v4547
      %v4594 = vunpack.i.h.s16 %v4547
      %v4595 = vunpack.i.l.s16 %v4548
      %v4596 = vunpack.i.h.s16 %v4548
      %v4597 = vunpack.i.l.s16 %v4549
      %v4598 = vunpack.i.h.s16 %v4549
      %s4599 = scalar_lea.vmem %s2, 16
      %v4600 = vld [vmem:[%s4599] sm:$0x3]
      %v4601 = vpack.i.b16 %v4551, %v4550
      %v4602 = vpack.i.b16 %v4553, %v4552
      %v4603 = vpack.i.b16 %v4555, %v4554
      %v4604 = vpack.i.b16 %v4557, %v4556
      %v4605 = vpack.i.b16 %v4559, %v4558
      %v4606 = vpack.i.b16 %v4561, %v4560
      %v4607 = vpack.i.b16 %v4563, %v4562
      %v4608 = vpack.i.b16 %v4565, %v4564
      %v4609 = vpack.i.b16 %v4567, %v4566
      %v4610 = vpack.i.b16 %v4569, %v4568
      %v4611 = vpack.i.b16 %v4571, %v4570
      %v4612 = vpack.i.b16 %v4573, %v4572
      %v4613 = vpack.i.b16 %v4575, %v4574
      %v4614 = vpack.i.b16 %v4577, %v4576
      %v4615 = vpack.i.b16 %v4579, %v4578
      %v4616 = vpack.i.b16 %v4581, %v4580
      %v4617 = vpack.i.b16 %v4583, %v4582
      %v4618 = vpack.i.b16 %v4585, %v4584
      %v4619 = vpack.i.b16 %v4587, %v4586
      %v4620 = vpack.i.b16 %v4589, %v4588
      %v4621 = vpack.i.b16 %v4591, %v4590
      %v4622 = vpack.i.b16 %v4593, %v4592
      %v4623 = vpack.i.b16 %v4595, %v4594
      %v4624 = vpack.i.b16 %v4597, %v4596
      %v4626 = vcombine.low %v4601, %v4602
      %v4627 = vcombine.low %v4603, %v4604
      %v4628 = vcombine.low %v4605, %v4606
      %v4629 = vcombine.low %v4607, %v4608
      %v4631 = vunpack.c.l.s4 1966171168
      %v4632 = vunpack.c.0.s8 %v4631
      %v4633 = vlaneseq
      %v4634 = vshrl.u32 %v4633, 7
      %v4635 = vsub.s32 %v4632, %v4634
      %v4636 = vrot.slane %v4626, %v4635
      %v4638 = vunpack.c.l.s4 1966171168
      %v4639 = vunpack.c.0.s8 %v4638
      %v4640 = vlaneseq
      %v4641 = vshrl.u32 %v4640, 7
      %v4642 = vsub.s32 %v4639, %v4641
      %v4643 = vrot.slane %v4627, %v4642
      %v4645 = vunpack.c.l.s4 1966171168
      %v4646 = vunpack.c.0.s8 %v4645
      %v4647 = vlaneseq
      %v4648 = vshrl.u32 %v4647, 7
      %v4649 = vsub.s32 %v4646, %v4648
      %v4650 = vrot.slane %v4628, %v4649
      %v4652 = vunpack.c.l.s4 1966171168
      %v4653 = vunpack.c.0.s8 %v4652
      %v4654 = vlaneseq
      %v4655 = vshrl.u32 %v4654, 7
      %v4656 = vsub.s32 %v4653, %v4655
      %v4657 = vrot.slane %v4629, %v4656
      %v4658 = vcombine.low %v4636, %v4643
      %v4659 = vcombine.low %v4650, %v4657
      %v4661 = vunpack.c.l.s4 1966171168
      %v4662 = vunpack.c.0.s8 %v4661
      %v4663 = vlaneseq
      %v4664 = vshrl.u32 %v4663, 7
      %v4665 = vsub.s32 %v4662, %v4664
      %v4666 = vrot.slane %v4658, %v4665
      %v4668 = vunpack.c.l.s4 1966171168
      %v4669 = vunpack.c.0.s8 %v4668
      %v4670 = vlaneseq
      %v4671 = vshrl.u32 %v4670, 7
      %v4672 = vsub.s32 %v4669, %v4671
      %v4673 = vrot.slane %v4659, %v4672
      %v4674 = vcombine.low %v4666, %v4673
      %v4675 = vcombine.low %v4609, %v4610
      %v4676 = vcombine.low %v4611, %v4612
      %v4677 = vcombine.low %v4613, %v4614
      %v4678 = vcombine.low %v4615, %v4616
      %v4680 = vunpack.c.l.s4 1966171168
      %v4681 = vunpack.c.0.s8 %v4680
      %v4682 = vlaneseq
      %v4683 = vshrl.u32 %v4682, 7
      %v4684 = vsub.s32 %v4681, %v4683
      %v4685 = vrot.slane %v4675, %v4684
      %v4687 = vunpack.c.l.s4 1966171168
      %v4688 = vunpack.c.0.s8 %v4687
      %v4689 = vlaneseq
      %v4690 = vshrl.u32 %v4689, 7
      %v4691 = vsub.s32 %v4688, %v4690
      %v4692 = vrot.slane %v4676, %v4691
      %v4694 = vunpack.c.l.s4 1966171168
      %v4695 = vunpack.c.0.s8 %v4694
      %v4696 = vlaneseq
      %v4697 = vshrl.u32 %v4696, 7
      %v4698 = vsub.s32 %v4695, %v4697
      %v4699 = vrot.slane %v4677, %v4698
      %v4701 = vunpack.c.l.s4 1966171168
      %v4702 = vunpack.c.0.s8 %v4701
      %v4703 = vlaneseq
      %v4704 = vshrl.u32 %v4703, 7
      %v4705 = vsub.s32 %v4702, %v4704
      %v4706 = vrot.slane %v4678, %v4705
      %v4707 = vcombine.low %v4685, %v4692
      %v4708 = vcombine.low %v4699, %v4706
      %v4710 = vunpack.c.l.s4 1966171168
      %v4711 = vunpack.c.0.s8 %v4710
      %v4712 = vlaneseq
      %v4713 = vshrl.u32 %v4712, 7
      %v4714 = vsub.s32 %v4711, %v4713
      %v4715 = vrot.slane %v4707, %v4714
      %v4717 = vunpack.c.l.s4 1966171168
      %v4718 = vunpack.c.0.s8 %v4717
      %v4719 = vlaneseq
      %v4720 = vshrl.u32 %v4719, 7
      %v4721 = vsub.s32 %v4718, %v4720
      %v4722 = vrot.slane %v4708, %v4721
      %v4723 = vcombine.low %v4715, %v4722
      %v4724 = vcombine.low %v4617, %v4618
      %v4725 = vcombine.low %v4619, %v4620
      %v4726 = vcombine.low %v4621, %v4622
      %v4727 = vcombine.low %v4623, %v4624
      %v4729 = vunpack.c.l.s4 1966171168
      %v4730 = vunpack.c.0.s8 %v4729
      %v4731 = vlaneseq
      %v4732 = vshrl.u32 %v4731, 7
      %v4733 = vsub.s32 %v4730, %v4732
      %v4734 = vrot.slane %v4724, %v4733
      %v4736 = vunpack.c.l.s4 1966171168
      %v4737 = vunpack.c.0.s8 %v4736
      %v4738 = vlaneseq
      %v4739 = vshrl.u32 %v4738, 7
      %v4740 = vsub.s32 %v4737, %v4739
      %v4741 = vrot.slane %v4725, %v4740
      %v4743 = vunpack.c.l.s4 1966171168
      %v4744 = vunpack.c.0.s8 %v4743
      %v4745 = vlaneseq
      %v4746 = vshrl.u32 %v4745, 7
      %v4747 = vsub.s32 %v4744, %v4746
      %v4748 = vrot.slane %v4726, %v4747
      %v4750 = vunpack.c.l.s4 1966171168
      %v4751 = vunpack.c.0.s8 %v4750
      %v4752 = vlaneseq
      %v4753 = vshrl.u32 %v4752, 7
      %v4754 = vsub.s32 %v4751, %v4753
      %v4755 = vrot.slane %v4727, %v4754
      %v4756 = vcombine.low %v4734, %v4741
      %v4757 = vcombine.low %v4748, %v4755
      %v4759 = vunpack.c.l.s4 1966171168
      %v4760 = vunpack.c.0.s8 %v4759
      %v4761 = vlaneseq
      %v4762 = vshrl.u32 %v4761, 7
      %v4763 = vsub.s32 %v4760, %v4762
      %v4764 = vrot.slane %v4756, %v4763
      %v4766 = vunpack.c.l.s4 1966171168
      %v4767 = vunpack.c.0.s8 %v4766
      %v4768 = vlaneseq
      %v4769 = vshrl.u32 %v4768, 7
      %v4770 = vsub.s32 %v4767, %v4769
      %v4771 = vrot.slane %v4757, %v4770
      %v4772 = vcombine.low %v4764, %v4771
      %v4774 = vunpack.c.l.s4 1966171168
      %v4775 = vunpack.c.0.s8 %v4774
      %v4776 = vlaneseq
      %v4777 = vshrl.u32 %v4776, 7
      %v4778 = vsub.s32 %v4775, %v4777
      %v4779 = vrot.slane %v4598, %v4778
      %v4781 = vunpack.c.l.s4 1966171168
      %v4782 = vunpack.c.0.s8 %v4781
      %v4783 = vlaneseq
      %v4784 = vshrl.u32 %v4783, 7
      %v4785 = vsub.s32 %v4782, %v4784
      %v4786 = vrot.slane %v4779, %v4785
      %v4788 = vsel %vm987, %v4674, 0
      %v4791 = vsel %vm987, %v4723, 0
      %v4794 = vsel %vm987, %v4772, 0
      %v4797 = vsel %vm987, %v4786, 0
      %v4800 = vsel %vm1000, %v4600, 0
      %4802 = vmatprep.subr.bf16.mxu0 0
      %4803 = vmatpush1.bf16.msra.mxu0 0
      %4804 = vmatprep.subr.bf16.mxu0 0
      %4805 = vmatpush1.bf16.msra.mxu0 0
      %4806 = vmatprep.subr.bf16.mxu0 0
      %4807 = vmatpush1.bf16.msra.mxu0 0
      %4808 = vmatprep.subr.bf16.mxu0 0
      %4809 = vmatpush1.bf16.msra.mxu0 0
      %4810 = vmatprep.subr.bf16.mxu0 0
      %4811 = vmatpush1.bf16.msra.mxu0 0
      %4812 = vmatprep.subr.bf16.mxu0 0
      %4813 = vmatpush1.bf16.msra.mxu0 0
      %4814 = vmatprep.subr.bf16.mxu0 0
      %4815 = vmatpush1.bf16.msra.mxu0 0
      %4816 = vmatprep.subr.bf16.mxu0 0
      %4817 = vmatpush1.bf16.msra.mxu0 %v4800
      %4818 = vmatprep.subr.bf16.mxu0 0
      %4819 = vmatpush2.bf16.msra.mxu0 0
      %4820 = vmatprep.subr.bf16.mxu0 0
      %4821 = vmatpush2.bf16.msra.mxu0 0
      %4822 = vmatprep.subr.bf16.mxu0 0
      %4823 = vmatpush2.bf16.msra.mxu0 0
      %4824 = vmatprep.subr.bf16.mxu0 0
      %4825 = vmatpush2.bf16.msra.mxu0 0
      %4826 = vmatprep.subr.bf16.mxu0 0
      %4827 = vmatpush2.bf16.msra.mxu0 0
      %4828 = vmatprep.subr.bf16.mxu0 0
      %4829 = vmatpush2.bf16.msra.mxu0 0
      %4830 = vmatprep.subr.bf16.mxu0 0
      %4831 = vmatpush2.bf16.msra.mxu0 0
      %4832 = vmatprep.subr.bf16.mxu0 0
      %4833 = vmatpush2.bf16.msra.mxu0 0
      %4834 = vmatprep.mubr.bf16.mxu0 0
      %4835 = vmatmul.mubr.bf16.gmra.mxu0 %v4788
      %v4836 = vpop.f32.mrf.mxu0
      %v4837 = vadd.f32 0.0, %v4836
      %v4838 = vpop.f32.mrf.mxu0
      %v4839 = vpop.f32.mrf.mxu0
      %v4840 = vadd.f32 0.0, %v4839
      %v4841 = vpop.f32.mrf.mxu0
      %4842 = vmatprep.mubr.bf16.mxu0 0
      %4843 = vmatmul.mubr.bf16.gmra.mxu0 %v4791
      %v4844 = vpop.f32.mrf.mxu0
      %v4845 = vadd.f32 0.0, %v4844
      %v4846 = vpop.f32.mrf.mxu0
      %v4847 = vpop.f32.mrf.mxu0
      %v4848 = vadd.f32 0.0, %v4847
      %v4849 = vpop.f32.mrf.mxu0
      %4850 = vmatprep.mubr.bf16.mxu0 0
      %4851 = vmatmul.mubr.bf16.gmra.mxu0 %v4794
      %v4852 = vpop.f32.mrf.mxu0
      %v4853 = vadd.f32 0.0, %v4852
      %v4854 = vpop.f32.mrf.mxu0
      %v4855 = vpop.f32.mrf.mxu0
      %v4856 = vadd.f32 0.0, %v4855
      %v4857 = vpop.f32.mrf.mxu0
      %4858 = vmatprep.mubr.bf16.mxu0 0
      %4859 = vmatmul.mubr.bf16.gmra.mxu0 %v4797
      %v4860 = vpop.f32.mrf.mxu0
      %v4861 = vadd.f32 0.0, %v4860
      %v4862 = vpop.f32.mrf.mxu0
      %v4863 = vpop.f32.mrf.mxu0
      %v4864 = vpop.f32.mrf.mxu0
      %4865 = vdwg.mxu0
      %v4866 = vadd.f32 %v4361, %v4837
      %v4867 = vadd.f32 %v4362, %v4840
      %v4868 = vadd.f32 %v4363, %v4845
      %v4869 = vadd.f32 %v4364, %v4848
      %v4870 = vadd.f32 %v4365, %v4853
      %v4871 = vadd.f32 %v4366, %v4856
      %v4872 = vadd.f32 %v4367, %v4861
      %v4873 = vld [vmem:[%s3] sm:$0x1]
      %v4875 = vlaneseq
      %v4876 = vshrl.u32 %v4875, 7
      %v4877 = vsub.s32 0, %v4876
      %v4878 = vrot.slane %v4873, %v4877
      %v4880 = vmul.f32 %v4866, %v4878
      %v4881 = vmul.f32 %v4867, %v4878
      %v4882 = vmul.f32 %v4868, %v4878
      %v4883 = vmul.f32 %v4869, %v4878
      %v4884 = vmul.f32 %v4870, %v4878
      %v4885 = vmul.f32 %v4871, %v4878
      %v4886 = vmul.f32 %v4872, %v4878
      %v4887 = vld [vmem:[%s4] sm:$0x1]
      %v4889 = vlaneseq
      %v4890 = vshrl.u32 %v4889, 7
      %v4891 = vsub.s32 0, %v4890
      %v4892 = vrot.slane %v4887, %v4891
      %v4894 = vadd.f32 %v4880, %v4892
      %v4895 = vadd.f32 %v4881, %v4892
      %v4896 = vadd.f32 %v4882, %v4892
      %v4897 = vadd.f32 %v4883, %v4892
      %v4898 = vadd.f32 %v4884, %v4892
      %v4899 = vadd.f32 %v4885, %v4892
      %v4900 = vadd.f32 %v4886, %v4892
      %v4901 = vmax.f32 %v4894, 0.0
      %v4902 = vmax.f32 %v4895, 0.0
      %v4903 = vmax.f32 %v4896, 0.0
      %v4904 = vmax.f32 %v4897, 0.0
      %v4905 = vmax.f32 %v4898, 0.0
      %v4906 = vmax.f32 %v4899, 0.0
      %v4907 = vmax.f32 %v4900, 0.0
      %v4908 = vpack.c.bf16 %v4902, %v4901
      %v4909 = vpack.c.bf16 %v4904, %v4903
      %v4910 = vpack.c.bf16 %v4906, %v4905
      %v4911 = vpack.c.bf16 %v4907, %v4907
      %v4916 = vunpack.c.l.b16 %v4908
      %v4917 = vunpack.c.h.b16 %v4908
      %v4918 = vunpack.c.l.b16 %v4909
      %v4919 = vunpack.c.h.b16 %v4909
      %v4920 = vunpack.c.l.b16 %v4910
      %v4921 = vunpack.c.h.b16 %v4910
      %v4922 = vunpack.c.l.b16 %v4911
      %v4923 = vpack.c.b16 %v4916, %v4916
      %v4924 = vpack.c.b16 %v4917, %v4917
      %v4925 = vpack.c.b16 %v4918, %v4918
      %v4926 = vpack.c.b16 %v4919, %v4919
      %v4927 = vpack.c.b16 %v4920, %v4920
      %v4928 = vpack.c.b16 %v4921, %v4921
      %v4929 = vpack.c.b16 %v4922, %v4922
      %4937 = vst [vmem:[%s332] sm:$0xf] %v4923
      %4938 = vst [vmem:[%s332 + $0x4] sm:$0xf] %v4924
      %4939 = vst [vmem:[%s332 + $0x8] sm:$0xf] %v4925
      %4940 = vst [vmem:[%s332 + $0xc] sm:$0xf] %v4926
      %4941 = vst [vmem:[%s332 + $0x10] sm:$0xf] %v4927
      %4942 = vst [vmem:[%s332 + $0x14] sm:$0xf] %v4928
      %vm4943 = vcmask 1040384
      %vm4944 = vsmask.f32 256
      %vm4945 = vmand %vm4943, %vm4944
      %v4946 = vld [vmem:[%s332 + $0x18] sm:$0x1]
      %v4947 = vsel %vm4945, %v4929, %v4946
      %4948 = vst [vmem:[%s332 + $0x18] sm:$0x1] %v4947
      %s4949 = sadd.s32 %s20, %s21
      %p4950 = scmp.lt.s32.totalorder %s4949, 1
      %s4951 = scalar_select %p4950, %s4949, 1
      %s4952 = smul.addr %s4951, 7
      %s4953 = smul.addr %s4952, 4
      %s4954 = scalar_lea.vmem %s5, %s4953
      // Predicated region
      $region41: #{_lambda_.3} parent=39 // pred_check
        %p4955 = pneg %p171
      $region42: #{_lambda_.3} parent=39 // pred_check_branch
        %4957 = sbr.rel (%p4955) target = $region44
      $region43: #{_lambda_.3} parent=39 // pred_region
        %s4958 = sadd.s32 %s20, %s21
      $region44: #{_lambda_.3} parent=39 // pred_fallthru
        _
    $region40: #{_lambda_.3} parent=5 // pred_fallthru
      _
    %p4959 = scmp.le.s32.totalorder 2, %s11
    // Predicated region
    $region45: #{_lambda_.3} parent=5 // pred_check
      %p4960 = pneg %p4959
    $region46: #{_lambda_.3} parent=5 // pred_check_branch
      %4962 = sbr.rel (%p4960) target = $region48
    $region47: #{_lambda_.3} parent=5 // pred_region
      %s4963 = ssub.s32 %s11, 2
      // Predicated region
      $region49: #{_lambda_.3} parent=47 // pred_check
        %p4964 = pneg %p177
      $region50: #{_lambda_.3} parent=47 // pred_check_branch
        %4966 = sbr.rel (%p4964) target = $region52
      $region51: #{_lambda_.3} parent=47 // pred_region
        %s4967 = sadd.s32 %s22, %s23
        %p4968 = scmp.lt.s32.totalorder %s4967, 1
        %s4969 = scalar_select %p4968, %s4967, 1
        %s4970 = smul.addr %s4969, 7
        %s4971 = smul.addr %s4970, 4
        %s4972 = scalar_lea.vmem %s5, %s4971
      $region52: #{_lambda_.3} parent=47 // pred_fallthru
        _
    $region48: #{_lambda_.3} parent=5 // pred_fallthru
      _
  $region6: #{_lambda_.3} parent=0 // loop_footer
    %s15 = sadd.s32 1, %s11
  $region7: #{_lambda_.3} parent=0 // loop_footer_branch
    %10 = sbr.rel target = $region3
  $region8: #{_lambda_.3} parent=0 // loop_exit
    _

// kernel: _lambda_.2
$region0: #{_lambda_.2}
  #allocation0 [shape = 'u32[]', space=smem, size = 0x4, offset = 0x4, fixed_abs, tag = 'smem constant byte address 0x4 - core index']
  #allocation1 [shape = 'u32[144,128]{1,0:T(1,128)}', space=vmem, size = 0x12000, scoped, tag = 'internal scratch']
  %s0 = inlined_call_operand.vmem [shape: bf16[2,8,4,8,4], index: 0, kind: input, shape index: {}, may-alias: {0,1}]
  %s1 = inlined_call_operand.vmem [shape: bf16[2,8,4,8,4], index: 1, kind: input, shape index: {}, may-alias: {0,1}]
  %s2 = inlined_call_operand.vmem [shape: bf16[9,4,128], index: 2, kind: input, shape index: {}]
  %s3 = inlined_call_operand.vmem [shape: f32[2,2,128], index: 3, kind: output, shape index: {}]
  %s4 = sld [smem:[#allocation0]]
  $region45: #{_lambda_.2} parent=0
    _
  %s6 = ssub.s32 1, %s4
  %s7 = scalar_select 0, %s6, %s4
  loop: start=0, step=1, limit=4
  $region2: #{_lambda_.2} parent=0 // loop_pre_header
    _
  $region3: #{_lambda_.2} parent=0 // loop_header
    %s9 = sphi 0, %s13
    %p10 = scmp.ge.s32.totalorder %s9, 4
    %s16 = sphi 0, %s28
    %s17 = sphi 0, %s24
    %s18 = sphi 0, %s16
    %s19 = sphi 0, %s17
    %s20 = sphi 0, %s18
    %s21 = sphi 0, %s19
    %s33 = sphi 0, %s35
    %s36 = sphi 0, %s33
    %s37 = sphi 0, %s36
    %s53 = sphi 0, %s37
    %s65 = sphi 0, %s67
    %s68 = sphi 0, %s65
    %s69 = sphi 0, %s68
    %s85 = sphi 0, %s69
    %s89 = sphi 0, %s89
    %s91 = sphi 0, %s89
    %s92 = sphi 0, %s91
    %s106 = sphi 0, %s92
    %s114 = sphi 0, %s116
    %s117 = sphi 0, %s114
    %s118 = sphi 0, %s117
    %s134 = sphi 0, %s118
  $region4: #{_lambda_.2} parent=0 // loop_header_branch
    %12 = sbr.rel (%p10) target = $region8
  $region5: #{_lambda_.2} parent=0 // loop_body
    %s14 = ssub.s32 %s9, 1
    %s15 = ssub.s32 %s9, 2
    %s22 = sadd.s32 1, %s17
    %p23 = scmp.ge.s32.totalorder %s22, 1
    %s24 = scalar_select %p23, 0, %s22
    %s25 = sadd.s32 1, %s16
    %s26 = scalar_select %p23, %s25, %s16
    %p27 = scmp.ge.s32.totalorder %s26, 2
    %s28 = scalar_select %p27, 0, %s26
    %s29 = ssub.s32 %s16, %s28
    %s30 = ssub.s32 %s17, %s24
    %s31 = sor.u32 %s29, %s30
    %p32 = scmp.eq.s32.totalorder %s31, 0
    %s34 = sadd.s32 %s33, 1
    %s35 = scalar_select %p32, %s33, %s34
    %p38 = pneg %p32
    %p39 = scmp.eq.s32.totalorder %s9, 1
    %p40 = por %p38, %p39
    %p41 = scmp.ne.s32.totalorder %s33, %s36
    %p42 = scmp.eq.s32.totalorder %s9, 0
    %p43 = por %p41, %p42
    %p44 = scmp.ne.s32.totalorder %s33, %s36
    %p45 = scmp.eq.s32.totalorder %s14, 1
    %p46 = por %p44, %p45
    %p47 = scmp.ne.s32.totalorder %s36, %s37
    %p48 = scmp.eq.s32.totalorder %s14, 0
    %p49 = por %p47, %p48
    %p50 = scmp.ne.s32.totalorder %s36, %s37
    %p51 = scmp.eq.s32.totalorder %s15, 1
    %p52 = por %p50, %p51
    %p54 = scmp.ne.s32.totalorder %s37, %s53
    %p55 = scmp.eq.s32.totalorder %s15, 0
    %p56 = por %p54, %p55
    %s57 = sadd.s32 %s17, 1
    %s58 = smul.u32 %s57, 7
    %s59 = sadd.s32 %s24, 1
    %s60 = smul.u32 %s59, 7
    %s61 = ssub.s32 %s16, %s28
    %s62 = ssub.s32 %s58, %s60
    %s63 = sor.u32 %s61, %s62
    %p64 = scmp.eq.s32.totalorder %s63, 0
    %s66 = sadd.s32 %s65, 1
    %s67 = scalar_select %p64, %s65, %s66
    %p70 = pneg %p64
    %p71 = scmp.eq.s32.totalorder %s9, 1
    %p72 = por %p70, %p71
    %p73 = scmp.ne.s32.totalorder %s65, %s68
    %p74 = scmp.eq.s32.totalorder %s9, 0
    %p75 = por %p73, %p74
    %p76 = scmp.ne.s32.totalorder %s65, %s68
    %p77 = scmp.eq.s32.totalorder %s14, 1
    %p78 = por %p76, %p77
    %p79 = scmp.ne.s32.totalorder %s68, %s69
    %p80 = scmp.eq.s32.totalorder %s14, 0
    %p81 = por %p79, %p80
    %p82 = scmp.ne.s32.totalorder %s68, %s69
    %p83 = scmp.eq.s32.totalorder %s15, 1
    %p84 = por %p82, %p83
    %p86 = scmp.ne.s32.totalorder %s69, %s85
    %p87 = scmp.eq.s32.totalorder %s15, 0
    %p88 = por %p86, %p87
    %s90 = sadd.s32 %s89, 1
    %p93 = scmp.eq.s32.totalorder %s9, 1
    %p94 = scmp.ne.s32.totalorder %s89, %s91
    %p95 = scmp.eq.s32.totalorder %s9, 0
    %p96 = por %p94, %p95
    %p97 = scmp.ne.s32.totalorder %s89, %s91
    %p98 = scmp.eq.s32.totalorder %s14, 1
    %p99 = por %p97, %p98
    %p100 = scmp.ne.s32.totalorder %s91, %s92
    %p101 = scmp.eq.s32.totalorder %s14, 0
    %p102 = por %p100, %p101
    %p103 = scmp.ne.s32.totalorder %s91, %s92
    %p104 = scmp.eq.s32.totalorder %s15, 1
    %p105 = por %p103, %p104
    %p107 = scmp.ne.s32.totalorder %s92, %s106
    %p108 = scmp.eq.s32.totalorder %s15, 0
    %p109 = por %p107, %p108
    %s110 = sadd.s32 %s16, %s17
    %s111 = sadd.s32 %s28, %s24
    %s112 = ssub.s32 %s110, %s111
    %p113 = scmp.eq.s32.totalorder %s112, 0
    %s115 = sadd.s32 %s114, 1
    %s116 = scalar_select %p113, %s114, %s115
    %p119 = pneg %p113
    %p120 = scmp.eq.s32.totalorder %s9, 1
    %p121 = por %p119, %p120
    %p122 = scmp.ne.s32.totalorder %s114, %s117
    %p123 = scmp.eq.s32.totalorder %s9, 0
    %p124 = por %p122, %p123
    %p125 = scmp.ne.s32.totalorder %s114, %s117
    %p126 = scmp.eq.s32.totalorder %s14, 1
    %p127 = por %p125, %p126
    %p128 = scmp.ne.s32.totalorder %s117, %s118
    %p129 = scmp.eq.s32.totalorder %s14, 0
    %p130 = por %p128, %p129
    %p131 = scmp.ne.s32.totalorder %s117, %s118
    %p132 = scmp.eq.s32.totalorder %s15, 1
    %p133 = por %p131, %p132
    %p135 = scmp.ne.s32.totalorder %s118, %s134
    %p136 = scmp.eq.s32.totalorder %s15, 0
    %p137 = por %p135, %p136
    %p138 = scmp.le.s32.totalorder 1, %s9
    %p139 = scmp.lt.s32.totalorder %s9, 3
    %p140 = pnand %p138, %p139
    %p141 = pneg %p140
    // Predicated region
    $region9: #{_lambda_.2} parent=5 // pred_check
      _
    $region10: #{_lambda_.2} parent=5 // pred_check_branch
      %143 = sbr.rel (%p140) target = $region12
    $region11: #{_lambda_.2} parent=5 // pred_region
      %s144 = ssub.s32 %s9, 1
      // Predicated region
      $region13: #{_lambda_.2} parent=11 // pred_check
        %p145 = pneg %p102
      $region14: #{_lambda_.2} parent=11 // pred_check_branch
        %147 = sbr.rel (%p145) target = $region16
      $region15: #{_lambda_.2} parent=11 // pred_region
        _
      $region16: #{_lambda_.2} parent=11 // pred_fallthru
        _
    $region12: #{_lambda_.2} parent=5 // pred_fallthru
      _
    %p148 = scmp.lt.s32.totalorder %s9, 2
    // Predicated region
    $region17: #{_lambda_.2} parent=5 // pred_check
      %p149 = pneg %p148
    $region18: #{_lambda_.2} parent=5 // pred_check_branch
      %151 = sbr.rel (%p149) target = $region20
    $region19: #{_lambda_.2} parent=5 // pred_region
      // Predicated region
      $region21: #{_lambda_.2} parent=19 // pred_check
        %p152 = pneg %p43
      $region22: #{_lambda_.2} parent=19 // pred_check_branch
        %154 = sbr.rel (%p152) target = $region24
      $region23: #{_lambda_.2} parent=19 // pred_region
        %s155 = smul.u32 7, %s17
        %s156 = ssub.s32 8, %s155
        %p157 = scmp.lt.s32.totalorder %s156, 7
        %s158 = scalar_select %p157, %s156, 7
        %s159 = smul.u32 64, %s158
        %s160 = smul.u32 %s159, 4
        %p161 = scmp.lt.s32.totalorder %s16, 1
        %s162 = scalar_select %p161, %s16, 1
        %p163 = scmp.lt.s32.totalorder %s155, 7
        %s164 = scalar_select %p163, %s155, 7
        %s165 = smul.addr %s164, 4
        %s166 = smul.addr %s162, 32
        %s167 = sadd.s32 %s165, %s166
        %s168 = smul.addr %s167, 4
        %s169 = scalar_lea.vmem %s0, %s168
        %s170 = smul.u32 7, %s17
        %s171 = ssub.s32 8, %s170
        %p172 = scmp.lt.s32.totalorder %s171, 7
        %s173 = scalar_select %p172, %s171, 7
        %s174 = smul.u32 64, %s173
        %s175 = smul.u32 %s174, 4
      $region24: #{_lambda_.2} parent=19 // pred_fallthru
        _
      // Predicated region
      $region25: #{_lambda_.2} parent=19 // pred_check
        %p176 = pneg %p75
      $region26: #{_lambda_.2} parent=19 // pred_check_branch
        %178 = sbr.rel (%p176) target = $region28
      $region27: #{_lambda_.2} parent=19 // pred_region
        %s179 = sadd.s32 %s17, 1
        %s180 = smul.u32 %s179, 7
        %p181 = scmp.lt.s32.totalorder %s16, 1
        %s182 = scalar_select %p181, %s16, 1
        %p183 = scmp.lt.s32.totalorder %s180, 7
        %s184 = scalar_select %p183, %s180, 7
        %s185 = smul.addr %s184, 4
        %s186 = smul.addr %s182, 32
        %s187 = sadd.s32 %s185, %s186
        %s188 = smul.addr %s187, 4
        %s189 = scalar_lea.vmem %s1, %s188
        %s190 = sadd.s32 %s17, 1
        %s191 = smul.u32 %s190, 7
      $region28: #{_lambda_.2} parent=19 // pred_fallthru
        _
    $region20: #{_lambda_.2} parent=5 // pred_fallthru
      _
    %p192 = scmp.le.s32.totalorder 1, %s9
    %p193 = scmp.lt.s32.totalorder %s9, 3
    %p194 = pnand %p192, %p193
    %p195 = pneg %p194
    // Predicated region
    $region29: #{_lambda_.2} parent=5 // pred_check
      _
    $region30: #{_lambda_.2} parent=5 // pred_check_branch
      %197 = sbr.rel (%p194) target = $region32
    $region31: #{_lambda_.2} parent=5 // pred_region
      %s198 = ssub.s32 %s9, 1
      %s199 = smul.u32 7, %s19
      %s200 = ssub.s32 8, %s199
      %p201 = scmp.lt.s32.totalorder %s200, 7
      %s202 = scalar_select %p201, %s200, 7
      %s203 = smul.u32 64, %s202
      %s204 = smul.u32 %s203, 4
      %p205 = scmp.lt.s32.totalorder %s18, 1
      %s206 = scalar_select %p205, %s18, 1
      %p207 = scmp.lt.s32.totalorder %s199, 7
      %s208 = scalar_select %p207, %s199, 7
      %s209 = smul.addr %s208, 4
      %s210 = smul.addr %s206, 32
      %s211 = sadd.s32 %s209, %s210
      %s212 = smul.addr %s211, 4
      %s213 = scalar_lea.vmem %s0, %s212
      %p214 = pneg %p49
      %p215 = pneg %p46
      %s216 = sadd.s32 %s19, 1
      %s217 = smul.u32 %s216, 7
      %p218 = scmp.lt.s32.totalorder %s18, 1
      %s219 = scalar_select %p218, %s18, 1
      %p220 = scmp.lt.s32.totalorder %s217, 7
      %s221 = scalar_select %p220, %s217, 7
      %s222 = smul.addr %s221, 4
      %s223 = smul.addr %s219, 32
      %s224 = sadd.s32 %s222, %s223
      %s225 = smul.addr %s224, 4
      %s226 = scalar_lea.vmem %s1, %s225
      %p227 = pneg %p81
      %p228 = pneg %p78
      %p229 = pneg %p102
      %p230 = pneg %p99
      %p231 = pneg %p130
      %p232 = pneg %p127
      %s233 = sadd.s32 %s18, %s19
      %p234 = scmp.lt.s32.totalorder %s233, 1
      %s235 = scalar_select %p234, %s233, 1
      %s236 = smul.addr %s235, 2
      %s237 = scalar_lea.vmem %s3, %s236
      %s238 = smul.u32 7, %s19
      %s239 = ssub.s32 8, %s238
      %p240 = scmp.lt.s32.totalorder %s239, 7
      %s241 = scalar_select %p240, %s239, 7
      %s242 = smul.u32 64, %s241
      %s243 = smul.u32 %s242, 4
      %p244 = scmp.lt.s32.totalorder %s18, 1
      %s245 = scalar_select %p244, %s18, 1
      %p246 = scmp.lt.s32.totalorder %s238, 7
      %s247 = scalar_select %p246, %s238, 7
      %s248 = smul.addr %s247, 4
      %s249 = smul.addr %s245, 32
      %s250 = sadd.s32 %s248, %s249
      %s251 = smul.addr %s250, 4
      %s252 = scalar_lea.vmem %s0, %s251
      %s253 = smul.u32 7, %s19
      %s254 = ssub.s32 8, %s253
      %p255 = scmp.lt.s32.totalorder %s254, 7
      %s256 = scalar_select %p255, %s254, 7
      %s257 = smul.u32 64, %s256
      %s258 = smul.u32 %s257, 4
      %s259 = sadd.s32 %s19, 1
      %s260 = smul.u32 %s259, 7
      %p261 = scmp.lt.s32.totalorder %s18, 1
      %s262 = scalar_select %p261, %s18, 1
      %p263 = scmp.lt.s32.totalorder %s260, 7
      %s264 = scalar_select %p263, %s260, 7
      %s265 = smul.addr %s264, 4
      %s266 = smul.addr %s262, 32
      %s267 = sadd.s32 %s265, %s266
      %s268 = smul.addr %s267, 4
      %s269 = scalar_lea.vmem %s1, %s268
      %s270 = sadd.s32 %s19, 1
      %s271 = smul.u32 %s270, 7
      %s272 = sadd.s32 %s18, %s19
      %p273 = scmp.lt.s32.totalorder %s272, 1
      %s274 = scalar_select %p273, %s272, 1
      %s275 = smul.addr %s274, 2
      %s276 = scalar_lea.vmem %s3, %s275
      %s277 = sadd.s32 %s18, %s19
      %v279 = vld [vmem:[%s252] sm:$0xf]
      %v280 = vld [vmem:[%s252 + $0x10] sm:$0xf]
      %v281 = vld [vmem:[%s252 + $0x20] sm:$0xf]
      %v282 = vld [vmem:[%s252 + $0x30] sm:$0xf]
      %v283 = vld [vmem:[%s252 + $0x40] sm:$0xf]
      %v284 = vld [vmem:[%s252 + $0x50] sm:$0xf]
      %v285 = vld [vmem:[%s252 + $0x60] sm:$0xf]
      %v294 = vunpack.c.l.s4 1966171168
      %v295 = vunpack.c.0.s8 %v294
      %v296 = vlaneseq
      %v297 = vshrl.u32 %v296, 7
      %v298 = vsub.s32 %v295, %v297
      %v299 = vrot.slane %v279, %v298
      %v300 = vcombine.high %v299, %v299
      %v302 = vunpack.c.l.s4 1966171168
      %v303 = vunpack.c.0.s8 %v302
      %v304 = vlaneseq
      %v305 = vshrl.u32 %v304, 7
      %v306 = vsub.s32 %v303, %v305
      %v307 = vrot.slane %v299, %v306
      %v309 = vunpack.c.l.s4 1966171168
      %v310 = vunpack.c.0.s8 %v309
      %v311 = vlaneseq
      %v312 = vshrl.u32 %v311, 7
      %v313 = vsub.s32 %v310, %v312
      %v314 = vrot.slane %v300, %v313
      %v315 = vcombine.high %v307, %v307
      %v316 = vcombine.high %v314, %v314
      %v318 = vunpack.c.l.s4 1966171168
      %v319 = vunpack.c.0.s8 %v318
      %v320 = vlaneseq
      %v321 = vshrl.u32 %v320, 7
      %v322 = vsub.s32 %v319, %v321
      %v323 = vrot.slane %v280, %v322
      %v324 = vcombine.high %v323, %v323
      %v326 = vunpack.c.l.s4 1966171168
      %v327 = vunpack.c.0.s8 %v326
      %v328 = vlaneseq
      %v329 = vshrl.u32 %v328, 7
      %v330 = vsub.s32 %v327, %v329
      %v331 = vrot.slane %v323, %v330
      %v333 = vunpack.c.l.s4 1966171168
      %v334 = vunpack.c.0.s8 %v333
      %v335 = vlaneseq
      %v336 = vshrl.u32 %v335, 7
      %v337 = vsub.s32 %v334, %v336
      %v338 = vrot.slane %v324, %v337
      %v339 = vcombine.high %v331, %v331
      %v340 = vcombine.high %v338, %v338
      %v342 = vunpack.c.l.s4 1966171168
      %v343 = vunpack.c.0.s8 %v342
      %v344 = vlaneseq
      %v345 = vshrl.u32 %v344, 7
      %v346 = vsub.s32 %v343, %v345
      %v347 = vrot.slane %v281, %v346
      %v348 = vcombine.high %v347, %v347
      %v350 = vunpack.c.l.s4 1966171168
      %v351 = vunpack.c.0.s8 %v350
      %v352 = vlaneseq
      %v353 = vshrl.u32 %v352, 7
      %v354 = vsub.s32 %v351, %v353
      %v355 = vrot.slane %v347, %v354
      %v357 = vunpack.c.l.s4 1966171168
      %v358 = vunpack.c.0.s8 %v357
      %v359 = vlaneseq
      %v360 = vshrl.u32 %v359, 7
      %v361 = vsub.s32 %v358, %v360
      %v362 = vrot.slane %v348, %v361
      %v363 = vcombine.high %v355, %v355
      %v364 = vcombine.high %v362, %v362
      %v366 = vunpack.c.l.s4 1966171168
      %v367 = vunpack.c.0.s8 %v366
      %v368 = vlaneseq
      %v369 = vshrl.u32 %v368, 7
      %v370 = vsub.s32 %v367, %v369
      %v371 = vrot.slane %v282, %v370
      %v372 = vcombine.high %v371, %v371
      %v374 = vunpack.c.l.s4 1966171168
      %v375 = vunpack.c.0.s8 %v374
      %v376 = vlaneseq
      %v377 = vshrl.u32 %v376, 7
      %v378 = vsub.s32 %v375, %v377
      %v379 = vrot.slane %v371, %v378
      %v381 = vunpack.c.l.s4 1966171168
      %v382 = vunpack.c.0.s8 %v381
      %v383 = vlaneseq
      %v384 = vshrl.u32 %v383, 7
      %v385 = vsub.s32 %v382, %v384
      %v386 = vrot.slane %v372, %v385
      %v387 = vcombine.high %v379, %v379
      %v388 = vcombine.high %v386, %v386
      %v390 = vunpack.c.l.s4 1966171168
      %v391 = vunpack.c.0.s8 %v390
      %v392 = vlaneseq
      %v393 = vshrl.u32 %v392, 7
      %v394 = vsub.s32 %v391, %v393
      %v395 = vrot.slane %v283, %v394
      %v396 = vcombine.high %v395, %v395
      %v398 = vunpack.c.l.s4 1966171168
      %v399 = vunpack.c.0.s8 %v398
      %v400 = vlaneseq
      %v401 = vshrl.u32 %v400, 7
      %v402 = vsub.s32 %v399, %v401
      %v403 = vrot.slane %v395, %v402
      %v405 = vunpack.c.l.s4 1966171168
      %v406 = vunpack.c.0.s8 %v405
      %v407 = vlaneseq
      %v408 = vshrl.u32 %v407, 7
      %v409 = vsub.s32 %v406, %v408
      %v410 = vrot.slane %v396, %v409
      %v411 = vcombine.high %v403, %v403
      %v412 = vcombine.high %v410, %v410
      %v414 = vunpack.c.l.s4 1966171168
      %v415 = vunpack.c.0.s8 %v414
      %v416 = vlaneseq
      %v417 = vshrl.u32 %v416, 7
      %v418 = vsub.s32 %v415, %v417
      %v419 = vrot.slane %v284, %v418
      %v420 = vcombine.high %v419, %v419
      %v422 = vunpack.c.l.s4 1966171168
      %v423 = vunpack.c.0.s8 %v422
      %v424 = vlaneseq
      %v425 = vshrl.u32 %v424, 7
      %v426 = vsub.s32 %v423, %v425
      %v427 = vrot.slane %v419, %v426
      %v429 = vunpack.c.l.s4 1966171168
      %v430 = vunpack.c.0.s8 %v429
      %v431 = vlaneseq
      %v432 = vshrl.u32 %v431, 7
      %v433 = vsub.s32 %v430, %v432
      %v434 = vrot.slane %v420, %v433
      %v435 = vcombine.high %v427, %v427
      %v436 = vcombine.high %v434, %v434
      %v438 = vunpack.c.l.s4 1966171168
      %v439 = vunpack.c.0.s8 %v438
      %v440 = vlaneseq
      %v441 = vshrl.u32 %v440, 7
      %v442 = vsub.s32 %v439, %v441
      %v443 = vrot.slane %v285, %v442
      %v444 = vcombine.high %v443, %v443
      %v446 = vunpack.c.l.s4 1966171168
      %v447 = vunpack.c.0.s8 %v446
      %v448 = vlaneseq
      %v449 = vshrl.u32 %v448, 7
      %v450 = vsub.s32 %v447, %v449
      %v451 = vrot.slane %v443, %v450
      %v453 = vunpack.c.l.s4 1966171168
      %v454 = vunpack.c.0.s8 %v453
      %v455 = vlaneseq
      %v456 = vshrl.u32 %v455, 7
      %v457 = vsub.s32 %v454, %v456
      %v458 = vrot.slane %v444, %v457
      %v459 = vcombine.high %v451, %v451
      %v460 = vcombine.high %v458, %v458
      %v461 = vunpack.i.l.s16 %v307
      %v462 = vunpack.i.h.s16 %v307
      %v463 = vunpack.i.l.s16 %v314
      %v464 = vunpack.i.h.s16 %v314
      %v465 = vunpack.i.l.s16 %v315
      %v466 = vunpack.i.h.s16 %v315
      %v467 = vunpack.i.l.s16 %v316
      %v468 = vunpack.i.l.s16 %v331
      %v469 = vunpack.i.h.s16 %v331
      %v470 = vunpack.i.l.s16 %v338
      %v471 = vunpack.i.h.s16 %v338
      %v472 = vunpack.i.l.s16 %v339
      %v473 = vunpack.i.h.s16 %v339
      %v474 = vunpack.i.l.s16 %v340
      %v475 = vunpack.i.l.s16 %v355
      %v476 = vunpack.i.h.s16 %v355
      %v477 = vunpack.i.l.s16 %v362
      %v478 = vunpack.i.h.s16 %v362
      %v479 = vunpack.i.l.s16 %v363
      %v480 = vunpack.i.h.s16 %v363
      %v481 = vunpack.i.l.s16 %v364
      %v482 = vunpack.i.l.s16 %v379
      %v483 = vunpack.i.h.s16 %v379
      %v484 = vunpack.i.l.s16 %v386
      %v485 = vunpack.i.h.s16 %v386
      %v486 = vunpack.i.l.s16 %v387
      %v487 = vunpack.i.h.s16 %v387
      %v488 = vunpack.i.l.s16 %v388
      %v489 = vunpack.i.l.s16 %v403
      %v490 = vunpack.i.h.s16 %v403
      %v491 = vunpack.i.l.s16 %v410
      %v492 = vunpack.i.h.s16 %v410
      %v493 = vunpack.i.l.s16 %v411
      %v494 = vunpack.i.h.s16 %v411
      %v495 = vunpack.i.l.s16 %v412
      %v496 = vunpack.i.l.s16 %v427
      %v497 = vunpack.i.h.s16 %v427
      %v498 = vunpack.i.l.s16 %v434
      %v499 = vunpack.i.h.s16 %v434
      %v500 = vunpack.i.l.s16 %v435
      %v501 = vunpack.i.h.s16 %v435
      %v502 = vunpack.i.l.s16 %v436
      %v503 = vunpack.i.l.s16 %v451
      %v504 = vunpack.i.h.s16 %v451
      %v505 = vunpack.i.l.s16 %v458
      %v506 = vunpack.i.h.s16 %v458
      %v507 = vunpack.i.l.s16 %v459
      %v508 = vunpack.i.h.s16 %v459
      %v509 = vunpack.i.l.s16 %v460
      %v510 = vld [vmem:[%s2] sm:$0x3]
      %s511 = scalar_lea.vmem %s252, 4
      %v512 = vld [vmem:[%s511] sm:$0xf]
      %v513 = vld [vmem:[%s511 + $0x10] sm:$0xf]
      %v514 = vld [vmem:[%s511 + $0x20] sm:$0xf]
      %v515 = vld [vmem:[%s511 + $0x30] sm:$0xf]
      %v516 = vld [vmem:[%s511 + $0x40] sm:$0xf]
      %v517 = vld [vmem:[%s511 + $0x50] sm:$0xf]
      %v518 = vld [vmem:[%s511 + $0x60] sm:$0xf]
      %v527 = vunpack.c.l.s4 1966171168
      %v528 = vunpack.c.0.s8 %v527
      %v529 = vlaneseq
      %v530 = vshrl.u32 %v529, 7
      %v531 = vsub.s32 %v528, %v530
      %v532 = vrot.slane %v512, %v531
      %v533 = vcombine.high %v532, %v532
      %v535 = vunpack.c.l.s4 1966171168
      %v536 = vunpack.c.0.s8 %v535
      %v537 = vlaneseq
      %v538 = vshrl.u32 %v537, 7
      %v539 = vsub.s32 %v536, %v538
      %v540 = vrot.slane %v532, %v539
      %v542 = vunpack.c.l.s4 1966171168
      %v543 = vunpack.c.0.s8 %v542
      %v544 = vlaneseq
      %v545 = vshrl.u32 %v544, 7
      %v546 = vsub.s32 %v543, %v545
      %v547 = vrot.slane %v533, %v546
      %v548 = vcombine.high %v540, %v540
      %v549 = vcombine.high %v547, %v547
      %v551 = vunpack.c.l.s4 1966171168
      %v552 = vunpack.c.0.s8 %v551
      %v553 = vlaneseq
      %v554 = vshrl.u32 %v553, 7
      %v555 = vsub.s32 %v552, %v554
      %v556 = vrot.slane %v513, %v555
      %v557 = vcombine.high %v556, %v556
      %v559 = vunpack.c.l.s4 1966171168
      %v560 = vunpack.c.0.s8 %v559
      %v561 = vlaneseq
      %v562 = vshrl.u32 %v561, 7
      %v563 = vsub.s32 %v560, %v562
      %v564 = vrot.slane %v556, %v563
      %v566 = vunpack.c.l.s4 1966171168
      %v567 = vunpack.c.0.s8 %v566
      %v568 = vlaneseq
      %v569 = vshrl.u32 %v568, 7
      %v570 = vsub.s32 %v567, %v569
      %v571 = vrot.slane %v557, %v570
      %v572 = vcombine.high %v564, %v564
      %v573 = vcombine.high %v571, %v571
      %v575 = vunpack.c.l.s4 1966171168
      %v576 = vunpack.c.0.s8 %v575
      %v577 = vlaneseq
      %v578 = vshrl.u32 %v577, 7
      %v579 = vsub.s32 %v576, %v578
      %v580 = vrot.slane %v514, %v579
      %v581 = vcombine.high %v580, %v580
      %v583 = vunpack.c.l.s4 1966171168
      %v584 = vunpack.c.0.s8 %v583
      %v585 = vlaneseq
      %v586 = vshrl.u32 %v585, 7
      %v587 = vsub.s32 %v584, %v586
      %v588 = vrot.slane %v580, %v587
      %v590 = vunpack.c.l.s4 1966171168
      %v591 = vunpack.c.0.s8 %v590
      %v592 = vlaneseq
      %v593 = vshrl.u32 %v592, 7
      %v594 = vsub.s32 %v591, %v593
      %v595 = vrot.slane %v581, %v594
      %v596 = vcombine.high %v588, %v588
      %v597 = vcombine.high %v595, %v595
      %v599 = vunpack.c.l.s4 1966171168
      %v600 = vunpack.c.0.s8 %v599
      %v601 = vlaneseq
      %v602 = vshrl.u32 %v601, 7
      %v603 = vsub.s32 %v600, %v602
      %v604 = vrot.slane %v515, %v603
      %v605 = vcombine.high %v604, %v604
      %v607 = vunpack.c.l.s4 1966171168
      %v608 = vunpack.c.0.s8 %v607
      %v609 = vlaneseq
      %v610 = vshrl.u32 %v609, 7
      %v611 = vsub.s32 %v608, %v610
      %v612 = vrot.slane %v604, %v611
      %v614 = vunpack.c.l.s4 1966171168
      %v615 = vunpack.c.0.s8 %v614
      %v616 = vlaneseq
      %v617 = vshrl.u32 %v616, 7
      %v618 = vsub.s32 %v615, %v617
      %v619 = vrot.slane %v605, %v618
      %v620 = vcombine.high %v612, %v612
      %v621 = vcombine.high %v619, %v619
      %v623 = vunpack.c.l.s4 1966171168
      %v624 = vunpack.c.0.s8 %v623
      %v625 = vlaneseq
      %v626 = vshrl.u32 %v625, 7
      %v627 = vsub.s32 %v624, %v626
      %v628 = vrot.slane %v516, %v627
      %v629 = vcombine.high %v628, %v628
      %v631 = vunpack.c.l.s4 1966171168
      %v632 = vunpack.c.0.s8 %v631
      %v633 = vlaneseq
      %v634 = vshrl.u32 %v633, 7
      %v635 = vsub.s32 %v632, %v634
      %v636 = vrot.slane %v628, %v635
      %v638 = vunpack.c.l.s4 1966171168
      %v639 = vunpack.c.0.s8 %v638
      %v640 = vlaneseq
      %v641 = vshrl.u32 %v640, 7
      %v642 = vsub.s32 %v639, %v641
      %v643 = vrot.slane %v629, %v642
      %v644 = vcombine.high %v636, %v636
      %v645 = vcombine.high %v643, %v643
      %v647 = vunpack.c.l.s4 1966171168
      %v648 = vunpack.c.0.s8 %v647
      %v649 = vlaneseq
      %v650 = vshrl.u32 %v649, 7
      %v651 = vsub.s32 %v648, %v650
      %v652 = vrot.slane %v517, %v651
      %v653 = vcombine.high %v652, %v652
      %v655 = vunpack.c.l.s4 1966171168
      %v656 = vunpack.c.0.s8 %v655
      %v657 = vlaneseq
      %v658 = vshrl.u32 %v657, 7
      %v659 = vsub.s32 %v656, %v658
      %v660 = vrot.slane %v652, %v659
      %v662 = vunpack.c.l.s4 1966171168
      %v663 = vunpack.c.0.s8 %v662
      %v664 = vlaneseq
      %v665 = vshrl.u32 %v664, 7
      %v666 = vsub.s32 %v663, %v665
      %v667 = vrot.slane %v653, %v666
      %v668 = vcombine.high %v660, %v660
      %v669 = vcombine.high %v667, %v667
      %v671 = vunpack.c.l.s4 1966171168
      %v672 = vunpack.c.0.s8 %v671
      %v673 = vlaneseq
      %v674 = vshrl.u32 %v673, 7
      %v675 = vsub.s32 %v672, %v674
      %v676 = vrot.slane %v518, %v675
      %v677 = vcombine.high %v676, %v676
      %v679 = vunpack.c.l.s4 1966171168
      %v680 = vunpack.c.0.s8 %v679
      %v681 = vlaneseq
      %v682 = vshrl.u32 %v681, 7
      %v683 = vsub.s32 %v680, %v682
      %v684 = vrot.slane %v676, %v683
      %v686 = vunpack.c.l.s4 1966171168
      %v687 = vunpack.c.0.s8 %v686
      %v688 = vlaneseq
      %v689 = vshrl.u32 %v688, 7
      %v690 = vsub.s32 %v687, %v689
      %v691 = vrot.slane %v677, %v690
      %v692 = vcombine.high %v684, %v684
      %v693 = vcombine.high %v691, %v691
      %v694 = vunpack.i.l.s16 %v540
      %v695 = vunpack.i.h.s16 %v540
      %v696 = vunpack.i.l.s16 %v547
      %v697 = vunpack.i.h.s16 %v547
      %v698 = vunpack.i.l.s16 %v548
      %v699 = vunpack.i.h.s16 %v548
      %v700 = vunpack.i.l.s16 %v549
      %v701 = vunpack.i.l.s16 %v564
      %v702 = vunpack.i.h.s16 %v564
      %v703 = vunpack.i.l.s16 %v571
      %v704 = vunpack.i.h.s16 %v571
      %v705 = vunpack.i.l.s16 %v572
      %v706 = vunpack.i.h.s16 %v572
      %v707 = vunpack.i.l.s16 %v573
      %v708 = vunpack.i.l.s16 %v588
      %v709 = vunpack.i.h.s16 %v588
      %v710 = vunpack.i.l.s16 %v595
      %v711 = vunpack.i.h.s16 %v595
      %v712 = vunpack.i.l.s16 %v596
      %v713 = vunpack.i.h.s16 %v596
      %v714 = vunpack.i.l.s16 %v597
      %v715 = vunpack.i.l.s16 %v612
      %v716 = vunpack.i.h.s16 %v612
      %v717 = vunpack.i.l.s16 %v619
      %v718 = vunpack.i.h.s16 %v619
      %v719 = vunpack.i.l.s16 %v620
      %v720 = vunpack.i.h.s16 %v620
      %v721 = vunpack.i.l.s16 %v621
      %v722 = vunpack.i.l.s16 %v636
      %v723 = vunpack.i.h.s16 %v636
      %v724 = vunpack.i.l.s16 %v643
      %v725 = vunpack.i.h.s16 %v643
      %v726 = vunpack.i.l.s16 %v644
      %v727 = vunpack.i.h.s16 %v644
      %v728 = vunpack.i.l.s16 %v645
      %v729 = vunpack.i.l.s16 %v660
      %v730 = vunpack.i.h.s16 %v660
      %v731 = vunpack.i.l.s16 %v667
      %v732 = vunpack.i.h.s16 %v667
      %v733 = vunpack.i.l.s16 %v668
      %v734 = vunpack.i.h.s16 %v668
      %v735 = vunpack.i.l.s16 %v669
      %v736 = vunpack.i.l.s16 %v684
      %v737 = vunpack.i.h.s16 %v684
      %v738 = vunpack.i.l.s16 %v691
      %v739 = vunpack.i.h.s16 %v691
      %v740 = vunpack.i.l.s16 %v692
      %v741 = vunpack.i.h.s16 %v692
      %v742 = vunpack.i.l.s16 %v693
      %s743 = scalar_lea.vmem %s2, 2
      %v744 = vld [vmem:[%s743] sm:$0x3]
      %v745 = vpack.i.b16 %v695, %v694
      %v746 = vpack.i.b16 %v697, %v696
      %v747 = vpack.i.b16 %v699, %v698
      %v748 = vpack.i.b16 %v701, %v700
      %v749 = vpack.i.b16 %v703, %v702
      %v750 = vpack.i.b16 %v705, %v704
      %v751 = vpack.i.b16 %v707, %v706
      %v752 = vpack.i.b16 %v709, %v708
      %v753 = vpack.i.b16 %v711, %v710
      %v754 = vpack.i.b16 %v713, %v712
      %v755 = vpack.i.b16 %v715, %v714
      %v756 = vpack.i.b16 %v717, %v716
      %v757 = vpack.i.b16 %v719, %v718
      %v758 = vpack.i.b16 %v721, %v720
      %v759 = vpack.i.b16 %v723, %v722
      %v760 = vpack.i.b16 %v725, %v724
      %v761 = vpack.i.b16 %v727, %v726
      %v762 = vpack.i.b16 %v729, %v728
      %v763 = vpack.i.b16 %v731, %v730
      %v764 = vpack.i.b16 %v733, %v732
      %v765 = vpack.i.b16 %v735, %v734
      %v766 = vpack.i.b16 %v737, %v736
      %v767 = vpack.i.b16 %v739, %v738
      %v768 = vpack.i.b16 %v741, %v740
      %v770 = vcombine.low %v745, %v746
      %v771 = vcombine.low %v747, %v748
      %v772 = vcombine.low %v749, %v750
      %v773 = vcombine.low %v751, %v752
      %v775 = vunpack.c.l.s4 1966171168
      %v776 = vunpack.c.0.s8 %v775
      %v777 = vlaneseq
      %v778 = vshrl.u32 %v777, 7
      %v779 = vsub.s32 %v776, %v778
      %v780 = vrot.slane %v770, %v779
      %v782 = vunpack.c.l.s4 1966171168
      %v783 = vunpack.c.0.s8 %v782
      %v784 = vlaneseq
      %v785 = vshrl.u32 %v784, 7
      %v786 = vsub.s32 %v783, %v785
      %v787 = vrot.slane %v771, %v786
      %v789 = vunpack.c.l.s4 1966171168
      %v790 = vunpack.c.0.s8 %v789
      %v791 = vlaneseq
      %v792 = vshrl.u32 %v791, 7
      %v793 = vsub.s32 %v790, %v792
      %v794 = vrot.slane %v772, %v793
      %v796 = vunpack.c.l.s4 1966171168
      %v797 = vunpack.c.0.s8 %v796
      %v798 = vlaneseq
      %v799 = vshrl.u32 %v798, 7
      %v800 = vsub.s32 %v797, %v799
      %v801 = vrot.slane %v773, %v800
      %v802 = vcombine.low %v780, %v787
      %v803 = vcombine.low %v794, %v801
      %v805 = vunpack.c.l.s4 1966171168
      %v806 = vunpack.c.0.s8 %v805
      %v807 = vlaneseq
      %v808 = vshrl.u32 %v807, 7
      %v809 = vsub.s32 %v806, %v808
      %v810 = vrot.slane %v802, %v809
      %v812 = vunpack.c.l.s4 1966171168
      %v813 = vunpack.c.0.s8 %v812
      %v814 = vlaneseq
      %v815 = vshrl.u32 %v814, 7
      %v816 = vsub.s32 %v813, %v815
      %v817 = vrot.slane %v803, %v816
      %v818 = vcombine.low %v810, %v817
      %v819 = vcombine.low %v753, %v754
      %v820 = vcombine.low %v755, %v756
      %v821 = vcombine.low %v757, %v758
      %v822 = vcombine.low %v759, %v760
      %v824 = vunpack.c.l.s4 1966171168
      %v825 = vunpack.c.0.s8 %v824
      %v826 = vlaneseq
      %v827 = vshrl.u32 %v826, 7
      %v828 = vsub.s32 %v825, %v827
      %v829 = vrot.slane %v819, %v828
      %v831 = vunpack.c.l.s4 1966171168
      %v832 = vunpack.c.0.s8 %v831
      %v833 = vlaneseq
      %v834 = vshrl.u32 %v833, 7
      %v835 = vsub.s32 %v832, %v834
      %v836 = vrot.slane %v820, %v835
      %v838 = vunpack.c.l.s4 1966171168
      %v839 = vunpack.c.0.s8 %v838
      %v840 = vlaneseq
      %v841 = vshrl.u32 %v840, 7
      %v842 = vsub.s32 %v839, %v841
      %v843 = vrot.slane %v821, %v842
      %v845 = vunpack.c.l.s4 1966171168
      %v846 = vunpack.c.0.s8 %v845
      %v847 = vlaneseq
      %v848 = vshrl.u32 %v847, 7
      %v849 = vsub.s32 %v846, %v848
      %v850 = vrot.slane %v822, %v849
      %v851 = vcombine.low %v829, %v836
      %v852 = vcombine.low %v843, %v850
      %v854 = vunpack.c.l.s4 1966171168
      %v855 = vunpack.c.0.s8 %v854
      %v856 = vlaneseq
      %v857 = vshrl.u32 %v856, 7
      %v858 = vsub.s32 %v855, %v857
      %v859 = vrot.slane %v851, %v858
      %v861 = vunpack.c.l.s4 1966171168
      %v862 = vunpack.c.0.s8 %v861
      %v863 = vlaneseq
      %v864 = vshrl.u32 %v863, 7
      %v865 = vsub.s32 %v862, %v864
      %v866 = vrot.slane %v852, %v865
      %v867 = vcombine.low %v859, %v866
      %v868 = vcombine.low %v761, %v762
      %v869 = vcombine.low %v763, %v764
      %v870 = vcombine.low %v765, %v766
      %v871 = vcombine.low %v767, %v768
      %v873 = vunpack.c.l.s4 1966171168
      %v874 = vunpack.c.0.s8 %v873
      %v875 = vlaneseq
      %v876 = vshrl.u32 %v875, 7
      %v877 = vsub.s32 %v874, %v876
      %v878 = vrot.slane %v868, %v877
      %v880 = vunpack.c.l.s4 1966171168
      %v881 = vunpack.c.0.s8 %v880
      %v882 = vlaneseq
      %v883 = vshrl.u32 %v882, 7
      %v884 = vsub.s32 %v881, %v883
      %v885 = vrot.slane %v869, %v884
      %v887 = vunpack.c.l.s4 1966171168
      %v888 = vunpack.c.0.s8 %v887
      %v889 = vlaneseq
      %v890 = vshrl.u32 %v889, 7
      %v891 = vsub.s32 %v888, %v890
      %v892 = vrot.slane %v870, %v891
      %v894 = vunpack.c.l.s4 1966171168
      %v895 = vunpack.c.0.s8 %v894
      %v896 = vlaneseq
      %v897 = vshrl.u32 %v896, 7
      %v898 = vsub.s32 %v895, %v897
      %v899 = vrot.slane %v871, %v898
      %v900 = vcombine.low %v878, %v885
      %v901 = vcombine.low %v892, %v899
      %v903 = vunpack.c.l.s4 1966171168
      %v904 = vunpack.c.0.s8 %v903
      %v905 = vlaneseq
      %v906 = vshrl.u32 %v905, 7
      %v907 = vsub.s32 %v904, %v906
      %v908 = vrot.slane %v900, %v907
      %v910 = vunpack.c.l.s4 1966171168
      %v911 = vunpack.c.0.s8 %v910
      %v912 = vlaneseq
      %v913 = vshrl.u32 %v912, 7
      %v914 = vsub.s32 %v911, %v913
      %v915 = vrot.slane %v901, %v914
      %v916 = vcombine.low %v908, %v915
      %v918 = vunpack.c.l.s4 1966171168
      %v919 = vunpack.c.0.s8 %v918
      %v920 = vlaneseq
      %v921 = vshrl.u32 %v920, 7
      %v922 = vsub.s32 %v919, %v921
      %v923 = vrot.slane %v742, %v922
      %v925 = vunpack.c.l.s4 1966171168
      %v926 = vunpack.c.0.s8 %v925
      %v927 = vlaneseq
      %v928 = vshrl.u32 %v927, 7
      %v929 = vsub.s32 %v926, %v928
      %v930 = vrot.slane %v923, %v929
      %vm931 = vcmask 31744
      %v933 = vsel %vm931, %v818, 0
      %v936 = vsel %vm931, %v867, 0
      %v939 = vsel %vm931, %v916, 0
      %v942 = vsel %vm931, %v930, 0
      %vm944 = vcmask 1041408
      %v946 = vsel %vm944, %v744, 0
      %948 = vmatprep.subr.bf16.mxu0 0
      %949 = vmatpush1.bf16.msra.mxu0 0
      %950 = vmatprep.subr.bf16.mxu0 0
      %951 = vmatpush1.bf16.msra.mxu0 0
      %952 = vmatprep.subr.bf16.mxu0 0
      %953 = vmatpush1.bf16.msra.mxu0 0
      %954 = vmatprep.subr.bf16.mxu0 0
      %955 = vmatpush1.bf16.msra.mxu0 0
      %956 = vmatprep.subr.bf16.mxu0 0
      %957 = vmatpush1.bf16.msra.mxu0 0
      %958 = vmatprep.subr.bf16.mxu0 0
      %959 = vmatpush1.bf16.msra.mxu0 0
      %960 = vmatprep.subr.bf16.mxu0 0
      %961 = vmatpush1.bf16.msra.mxu0 0
      %962 = vmatprep.subr.bf16.mxu0 0
      %963 = vmatpush1.bf16.msra.mxu0 %v946
      %964 = vmatprep.subr.bf16.mxu0 0
      %965 = vmatpush2.bf16.msra.mxu0 0
      %966 = vmatprep.subr.bf16.mxu0 0
      %967 = vmatpush2.bf16.msra.mxu0 0
      %968 = vmatprep.subr.bf16.mxu0 0
      %969 = vmatpush2.bf16.msra.mxu0 0
      %970 = vmatprep.subr.bf16.mxu0 0
      %971 = vmatpush2.bf16.msra.mxu0 0
      %972 = vmatprep.subr.bf16.mxu0 0
      %973 = vmatpush2.bf16.msra.mxu0 0
      %974 = vmatprep.subr.bf16.mxu0 0
      %975 = vmatpush2.bf16.msra.mxu0 0
      %976 = vmatprep.subr.bf16.mxu0 0
      %977 = vmatpush2.bf16.msra.mxu0 0
      %978 = vmatprep.subr.bf16.mxu0 0
      %979 = vmatpush2.bf16.msra.mxu0 0
      %980 = vmatprep.mubr.bf16.mxu0 0
      %981 = vmatmul.mubr.bf16.gmra.mxu0 %v933
      %v982 = vpop.f32.mrf.mxu0
      %v983 = vadd.f32 0.0, %v982
      %v984 = vpop.f32.mrf.mxu0
      %v985 = vpop.f32.mrf.mxu0
      %v986 = vadd.f32 0.0, %v985
      %v987 = vpop.f32.mrf.mxu0
      %988 = vmatprep.mubr.bf16.mxu0 0
      %989 = vmatmul.mubr.bf16.gmra.mxu0 %v936
      %v990 = vpop.f32.mrf.mxu0
      %v991 = vadd.f32 0.0, %v990
      %v992 = vpop.f32.mrf.mxu0
      %v993 = vpop.f32.mrf.mxu0
      %v994 = vadd.f32 0.0, %v993
      %v995 = vpop.f32.mrf.mxu0
      %996 = vmatprep.mubr.bf16.mxu0 0
      %997 = vmatmul.mubr.bf16.gmra.mxu0 %v939
      %v998 = vpop.f32.mrf.mxu0
      %v999 = vadd.f32 0.0, %v998
      %v1000 = vpop.f32.mrf.mxu0
      %v1001 = vpop.f32.mrf.mxu0
      %v1002 = vadd.f32 0.0, %v1001
      %v1003 = vpop.f32.mrf.mxu0
      %1004 = vmatprep.mubr.bf16.mxu0 0
      %1005 = vmatmul.mubr.bf16.gmra.mxu0 %v942
      %v1006 = vpop.f32.mrf.mxu0
      %v1007 = vadd.f32 0.0, %v1006
      %v1008 = vpop.f32.mrf.mxu0
      %v1009 = vpop.f32.mrf.mxu0
      %v1010 = vpop.f32.mrf.mxu0
      %1011 = vdwg.mxu0
      %v1012 = vpack.i.b16 %v462, %v461
      %v1013 = vpack.i.b16 %v464, %v463
      %v1014 = vpack.i.b16 %v466, %v465
      %v1015 = vpack.i.b16 %v468, %v467
      %v1016 = vpack.i.b16 %v470, %v469
      %v1017 = vpack.i.b16 %v472, %v471
      %v1018 = vpack.i.b16 %v474, %v473
      %v1019 = vpack.i.b16 %v476, %v475
      %v1020 = vpack.i.b16 %v478, %v477
      %v1021 = vpack.i.b16 %v480, %v479
      %v1022 = vpack.i.b16 %v482, %v481
      %v1023 = vpack.i.b16 %v484, %v483
      %v1024 = vpack.i.b16 %v486, %v485
      %v1025 = vpack.i.b16 %v488, %v487
      %v1026 = vpack.i.b16 %v490, %v489
      %v1027 = vpack.i.b16 %v492, %v491
      %v1028 = vpack.i.b16 %v494, %v493
      %v1029 = vpack.i.b16 %v496, %v495
      %v1030 = vpack.i.b16 %v498, %v497
      %v1031 = vpack.i.b16 %v500, %v499
      %v1032 = vpack.i.b16 %v502, %v501
      %v1033 = vpack.i.b16 %v504, %v503
      %v1034 = vpack.i.b16 %v506, %v505
      %v1035 = vpack.i.b16 %v508, %v507
      %v1037 = vcombine.low %v1012, %v1013
      %v1038 = vcombine.low %v1014, %v1015
      %v1039 = vcombine.low %v1016, %v1017
      %v1040 = vcombine.low %v1018, %v1019
      %v1042 = vunpack.c.l.s4 1966171168
      %v1043 = vunpack.c.0.s8 %v1042
      %v1044 = vlaneseq
      %v1045 = vshrl.u32 %v1044, 7
      %v1046 = vsub.s32 %v1043, %v1045
      %v1047 = vrot.slane %v1037, %v1046
      %v1049 = vunpack.c.l.s4 1966171168
      %v1050 = vunpack.c.0.s8 %v1049
      %v1051 = vlaneseq
      %v1052 = vshrl.u32 %v1051, 7
      %v1053 = vsub.s32 %v1050, %v1052
      %v1054 = vrot.slane %v1038, %v1053
      %v1056 = vunpack.c.l.s4 1966171168
      %v1057 = vunpack.c.0.s8 %v1056
      %v1058 = vlaneseq
      %v1059 = vshrl.u32 %v1058, 7
      %v1060 = vsub.s32 %v1057, %v1059
      %v1061 = vrot.slane %v1039, %v1060
      %v1063 = vunpack.c.l.s4 1966171168
      %v1064 = vunpack.c.0.s8 %v1063
      %v1065 = vlaneseq
      %v1066 = vshrl.u32 %v1065, 7
      %v1067 = vsub.s32 %v1064, %v1066
      %v1068 = vrot.slane %v1040, %v1067
      %v1069 = vcombine.low %v1047, %v1054
      %v1070 = vcombine.low %v1061, %v1068
      %v1072 = vunpack.c.l.s4 1966171168
      %v1073 = vunpack.c.0.s8 %v1072
      %v1074 = vlaneseq
      %v1075 = vshrl.u32 %v1074, 7
      %v1076 = vsub.s32 %v1073, %v1075
      %v1077 = vrot.slane %v1069, %v1076
      %v1079 = vunpack.c.l.s4 1966171168
      %v1080 = vunpack.c.0.s8 %v1079
      %v1081 = vlaneseq
      %v1082 = vshrl.u32 %v1081, 7
      %v1083 = vsub.s32 %v1080, %v1082
      %v1084 = vrot.slane %v1070, %v1083
      %v1085 = vcombine.low %v1077, %v1084
      %v1086 = vcombine.low %v1020, %v1021
      %v1087 = vcombine.low %v1022, %v1023
      %v1088 = vcombine.low %v1024, %v1025
      %v1089 = vcombine.low %v1026, %v1027
      %v1091 = vunpack.c.l.s4 1966171168
      %v1092 = vunpack.c.0.s8 %v1091
      %v1093 = vlaneseq
      %v1094 = vshrl.u32 %v1093, 7
      %v1095 = vsub.s32 %v1092, %v1094
      %v1096 = vrot.slane %v1086, %v1095
      %v1098 = vunpack.c.l.s4 1966171168
      %v1099 = vunpack.c.0.s8 %v1098
      %v1100 = vlaneseq
      %v1101 = vshrl.u32 %v1100, 7
      %v1102 = vsub.s32 %v1099, %v1101
      %v1103 = vrot.slane %v1087, %v1102
      %v1105 = vunpack.c.l.s4 1966171168
      %v1106 = vunpack.c.0.s8 %v1105
      %v1107 = vlaneseq
      %v1108 = vshrl.u32 %v1107, 7
      %v1109 = vsub.s32 %v1106, %v1108
      %v1110 = vrot.slane %v1088, %v1109
      %v1112 = vunpack.c.l.s4 1966171168
      %v1113 = vunpack.c.0.s8 %v1112
      %v1114 = vlaneseq
      %v1115 = vshrl.u32 %v1114, 7
      %v1116 = vsub.s32 %v1113, %v1115
      %v1117 = vrot.slane %v1089, %v1116
      %v1118 = vcombine.low %v1096, %v1103
      %v1119 = vcombine.low %v1110, %v1117
      %v1121 = vunpack.c.l.s4 1966171168
      %v1122 = vunpack.c.0.s8 %v1121
      %v1123 = vlaneseq
      %v1124 = vshrl.u32 %v1123, 7
      %v1125 = vsub.s32 %v1122, %v1124
      %v1126 = vrot.slane %v1118, %v1125
      %v1128 = vunpack.c.l.s4 1966171168
      %v1129 = vunpack.c.0.s8 %v1128
      %v1130 = vlaneseq
      %v1131 = vshrl.u32 %v1130, 7
      %v1132 = vsub.s32 %v1129, %v1131
      %v1133 = vrot.slane %v1119, %v1132
      %v1134 = vcombine.low %v1126, %v1133
      %v1135 = vcombine.low %v1028, %v1029
      %v1136 = vcombine.low %v1030, %v1031
      %v1137 = vcombine.low %v1032, %v1033
      %v1138 = vcombine.low %v1034, %v1035
      %v1140 = vunpack.c.l.s4 1966171168
      %v1141 = vunpack.c.0.s8 %v1140
      %v1142 = vlaneseq
      %v1143 = vshrl.u32 %v1142, 7
      %v1144 = vsub.s32 %v1141, %v1143
      %v1145 = vrot.slane %v1135, %v1144
      %v1147 = vunpack.c.l.s4 1966171168
      %v1148 = vunpack.c.0.s8 %v1147
      %v1149 = vlaneseq
      %v1150 = vshrl.u32 %v1149, 7
      %v1151 = vsub.s32 %v1148, %v1150
      %v1152 = vrot.slane %v1136, %v1151
      %v1154 = vunpack.c.l.s4 1966171168
      %v1155 = vunpack.c.0.s8 %v1154
      %v1156 = vlaneseq
      %v1157 = vshrl.u32 %v1156, 7
      %v1158 = vsub.s32 %v1155, %v1157
      %v1159 = vrot.slane %v1137, %v1158
      %v1161 = vunpack.c.l.s4 1966171168
      %v1162 = vunpack.c.0.s8 %v1161
      %v1163 = vlaneseq
      %v1164 = vshrl.u32 %v1163, 7
      %v1165 = vsub.s32 %v1162, %v1164
      %v1166 = vrot.slane %v1138, %v1165
      %v1167 = vcombine.low %v1145, %v1152
      %v1168 = vcombine.low %v1159, %v1166
      %v1170 = vunpack.c.l.s4 1966171168
      %v1171 = vunpack.c.0.s8 %v1170
      %v1172 = vlaneseq
      %v1173 = vshrl.u32 %v1172, 7
      %v1174 = vsub.s32 %v1171, %v1173
      %v1175 = vrot.slane %v1167, %v1174
      %v1177 = vunpack.c.l.s4 1966171168
      %v1178 = vunpack.c.0.s8 %v1177
      %v1179 = vlaneseq
      %v1180 = vshrl.u32 %v1179, 7
      %v1181 = vsub.s32 %v1178, %v1180
      %v1182 = vrot.slane %v1168, %v1181
      %v1183 = vcombine.low %v1175, %v1182
      %v1185 = vunpack.c.l.s4 1966171168
      %v1186 = vunpack.c.0.s8 %v1185
      %v1187 = vlaneseq
      %v1188 = vshrl.u32 %v1187, 7
      %v1189 = vsub.s32 %v1186, %v1188
      %v1190 = vrot.slane %v509, %v1189
      %v1192 = vunpack.c.l.s4 1966171168
      %v1193 = vunpack.c.0.s8 %v1192
      %v1194 = vlaneseq
      %v1195 = vshrl.u32 %v1194, 7
      %v1196 = vsub.s32 %v1193, %v1195
      %v1197 = vrot.slane %v1190, %v1196
      %v1199 = vsel %vm931, %v1085, 0
      %v1202 = vsel %vm931, %v1134, 0
      %v1205 = vsel %vm931, %v1183, 0
      %v1208 = vsel %vm931, %v1197, 0
      %v1211 = vsel %vm944, %v510, 0
      %1213 = vmatprep.subr.bf16.mxu0 0
      %1214 = vmatpush1.bf16.msra.mxu0 0
      %1215 = vmatprep.subr.bf16.mxu0 0
      %1216 = vmatpush1.bf16.msra.mxu0 0
      %1217 = vmatprep.subr.bf16.mxu0 0
      %1218 = vmatpush1.bf16.msra.mxu0 0
      %1219 = vmatprep.subr.bf16.mxu0 0
      %1220 = vmatpush1.bf16.msra.mxu0 0
      %1221 = vmatprep.subr.bf16.mxu0 0
      %1222 = vmatpush1.bf16.msra.mxu0 0
      %1223 = vmatprep.subr.bf16.mxu0 0
      %1224 = vmatpush1.bf16.msra.mxu0 0
      %1225 = vmatprep.subr.bf16.mxu0 0
      %1226 = vmatpush1.bf16.msra.mxu0 0
      %1227 = vmatprep.subr.bf16.mxu0 0
      %1228 = vmatpush1.bf16.msra.mxu0 %v1211
      %1229 = vmatprep.subr.bf16.mxu0 0
      %1230 = vmatpush2.bf16.msra.mxu0 0
      %1231 = vmatprep.subr.bf16.mxu0 0
      %1232 = vmatpush2.bf16.msra.mxu0 0
      %1233 = vmatprep.subr.bf16.mxu0 0
      %1234 = vmatpush2.bf16.msra.mxu0 0
      %1235 = vmatprep.subr.bf16.mxu0 0
      %1236 = vmatpush2.bf16.msra.mxu0 0
      %1237 = vmatprep.subr.bf16.mxu0 0
      %1238 = vmatpush2.bf16.msra.mxu0 0
      %1239 = vmatprep.subr.bf16.mxu0 0
      %1240 = vmatpush2.bf16.msra.mxu0 0
      %1241 = vmatprep.subr.bf16.mxu0 0
      %1242 = vmatpush2.bf16.msra.mxu0 0
      %1243 = vmatprep.subr.bf16.mxu0 0
      %1244 = vmatpush2.bf16.msra.mxu0 0
      %1245 = vmatprep.mubr.bf16.mxu0 0
      %1246 = vmatmul.mubr.bf16.gmra.mxu0 %v1199
      %v1247 = vpop.f32.mrf.mxu0
      %v1248 = vadd.f32 %v983, %v1247
      %v1249 = vpop.f32.mrf.mxu0
      %v1250 = vpop.f32.mrf.mxu0
      %v1251 = vadd.f32 %v986, %v1250
      %v1252 = vpop.f32.mrf.mxu0
      %1253 = vmatprep.mubr.bf16.mxu0 0
      %1254 = vmatmul.mubr.bf16.gmra.mxu0 %v1202
      %v1255 = vpop.f32.mrf.mxu0
      %v1256 = vadd.f32 %v991, %v1255
      %v1257 = vpop.f32.mrf.mxu0
      %v1258 = vpop.f32.mrf.mxu0
      %v1259 = vadd.f32 %v994, %v1258
      %v1260 = vpop.f32.mrf.mxu0
      %1261 = vmatprep.mubr.bf16.mxu0 0
      %1262 = vmatmul.mubr.bf16.gmra.mxu0 %v1205
      %v1263 = vpop.f32.mrf.mxu0
      %v1264 = vadd.f32 %v999, %v1263
      %v1265 = vpop.f32.mrf.mxu0
      %v1266 = vpop.f32.mrf.mxu0
      %v1267 = vadd.f32 %v1002, %v1266
      %v1268 = vpop.f32.mrf.mxu0
      %1269 = vmatprep.mubr.bf16.mxu0 0
      %1270 = vmatmul.mubr.bf16.gmra.mxu0 %v1208
      %v1271 = vpop.f32.mrf.mxu0
      %v1272 = vadd.f32 %v1007, %v1271
      %v1273 = vpop.f32.mrf.mxu0
      %v1274 = vpop.f32.mrf.mxu0
      %v1275 = vpop.f32.mrf.mxu0
      %1276 = vdwg.mxu0
      %v1277 = vld [vmem:[%s252] sm:$0xf]
      %v1278 = vld [vmem:[%s252 + $0x10] sm:$0xf]
      %v1279 = vld [vmem:[%s252 + $0x20] sm:$0xf]
      %v1280 = vld [vmem:[%s252 + $0x30] sm:$0xf]
      %v1281 = vld [vmem:[%s252 + $0x40] sm:$0xf]
      %v1282 = vld [vmem:[%s252 + $0x50] sm:$0xf]
      %v1283 = vld [vmem:[%s252 + $0x60] sm:$0xf]
      %v1292 = vunpack.c.l.s4 1966171168
      %v1293 = vunpack.c.0.s8 %v1292
      %v1294 = vlaneseq
      %v1295 = vshrl.u32 %v1294, 7
      %v1296 = vsub.s32 %v1293, %v1295
      %v1297 = vrot.slane %v1277, %v1296
      %v1298 = vcombine.high %v1297, %v1297
      %v1300 = vunpack.c.l.s4 1966171168
      %v1301 = vunpack.c.0.s8 %v1300
      %v1302 = vlaneseq
      %v1303 = vshrl.u32 %v1302, 7
      %v1304 = vsub.s32 %v1301, %v1303
      %v1305 = vrot.slane %v1297, %v1304
      %v1307 = vunpack.c.l.s4 1966171168
      %v1308 = vunpack.c.0.s8 %v1307
      %v1309 = vlaneseq
      %v1310 = vshrl.u32 %v1309, 7
      %v1311 = vsub.s32 %v1308, %v1310
      %v1312 = vrot.slane %v1298, %v1311
      %v1313 = vcombine.high %v1305, %v1305
      %v1314 = vcombine.high %v1312, %v1312
      %v1316 = vunpack.c.l.s4 1966171168
      %v1317 = vunpack.c.0.s8 %v1316
      %v1318 = vlaneseq
      %v1319 = vshrl.u32 %v1318, 7
      %v1320 = vsub.s32 %v1317, %v1319
      %v1321 = vrot.slane %v1278, %v1320
      %v1322 = vcombine.high %v1321, %v1321
      %v1324 = vunpack.c.l.s4 1966171168
      %v1325 = vunpack.c.0.s8 %v1324
      %v1326 = vlaneseq
      %v1327 = vshrl.u32 %v1326, 7
      %v1328 = vsub.s32 %v1325, %v1327
      %v1329 = vrot.slane %v1321, %v1328
      %v1331 = vunpack.c.l.s4 1966171168
      %v1332 = vunpack.c.0.s8 %v1331
      %v1333 = vlaneseq
      %v1334 = vshrl.u32 %v1333, 7
      %v1335 = vsub.s32 %v1332, %v1334
      %v1336 = vrot.slane %v1322, %v1335
      %v1337 = vcombine.high %v1329, %v1329
      %v1338 = vcombine.high %v1336, %v1336
      %v1340 = vunpack.c.l.s4 1966171168
      %v1341 = vunpack.c.0.s8 %v1340
      %v1342 = vlaneseq
      %v1343 = vshrl.u32 %v1342, 7
      %v1344 = vsub.s32 %v1341, %v1343
      %v1345 = vrot.slane %v1279, %v1344
      %v1346 = vcombine.high %v1345, %v1345
      %v1348 = vunpack.c.l.s4 1966171168
      %v1349 = vunpack.c.0.s8 %v1348
      %v1350 = vlaneseq
      %v1351 = vshrl.u32 %v1350, 7
      %v1352 = vsub.s32 %v1349, %v1351
      %v1353 = vrot.slane %v1345, %v1352
      %v1355 = vunpack.c.l.s4 1966171168
      %v1356 = vunpack.c.0.s8 %v1355
      %v1357 = vlaneseq
      %v1358 = vshrl.u32 %v1357, 7
      %v1359 = vsub.s32 %v1356, %v1358
      %v1360 = vrot.slane %v1346, %v1359
      %v1361 = vcombine.high %v1353, %v1353
      %v1362 = vcombine.high %v1360, %v1360
      %v1364 = vunpack.c.l.s4 1966171168
      %v1365 = vunpack.c.0.s8 %v1364
      %v1366 = vlaneseq
      %v1367 = vshrl.u32 %v1366, 7
      %v1368 = vsub.s32 %v1365, %v1367
      %v1369 = vrot.slane %v1280, %v1368
      %v1370 = vcombine.high %v1369, %v1369
      %v1372 = vunpack.c.l.s4 1966171168
      %v1373 = vunpack.c.0.s8 %v1372
      %v1374 = vlaneseq
      %v1375 = vshrl.u32 %v1374, 7
      %v1376 = vsub.s32 %v1373, %v1375
      %v1377 = vrot.slane %v1369, %v1376
      %v1379 = vunpack.c.l.s4 1966171168
      %v1380 = vunpack.c.0.s8 %v1379
      %v1381 = vlaneseq
      %v1382 = vshrl.u32 %v1381, 7
      %v1383 = vsub.s32 %v1380, %v1382
      %v1384 = vrot.slane %v1370, %v1383
      %v1385 = vcombine.high %v1377, %v1377
      %v1386 = vcombine.high %v1384, %v1384
      %v1388 = vunpack.c.l.s4 1966171168
      %v1389 = vunpack.c.0.s8 %v1388
      %v1390 = vlaneseq
      %v1391 = vshrl.u32 %v1390, 7
      %v1392 = vsub.s32 %v1389, %v1391
      %v1393 = vrot.slane %v1281, %v1392
      %v1394 = vcombine.high %v1393, %v1393
      %v1396 = vunpack.c.l.s4 1966171168
      %v1397 = vunpack.c.0.s8 %v1396
      %v1398 = vlaneseq
      %v1399 = vshrl.u32 %v1398, 7
      %v1400 = vsub.s32 %v1397, %v1399
      %v1401 = vrot.slane %v1393, %v1400
      %v1403 = vunpack.c.l.s4 1966171168
      %v1404 = vunpack.c.0.s8 %v1403
      %v1405 = vlaneseq
      %v1406 = vshrl.u32 %v1405, 7
      %v1407 = vsub.s32 %v1404, %v1406
      %v1408 = vrot.slane %v1394, %v1407
      %v1409 = vcombine.high %v1401, %v1401
      %v1410 = vcombine.high %v1408, %v1408
      %v1412 = vunpack.c.l.s4 1966171168
      %v1413 = vunpack.c.0.s8 %v1412
      %v1414 = vlaneseq
      %v1415 = vshrl.u32 %v1414, 7
      %v1416 = vsub.s32 %v1413, %v1415
      %v1417 = vrot.slane %v1282, %v1416
      %v1418 = vcombine.high %v1417, %v1417
      %v1420 = vunpack.c.l.s4 1966171168
      %v1421 = vunpack.c.0.s8 %v1420
      %v1422 = vlaneseq
      %v1423 = vshrl.u32 %v1422, 7
      %v1424 = vsub.s32 %v1421, %v1423
      %v1425 = vrot.slane %v1417, %v1424
      %v1427 = vunpack.c.l.s4 1966171168
      %v1428 = vunpack.c.0.s8 %v1427
      %v1429 = vlaneseq
      %v1430 = vshrl.u32 %v1429, 7
      %v1431 = vsub.s32 %v1428, %v1430
      %v1432 = vrot.slane %v1418, %v1431
      %v1433 = vcombine.high %v1425, %v1425
      %v1434 = vcombine.high %v1432, %v1432
      %v1436 = vunpack.c.l.s4 1966171168
      %v1437 = vunpack.c.0.s8 %v1436
      %v1438 = vlaneseq
      %v1439 = vshrl.u32 %v1438, 7
      %v1440 = vsub.s32 %v1437, %v1439
      %v1441 = vrot.slane %v1283, %v1440
      %v1442 = vcombine.high %v1441, %v1441
      %v1444 = vunpack.c.l.s4 1966171168
      %v1445 = vunpack.c.0.s8 %v1444
      %v1446 = vlaneseq
      %v1447 = vshrl.u32 %v1446, 7
      %v1448 = vsub.s32 %v1445, %v1447
      %v1449 = vrot.slane %v1441, %v1448
      %v1451 = vunpack.c.l.s4 1966171168
      %v1452 = vunpack.c.0.s8 %v1451
      %v1453 = vlaneseq
      %v1454 = vshrl.u32 %v1453, 7
      %v1455 = vsub.s32 %v1452, %v1454
      %v1456 = vrot.slane %v1442, %v1455
      %v1457 = vcombine.high %v1449, %v1449
      %v1458 = vcombine.high %v1456, %v1456
      %v1459 = vunpack.i.h.s16 %v1305
      %v1460 = vunpack.i.l.s16 %v1312
      %v1461 = vunpack.i.h.s16 %v1312
      %v1462 = vunpack.i.l.s16 %v1313
      %v1463 = vunpack.i.h.s16 %v1313
      %v1464 = vunpack.i.l.s16 %v1314
      %v1465 = vunpack.i.h.s16 %v1314
      %v1466 = vunpack.i.h.s16 %v1329
      %v1467 = vunpack.i.l.s16 %v1336
      %v1468 = vunpack.i.h.s16 %v1336
      %v1469 = vunpack.i.l.s16 %v1337
      %v1470 = vunpack.i.h.s16 %v1337
      %v1471 = vunpack.i.l.s16 %v1338
      %v1472 = vunpack.i.h.s16 %v1338
      %v1473 = vunpack.i.h.s16 %v1353
      %v1474 = vunpack.i.l.s16 %v1360
      %v1475 = vunpack.i.h.s16 %v1360
      %v1476 = vunpack.i.l.s16 %v1361
      %v1477 = vunpack.i.h.s16 %v1361
      %v1478 = vunpack.i.l.s16 %v1362
      %v1479 = vunpack.i.h.s16 %v1362
      %v1480 = vunpack.i.h.s16 %v1377
      %v1481 = vunpack.i.l.s16 %v1384
      %v1482 = vunpack.i.h.s16 %v1384
      %v1483 = vunpack.i.l.s16 %v1385
      %v1484 = vunpack.i.h.s16 %v1385
      %v1485 = vunpack.i.l.s16 %v1386
      %v1486 = vunpack.i.h.s16 %v1386
      %v1487 = vunpack.i.h.s16 %v1401
      %v1488 = vunpack.i.l.s16 %v1408
      %v1489 = vunpack.i.h.s16 %v1408
      %v1490 = vunpack.i.l.s16 %v1409
      %v1491 = vunpack.i.h.s16 %v1409
      %v1492 = vunpack.i.l.s16 %v1410
      %v1493 = vunpack.i.h.s16 %v1410
      %v1494 = vunpack.i.h.s16 %v1425
      %v1495 = vunpack.i.l.s16 %v1432
      %v1496 = vunpack.i.h.s16 %v1432
      %v1497 = vunpack.i.l.s16 %v1433
      %v1498 = vunpack.i.h.s16 %v1433
      %v1499 = vunpack.i.l.s16 %v1434
      %v1500 = vunpack.i.h.s16 %v1434
      %v1501 = vunpack.i.h.s16 %v1449
      %v1502 = vunpack.i.l.s16 %v1456
      %v1503 = vunpack.i.h.s16 %v1456
      %v1504 = vunpack.i.l.s16 %v1457
      %v1505 = vunpack.i.h.s16 %v1457
      %v1506 = vunpack.i.l.s16 %v1458
      %v1507 = vunpack.i.h.s16 %v1458
      %s1508 = scalar_lea.vmem %s2, 4
      %v1509 = vld [vmem:[%s1508] sm:$0x3]
      %v1510 = vpack.i.b16 %v1460, %v1459
      %v1511 = vpack.i.b16 %v1462, %v1461
      %v1512 = vpack.i.b16 %v1464, %v1463
      %v1513 = vpack.i.b16 %v1466, %v1465
      %v1514 = vpack.i.b16 %v1468, %v1467
      %v1515 = vpack.i.b16 %v1470, %v1469
      %v1516 = vpack.i.b16 %v1472, %v1471
      %v1517 = vpack.i.b16 %v1474, %v1473
      %v1518 = vpack.i.b16 %v1476, %v1475
      %v1519 = vpack.i.b16 %v1478, %v1477
      %v1520 = vpack.i.b16 %v1480, %v1479
      %v1521 = vpack.i.b16 %v1482, %v1481
      %v1522 = vpack.i.b16 %v1484, %v1483
      %v1523 = vpack.i.b16 %v1486, %v1485
      %v1524 = vpack.i.b16 %v1488, %v1487
      %v1525 = vpack.i.b16 %v1490, %v1489
      %v1526 = vpack.i.b16 %v1492, %v1491
      %v1527 = vpack.i.b16 %v1494, %v1493
      %v1528 = vpack.i.b16 %v1496, %v1495
      %v1529 = vpack.i.b16 %v1498, %v1497
      %v1530 = vpack.i.b16 %v1500, %v1499
      %v1531 = vpack.i.b16 %v1502, %v1501
      %v1532 = vpack.i.b16 %v1504, %v1503
      %v1533 = vpack.i.b16 %v1506, %v1505
      %v1535 = vcombine.low %v1510, %v1511
      %v1536 = vcombine.low %v1512, %v1513
      %v1537 = vcombine.low %v1514, %v1515
      %v1538 = vcombine.low %v1516, %v1517
      %v1540 = vunpack.c.l.s4 1966171168
      %v1541 = vunpack.c.0.s8 %v1540
      %v1542 = vlaneseq
      %v1543 = vshrl.u32 %v1542, 7
      %v1544 = vsub.s32 %v1541, %v1543
      %v1545 = vrot.slane %v1535, %v1544
      %v1547 = vunpack.c.l.s4 1966171168
      %v1548 = vunpack.c.0.s8 %v1547
      %v1549 = vlaneseq
      %v1550 = vshrl.u32 %v1549, 7
      %v1551 = vsub.s32 %v1548, %v1550
      %v1552 = vrot.slane %v1536, %v1551
      %v1554 = vunpack.c.l.s4 1966171168
      %v1555 = vunpack.c.0.s8 %v1554
      %v1556 = vlaneseq
      %v1557 = vshrl.u32 %v1556, 7
      %v1558 = vsub.s32 %v1555, %v1557
      %v1559 = vrot.slane %v1537, %v1558
      %v1561 = vunpack.c.l.s4 1966171168
      %v1562 = vunpack.c.0.s8 %v1561
      %v1563 = vlaneseq
      %v1564 = vshrl.u32 %v1563, 7
      %v1565 = vsub.s32 %v1562, %v1564
      %v1566 = vrot.slane %v1538, %v1565
      %v1567 = vcombine.low %v1545, %v1552
      %v1568 = vcombine.low %v1559, %v1566
      %v1570 = vunpack.c.l.s4 1966171168
      %v1571 = vunpack.c.0.s8 %v1570
      %v1572 = vlaneseq
      %v1573 = vshrl.u32 %v1572, 7
      %v1574 = vsub.s32 %v1571, %v1573
      %v1575 = vrot.slane %v1567, %v1574
      %v1577 = vunpack.c.l.s4 1966171168
      %v1578 = vunpack.c.0.s8 %v1577
      %v1579 = vlaneseq
      %v1580 = vshrl.u32 %v1579, 7
      %v1581 = vsub.s32 %v1578, %v1580
      %v1582 = vrot.slane %v1568, %v1581
      %v1583 = vcombine.low %v1575, %v1582
      %v1584 = vcombine.low %v1518, %v1519
      %v1585 = vcombine.low %v1520, %v1521
      %v1586 = vcombine.low %v1522, %v1523
      %v1587 = vcombine.low %v1524, %v1525
      %v1589 = vunpack.c.l.s4 1966171168
      %v1590 = vunpack.c.0.s8 %v1589
      %v1591 = vlaneseq
      %v1592 = vshrl.u32 %v1591, 7
      %v1593 = vsub.s32 %v1590, %v1592
      %v1594 = vrot.slane %v1584, %v1593
      %v1596 = vunpack.c.l.s4 1966171168
      %v1597 = vunpack.c.0.s8 %v1596
      %v1598 = vlaneseq
      %v1599 = vshrl.u32 %v1598, 7
      %v1600 = vsub.s32 %v1597, %v1599
      %v1601 = vrot.slane %v1585, %v1600
      %v1603 = vunpack.c.l.s4 1966171168
      %v1604 = vunpack.c.0.s8 %v1603
      %v1605 = vlaneseq
      %v1606 = vshrl.u32 %v1605, 7
      %v1607 = vsub.s32 %v1604, %v1606
      %v1608 = vrot.slane %v1586, %v1607
      %v1610 = vunpack.c.l.s4 1966171168
      %v1611 = vunpack.c.0.s8 %v1610
      %v1612 = vlaneseq
      %v1613 = vshrl.u32 %v1612, 7
      %v1614 = vsub.s32 %v1611, %v1613
      %v1615 = vrot.slane %v1587, %v1614
      %v1616 = vcombine.low %v1594, %v1601
      %v1617 = vcombine.low %v1608, %v1615
      %v1619 = vunpack.c.l.s4 1966171168
      %v1620 = vunpack.c.0.s8 %v1619
      %v1621 = vlaneseq
      %v1622 = vshrl.u32 %v1621, 7
      %v1623 = vsub.s32 %v1620, %v1622
      %v1624 = vrot.slane %v1616, %v1623
      %v1626 = vunpack.c.l.s4 1966171168
      %v1627 = vunpack.c.0.s8 %v1626
      %v1628 = vlaneseq
      %v1629 = vshrl.u32 %v1628, 7
      %v1630 = vsub.s32 %v1627, %v1629
      %v1631 = vrot.slane %v1617, %v1630
      %v1632 = vcombine.low %v1624, %v1631
      %v1633 = vcombine.low %v1526, %v1527
      %v1634 = vcombine.low %v1528, %v1529
      %v1635 = vcombine.low %v1530, %v1531
      %v1636 = vcombine.low %v1532, %v1533
      %v1638 = vunpack.c.l.s4 1966171168
      %v1639 = vunpack.c.0.s8 %v1638
      %v1640 = vlaneseq
      %v1641 = vshrl.u32 %v1640, 7
      %v1642 = vsub.s32 %v1639, %v1641
      %v1643 = vrot.slane %v1633, %v1642
      %v1645 = vunpack.c.l.s4 1966171168
      %v1646 = vunpack.c.0.s8 %v1645
      %v1647 = vlaneseq
      %v1648 = vshrl.u32 %v1647, 7
      %v1649 = vsub.s32 %v1646, %v1648
      %v1650 = vrot.slane %v1634, %v1649
      %v1652 = vunpack.c.l.s4 1966171168
      %v1653 = vunpack.c.0.s8 %v1652
      %v1654 = vlaneseq
      %v1655 = vshrl.u32 %v1654, 7
      %v1656 = vsub.s32 %v1653, %v1655
      %v1657 = vrot.slane %v1635, %v1656
      %v1659 = vunpack.c.l.s4 1966171168
      %v1660 = vunpack.c.0.s8 %v1659
      %v1661 = vlaneseq
      %v1662 = vshrl.u32 %v1661, 7
      %v1663 = vsub.s32 %v1660, %v1662
      %v1664 = vrot.slane %v1636, %v1663
      %v1665 = vcombine.low %v1643, %v1650
      %v1666 = vcombine.low %v1657, %v1664
      %v1668 = vunpack.c.l.s4 1966171168
      %v1669 = vunpack.c.0.s8 %v1668
      %v1670 = vlaneseq
      %v1671 = vshrl.u32 %v1670, 7
      %v1672 = vsub.s32 %v1669, %v1671
      %v1673 = vrot.slane %v1665, %v1672
      %v1675 = vunpack.c.l.s4 1966171168
      %v1676 = vunpack.c.0.s8 %v1675
      %v1677 = vlaneseq
      %v1678 = vshrl.u32 %v1677, 7
      %v1679 = vsub.s32 %v1676, %v1678
      %v1680 = vrot.slane %v1666, %v1679
      %v1681 = vcombine.low %v1673, %v1680
      %v1683 = vunpack.c.l.s4 1966171168
      %v1684 = vunpack.c.0.s8 %v1683
      %v1685 = vlaneseq
      %v1686 = vshrl.u32 %v1685, 7
      %v1687 = vsub.s32 %v1684, %v1686
      %v1688 = vrot.slane %v1507, %v1687
      %v1690 = vunpack.c.l.s4 1966171168
      %v1691 = vunpack.c.0.s8 %v1690
      %v1692 = vlaneseq
      %v1693 = vshrl.u32 %v1692, 7
      %v1694 = vsub.s32 %v1691, %v1693
      %v1695 = vrot.slane %v1688, %v1694
      %v1697 = vsel %vm931, %v1583, 0
      %v1700 = vsel %vm931, %v1632, 0
      %v1703 = vsel %vm931, %v1681, 0
      %v1706 = vsel %vm931, %v1695, 0
      %v1709 = vsel %vm944, %v1509, 0
      %1711 = vmatprep.subr.bf16.mxu0 0
      %1712 = vmatpush1.bf16.msra.mxu0 0
      %1713 = vmatprep.subr.bf16.mxu0 0
      %1714 = vmatpush1.bf16.msra.mxu0 0
      %1715 = vmatprep.subr.bf16.mxu0 0
      %1716 = vmatpush1.bf16.msra.mxu0 0
      %1717 = vmatprep.subr.bf16.mxu0 0
      %1718 = vmatpush1.bf16.msra.mxu0 0
      %1719 = vmatprep.subr.bf16.mxu0 0
      %1720 = vmatpush1.bf16.msra.mxu0 0
      %1721 = vmatprep.subr.bf16.mxu0 0
      %1722 = vmatpush1.bf16.msra.mxu0 0
      %1723 = vmatprep.subr.bf16.mxu0 0
      %1724 = vmatpush1.bf16.msra.mxu0 0
      %1725 = vmatprep.subr.bf16.mxu0 0
      %1726 = vmatpush1.bf16.msra.mxu0 %v1709
      %1727 = vmatprep.subr.bf16.mxu0 0
      %1728 = vmatpush2.bf16.msra.mxu0 0
      %1729 = vmatprep.subr.bf16.mxu0 0
      %1730 = vmatpush2.bf16.msra.mxu0 0
      %1731 = vmatprep.subr.bf16.mxu0 0
      %1732 = vmatpush2.bf16.msra.mxu0 0
      %1733 = vmatprep.subr.bf16.mxu0 0
      %1734 = vmatpush2.bf16.msra.mxu0 0
      %1735 = vmatprep.subr.bf16.mxu0 0
      %1736 = vmatpush2.bf16.msra.mxu0 0
      %1737 = vmatprep.subr.bf16.mxu0 0
      %1738 = vmatpush2.bf16.msra.mxu0 0
      %1739 = vmatprep.subr.bf16.mxu0 0
      %1740 = vmatpush2.bf16.msra.mxu0 0
      %1741 = vmatprep.subr.bf16.mxu0 0
      %1742 = vmatpush2.bf16.msra.mxu0 0
      %1743 = vmatprep.mubr.bf16.mxu0 0
      %1744 = vmatmul.mubr.bf16.gmra.mxu0 %v1697
      %v1745 = vpop.f32.mrf.mxu0
      %v1746 = vadd.f32 0.0, %v1745
      %v1747 = vpop.f32.mrf.mxu0
      %v1748 = vpop.f32.mrf.mxu0
      %v1749 = vadd.f32 0.0, %v1748
      %v1750 = vpop.f32.mrf.mxu0
      %1751 = vmatprep.mubr.bf16.mxu0 0
      %1752 = vmatmul.mubr.bf16.gmra.mxu0 %v1700
      %v1753 = vpop.f32.mrf.mxu0
      %v1754 = vadd.f32 0.0, %v1753
      %v1755 = vpop.f32.mrf.mxu0
      %v1756 = vpop.f32.mrf.mxu0
      %v1757 = vadd.f32 0.0, %v1756
      %v1758 = vpop.f32.mrf.mxu0
      %1759 = vmatprep.mubr.bf16.mxu0 0
      %1760 = vmatmul.mubr.bf16.gmra.mxu0 %v1703
      %v1761 = vpop.f32.mrf.mxu0
      %v1762 = vadd.f32 0.0, %v1761
      %v1763 = vpop.f32.mrf.mxu0
      %v1764 = vpop.f32.mrf.mxu0
      %v1765 = vadd.f32 0.0, %v1764
      %v1766 = vpop.f32.mrf.mxu0
      %1767 = vmatprep.mubr.bf16.mxu0 0
      %1768 = vmatmul.mubr.bf16.gmra.mxu0 %v1706
      %v1769 = vpop.f32.mrf.mxu0
      %v1770 = vadd.f32 0.0, %v1769
      %v1771 = vpop.f32.mrf.mxu0
      %v1772 = vpop.f32.mrf.mxu0
      %v1773 = vpop.f32.mrf.mxu0
      %1774 = vdwg.mxu0
      %v1775 = vadd.f32 %v1248, %v1746
      %v1776 = vadd.f32 %v1251, %v1749
      %v1777 = vadd.f32 %v1256, %v1754
      %v1778 = vadd.f32 %v1259, %v1757
      %v1779 = vadd.f32 %v1264, %v1762
      %v1780 = vadd.f32 %v1267, %v1765
      %v1781 = vadd.f32 %v1272, %v1770
      %s1782 = scalar_lea.vmem %s252, 8
      %v1783 = vld [vmem:[%s1782] sm:$0xf]
      %v1784 = vld [vmem:[%s1782 + $0x10] sm:$0xf]
      %v1785 = vld [vmem:[%s1782 + $0x20] sm:$0xf]
      %v1786 = vld [vmem:[%s1782 + $0x30] sm:$0xf]
      %v1787 = vld [vmem:[%s1782 + $0x40] sm:$0xf]
      %v1788 = vld [vmem:[%s1782 + $0x50] sm:$0xf]
      %v1789 = vld [vmem:[%s1782 + $0x60] sm:$0xf]
      %v1798 = vunpack.c.l.s4 1966171168
      %v1799 = vunpack.c.0.s8 %v1798
      %v1800 = vlaneseq
      %v1801 = vshrl.u32 %v1800, 7
      %v1802 = vsub.s32 %v1799, %v1801
      %v1803 = vrot.slane %v1783, %v1802
      %v1804 = vcombine.high %v1803, %v1803
      %v1806 = vunpack.c.l.s4 1966171168
      %v1807 = vunpack.c.0.s8 %v1806
      %v1808 = vlaneseq
      %v1809 = vshrl.u32 %v1808, 7
      %v1810 = vsub.s32 %v1807, %v1809
      %v1811 = vrot.slane %v1803, %v1810
      %v1813 = vunpack.c.l.s4 1966171168
      %v1814 = vunpack.c.0.s8 %v1813
      %v1815 = vlaneseq
      %v1816 = vshrl.u32 %v1815, 7
      %v1817 = vsub.s32 %v1814, %v1816
      %v1818 = vrot.slane %v1804, %v1817
      %v1819 = vcombine.high %v1811, %v1811
      %v1820 = vcombine.high %v1818, %v1818
      %v1822 = vunpack.c.l.s4 1966171168
      %v1823 = vunpack.c.0.s8 %v1822
      %v1824 = vlaneseq
      %v1825 = vshrl.u32 %v1824, 7
      %v1826 = vsub.s32 %v1823, %v1825
      %v1827 = vrot.slane %v1784, %v1826
      %v1828 = vcombine.high %v1827, %v1827
      %v1830 = vunpack.c.l.s4 1966171168
      %v1831 = vunpack.c.0.s8 %v1830
      %v1832 = vlaneseq
      %v1833 = vshrl.u32 %v1832, 7
      %v1834 = vsub.s32 %v1831, %v1833
      %v1835 = vrot.slane %v1827, %v1834
      %v1837 = vunpack.c.l.s4 1966171168
      %v1838 = vunpack.c.0.s8 %v1837
      %v1839 = vlaneseq
      %v1840 = vshrl.u32 %v1839, 7
      %v1841 = vsub.s32 %v1838, %v1840
      %v1842 = vrot.slane %v1828, %v1841
      %v1843 = vcombine.high %v1835, %v1835
      %v1844 = vcombine.high %v1842, %v1842
      %v1846 = vunpack.c.l.s4 1966171168
      %v1847 = vunpack.c.0.s8 %v1846
      %v1848 = vlaneseq
      %v1849 = vshrl.u32 %v1848, 7
      %v1850 = vsub.s32 %v1847, %v1849
      %v1851 = vrot.slane %v1785, %v1850
      %v1852 = vcombine.high %v1851, %v1851
      %v1854 = vunpack.c.l.s4 1966171168
      %v1855 = vunpack.c.0.s8 %v1854
      %v1856 = vlaneseq
      %v1857 = vshrl.u32 %v1856, 7
      %v1858 = vsub.s32 %v1855, %v1857
      %v1859 = vrot.slane %v1851, %v1858
      %v1861 = vunpack.c.l.s4 1966171168
      %v1862 = vunpack.c.0.s8 %v1861
      %v1863 = vlaneseq
      %v1864 = vshrl.u32 %v1863, 7
      %v1865 = vsub.s32 %v1862, %v1864
      %v1866 = vrot.slane %v1852, %v1865
      %v1867 = vcombine.high %v1859, %v1859
      %v1868 = vcombine.high %v1866, %v1866
      %v1870 = vunpack.c.l.s4 1966171168
      %v1871 = vunpack.c.0.s8 %v1870
      %v1872 = vlaneseq
      %v1873 = vshrl.u32 %v1872, 7
      %v1874 = vsub.s32 %v1871, %v1873
      %v1875 = vrot.slane %v1786, %v1874
      %v1876 = vcombine.high %v1875, %v1875
      %v1878 = vunpack.c.l.s4 1966171168
      %v1879 = vunpack.c.0.s8 %v1878
      %v1880 = vlaneseq
      %v1881 = vshrl.u32 %v1880, 7
      %v1882 = vsub.s32 %v1879, %v1881
      %v1883 = vrot.slane %v1875, %v1882
      %v1885 = vunpack.c.l.s4 1966171168
      %v1886 = vunpack.c.0.s8 %v1885
      %v1887 = vlaneseq
      %v1888 = vshrl.u32 %v1887, 7
      %v1889 = vsub.s32 %v1886, %v1888
      %v1890 = vrot.slane %v1876, %v1889
      %v1891 = vcombine.high %v1883, %v1883
      %v1892 = vcombine.high %v1890, %v1890
      %v1894 = vunpack.c.l.s4 1966171168
      %v1895 = vunpack.c.0.s8 %v1894
      %v1896 = vlaneseq
      %v1897 = vshrl.u32 %v1896, 7
      %v1898 = vsub.s32 %v1895, %v1897
      %v1899 = vrot.slane %v1787, %v1898
      %v1900 = vcombine.high %v1899, %v1899
      %v1902 = vunpack.c.l.s4 1966171168
      %v1903 = vunpack.c.0.s8 %v1902
      %v1904 = vlaneseq
      %v1905 = vshrl.u32 %v1904, 7
      %v1906 = vsub.s32 %v1903, %v1905
      %v1907 = vrot.slane %v1899, %v1906
      %v1909 = vunpack.c.l.s4 1966171168
      %v1910 = vunpack.c.0.s8 %v1909
      %v1911 = vlaneseq
      %v1912 = vshrl.u32 %v1911, 7
      %v1913 = vsub.s32 %v1910, %v1912
      %v1914 = vrot.slane %v1900, %v1913
      %v1915 = vcombine.high %v1907, %v1907
      %v1916 = vcombine.high %v1914, %v1914
      %v1918 = vunpack.c.l.s4 1966171168
      %v1919 = vunpack.c.0.s8 %v1918
      %v1920 = vlaneseq
      %v1921 = vshrl.u32 %v1920, 7
      %v1922 = vsub.s32 %v1919, %v1921
      %v1923 = vrot.slane %v1788, %v1922
      %v1924 = vcombine.high %v1923, %v1923
      %v1926 = vunpack.c.l.s4 1966171168
      %v1927 = vunpack.c.0.s8 %v1926
      %v1928 = vlaneseq
      %v1929 = vshrl.u32 %v1928, 7
      %v1930 = vsub.s32 %v1927, %v1929
      %v1931 = vrot.slane %v1923, %v1930
      %v1933 = vunpack.c.l.s4 1966171168
      %v1934 = vunpack.c.0.s8 %v1933
      %v1935 = vlaneseq
      %v1936 = vshrl.u32 %v1935, 7
      %v1937 = vsub.s32 %v1934, %v1936
      %v1938 = vrot.slane %v1924, %v1937
      %v1939 = vcombine.high %v1931, %v1931
      %v1940 = vcombine.high %v1938, %v1938
      %v1942 = vunpack.c.l.s4 1966171168
      %v1943 = vunpack.c.0.s8 %v1942
      %v1944 = vlaneseq
      %v1945 = vshrl.u32 %v1944, 7
      %v1946 = vsub.s32 %v1943, %v1945
      %v1947 = vrot.slane %v1789, %v1946
      %v1948 = vcombine.high %v1947, %v1947
      %v1950 = vunpack.c.l.s4 1966171168
      %v1951 = vunpack.c.0.s8 %v1950
      %v1952 = vlaneseq
      %v1953 = vshrl.u32 %v1952, 7
      %v1954 = vsub.s32 %v1951, %v1953
      %v1955 = vrot.slane %v1947, %v1954
      %v1957 = vunpack.c.l.s4 1966171168
      %v1958 = vunpack.c.0.s8 %v1957
      %v1959 = vlaneseq
      %v1960 = vshrl.u32 %v1959, 7
      %v1961 = vsub.s32 %v1958, %v1960
      %v1962 = vrot.slane %v1948, %v1961
      %v1963 = vcombine.high %v1955, %v1955
      %v1964 = vcombine.high %v1962, %v1962
      %v1965 = vunpack.i.l.s16 %v1811
      %v1966 = vunpack.i.h.s16 %v1811
      %v1967 = vunpack.i.l.s16 %v1818
      %v1968 = vunpack.i.h.s16 %v1818
      %v1969 = vunpack.i.l.s16 %v1819
      %v1970 = vunpack.i.h.s16 %v1819
      %v1971 = vunpack.i.l.s16 %v1820
      %v1972 = vunpack.i.l.s16 %v1835
      %v1973 = vunpack.i.h.s16 %v1835
      %v1974 = vunpack.i.l.s16 %v1842
      %v1975 = vunpack.i.h.s16 %v1842
      %v1976 = vunpack.i.l.s16 %v1843
      %v1977 = vunpack.i.h.s16 %v1843
      %v1978 = vunpack.i.l.s16 %v1844
      %v1979 = vunpack.i.l.s16 %v1859
      %v1980 = vunpack.i.h.s16 %v1859
      %v1981 = vunpack.i.l.s16 %v1866
      %v1982 = vunpack.i.h.s16 %v1866
      %v1983 = vunpack.i.l.s16 %v1867
      %v1984 = vunpack.i.h.s16 %v1867
      %v1985 = vunpack.i.l.s16 %v1868
      %v1986 = vunpack.i.l.s16 %v1883
      %v1987 = vunpack.i.h.s16 %v1883
      %v1988 = vunpack.i.l.s16 %v1890
      %v1989 = vunpack.i.h.s16 %v1890
      %v1990 = vunpack.i.l.s16 %v1891
      %v1991 = vunpack.i.h.s16 %v1891
      %v1992 = vunpack.i.l.s16 %v1892
      %v1993 = vunpack.i.l.s16 %v1907
      %v1994 = vunpack.i.h.s16 %v1907
      %v1995 = vunpack.i.l.s16 %v1914
      %v1996 = vunpack.i.h.s16 %v1914
      %v1997 = vunpack.i.l.s16 %v1915
      %v1998 = vunpack.i.h.s16 %v1915
      %v1999 = vunpack.i.l.s16 %v1916
      %v2000 = vunpack.i.l.s16 %v1931
      %v2001 = vunpack.i.h.s16 %v1931
      %v2002 = vunpack.i.l.s16 %v1938
      %v2003 = vunpack.i.h.s16 %v1938
      %v2004 = vunpack.i.l.s16 %v1939
      %v2005 = vunpack.i.h.s16 %v1939
      %v2006 = vunpack.i.l.s16 %v1940
      %v2007 = vunpack.i.l.s16 %v1955
      %v2008 = vunpack.i.h.s16 %v1955
      %v2009 = vunpack.i.l.s16 %v1962
      %v2010 = vunpack.i.h.s16 %v1962
      %v2011 = vunpack.i.l.s16 %v1963
      %v2012 = vunpack.i.h.s16 %v1963
      %v2013 = vunpack.i.l.s16 %v1964
      %s2014 = scalar_lea.vmem %s2, 6
      %v2015 = vld [vmem:[%s2014] sm:$0x3]
      %v2016 = vpack.i.b16 %v1966, %v1965
      %v2017 = vpack.i.b16 %v1968, %v1967
      %v2018 = vpack.i.b16 %v1970, %v1969
      %v2019 = vpack.i.b16 %v1972, %v1971
      %v2020 = vpack.i.b16 %v1974, %v1973
      %v2021 = vpack.i.b16 %v1976, %v1975
      %v2022 = vpack.i.b16 %v1978, %v1977
      %v2023 = vpack.i.b16 %v1980, %v1979
      %v2024 = vpack.i.b16 %v1982, %v1981
      %v2025 = vpack.i.b16 %v1984, %v1983
      %v2026 = vpack.i.b16 %v1986, %v1985
      %v2027 = vpack.i.b16 %v1988, %v1987
      %v2028 = vpack.i.b16 %v1990, %v1989
      %v2029 = vpack.i.b16 %v1992, %v1991
      %v2030 = vpack.i.b16 %v1994, %v1993
      %v2031 = vpack.i.b16 %v1996, %v1995
      %v2032 = vpack.i.b16 %v1998, %v1997
      %v2033 = vpack.i.b16 %v2000, %v1999
      %v2034 = vpack.i.b16 %v2002, %v2001
      %v2035 = vpack.i.b16 %v2004, %v2003
      %v2036 = vpack.i.b16 %v2006, %v2005
      %v2037 = vpack.i.b16 %v2008, %v2007
      %v2038 = vpack.i.b16 %v2010, %v2009
      %v2039 = vpack.i.b16 %v2012, %v2011
      %v2041 = vcombine.low %v2016, %v2017
      %v2042 = vcombine.low %v2018, %v2019
      %v2043 = vcombine.low %v2020, %v2021
      %v2044 = vcombine.low %v2022, %v2023
      %v2046 = vunpack.c.l.s4 1966171168
      %v2047 = vunpack.c.0.s8 %v2046
      %v2048 = vlaneseq
      %v2049 = vshrl.u32 %v2048, 7
      %v2050 = vsub.s32 %v2047, %v2049
      %v2051 = vrot.slane %v2041, %v2050
      %v2053 = vunpack.c.l.s4 1966171168
      %v2054 = vunpack.c.0.s8 %v2053
      %v2055 = vlaneseq
      %v2056 = vshrl.u32 %v2055, 7
      %v2057 = vsub.s32 %v2054, %v2056
      %v2058 = vrot.slane %v2042, %v2057
      %v2060 = vunpack.c.l.s4 1966171168
      %v2061 = vunpack.c.0.s8 %v2060
      %v2062 = vlaneseq
      %v2063 = vshrl.u32 %v2062, 7
      %v2064 = vsub.s32 %v2061, %v2063
      %v2065 = vrot.slane %v2043, %v2064
      %v2067 = vunpack.c.l.s4 1966171168
      %v2068 = vunpack.c.0.s8 %v2067
      %v2069 = vlaneseq
      %v2070 = vshrl.u32 %v2069, 7
      %v2071 = vsub.s32 %v2068, %v2070
      %v2072 = vrot.slane %v2044, %v2071
      %v2073 = vcombine.low %v2051, %v2058
      %v2074 = vcombine.low %v2065, %v2072
      %v2076 = vunpack.c.l.s4 1966171168
      %v2077 = vunpack.c.0.s8 %v2076
      %v2078 = vlaneseq
      %v2079 = vshrl.u32 %v2078, 7
      %v2080 = vsub.s32 %v2077, %v2079
      %v2081 = vrot.slane %v2073, %v2080
      %v2083 = vunpack.c.l.s4 1966171168
      %v2084 = vunpack.c.0.s8 %v2083
      %v2085 = vlaneseq
      %v2086 = vshrl.u32 %v2085, 7
      %v2087 = vsub.s32 %v2084, %v2086
      %v2088 = vrot.slane %v2074, %v2087
      %v2089 = vcombine.low %v2081, %v2088
      %v2090 = vcombine.low %v2024, %v2025
      %v2091 = vcombine.low %v2026, %v2027
      %v2092 = vcombine.low %v2028, %v2029
      %v2093 = vcombine.low %v2030, %v2031
      %v2095 = vunpack.c.l.s4 1966171168
      %v2096 = vunpack.c.0.s8 %v2095
      %v2097 = vlaneseq
      %v2098 = vshrl.u32 %v2097, 7
      %v2099 = vsub.s32 %v2096, %v2098
      %v2100 = vrot.slane %v2090, %v2099
      %v2102 = vunpack.c.l.s4 1966171168
      %v2103 = vunpack.c.0.s8 %v2102
      %v2104 = vlaneseq
      %v2105 = vshrl.u32 %v2104, 7
      %v2106 = vsub.s32 %v2103, %v2105
      %v2107 = vrot.slane %v2091, %v2106
      %v2109 = vunpack.c.l.s4 1966171168
      %v2110 = vunpack.c.0.s8 %v2109
      %v2111 = vlaneseq
      %v2112 = vshrl.u32 %v2111, 7
      %v2113 = vsub.s32 %v2110, %v2112
      %v2114 = vrot.slane %v2092, %v2113
      %v2116 = vunpack.c.l.s4 1966171168
      %v2117 = vunpack.c.0.s8 %v2116
      %v2118 = vlaneseq
      %v2119 = vshrl.u32 %v2118, 7
      %v2120 = vsub.s32 %v2117, %v2119
      %v2121 = vrot.slane %v2093, %v2120
      %v2122 = vcombine.low %v2100, %v2107
      %v2123 = vcombine.low %v2114, %v2121
      %v2125 = vunpack.c.l.s4 1966171168
      %v2126 = vunpack.c.0.s8 %v2125
      %v2127 = vlaneseq
      %v2128 = vshrl.u32 %v2127, 7
      %v2129 = vsub.s32 %v2126, %v2128
      %v2130 = vrot.slane %v2122, %v2129
      %v2132 = vunpack.c.l.s4 1966171168
      %v2133 = vunpack.c.0.s8 %v2132
      %v2134 = vlaneseq
      %v2135 = vshrl.u32 %v2134, 7
      %v2136 = vsub.s32 %v2133, %v2135
      %v2137 = vrot.slane %v2123, %v2136
      %v2138 = vcombine.low %v2130, %v2137
      %v2139 = vcombine.low %v2032, %v2033
      %v2140 = vcombine.low %v2034, %v2035
      %v2141 = vcombine.low %v2036, %v2037
      %v2142 = vcombine.low %v2038, %v2039
      %v2144 = vunpack.c.l.s4 1966171168
      %v2145 = vunpack.c.0.s8 %v2144
      %v2146 = vlaneseq
      %v2147 = vshrl.u32 %v2146, 7
      %v2148 = vsub.s32 %v2145, %v2147
      %v2149 = vrot.slane %v2139, %v2148
      %v2151 = vunpack.c.l.s4 1966171168
      %v2152 = vunpack.c.0.s8 %v2151
      %v2153 = vlaneseq
      %v2154 = vshrl.u32 %v2153, 7
      %v2155 = vsub.s32 %v2152, %v2154
      %v2156 = vrot.slane %v2140, %v2155
      %v2158 = vunpack.c.l.s4 1966171168
      %v2159 = vunpack.c.0.s8 %v2158
      %v2160 = vlaneseq
      %v2161 = vshrl.u32 %v2160, 7
      %v2162 = vsub.s32 %v2159, %v2161
      %v2163 = vrot.slane %v2141, %v2162
      %v2165 = vunpack.c.l.s4 1966171168
      %v2166 = vunpack.c.0.s8 %v2165
      %v2167 = vlaneseq
      %v2168 = vshrl.u32 %v2167, 7
      %v2169 = vsub.s32 %v2166, %v2168
      %v2170 = vrot.slane %v2142, %v2169
      %v2171 = vcombine.low %v2149, %v2156
      %v2172 = vcombine.low %v2163, %v2170
      %v2174 = vunpack.c.l.s4 1966171168
      %v2175 = vunpack.c.0.s8 %v2174
      %v2176 = vlaneseq
      %v2177 = vshrl.u32 %v2176, 7
      %v2178 = vsub.s32 %v2175, %v2177
      %v2179 = vrot.slane %v2171, %v2178
      %v2181 = vunpack.c.l.s4 1966171168
      %v2182 = vunpack.c.0.s8 %v2181
      %v2183 = vlaneseq
      %v2184 = vshrl.u32 %v2183, 7
      %v2185 = vsub.s32 %v2182, %v2184
      %v2186 = vrot.slane %v2172, %v2185
      %v2187 = vcombine.low %v2179, %v2186
      %v2189 = vunpack.c.l.s4 1966171168
      %v2190 = vunpack.c.0.s8 %v2189
      %v2191 = vlaneseq
      %v2192 = vshrl.u32 %v2191, 7
      %v2193 = vsub.s32 %v2190, %v2192
      %v2194 = vrot.slane %v2013, %v2193
      %v2196 = vunpack.c.l.s4 1966171168
      %v2197 = vunpack.c.0.s8 %v2196
      %v2198 = vlaneseq
      %v2199 = vshrl.u32 %v2198, 7
      %v2200 = vsub.s32 %v2197, %v2199
      %v2201 = vrot.slane %v2194, %v2200
      %v2203 = vsel %vm931, %v2089, 0
      %v2206 = vsel %vm931, %v2138, 0
      %v2209 = vsel %vm931, %v2187, 0
      %v2212 = vsel %vm931, %v2201, 0
      %v2215 = vsel %vm944, %v2015, 0
      %2217 = vmatprep.subr.bf16.mxu0 0
      %2218 = vmatpush1.bf16.msra.mxu0 0
      %2219 = vmatprep.subr.bf16.mxu0 0
      %2220 = vmatpush1.bf16.msra.mxu0 0
      %2221 = vmatprep.subr.bf16.mxu0 0
      %2222 = vmatpush1.bf16.msra.mxu0 0
      %2223 = vmatprep.subr.bf16.mxu0 0
      %2224 = vmatpush1.bf16.msra.mxu0 0
      %2225 = vmatprep.subr.bf16.mxu0 0
      %2226 = vmatpush1.bf16.msra.mxu0 0
      %2227 = vmatprep.subr.bf16.mxu0 0
      %2228 = vmatpush1.bf16.msra.mxu0 0
      %2229 = vmatprep.subr.bf16.mxu0 0
      %2230 = vmatpush1.bf16.msra.mxu0 0
      %2231 = vmatprep.subr.bf16.mxu0 0
      %2232 = vmatpush1.bf16.msra.mxu0 %v2215
      %2233 = vmatprep.subr.bf16.mxu0 0
      %2234 = vmatpush2.bf16.msra.mxu0 0
      %2235 = vmatprep.subr.bf16.mxu0 0
      %2236 = vmatpush2.bf16.msra.mxu0 0
      %2237 = vmatprep.subr.bf16.mxu0 0
      %2238 = vmatpush2.bf16.msra.mxu0 0
      %2239 = vmatprep.subr.bf16.mxu0 0
      %2240 = vmatpush2.bf16.msra.mxu0 0
      %2241 = vmatprep.subr.bf16.mxu0 0
      %2242 = vmatpush2.bf16.msra.mxu0 0
      %2243 = vmatprep.subr.bf16.mxu0 0
      %2244 = vmatpush2.bf16.msra.mxu0 0
      %2245 = vmatprep.subr.bf16.mxu0 0
      %2246 = vmatpush2.bf16.msra.mxu0 0
      %2247 = vmatprep.subr.bf16.mxu0 0
      %2248 = vmatpush2.bf16.msra.mxu0 0
      %2249 = vmatprep.mubr.bf16.mxu0 0
      %2250 = vmatmul.mubr.bf16.gmra.mxu0 %v2203
      %v2251 = vpop.f32.mrf.mxu0
      %v2252 = vadd.f32 0.0, %v2251
      %v2253 = vpop.f32.mrf.mxu0
      %v2254 = vpop.f32.mrf.mxu0
      %v2255 = vadd.f32 0.0, %v2254
      %v2256 = vpop.f32.mrf.mxu0
      %2257 = vmatprep.mubr.bf16.mxu0 0
      %2258 = vmatmul.mubr.bf16.gmra.mxu0 %v2206
      %v2259 = vpop.f32.mrf.mxu0
      %v2260 = vadd.f32 0.0, %v2259
      %v2261 = vpop.f32.mrf.mxu0
      %v2262 = vpop.f32.mrf.mxu0
      %v2263 = vadd.f32 0.0, %v2262
      %v2264 = vpop.f32.mrf.mxu0
      %2265 = vmatprep.mubr.bf16.mxu0 0
      %2266 = vmatmul.mubr.bf16.gmra.mxu0 %v2209
      %v2267 = vpop.f32.mrf.mxu0
      %v2268 = vadd.f32 0.0, %v2267
      %v2269 = vpop.f32.mrf.mxu0
      %v2270 = vpop.f32.mrf.mxu0
      %v2271 = vadd.f32 0.0, %v2270
      %v2272 = vpop.f32.mrf.mxu0
      %2273 = vmatprep.mubr.bf16.mxu0 0
      %2274 = vmatmul.mubr.bf16.gmra.mxu0 %v2212
      %v2275 = vpop.f32.mrf.mxu0
      %v2276 = vadd.f32 0.0, %v2275
      %v2277 = vpop.f32.mrf.mxu0
      %v2278 = vpop.f32.mrf.mxu0
      %v2279 = vpop.f32.mrf.mxu0
      %2280 = vdwg.mxu0
      %v2281 = vadd.f32 %v1775, %v2252
      %v2282 = vadd.f32 %v1776, %v2255
      %v2283 = vadd.f32 %v1777, %v2260
      %v2284 = vadd.f32 %v1778, %v2263
      %v2285 = vadd.f32 %v1779, %v2268
      %v2286 = vadd.f32 %v1780, %v2271
      %v2287 = vadd.f32 %v1781, %v2276
      %s2288 = scalar_lea.vmem %s252, 12
      %v2289 = vld [vmem:[%s2288] sm:$0xf]
      %v2290 = vld [vmem:[%s2288 + $0x10] sm:$0xf]
      %v2291 = vld [vmem:[%s2288 + $0x20] sm:$0xf]
      %v2292 = vld [vmem:[%s2288 + $0x30] sm:$0xf]
      %v2293 = vld [vmem:[%s2288 + $0x40] sm:$0xf]
      %v2294 = vld [vmem:[%s2288 + $0x50] sm:$0xf]
      %v2295 = vld [vmem:[%s2288 + $0x60] sm:$0xf]
      %v2304 = vunpack.c.l.s4 1966171168
      %v2305 = vunpack.c.0.s8 %v2304
      %v2306 = vlaneseq
      %v2307 = vshrl.u32 %v2306, 7
      %v2308 = vsub.s32 %v2305, %v2307
      %v2309 = vrot.slane %v2289, %v2308
      %v2310 = vcombine.high %v2309, %v2309
      %v2312 = vunpack.c.l.s4 1966171168
      %v2313 = vunpack.c.0.s8 %v2312
      %v2314 = vlaneseq
      %v2315 = vshrl.u32 %v2314, 7
      %v2316 = vsub.s32 %v2313, %v2315
      %v2317 = vrot.slane %v2309, %v2316
      %v2319 = vunpack.c.l.s4 1966171168
      %v2320 = vunpack.c.0.s8 %v2319
      %v2321 = vlaneseq
      %v2322 = vshrl.u32 %v2321, 7
      %v2323 = vsub.s32 %v2320, %v2322
      %v2324 = vrot.slane %v2310, %v2323
      %v2325 = vcombine.high %v2317, %v2317
      %v2326 = vcombine.high %v2324, %v2324
      %v2328 = vunpack.c.l.s4 1966171168
      %v2329 = vunpack.c.0.s8 %v2328
      %v2330 = vlaneseq
      %v2331 = vshrl.u32 %v2330, 7
      %v2332 = vsub.s32 %v2329, %v2331
      %v2333 = vrot.slane %v2290, %v2332
      %v2334 = vcombine.high %v2333, %v2333
      %v2336 = vunpack.c.l.s4 1966171168
      %v2337 = vunpack.c.0.s8 %v2336
      %v2338 = vlaneseq
      %v2339 = vshrl.u32 %v2338, 7
      %v2340 = vsub.s32 %v2337, %v2339
      %v2341 = vrot.slane %v2333, %v2340
      %v2343 = vunpack.c.l.s4 1966171168
      %v2344 = vunpack.c.0.s8 %v2343
      %v2345 = vlaneseq
      %v2346 = vshrl.u32 %v2345, 7
      %v2347 = vsub.s32 %v2344, %v2346
      %v2348 = vrot.slane %v2334, %v2347
      %v2349 = vcombine.high %v2341, %v2341
      %v2350 = vcombine.high %v2348, %v2348
      %v2352 = vunpack.c.l.s4 1966171168
      %v2353 = vunpack.c.0.s8 %v2352
      %v2354 = vlaneseq
      %v2355 = vshrl.u32 %v2354, 7
      %v2356 = vsub.s32 %v2353, %v2355
      %v2357 = vrot.slane %v2291, %v2356
      %v2358 = vcombine.high %v2357, %v2357
      %v2360 = vunpack.c.l.s4 1966171168
      %v2361 = vunpack.c.0.s8 %v2360
      %v2362 = vlaneseq
      %v2363 = vshrl.u32 %v2362, 7
      %v2364 = vsub.s32 %v2361, %v2363
      %v2365 = vrot.slane %v2357, %v2364
      %v2367 = vunpack.c.l.s4 1966171168
      %v2368 = vunpack.c.0.s8 %v2367
      %v2369 = vlaneseq
      %v2370 = vshrl.u32 %v2369, 7
      %v2371 = vsub.s32 %v2368, %v2370
      %v2372 = vrot.slane %v2358, %v2371
      %v2373 = vcombine.high %v2365, %v2365
      %v2374 = vcombine.high %v2372, %v2372
      %v2376 = vunpack.c.l.s4 1966171168
      %v2377 = vunpack.c.0.s8 %v2376
      %v2378 = vlaneseq
      %v2379 = vshrl.u32 %v2378, 7
      %v2380 = vsub.s32 %v2377, %v2379
      %v2381 = vrot.slane %v2292, %v2380
      %v2382 = vcombine.high %v2381, %v2381
      %v2384 = vunpack.c.l.s4 1966171168
      %v2385 = vunpack.c.0.s8 %v2384
      %v2386 = vlaneseq
      %v2387 = vshrl.u32 %v2386, 7
      %v2388 = vsub.s32 %v2385, %v2387
      %v2389 = vrot.slane %v2381, %v2388
      %v2391 = vunpack.c.l.s4 1966171168
      %v2392 = vunpack.c.0.s8 %v2391
      %v2393 = vlaneseq
      %v2394 = vshrl.u32 %v2393, 7
      %v2395 = vsub.s32 %v2392, %v2394
      %v2396 = vrot.slane %v2382, %v2395
      %v2397 = vcombine.high %v2389, %v2389
      %v2398 = vcombine.high %v2396, %v2396
      %v2400 = vunpack.c.l.s4 1966171168
      %v2401 = vunpack.c.0.s8 %v2400
      %v2402 = vlaneseq
      %v2403 = vshrl.u32 %v2402, 7
      %v2404 = vsub.s32 %v2401, %v2403
      %v2405 = vrot.slane %v2293, %v2404
      %v2406 = vcombine.high %v2405, %v2405
      %v2408 = vunpack.c.l.s4 1966171168
      %v2409 = vunpack.c.0.s8 %v2408
      %v2410 = vlaneseq
      %v2411 = vshrl.u32 %v2410, 7
      %v2412 = vsub.s32 %v2409, %v2411
      %v2413 = vrot.slane %v2405, %v2412
      %v2415 = vunpack.c.l.s4 1966171168
      %v2416 = vunpack.c.0.s8 %v2415
      %v2417 = vlaneseq
      %v2418 = vshrl.u32 %v2417, 7
      %v2419 = vsub.s32 %v2416, %v2418
      %v2420 = vrot.slane %v2406, %v2419
      %v2421 = vcombine.high %v2413, %v2413
      %v2422 = vcombine.high %v2420, %v2420
      %v2424 = vunpack.c.l.s4 1966171168
      %v2425 = vunpack.c.0.s8 %v2424
      %v2426 = vlaneseq
      %v2427 = vshrl.u32 %v2426, 7
      %v2428 = vsub.s32 %v2425, %v2427
      %v2429 = vrot.slane %v2294, %v2428
      %v2430 = vcombine.high %v2429, %v2429
      %v2432 = vunpack.c.l.s4 1966171168
      %v2433 = vunpack.c.0.s8 %v2432
      %v2434 = vlaneseq
      %v2435 = vshrl.u32 %v2434, 7
      %v2436 = vsub.s32 %v2433, %v2435
      %v2437 = vrot.slane %v2429, %v2436
      %v2439 = vunpack.c.l.s4 1966171168
      %v2440 = vunpack.c.0.s8 %v2439
      %v2441 = vlaneseq
      %v2442 = vshrl.u32 %v2441, 7
      %v2443 = vsub.s32 %v2440, %v2442
      %v2444 = vrot.slane %v2430, %v2443
      %v2445 = vcombine.high %v2437, %v2437
      %v2446 = vcombine.high %v2444, %v2444
      %v2448 = vunpack.c.l.s4 1966171168
      %v2449 = vunpack.c.0.s8 %v2448
      %v2450 = vlaneseq
      %v2451 = vshrl.u32 %v2450, 7
      %v2452 = vsub.s32 %v2449, %v2451
      %v2453 = vrot.slane %v2295, %v2452
      %v2454 = vcombine.high %v2453, %v2453
      %v2456 = vunpack.c.l.s4 1966171168
      %v2457 = vunpack.c.0.s8 %v2456
      %v2458 = vlaneseq
      %v2459 = vshrl.u32 %v2458, 7
      %v2460 = vsub.s32 %v2457, %v2459
      %v2461 = vrot.slane %v2453, %v2460
      %v2463 = vunpack.c.l.s4 1966171168
      %v2464 = vunpack.c.0.s8 %v2463
      %v2465 = vlaneseq
      %v2466 = vshrl.u32 %v2465, 7
      %v2467 = vsub.s32 %v2464, %v2466
      %v2468 = vrot.slane %v2454, %v2467
      %v2469 = vcombine.high %v2461, %v2461
      %v2470 = vcombine.high %v2468, %v2468
      %v2471 = vunpack.i.l.s16 %v2317
      %v2472 = vunpack.i.h.s16 %v2317
      %v2473 = vunpack.i.l.s16 %v2324
      %v2474 = vunpack.i.h.s16 %v2324
      %v2475 = vunpack.i.l.s16 %v2325
      %v2476 = vunpack.i.h.s16 %v2325
      %v2477 = vunpack.i.l.s16 %v2326
      %v2478 = vunpack.i.l.s16 %v2341
      %v2479 = vunpack.i.h.s16 %v2341
      %v2480 = vunpack.i.l.s16 %v2348
      %v2481 = vunpack.i.h.s16 %v2348
      %v2482 = vunpack.i.l.s16 %v2349
      %v2483 = vunpack.i.h.s16 %v2349
      %v2484 = vunpack.i.l.s16 %v2350
      %v2485 = vunpack.i.l.s16 %v2365
      %v2486 = vunpack.i.h.s16 %v2365
      %v2487 = vunpack.i.l.s16 %v2372
      %v2488 = vunpack.i.h.s16 %v2372
      %v2489 = vunpack.i.l.s16 %v2373
      %v2490 = vunpack.i.h.s16 %v2373
      %v2491 = vunpack.i.l.s16 %v2374
      %v2492 = vunpack.i.l.s16 %v2389
      %v2493 = vunpack.i.h.s16 %v2389
      %v2494 = vunpack.i.l.s16 %v2396
      %v2495 = vunpack.i.h.s16 %v2396
      %v2496 = vunpack.i.l.s16 %v2397
      %v2497 = vunpack.i.h.s16 %v2397
      %v2498 = vunpack.i.l.s16 %v2398
      %v2499 = vunpack.i.l.s16 %v2413
      %v2500 = vunpack.i.h.s16 %v2413
      %v2501 = vunpack.i.l.s16 %v2420
      %v2502 = vunpack.i.h.s16 %v2420
      %v2503 = vunpack.i.l.s16 %v2421
      %v2504 = vunpack.i.h.s16 %v2421
      %v2505 = vunpack.i.l.s16 %v2422
      %v2506 = vunpack.i.l.s16 %v2437
      %v2507 = vunpack.i.h.s16 %v2437
      %v2508 = vunpack.i.l.s16 %v2444
      %v2509 = vunpack.i.h.s16 %v2444
      %v2510 = vunpack.i.l.s16 %v2445
      %v2511 = vunpack.i.h.s16 %v2445
      %v2512 = vunpack.i.l.s16 %v2446
      %v2513 = vunpack.i.l.s16 %v2461
      %v2514 = vunpack.i.h.s16 %v2461
      %v2515 = vunpack.i.l.s16 %v2468
      %v2516 = vunpack.i.h.s16 %v2468
      %v2517 = vunpack.i.l.s16 %v2469
      %v2518 = vunpack.i.h.s16 %v2469
      %v2519 = vunpack.i.l.s16 %v2470
      %s2520 = scalar_lea.vmem %s2, 8
      %v2521 = vld [vmem:[%s2520] sm:$0x3]
      %v2522 = vpack.i.b16 %v2472, %v2471
      %v2523 = vpack.i.b16 %v2474, %v2473
      %v2524 = vpack.i.b16 %v2476, %v2475
      %v2525 = vpack.i.b16 %v2478, %v2477
      %v2526 = vpack.i.b16 %v2480, %v2479
      %v2527 = vpack.i.b16 %v2482, %v2481
      %v2528 = vpack.i.b16 %v2484, %v2483
      %v2529 = vpack.i.b16 %v2486, %v2485
      %v2530 = vpack.i.b16 %v2488, %v2487
      %v2531 = vpack.i.b16 %v2490, %v2489
      %v2532 = vpack.i.b16 %v2492, %v2491
      %v2533 = vpack.i.b16 %v2494, %v2493
      %v2534 = vpack.i.b16 %v2496, %v2495
      %v2535 = vpack.i.b16 %v2498, %v2497
      %v2536 = vpack.i.b16 %v2500, %v2499
      %v2537 = vpack.i.b16 %v2502, %v2501
      %v2538 = vpack.i.b16 %v2504, %v2503
      %v2539 = vpack.i.b16 %v2506, %v2505
      %v2540 = vpack.i.b16 %v2508, %v2507
      %v2541 = vpack.i.b16 %v2510, %v2509
      %v2542 = vpack.i.b16 %v2512, %v2511
      %v2543 = vpack.i.b16 %v2514, %v2513
      %v2544 = vpack.i.b16 %v2516, %v2515
      %v2545 = vpack.i.b16 %v2518, %v2517
      %v2547 = vcombine.low %v2522, %v2523
      %v2548 = vcombine.low %v2524, %v2525
      %v2549 = vcombine.low %v2526, %v2527
      %v2550 = vcombine.low %v2528, %v2529
      %v2552 = vunpack.c.l.s4 1966171168
      %v2553 = vunpack.c.0.s8 %v2552
      %v2554 = vlaneseq
      %v2555 = vshrl.u32 %v2554, 7
      %v2556 = vsub.s32 %v2553, %v2555
      %v2557 = vrot.slane %v2547, %v2556
      %v2559 = vunpack.c.l.s4 1966171168
      %v2560 = vunpack.c.0.s8 %v2559
      %v2561 = vlaneseq
      %v2562 = vshrl.u32 %v2561, 7
      %v2563 = vsub.s32 %v2560, %v2562
      %v2564 = vrot.slane %v2548, %v2563
      %v2566 = vunpack.c.l.s4 1966171168
      %v2567 = vunpack.c.0.s8 %v2566
      %v2568 = vlaneseq
      %v2569 = vshrl.u32 %v2568, 7
      %v2570 = vsub.s32 %v2567, %v2569
      %v2571 = vrot.slane %v2549, %v2570
      %v2573 = vunpack.c.l.s4 1966171168
      %v2574 = vunpack.c.0.s8 %v2573
      %v2575 = vlaneseq
      %v2576 = vshrl.u32 %v2575, 7
      %v2577 = vsub.s32 %v2574, %v2576
      %v2578 = vrot.slane %v2550, %v2577
      %v2579 = vcombine.low %v2557, %v2564
      %v2580 = vcombine.low %v2571, %v2578
      %v2582 = vunpack.c.l.s4 1966171168
      %v2583 = vunpack.c.0.s8 %v2582
      %v2584 = vlaneseq
      %v2585 = vshrl.u32 %v2584, 7
      %v2586 = vsub.s32 %v2583, %v2585
      %v2587 = vrot.slane %v2579, %v2586
      %v2589 = vunpack.c.l.s4 1966171168
      %v2590 = vunpack.c.0.s8 %v2589
      %v2591 = vlaneseq
      %v2592 = vshrl.u32 %v2591, 7
      %v2593 = vsub.s32 %v2590, %v2592
      %v2594 = vrot.slane %v2580, %v2593
      %v2595 = vcombine.low %v2587, %v2594
      %v2596 = vcombine.low %v2530, %v2531
      %v2597 = vcombine.low %v2532, %v2533
      %v2598 = vcombine.low %v2534, %v2535
      %v2599 = vcombine.low %v2536, %v2537
      %v2601 = vunpack.c.l.s4 1966171168
      %v2602 = vunpack.c.0.s8 %v2601
      %v2603 = vlaneseq
      %v2604 = vshrl.u32 %v2603, 7
      %v2605 = vsub.s32 %v2602, %v2604
      %v2606 = vrot.slane %v2596, %v2605
      %v2608 = vunpack.c.l.s4 1966171168
      %v2609 = vunpack.c.0.s8 %v2608
      %v2610 = vlaneseq
      %v2611 = vshrl.u32 %v2610, 7
      %v2612 = vsub.s32 %v2609, %v2611
      %v2613 = vrot.slane %v2597, %v2612
      %v2615 = vunpack.c.l.s4 1966171168
      %v2616 = vunpack.c.0.s8 %v2615
      %v2617 = vlaneseq
      %v2618 = vshrl.u32 %v2617, 7
      %v2619 = vsub.s32 %v2616, %v2618
      %v2620 = vrot.slane %v2598, %v2619
      %v2622 = vunpack.c.l.s4 1966171168
      %v2623 = vunpack.c.0.s8 %v2622
      %v2624 = vlaneseq
      %v2625 = vshrl.u32 %v2624, 7
      %v2626 = vsub.s32 %v2623, %v2625
      %v2627 = vrot.slane %v2599, %v2626
      %v2628 = vcombine.low %v2606, %v2613
      %v2629 = vcombine.low %v2620, %v2627
      %v2631 = vunpack.c.l.s4 1966171168
      %v2632 = vunpack.c.0.s8 %v2631
      %v2633 = vlaneseq
      %v2634 = vshrl.u32 %v2633, 7
      %v2635 = vsub.s32 %v2632, %v2634
      %v2636 = vrot.slane %v2628, %v2635
      %v2638 = vunpack.c.l.s4 1966171168
      %v2639 = vunpack.c.0.s8 %v2638
      %v2640 = vlaneseq
      %v2641 = vshrl.u32 %v2640, 7
      %v2642 = vsub.s32 %v2639, %v2641
      %v2643 = vrot.slane %v2629, %v2642
      %v2644 = vcombine.low %v2636, %v2643
      %v2645 = vcombine.low %v2538, %v2539
      %v2646 = vcombine.low %v2540, %v2541
      %v2647 = vcombine.low %v2542, %v2543
      %v2648 = vcombine.low %v2544, %v2545
      %v2650 = vunpack.c.l.s4 1966171168
      %v2651 = vunpack.c.0.s8 %v2650
      %v2652 = vlaneseq
      %v2653 = vshrl.u32 %v2652, 7
      %v2654 = vsub.s32 %v2651, %v2653
      %v2655 = vrot.slane %v2645, %v2654
      %v2657 = vunpack.c.l.s4 1966171168
      %v2658 = vunpack.c.0.s8 %v2657
      %v2659 = vlaneseq
      %v2660 = vshrl.u32 %v2659, 7
      %v2661 = vsub.s32 %v2658, %v2660
      %v2662 = vrot.slane %v2646, %v2661
      %v2664 = vunpack.c.l.s4 1966171168
      %v2665 = vunpack.c.0.s8 %v2664
      %v2666 = vlaneseq
      %v2667 = vshrl.u32 %v2666, 7
      %v2668 = vsub.s32 %v2665, %v2667
      %v2669 = vrot.slane %v2647, %v2668
      %v2671 = vunpack.c.l.s4 1966171168
      %v2672 = vunpack.c.0.s8 %v2671
      %v2673 = vlaneseq
      %v2674 = vshrl.u32 %v2673, 7
      %v2675 = vsub.s32 %v2672, %v2674
      %v2676 = vrot.slane %v2648, %v2675
      %v2677 = vcombine.low %v2655, %v2662
      %v2678 = vcombine.low %v2669, %v2676
      %v2680 = vunpack.c.l.s4 1966171168
      %v2681 = vunpack.c.0.s8 %v2680
      %v2682 = vlaneseq
      %v2683 = vshrl.u32 %v2682, 7
      %v2684 = vsub.s32 %v2681, %v2683
      %v2685 = vrot.slane %v2677, %v2684
      %v2687 = vunpack.c.l.s4 1966171168
      %v2688 = vunpack.c.0.s8 %v2687
      %v2689 = vlaneseq
      %v2690 = vshrl.u32 %v2689, 7
      %v2691 = vsub.s32 %v2688, %v2690
      %v2692 = vrot.slane %v2678, %v2691
      %v2693 = vcombine.low %v2685, %v2692
      %v2695 = vunpack.c.l.s4 1966171168
      %v2696 = vunpack.c.0.s8 %v2695
      %v2697 = vlaneseq
      %v2698 = vshrl.u32 %v2697, 7
      %v2699 = vsub.s32 %v2696, %v2698
      %v2700 = vrot.slane %v2519, %v2699
      %v2702 = vunpack.c.l.s4 1966171168
      %v2703 = vunpack.c.0.s8 %v2702
      %v2704 = vlaneseq
      %v2705 = vshrl.u32 %v2704, 7
      %v2706 = vsub.s32 %v2703, %v2705
      %v2707 = vrot.slane %v2700, %v2706
      %v2709 = vsel %vm931, %v2595, 0
      %v2712 = vsel %vm931, %v2644, 0
      %v2715 = vsel %vm931, %v2693, 0
      %v2718 = vsel %vm931, %v2707, 0
      %v2721 = vsel %vm944, %v2521, 0
      %2723 = vmatprep.subr.bf16.mxu0 0
      %2724 = vmatpush1.bf16.msra.mxu0 0
      %2725 = vmatprep.subr.bf16.mxu0 0
      %2726 = vmatpush1.bf16.msra.mxu0 0
      %2727 = vmatprep.subr.bf16.mxu0 0
      %2728 = vmatpush1.bf16.msra.mxu0 0
      %2729 = vmatprep.subr.bf16.mxu0 0
      %2730 = vmatpush1.bf16.msra.mxu0 0
      %2731 = vmatprep.subr.bf16.mxu0 0
      %2732 = vmatpush1.bf16.msra.mxu0 0
      %2733 = vmatprep.subr.bf16.mxu0 0
      %2734 = vmatpush1.bf16.msra.mxu0 0
      %2735 = vmatprep.subr.bf16.mxu0 0
      %2736 = vmatpush1.bf16.msra.mxu0 0
      %2737 = vmatprep.subr.bf16.mxu0 0
      %2738 = vmatpush1.bf16.msra.mxu0 %v2721
      %2739 = vmatprep.subr.bf16.mxu0 0
      %2740 = vmatpush2.bf16.msra.mxu0 0
      %2741 = vmatprep.subr.bf16.mxu0 0
      %2742 = vmatpush2.bf16.msra.mxu0 0
      %2743 = vmatprep.subr.bf16.mxu0 0
      %2744 = vmatpush2.bf16.msra.mxu0 0
      %2745 = vmatprep.subr.bf16.mxu0 0
      %2746 = vmatpush2.bf16.msra.mxu0 0
      %2747 = vmatprep.subr.bf16.mxu0 0
      %2748 = vmatpush2.bf16.msra.mxu0 0
      %2749 = vmatprep.subr.bf16.mxu0 0
      %2750 = vmatpush2.bf16.msra.mxu0 0
      %2751 = vmatprep.subr.bf16.mxu0 0
      %2752 = vmatpush2.bf16.msra.mxu0 0
      %2753 = vmatprep.subr.bf16.mxu0 0
      %2754 = vmatpush2.bf16.msra.mxu0 0
      %2755 = vmatprep.mubr.bf16.mxu0 0
      %2756 = vmatmul.mubr.bf16.gmra.mxu0 %v2709
      %v2757 = vpop.f32.mrf.mxu0
      %v2758 = vadd.f32 0.0, %v2757
      %v2759 = vpop.f32.mrf.mxu0
      %v2760 = vpop.f32.mrf.mxu0
      %v2761 = vadd.f32 0.0, %v2760
      %v2762 = vpop.f32.mrf.mxu0
      %2763 = vmatprep.mubr.bf16.mxu0 0
      %2764 = vmatmul.mubr.bf16.gmra.mxu0 %v2712
      %v2765 = vpop.f32.mrf.mxu0
      %v2766 = vadd.f32 0.0, %v2765
      %v2767 = vpop.f32.mrf.mxu0
      %v2768 = vpop.f32.mrf.mxu0
      %v2769 = vadd.f32 0.0, %v2768
      %v2770 = vpop.f32.mrf.mxu0
      %2771 = vmatprep.mubr.bf16.mxu0 0
      %2772 = vmatmul.mubr.bf16.gmra.mxu0 %v2715
      %v2773 = vpop.f32.mrf.mxu0
      %v2774 = vadd.f32 0.0, %v2773
      %v2775 = vpop.f32.mrf.mxu0
      %v2776 = vpop.f32.mrf.mxu0
      %v2777 = vadd.f32 0.0, %v2776
      %v2778 = vpop.f32.mrf.mxu0
      %2779 = vmatprep.mubr.bf16.mxu0 0
      %2780 = vmatmul.mubr.bf16.gmra.mxu0 %v2718
      %v2781 = vpop.f32.mrf.mxu0
      %v2782 = vadd.f32 0.0, %v2781
      %v2783 = vpop.f32.mrf.mxu0
      %v2784 = vpop.f32.mrf.mxu0
      %v2785 = vpop.f32.mrf.mxu0
      %2786 = vdwg.mxu0
      %v2787 = vadd.f32 %v2281, %v2758
      %v2788 = vadd.f32 %v2282, %v2761
      %v2789 = vadd.f32 %v2283, %v2766
      %v2790 = vadd.f32 %v2284, %v2769
      %v2791 = vadd.f32 %v2285, %v2774
      %v2792 = vadd.f32 %v2286, %v2777
      %v2793 = vadd.f32 %v2287, %v2782
      %v2794 = vld [vmem:[%s1782] sm:$0xf]
      %v2795 = vld [vmem:[%s1782 + $0x10] sm:$0xf]
      %v2796 = vld [vmem:[%s1782 + $0x20] sm:$0xf]
      %v2797 = vld [vmem:[%s1782 + $0x30] sm:$0xf]
      %v2798 = vld [vmem:[%s1782 + $0x40] sm:$0xf]
      %v2799 = vld [vmem:[%s1782 + $0x50] sm:$0xf]
      %v2800 = vld [vmem:[%s1782 + $0x60] sm:$0xf]
      %v2809 = vunpack.c.l.s4 1966171168
      %v2810 = vunpack.c.0.s8 %v2809
      %v2811 = vlaneseq
      %v2812 = vshrl.u32 %v2811, 7
      %v2813 = vsub.s32 %v2810, %v2812
      %v2814 = vrot.slane %v2794, %v2813
      %v2815 = vcombine.high %v2814, %v2814
      %v2817 = vunpack.c.l.s4 1966171168
      %v2818 = vunpack.c.0.s8 %v2817
      %v2819 = vlaneseq
      %v2820 = vshrl.u32 %v2819, 7
      %v2821 = vsub.s32 %v2818, %v2820
      %v2822 = vrot.slane %v2814, %v2821
      %v2824 = vunpack.c.l.s4 1966171168
      %v2825 = vunpack.c.0.s8 %v2824
      %v2826 = vlaneseq
      %v2827 = vshrl.u32 %v2826, 7
      %v2828 = vsub.s32 %v2825, %v2827
      %v2829 = vrot.slane %v2815, %v2828
      %v2830 = vcombine.high %v2822, %v2822
      %v2831 = vcombine.high %v2829, %v2829
      %v2833 = vunpack.c.l.s4 1966171168
      %v2834 = vunpack.c.0.s8 %v2833
      %v2835 = vlaneseq
      %v2836 = vshrl.u32 %v2835, 7
      %v2837 = vsub.s32 %v2834, %v2836
      %v2838 = vrot.slane %v2795, %v2837
      %v2839 = vcombine.high %v2838, %v2838
      %v2841 = vunpack.c.l.s4 1966171168
      %v2842 = vunpack.c.0.s8 %v2841
      %v2843 = vlaneseq
      %v2844 = vshrl.u32 %v2843, 7
      %v2845 = vsub.s32 %v2842, %v2844
      %v2846 = vrot.slane %v2838, %v2845
      %v2848 = vunpack.c.l.s4 1966171168
      %v2849 = vunpack.c.0.s8 %v2848
      %v2850 = vlaneseq
      %v2851 = vshrl.u32 %v2850, 7
      %v2852 = vsub.s32 %v2849, %v2851
      %v2853 = vrot.slane %v2839, %v2852
      %v2854 = vcombine.high %v2846, %v2846
      %v2855 = vcombine.high %v2853, %v2853
      %v2857 = vunpack.c.l.s4 1966171168
      %v2858 = vunpack.c.0.s8 %v2857
      %v2859 = vlaneseq
      %v2860 = vshrl.u32 %v2859, 7
      %v2861 = vsub.s32 %v2858, %v2860
      %v2862 = vrot.slane %v2796, %v2861
      %v2863 = vcombine.high %v2862, %v2862
      %v2865 = vunpack.c.l.s4 1966171168
      %v2866 = vunpack.c.0.s8 %v2865
      %v2867 = vlaneseq
      %v2868 = vshrl.u32 %v2867, 7
      %v2869 = vsub.s32 %v2866, %v2868
      %v2870 = vrot.slane %v2862, %v2869
      %v2872 = vunpack.c.l.s4 1966171168
      %v2873 = vunpack.c.0.s8 %v2872
      %v2874 = vlaneseq
      %v2875 = vshrl.u32 %v2874, 7
      %v2876 = vsub.s32 %v2873, %v2875
      %v2877 = vrot.slane %v2863, %v2876
      %v2878 = vcombine.high %v2870, %v2870
      %v2879 = vcombine.high %v2877, %v2877
      %v2881 = vunpack.c.l.s4 1966171168
      %v2882 = vunpack.c.0.s8 %v2881
      %v2883 = vlaneseq
      %v2884 = vshrl.u32 %v2883, 7
      %v2885 = vsub.s32 %v2882, %v2884
      %v2886 = vrot.slane %v2797, %v2885
      %v2887 = vcombine.high %v2886, %v2886
      %v2889 = vunpack.c.l.s4 1966171168
      %v2890 = vunpack.c.0.s8 %v2889
      %v2891 = vlaneseq
      %v2892 = vshrl.u32 %v2891, 7
      %v2893 = vsub.s32 %v2890, %v2892
      %v2894 = vrot.slane %v2886, %v2893
      %v2896 = vunpack.c.l.s4 1966171168
      %v2897 = vunpack.c.0.s8 %v2896
      %v2898 = vlaneseq
      %v2899 = vshrl.u32 %v2898, 7
      %v2900 = vsub.s32 %v2897, %v2899
      %v2901 = vrot.slane %v2887, %v2900
      %v2902 = vcombine.high %v2894, %v2894
      %v2903 = vcombine.high %v2901, %v2901
      %v2905 = vunpack.c.l.s4 1966171168
      %v2906 = vunpack.c.0.s8 %v2905
      %v2907 = vlaneseq
      %v2908 = vshrl.u32 %v2907, 7
      %v2909 = vsub.s32 %v2906, %v2908
      %v2910 = vrot.slane %v2798, %v2909
      %v2911 = vcombine.high %v2910, %v2910
      %v2913 = vunpack.c.l.s4 1966171168
      %v2914 = vunpack.c.0.s8 %v2913
      %v2915 = vlaneseq
      %v2916 = vshrl.u32 %v2915, 7
      %v2917 = vsub.s32 %v2914, %v2916
      %v2918 = vrot.slane %v2910, %v2917
      %v2920 = vunpack.c.l.s4 1966171168
      %v2921 = vunpack.c.0.s8 %v2920
      %v2922 = vlaneseq
      %v2923 = vshrl.u32 %v2922, 7
      %v2924 = vsub.s32 %v2921, %v2923
      %v2925 = vrot.slane %v2911, %v2924
      %v2926 = vcombine.high %v2918, %v2918
      %v2927 = vcombine.high %v2925, %v2925
      %v2929 = vunpack.c.l.s4 1966171168
      %v2930 = vunpack.c.0.s8 %v2929
      %v2931 = vlaneseq
      %v2932 = vshrl.u32 %v2931, 7
      %v2933 = vsub.s32 %v2930, %v2932
      %v2934 = vrot.slane %v2799, %v2933
      %v2935 = vcombine.high %v2934, %v2934
      %v2937 = vunpack.c.l.s4 1966171168
      %v2938 = vunpack.c.0.s8 %v2937
      %v2939 = vlaneseq
      %v2940 = vshrl.u32 %v2939, 7
      %v2941 = vsub.s32 %v2938, %v2940
      %v2942 = vrot.slane %v2934, %v2941
      %v2944 = vunpack.c.l.s4 1966171168
      %v2945 = vunpack.c.0.s8 %v2944
      %v2946 = vlaneseq
      %v2947 = vshrl.u32 %v2946, 7
      %v2948 = vsub.s32 %v2945, %v2947
      %v2949 = vrot.slane %v2935, %v2948
      %v2950 = vcombine.high %v2942, %v2942
      %v2951 = vcombine.high %v2949, %v2949
      %v2953 = vunpack.c.l.s4 1966171168
      %v2954 = vunpack.c.0.s8 %v2953
      %v2955 = vlaneseq
      %v2956 = vshrl.u32 %v2955, 7
      %v2957 = vsub.s32 %v2954, %v2956
      %v2958 = vrot.slane %v2800, %v2957
      %v2959 = vcombine.high %v2958, %v2958
      %v2961 = vunpack.c.l.s4 1966171168
      %v2962 = vunpack.c.0.s8 %v2961
      %v2963 = vlaneseq
      %v2964 = vshrl.u32 %v2963, 7
      %v2965 = vsub.s32 %v2962, %v2964
      %v2966 = vrot.slane %v2958, %v2965
      %v2968 = vunpack.c.l.s4 1966171168
      %v2969 = vunpack.c.0.s8 %v2968
      %v2970 = vlaneseq
      %v2971 = vshrl.u32 %v2970, 7
      %v2972 = vsub.s32 %v2969, %v2971
      %v2973 = vrot.slane %v2959, %v2972
      %v2974 = vcombine.high %v2966, %v2966
      %v2975 = vcombine.high %v2973, %v2973
      %v2976 = vunpack.i.h.s16 %v2822
      %v2977 = vunpack.i.l.s16 %v2829
      %v2978 = vunpack.i.h.s16 %v2829
      %v2979 = vunpack.i.l.s16 %v2830
      %v2980 = vunpack.i.h.s16 %v2830
      %v2981 = vunpack.i.l.s16 %v2831
      %v2982 = vunpack.i.h.s16 %v2831
      %v2983 = vunpack.i.h.s16 %v2846
      %v2984 = vunpack.i.l.s16 %v2853
      %v2985 = vunpack.i.h.s16 %v2853
      %v2986 = vunpack.i.l.s16 %v2854
      %v2987 = vunpack.i.h.s16 %v2854
      %v2988 = vunpack.i.l.s16 %v2855
      %v2989 = vunpack.i.h.s16 %v2855
      %v2990 = vunpack.i.h.s16 %v2870
      %v2991 = vunpack.i.l.s16 %v2877
      %v2992 = vunpack.i.h.s16 %v2877
      %v2993 = vunpack.i.l.s16 %v2878
      %v2994 = vunpack.i.h.s16 %v2878
      %v2995 = vunpack.i.l.s16 %v2879
      %v2996 = vunpack.i.h.s16 %v2879
      %v2997 = vunpack.i.h.s16 %v2894
      %v2998 = vunpack.i.l.s16 %v2901
      %v2999 = vunpack.i.h.s16 %v2901
      %v3000 = vunpack.i.l.s16 %v2902
      %v3001 = vunpack.i.h.s16 %v2902
      %v3002 = vunpack.i.l.s16 %v2903
      %v3003 = vunpack.i.h.s16 %v2903
      %v3004 = vunpack.i.h.s16 %v2918
      %v3005 = vunpack.i.l.s16 %v2925
      %v3006 = vunpack.i.h.s16 %v2925
      %v3007 = vunpack.i.l.s16 %v2926
      %v3008 = vunpack.i.h.s16 %v2926
      %v3009 = vunpack.i.l.s16 %v2927
      %v3010 = vunpack.i.h.s16 %v2927
      %v3011 = vunpack.i.h.s16 %v2942
      %v3012 = vunpack.i.l.s16 %v2949
      %v3013 = vunpack.i.h.s16 %v2949
      %v3014 = vunpack.i.l.s16 %v2950
      %v3015 = vunpack.i.h.s16 %v2950
      %v3016 = vunpack.i.l.s16 %v2951
      %v3017 = vunpack.i.h.s16 %v2951
      %v3018 = vunpack.i.h.s16 %v2966
      %v3019 = vunpack.i.l.s16 %v2973
      %v3020 = vunpack.i.h.s16 %v2973
      %v3021 = vunpack.i.l.s16 %v2974
      %v3022 = vunpack.i.h.s16 %v2974
      %v3023 = vunpack.i.l.s16 %v2975
      %v3024 = vunpack.i.h.s16 %v2975
      %s3025 = scalar_lea.vmem %s2, 10
      %v3026 = vld [vmem:[%s3025] sm:$0x3]
      %v3027 = vpack.i.b16 %v2977, %v2976
      %v3028 = vpack.i.b16 %v2979, %v2978
      %v3029 = vpack.i.b16 %v2981, %v2980
      %v3030 = vpack.i.b16 %v2983, %v2982
      %v3031 = vpack.i.b16 %v2985, %v2984
      %v3032 = vpack.i.b16 %v2987, %v2986
      %v3033 = vpack.i.b16 %v2989, %v2988
      %v3034 = vpack.i.b16 %v2991, %v2990
      %v3035 = vpack.i.b16 %v2993, %v2992
      %v3036 = vpack.i.b16 %v2995, %v2994
      %v3037 = vpack.i.b16 %v2997, %v2996
      %v3038 = vpack.i.b16 %v2999, %v2998
      %v3039 = vpack.i.b16 %v3001, %v3000
      %v3040 = vpack.i.b16 %v3003, %v3002
      %v3041 = vpack.i.b16 %v3005, %v3004
      %v3042 = vpack.i.b16 %v3007, %v3006
      %v3043 = vpack.i.b16 %v3009, %v3008
      %v3044 = vpack.i.b16 %v3011, %v3010
      %v3045 = vpack.i.b16 %v3013, %v3012
      %v3046 = vpack.i.b16 %v3015, %v3014
      %v3047 = vpack.i.b16 %v3017, %v3016
      %v3048 = vpack.i.b16 %v3019, %v3018
      %v3049 = vpack.i.b16 %v3021, %v3020
      %v3050 = vpack.i.b16 %v3023, %v3022
      %v3052 = vcombine.low %v3027, %v3028
      %v3053 = vcombine.low %v3029, %v3030
      %v3054 = vcombine.low %v3031, %v3032
      %v3055 = vcombine.low %v3033, %v3034
      %v3057 = vunpack.c.l.s4 1966171168
      %v3058 = vunpack.c.0.s8 %v3057
      %v3059 = vlaneseq
      %v3060 = vshrl.u32 %v3059, 7
      %v3061 = vsub.s32 %v3058, %v3060
      %v3062 = vrot.slane %v3052, %v3061
      %v3064 = vunpack.c.l.s4 1966171168
      %v3065 = vunpack.c.0.s8 %v3064
      %v3066 = vlaneseq
      %v3067 = vshrl.u32 %v3066, 7
      %v3068 = vsub.s32 %v3065, %v3067
      %v3069 = vrot.slane %v3053, %v3068
      %v3071 = vunpack.c.l.s4 1966171168
      %v3072 = vunpack.c.0.s8 %v3071
      %v3073 = vlaneseq
      %v3074 = vshrl.u32 %v3073, 7
      %v3075 = vsub.s32 %v3072, %v3074
      %v3076 = vrot.slane %v3054, %v3075
      %v3078 = vunpack.c.l.s4 1966171168
      %v3079 = vunpack.c.0.s8 %v3078
      %v3080 = vlaneseq
      %v3081 = vshrl.u32 %v3080, 7
      %v3082 = vsub.s32 %v3079, %v3081
      %v3083 = vrot.slane %v3055, %v3082
      %v3084 = vcombine.low %v3062, %v3069
      %v3085 = vcombine.low %v3076, %v3083
      %v3087 = vunpack.c.l.s4 1966171168
      %v3088 = vunpack.c.0.s8 %v3087
      %v3089 = vlaneseq
      %v3090 = vshrl.u32 %v3089, 7
      %v3091 = vsub.s32 %v3088, %v3090
      %v3092 = vrot.slane %v3084, %v3091
      %v3094 = vunpack.c.l.s4 1966171168
      %v3095 = vunpack.c.0.s8 %v3094
      %v3096 = vlaneseq
      %v3097 = vshrl.u32 %v3096, 7
      %v3098 = vsub.s32 %v3095, %v3097
      %v3099 = vrot.slane %v3085, %v3098
      %v3100 = vcombine.low %v3092, %v3099
      %v3101 = vcombine.low %v3035, %v3036
      %v3102 = vcombine.low %v3037, %v3038
      %v3103 = vcombine.low %v3039, %v3040
      %v3104 = vcombine.low %v3041, %v3042
      %v3106 = vunpack.c.l.s4 1966171168
      %v3107 = vunpack.c.0.s8 %v3106
      %v3108 = vlaneseq
      %v3109 = vshrl.u32 %v3108, 7
      %v3110 = vsub.s32 %v3107, %v3109
      %v3111 = vrot.slane %v3101, %v3110
      %v3113 = vunpack.c.l.s4 1966171168
      %v3114 = vunpack.c.0.s8 %v3113
      %v3115 = vlaneseq
      %v3116 = vshrl.u32 %v3115, 7
      %v3117 = vsub.s32 %v3114, %v3116
      %v3118 = vrot.slane %v3102, %v3117
      %v3120 = vunpack.c.l.s4 1966171168
      %v3121 = vunpack.c.0.s8 %v3120
      %v3122 = vlaneseq
      %v3123 = vshrl.u32 %v3122, 7
      %v3124 = vsub.s32 %v3121, %v3123
      %v3125 = vrot.slane %v3103, %v3124
      %v3127 = vunpack.c.l.s4 1966171168
      %v3128 = vunpack.c.0.s8 %v3127
      %v3129 = vlaneseq
      %v3130 = vshrl.u32 %v3129, 7
      %v3131 = vsub.s32 %v3128, %v3130
      %v3132 = vrot.slane %v3104, %v3131
      %v3133 = vcombine.low %v3111, %v3118
      %v3134 = vcombine.low %v3125, %v3132
      %v3136 = vunpack.c.l.s4 1966171168
      %v3137 = vunpack.c.0.s8 %v3136
      %v3138 = vlaneseq
      %v3139 = vshrl.u32 %v3138, 7
      %v3140 = vsub.s32 %v3137, %v3139
      %v3141 = vrot.slane %v3133, %v3140
      %v3143 = vunpack.c.l.s4 1966171168
      %v3144 = vunpack.c.0.s8 %v3143
      %v3145 = vlaneseq
      %v3146 = vshrl.u32 %v3145, 7
      %v3147 = vsub.s32 %v3144, %v3146
      %v3148 = vrot.slane %v3134, %v3147
      %v3149 = vcombine.low %v3141, %v3148
      %v3150 = vcombine.low %v3043, %v3044
      %v3151 = vcombine.low %v3045, %v3046
      %v3152 = vcombine.low %v3047, %v3048
      %v3153 = vcombine.low %v3049, %v3050
      %v3155 = vunpack.c.l.s4 1966171168
      %v3156 = vunpack.c.0.s8 %v3155
      %v3157 = vlaneseq
      %v3158 = vshrl.u32 %v3157, 7
      %v3159 = vsub.s32 %v3156, %v3158
      %v3160 = vrot.slane %v3150, %v3159
      %v3162 = vunpack.c.l.s4 1966171168
      %v3163 = vunpack.c.0.s8 %v3162
      %v3164 = vlaneseq
      %v3165 = vshrl.u32 %v3164, 7
      %v3166 = vsub.s32 %v3163, %v3165
      %v3167 = vrot.slane %v3151, %v3166
      %v3169 = vunpack.c.l.s4 1966171168
      %v3170 = vunpack.c.0.s8 %v3169
      %v3171 = vlaneseq
      %v3172 = vshrl.u32 %v3171, 7
      %v3173 = vsub.s32 %v3170, %v3172
      %v3174 = vrot.slane %v3152, %v3173
      %v3176 = vunpack.c.l.s4 1966171168
      %v3177 = vunpack.c.0.s8 %v3176
      %v3178 = vlaneseq
      %v3179 = vshrl.u32 %v3178, 7
      %v3180 = vsub.s32 %v3177, %v3179
      %v3181 = vrot.slane %v3153, %v3180
      %v3182 = vcombine.low %v3160, %v3167
      %v3183 = vcombine.low %v3174, %v3181
      %v3185 = vunpack.c.l.s4 1966171168
      %v3186 = vunpack.c.0.s8 %v3185
      %v3187 = vlaneseq
      %v3188 = vshrl.u32 %v3187, 7
      %v3189 = vsub.s32 %v3186, %v3188
      %v3190 = vrot.slane %v3182, %v3189
      %v3192 = vunpack.c.l.s4 1966171168
      %v3193 = vunpack.c.0.s8 %v3192
      %v3194 = vlaneseq
      %v3195 = vshrl.u32 %v3194, 7
      %v3196 = vsub.s32 %v3193, %v3195
      %v3197 = vrot.slane %v3183, %v3196
      %v3198 = vcombine.low %v3190, %v3197
      %v3200 = vunpack.c.l.s4 1966171168
      %v3201 = vunpack.c.0.s8 %v3200
      %v3202 = vlaneseq
      %v3203 = vshrl.u32 %v3202, 7
      %v3204 = vsub.s32 %v3201, %v3203
      %v3205 = vrot.slane %v3024, %v3204
      %v3207 = vunpack.c.l.s4 1966171168
      %v3208 = vunpack.c.0.s8 %v3207
      %v3209 = vlaneseq
      %v3210 = vshrl.u32 %v3209, 7
      %v3211 = vsub.s32 %v3208, %v3210
      %v3212 = vrot.slane %v3205, %v3211
      %v3214 = vsel %vm931, %v3100, 0
      %v3217 = vsel %vm931, %v3149, 0
      %v3220 = vsel %vm931, %v3198, 0
      %v3223 = vsel %vm931, %v3212, 0
      %v3226 = vsel %vm944, %v3026, 0
      %3228 = vmatprep.subr.bf16.mxu0 0
      %3229 = vmatpush1.bf16.msra.mxu0 0
      %3230 = vmatprep.subr.bf16.mxu0 0
      %3231 = vmatpush1.bf16.msra.mxu0 0
      %3232 = vmatprep.subr.bf16.mxu0 0
      %3233 = vmatpush1.bf16.msra.mxu0 0
      %3234 = vmatprep.subr.bf16.mxu0 0
      %3235 = vmatpush1.bf16.msra.mxu0 0
      %3236 = vmatprep.subr.bf16.mxu0 0
      %3237 = vmatpush1.bf16.msra.mxu0 0
      %3238 = vmatprep.subr.bf16.mxu0 0
      %3239 = vmatpush1.bf16.msra.mxu0 0
      %3240 = vmatprep.subr.bf16.mxu0 0
      %3241 = vmatpush1.bf16.msra.mxu0 0
      %3242 = vmatprep.subr.bf16.mxu0 0
      %3243 = vmatpush1.bf16.msra.mxu0 %v3226
      %3244 = vmatprep.subr.bf16.mxu0 0
      %3245 = vmatpush2.bf16.msra.mxu0 0
      %3246 = vmatprep.subr.bf16.mxu0 0
      %3247 = vmatpush2.bf16.msra.mxu0 0
      %3248 = vmatprep.subr.bf16.mxu0 0
      %3249 = vmatpush2.bf16.msra.mxu0 0
      %3250 = vmatprep.subr.bf16.mxu0 0
      %3251 = vmatpush2.bf16.msra.mxu0 0
      %3252 = vmatprep.subr.bf16.mxu0 0
      %3253 = vmatpush2.bf16.msra.mxu0 0
      %3254 = vmatprep.subr.bf16.mxu0 0
      %3255 = vmatpush2.bf16.msra.mxu0 0
      %3256 = vmatprep.subr.bf16.mxu0 0
      %3257 = vmatpush2.bf16.msra.mxu0 0
      %3258 = vmatprep.subr.bf16.mxu0 0
      %3259 = vmatpush2.bf16.msra.mxu0 0
      %3260 = vmatprep.mubr.bf16.mxu0 0
      %3261 = vmatmul.mubr.bf16.gmra.mxu0 %v3214
      %v3262 = vpop.f32.mrf.mxu0
      %v3263 = vadd.f32 0.0, %v3262
      %v3264 = vpop.f32.mrf.mxu0
      %v3265 = vpop.f32.mrf.mxu0
      %v3266 = vadd.f32 0.0, %v3265
      %v3267 = vpop.f32.mrf.mxu0
      %3268 = vmatprep.mubr.bf16.mxu0 0
      %3269 = vmatmul.mubr.bf16.gmra.mxu0 %v3217
      %v3270 = vpop.f32.mrf.mxu0
      %v3271 = vadd.f32 0.0, %v3270
      %v3272 = vpop.f32.mrf.mxu0
      %v3273 = vpop.f32.mrf.mxu0
      %v3274 = vadd.f32 0.0, %v3273
      %v3275 = vpop.f32.mrf.mxu0
      %3276 = vmatprep.mubr.bf16.mxu0 0
      %3277 = vmatmul.mubr.bf16.gmra.mxu0 %v3220
      %v3278 = vpop.f32.mrf.mxu0
      %v3279 = vadd.f32 0.0, %v3278
      %v3280 = vpop.f32.mrf.mxu0
      %v3281 = vpop.f32.mrf.mxu0
      %v3282 = vadd.f32 0.0, %v3281
      %v3283 = vpop.f32.mrf.mxu0
      %3284 = vmatprep.mubr.bf16.mxu0 0
      %3285 = vmatmul.mubr.bf16.gmra.mxu0 %v3223
      %v3286 = vpop.f32.mrf.mxu0
      %v3287 = vadd.f32 0.0, %v3286
      %v3288 = vpop.f32.mrf.mxu0
      %v3289 = vpop.f32.mrf.mxu0
      %v3290 = vpop.f32.mrf.mxu0
      %3291 = vdwg.mxu0
      %v3292 = vadd.f32 %v2787, %v3263
      %v3293 = vadd.f32 %v2788, %v3266
      %v3294 = vadd.f32 %v2789, %v3271
      %v3295 = vadd.f32 %v2790, %v3274
      %v3296 = vadd.f32 %v2791, %v3279
      %v3297 = vadd.f32 %v2792, %v3282
      %v3298 = vadd.f32 %v2793, %v3287
      %v3299 = vld [vmem:[%s269] sm:$0xf]
      %s3300 = scalar_lea.vmem %s252, 16
      %v3301 = vld [vmem:[%s3300] sm:$0xf]
      %v3302 = vld [vmem:[%s3300 + $0x10] sm:$0xf]
      %v3303 = vld [vmem:[%s3300 + $0x20] sm:$0xf]
      %v3304 = vld [vmem:[%s3300 + $0x30] sm:$0xf]
      %v3305 = vld [vmem:[%s3300 + $0x40] sm:$0xf]
      %v3306 = vld [vmem:[%s3300 + $0x50] sm:$0xf]
      %v3315 = vunpack.c.l.s4 1966171168
      %v3316 = vunpack.c.0.s8 %v3315
      %v3317 = vlaneseq
      %v3318 = vshrl.u32 %v3317, 7
      %v3319 = vsub.s32 %v3316, %v3318
      %v3320 = vrot.slane %v3301, %v3319
      %v3321 = vcombine.high %v3320, %v3320
      %v3323 = vunpack.c.l.s4 1966171168
      %v3324 = vunpack.c.0.s8 %v3323
      %v3325 = vlaneseq
      %v3326 = vshrl.u32 %v3325, 7
      %v3327 = vsub.s32 %v3324, %v3326
      %v3328 = vrot.slane %v3320, %v3327
      %v3330 = vunpack.c.l.s4 1966171168
      %v3331 = vunpack.c.0.s8 %v3330
      %v3332 = vlaneseq
      %v3333 = vshrl.u32 %v3332, 7
      %v3334 = vsub.s32 %v3331, %v3333
      %v3335 = vrot.slane %v3321, %v3334
      %v3336 = vcombine.high %v3328, %v3328
      %v3337 = vcombine.high %v3335, %v3335
      %v3339 = vunpack.c.l.s4 1966171168
      %v3340 = vunpack.c.0.s8 %v3339
      %v3341 = vlaneseq
      %v3342 = vshrl.u32 %v3341, 7
      %v3343 = vsub.s32 %v3340, %v3342
      %v3344 = vrot.slane %v3302, %v3343
      %v3345 = vcombine.high %v3344, %v3344
      %v3347 = vunpack.c.l.s4 1966171168
      %v3348 = vunpack.c.0.s8 %v3347
      %v3349 = vlaneseq
      %v3350 = vshrl.u32 %v3349, 7
      %v3351 = vsub.s32 %v3348, %v3350
      %v3352 = vrot.slane %v3344, %v3351
      %v3354 = vunpack.c.l.s4 1966171168
      %v3355 = vunpack.c.0.s8 %v3354
      %v3356 = vlaneseq
      %v3357 = vshrl.u32 %v3356, 7
      %v3358 = vsub.s32 %v3355, %v3357
      %v3359 = vrot.slane %v3345, %v3358
      %v3360 = vcombine.high %v3352, %v3352
      %v3361 = vcombine.high %v3359, %v3359
      %v3363 = vunpack.c.l.s4 1966171168
      %v3364 = vunpack.c.0.s8 %v3363
      %v3365 = vlaneseq
      %v3366 = vshrl.u32 %v3365, 7
      %v3367 = vsub.s32 %v3364, %v3366
      %v3368 = vrot.slane %v3303, %v3367
      %v3369 = vcombine.high %v3368, %v3368
      %v3371 = vunpack.c.l.s4 1966171168
      %v3372 = vunpack.c.0.s8 %v3371
      %v3373 = vlaneseq
      %v3374 = vshrl.u32 %v3373, 7
      %v3375 = vsub.s32 %v3372, %v3374
      %v3376 = vrot.slane %v3368, %v3375
      %v3378 = vunpack.c.l.s4 1966171168
      %v3379 = vunpack.c.0.s8 %v3378
      %v3380 = vlaneseq
      %v3381 = vshrl.u32 %v3380, 7
      %v3382 = vsub.s32 %v3379, %v3381
      %v3383 = vrot.slane %v3369, %v3382
      %v3384 = vcombine.high %v3376, %v3376
      %v3385 = vcombine.high %v3383, %v3383
      %v3387 = vunpack.c.l.s4 1966171168
      %v3388 = vunpack.c.0.s8 %v3387
      %v3389 = vlaneseq
      %v3390 = vshrl.u32 %v3389, 7
      %v3391 = vsub.s32 %v3388, %v3390
      %v3392 = vrot.slane %v3304, %v3391
      %v3393 = vcombine.high %v3392, %v3392
      %v3395 = vunpack.c.l.s4 1966171168
      %v3396 = vunpack.c.0.s8 %v3395
      %v3397 = vlaneseq
      %v3398 = vshrl.u32 %v3397, 7
      %v3399 = vsub.s32 %v3396, %v3398
      %v3400 = vrot.slane %v3392, %v3399
      %v3402 = vunpack.c.l.s4 1966171168
      %v3403 = vunpack.c.0.s8 %v3402
      %v3404 = vlaneseq
      %v3405 = vshrl.u32 %v3404, 7
      %v3406 = vsub.s32 %v3403, %v3405
      %v3407 = vrot.slane %v3393, %v3406
      %v3408 = vcombine.high %v3400, %v3400
      %v3409 = vcombine.high %v3407, %v3407
      %v3411 = vunpack.c.l.s4 1966171168
      %v3412 = vunpack.c.0.s8 %v3411
      %v3413 = vlaneseq
      %v3414 = vshrl.u32 %v3413, 7
      %v3415 = vsub.s32 %v3412, %v3414
      %v3416 = vrot.slane %v3305, %v3415
      %v3417 = vcombine.high %v3416, %v3416
      %v3419 = vunpack.c.l.s4 1966171168
      %v3420 = vunpack.c.0.s8 %v3419
      %v3421 = vlaneseq
      %v3422 = vshrl.u32 %v3421, 7
      %v3423 = vsub.s32 %v3420, %v3422
      %v3424 = vrot.slane %v3416, %v3423
      %v3426 = vunpack.c.l.s4 1966171168
      %v3427 = vunpack.c.0.s8 %v3426
      %v3428 = vlaneseq
      %v3429 = vshrl.u32 %v3428, 7
      %v3430 = vsub.s32 %v3427, %v3429
      %v3431 = vrot.slane %v3417, %v3430
      %v3432 = vcombine.high %v3424, %v3424
      %v3433 = vcombine.high %v3431, %v3431
      %v3435 = vunpack.c.l.s4 1966171168
      %v3436 = vunpack.c.0.s8 %v3435
      %v3437 = vlaneseq
      %v3438 = vshrl.u32 %v3437, 7
      %v3439 = vsub.s32 %v3436, %v3438
      %v3440 = vrot.slane %v3306, %v3439
      %v3441 = vcombine.high %v3440, %v3440
      %v3443 = vunpack.c.l.s4 1966171168
      %v3444 = vunpack.c.0.s8 %v3443
      %v3445 = vlaneseq
      %v3446 = vshrl.u32 %v3445, 7
      %v3447 = vsub.s32 %v3444, %v3446
      %v3448 = vrot.slane %v3440, %v3447
      %v3450 = vunpack.c.l.s4 1966171168
      %v3451 = vunpack.c.0.s8 %v3450
      %v3452 = vlaneseq
      %v3453 = vshrl.u32 %v3452, 7
      %v3454 = vsub.s32 %v3451, %v3453
      %v3455 = vrot.slane %v3441, %v3454
      %v3456 = vcombine.high %v3448, %v3448
      %v3457 = vcombine.high %v3455, %v3455
      %v3459 = vunpack.c.l.s4 1966171168
      %v3460 = vunpack.c.0.s8 %v3459
      %v3461 = vlaneseq
      %v3462 = vshrl.u32 %v3461, 7
      %v3463 = vsub.s32 %v3460, %v3462
      %v3464 = vrot.slane %v3299, %v3463
      %v3465 = vcombine.high %v3464, %v3464
      %v3467 = vunpack.c.l.s4 1966171168
      %v3468 = vunpack.c.0.s8 %v3467
      %v3469 = vlaneseq
      %v3470 = vshrl.u32 %v3469, 7
      %v3471 = vsub.s32 %v3468, %v3470
      %v3472 = vrot.slane %v3464, %v3471
      %v3474 = vunpack.c.l.s4 1966171168
      %v3475 = vunpack.c.0.s8 %v3474
      %v3476 = vlaneseq
      %v3477 = vshrl.u32 %v3476, 7
      %v3478 = vsub.s32 %v3475, %v3477
      %v3479 = vrot.slane %v3465, %v3478
      %v3480 = vcombine.high %v3472, %v3472
      %v3481 = vcombine.high %v3479, %v3479
      %v3482 = vunpack.i.l.s16 %v3328
      %v3483 = vunpack.i.h.s16 %v3328
      %v3484 = vunpack.i.l.s16 %v3335
      %v3485 = vunpack.i.h.s16 %v3335
      %v3486 = vunpack.i.l.s16 %v3336
      %v3487 = vunpack.i.h.s16 %v3336
      %v3488 = vunpack.i.l.s16 %v3337
      %v3489 = vunpack.i.l.s16 %v3352
      %v3490 = vunpack.i.h.s16 %v3352
      %v3491 = vunpack.i.l.s16 %v3359
      %v3492 = vunpack.i.h.s16 %v3359
      %v3493 = vunpack.i.l.s16 %v3360
      %v3494 = vunpack.i.h.s16 %v3360
      %v3495 = vunpack.i.l.s16 %v3361
      %v3496 = vunpack.i.l.s16 %v3376
      %v3497 = vunpack.i.h.s16 %v3376
      %v3498 = vunpack.i.l.s16 %v3383
      %v3499 = vunpack.i.h.s16 %v3383
      %v3500 = vunpack.i.l.s16 %v3384
      %v3501 = vunpack.i.h.s16 %v3384
      %v3502 = vunpack.i.l.s16 %v3385
      %v3503 = vunpack.i.l.s16 %v3400
      %v3504 = vunpack.i.h.s16 %v3400
      %v3505 = vunpack.i.l.s16 %v3407
      %v3506 = vunpack.i.h.s16 %v3407
      %v3507 = vunpack.i.l.s16 %v3408
      %v3508 = vunpack.i.h.s16 %v3408
      %v3509 = vunpack.i.l.s16 %v3409
      %v3510 = vunpack.i.l.s16 %v3424
      %v3511 = vunpack.i.h.s16 %v3424
      %v3512 = vunpack.i.l.s16 %v3431
      %v3513 = vunpack.i.h.s16 %v3431
      %v3514 = vunpack.i.l.s16 %v3432
      %v3515 = vunpack.i.h.s16 %v3432
      %v3516 = vunpack.i.l.s16 %v3433
      %v3517 = vunpack.i.l.s16 %v3448
      %v3518 = vunpack.i.h.s16 %v3448
      %v3519 = vunpack.i.l.s16 %v3455
      %v3520 = vunpack.i.h.s16 %v3455
      %v3521 = vunpack.i.l.s16 %v3456
      %v3522 = vunpack.i.h.s16 %v3456
      %v3523 = vunpack.i.l.s16 %v3457
      %v3524 = vunpack.i.l.s16 %v3472
      %v3525 = vunpack.i.h.s16 %v3472
      %v3526 = vunpack.i.l.s16 %v3479
      %v3527 = vunpack.i.h.s16 %v3479
      %v3528 = vunpack.i.l.s16 %v3480
      %v3529 = vunpack.i.h.s16 %v3480
      %v3530 = vunpack.i.l.s16 %v3481
      %s3531 = scalar_lea.vmem %s2, 12
      %v3532 = vld [vmem:[%s3531] sm:$0x3]
      %v3533 = vpack.i.b16 %v3483, %v3482
      %v3534 = vpack.i.b16 %v3485, %v3484
      %v3535 = vpack.i.b16 %v3487, %v3486
      %v3536 = vpack.i.b16 %v3489, %v3488
      %v3537 = vpack.i.b16 %v3491, %v3490
      %v3538 = vpack.i.b16 %v3493, %v3492
      %v3539 = vpack.i.b16 %v3495, %v3494
      %v3540 = vpack.i.b16 %v3497, %v3496
      %v3541 = vpack.i.b16 %v3499, %v3498
      %v3542 = vpack.i.b16 %v3501, %v3500
      %v3543 = vpack.i.b16 %v3503, %v3502
      %v3544 = vpack.i.b16 %v3505, %v3504
      %v3545 = vpack.i.b16 %v3507, %v3506
      %v3546 = vpack.i.b16 %v3509, %v3508
      %v3547 = vpack.i.b16 %v3511, %v3510
      %v3548 = vpack.i.b16 %v3513, %v3512
      %v3549 = vpack.i.b16 %v3515, %v3514
      %v3550 = vpack.i.b16 %v3517, %v3516
      %v3551 = vpack.i.b16 %v3519, %v3518
      %v3552 = vpack.i.b16 %v3521, %v3520
      %v3553 = vpack.i.b16 %v3523, %v3522
      %v3554 = vpack.i.b16 %v3525, %v3524
      %v3555 = vpack.i.b16 %v3527, %v3526
      %v3556 = vpack.i.b16 %v3529, %v3528
      %v3558 = vcombine.low %v3533, %v3534
      %v3559 = vcombine.low %v3535, %v3536
      %v3560 = vcombine.low %v3537, %v3538
      %v3561 = vcombine.low %v3539, %v3540
      %v3563 = vunpack.c.l.s4 1966171168
      %v3564 = vunpack.c.0.s8 %v3563
      %v3565 = vlaneseq
      %v3566 = vshrl.u32 %v3565, 7
      %v3567 = vsub.s32 %v3564, %v3566
      %v3568 = vrot.slane %v3558, %v3567
      %v3570 = vunpack.c.l.s4 1966171168
      %v3571 = vunpack.c.0.s8 %v3570
      %v3572 = vlaneseq
      %v3573 = vshrl.u32 %v3572, 7
      %v3574 = vsub.s32 %v3571, %v3573
      %v3575 = vrot.slane %v3559, %v3574
      %v3577 = vunpack.c.l.s4 1966171168
      %v3578 = vunpack.c.0.s8 %v3577
      %v3579 = vlaneseq
      %v3580 = vshrl.u32 %v3579, 7
      %v3581 = vsub.s32 %v3578, %v3580
      %v3582 = vrot.slane %v3560, %v3581
      %v3584 = vunpack.c.l.s4 1966171168
      %v3585 = vunpack.c.0.s8 %v3584
      %v3586 = vlaneseq
      %v3587 = vshrl.u32 %v3586, 7
      %v3588 = vsub.s32 %v3585, %v3587
      %v3589 = vrot.slane %v3561, %v3588
      %v3590 = vcombine.low %v3568, %v3575
      %v3591 = vcombine.low %v3582, %v3589
      %v3593 = vunpack.c.l.s4 1966171168
      %v3594 = vunpack.c.0.s8 %v3593
      %v3595 = vlaneseq
      %v3596 = vshrl.u32 %v3595, 7
      %v3597 = vsub.s32 %v3594, %v3596
      %v3598 = vrot.slane %v3590, %v3597
      %v3600 = vunpack.c.l.s4 1966171168
      %v3601 = vunpack.c.0.s8 %v3600
      %v3602 = vlaneseq
      %v3603 = vshrl.u32 %v3602, 7
      %v3604 = vsub.s32 %v3601, %v3603
      %v3605 = vrot.slane %v3591, %v3604
      %v3606 = vcombine.low %v3598, %v3605
      %v3607 = vcombine.low %v3541, %v3542
      %v3608 = vcombine.low %v3543, %v3544
      %v3609 = vcombine.low %v3545, %v3546
      %v3610 = vcombine.low %v3547, %v3548
      %v3612 = vunpack.c.l.s4 1966171168
      %v3613 = vunpack.c.0.s8 %v3612
      %v3614 = vlaneseq
      %v3615 = vshrl.u32 %v3614, 7
      %v3616 = vsub.s32 %v3613, %v3615
      %v3617 = vrot.slane %v3607, %v3616
      %v3619 = vunpack.c.l.s4 1966171168
      %v3620 = vunpack.c.0.s8 %v3619
      %v3621 = vlaneseq
      %v3622 = vshrl.u32 %v3621, 7
      %v3623 = vsub.s32 %v3620, %v3622
      %v3624 = vrot.slane %v3608, %v3623
      %v3626 = vunpack.c.l.s4 1966171168
      %v3627 = vunpack.c.0.s8 %v3626
      %v3628 = vlaneseq
      %v3629 = vshrl.u32 %v3628, 7
      %v3630 = vsub.s32 %v3627, %v3629
      %v3631 = vrot.slane %v3609, %v3630
      %v3633 = vunpack.c.l.s4 1966171168
      %v3634 = vunpack.c.0.s8 %v3633
      %v3635 = vlaneseq
      %v3636 = vshrl.u32 %v3635, 7
      %v3637 = vsub.s32 %v3634, %v3636
      %v3638 = vrot.slane %v3610, %v3637
      %v3639 = vcombine.low %v3617, %v3624
      %v3640 = vcombine.low %v3631, %v3638
      %v3642 = vunpack.c.l.s4 1966171168
      %v3643 = vunpack.c.0.s8 %v3642
      %v3644 = vlaneseq
      %v3645 = vshrl.u32 %v3644, 7
      %v3646 = vsub.s32 %v3643, %v3645
      %v3647 = vrot.slane %v3639, %v3646
      %v3649 = vunpack.c.l.s4 1966171168
      %v3650 = vunpack.c.0.s8 %v3649
      %v3651 = vlaneseq
      %v3652 = vshrl.u32 %v3651, 7
      %v3653 = vsub.s32 %v3650, %v3652
      %v3654 = vrot.slane %v3640, %v3653
      %v3655 = vcombine.low %v3647, %v3654
      %v3656 = vcombine.low %v3549, %v3550
      %v3657 = vcombine.low %v3551, %v3552
      %v3658 = vcombine.low %v3553, %v3554
      %v3659 = vcombine.low %v3555, %v3556
      %v3661 = vunpack.c.l.s4 1966171168
      %v3662 = vunpack.c.0.s8 %v3661
      %v3663 = vlaneseq
      %v3664 = vshrl.u32 %v3663, 7
      %v3665 = vsub.s32 %v3662, %v3664
      %v3666 = vrot.slane %v3656, %v3665
      %v3668 = vunpack.c.l.s4 1966171168
      %v3669 = vunpack.c.0.s8 %v3668
      %v3670 = vlaneseq
      %v3671 = vshrl.u32 %v3670, 7
      %v3672 = vsub.s32 %v3669, %v3671
      %v3673 = vrot.slane %v3657, %v3672
      %v3675 = vunpack.c.l.s4 1966171168
      %v3676 = vunpack.c.0.s8 %v3675
      %v3677 = vlaneseq
      %v3678 = vshrl.u32 %v3677, 7
      %v3679 = vsub.s32 %v3676, %v3678
      %v3680 = vrot.slane %v3658, %v3679
      %v3682 = vunpack.c.l.s4 1966171168
      %v3683 = vunpack.c.0.s8 %v3682
      %v3684 = vlaneseq
      %v3685 = vshrl.u32 %v3684, 7
      %v3686 = vsub.s32 %v3683, %v3685
      %v3687 = vrot.slane %v3659, %v3686
      %v3688 = vcombine.low %v3666, %v3673
      %v3689 = vcombine.low %v3680, %v3687
      %v3691 = vunpack.c.l.s4 1966171168
      %v3692 = vunpack.c.0.s8 %v3691
      %v3693 = vlaneseq
      %v3694 = vshrl.u32 %v3693, 7
      %v3695 = vsub.s32 %v3692, %v3694
      %v3696 = vrot.slane %v3688, %v3695
      %v3698 = vunpack.c.l.s4 1966171168
      %v3699 = vunpack.c.0.s8 %v3698
      %v3700 = vlaneseq
      %v3701 = vshrl.u32 %v3700, 7
      %v3702 = vsub.s32 %v3699, %v3701
      %v3703 = vrot.slane %v3689, %v3702
      %v3704 = vcombine.low %v3696, %v3703
      %v3706 = vunpack.c.l.s4 1966171168
      %v3707 = vunpack.c.0.s8 %v3706
      %v3708 = vlaneseq
      %v3709 = vshrl.u32 %v3708, 7
      %v3710 = vsub.s32 %v3707, %v3709
      %v3711 = vrot.slane %v3530, %v3710
      %v3713 = vunpack.c.l.s4 1966171168
      %v3714 = vunpack.c.0.s8 %v3713
      %v3715 = vlaneseq
      %v3716 = vshrl.u32 %v3715, 7
      %v3717 = vsub.s32 %v3714, %v3716
      %v3718 = vrot.slane %v3711, %v3717
      %v3720 = vsel %vm931, %v3606, 0
      %v3723 = vsel %vm931, %v3655, 0
      %v3726 = vsel %vm931, %v3704, 0
      %v3729 = vsel %vm931, %v3718, 0
      %v3732 = vsel %vm944, %v3532, 0
      %3734 = vmatprep.subr.bf16.mxu0 0
      %3735 = vmatpush1.bf16.msra.mxu0 0
      %3736 = vmatprep.subr.bf16.mxu0 0
      %3737 = vmatpush1.bf16.msra.mxu0 0
      %3738 = vmatprep.subr.bf16.mxu0 0
      %3739 = vmatpush1.bf16.msra.mxu0 0
      %3740 = vmatprep.subr.bf16.mxu0 0
      %3741 = vmatpush1.bf16.msra.mxu0 0
      %3742 = vmatprep.subr.bf16.mxu0 0
      %3743 = vmatpush1.bf16.msra.mxu0 0
      %3744 = vmatprep.subr.bf16.mxu0 0
      %3745 = vmatpush1.bf16.msra.mxu0 0
      %3746 = vmatprep.subr.bf16.mxu0 0
      %3747 = vmatpush1.bf16.msra.mxu0 0
      %3748 = vmatprep.subr.bf16.mxu0 0
      %3749 = vmatpush1.bf16.msra.mxu0 %v3732
      %3750 = vmatprep.subr.bf16.mxu0 0
      %3751 = vmatpush2.bf16.msra.mxu0 0
      %3752 = vmatprep.subr.bf16.mxu0 0
      %3753 = vmatpush2.bf16.msra.mxu0 0
      %3754 = vmatprep.subr.bf16.mxu0 0
      %3755 = vmatpush2.bf16.msra.mxu0 0
      %3756 = vmatprep.subr.bf16.mxu0 0
      %3757 = vmatpush2.bf16.msra.mxu0 0
      %3758 = vmatprep.subr.bf16.mxu0 0
      %3759 = vmatpush2.bf16.msra.mxu0 0
      %3760 = vmatprep.subr.bf16.mxu0 0
      %3761 = vmatpush2.bf16.msra.mxu0 0
      %3762 = vmatprep.subr.bf16.mxu0 0
      %3763 = vmatpush2.bf16.msra.mxu0 0
      %3764 = vmatprep.subr.bf16.mxu0 0
      %3765 = vmatpush2.bf16.msra.mxu0 0
      %3766 = vmatprep.mubr.bf16.mxu0 0
      %3767 = vmatmul.mubr.bf16.gmra.mxu0 %v3720
      %v3768 = vpop.f32.mrf.mxu0
      %v3769 = vadd.f32 0.0, %v3768
      %v3770 = vpop.f32.mrf.mxu0
      %v3771 = vpop.f32.mrf.mxu0
      %v3772 = vadd.f32 0.0, %v3771
      %v3773 = vpop.f32.mrf.mxu0
      %3774 = vmatprep.mubr.bf16.mxu0 0
      %3775 = vmatmul.mubr.bf16.gmra.mxu0 %v3723
      %v3776 = vpop.f32.mrf.mxu0
      %v3777 = vadd.f32 0.0, %v3776
      %v3778 = vpop.f32.mrf.mxu0
      %v3779 = vpop.f32.mrf.mxu0
      %v3780 = vadd.f32 0.0, %v3779
      %v3781 = vpop.f32.mrf.mxu0
      %3782 = vmatprep.mubr.bf16.mxu0 0
      %3783 = vmatmul.mubr.bf16.gmra.mxu0 %v3726
      %v3784 = vpop.f32.mrf.mxu0
      %v3785 = vadd.f32 0.0, %v3784
      %v3786 = vpop.f32.mrf.mxu0
      %v3787 = vpop.f32.mrf.mxu0
      %v3788 = vadd.f32 0.0, %v3787
      %v3789 = vpop.f32.mrf.mxu0
      %3790 = vmatprep.mubr.bf16.mxu0 0
      %3791 = vmatmul.mubr.bf16.gmra.mxu0 %v3729
      %v3792 = vpop.f32.mrf.mxu0
      %v3793 = vadd.f32 0.0, %v3792
      %v3794 = vpop.f32.mrf.mxu0
      %v3795 = vpop.f32.mrf.mxu0
      %v3796 = vpop.f32.mrf.mxu0
      %3797 = vdwg.mxu0
      %v3798 = vadd.f32 %v3292, %v3769
      %v3799 = vadd.f32 %v3293, %v3772
      %v3800 = vadd.f32 %v3294, %v3777
      %v3801 = vadd.f32 %v3295, %v3780
      %v3802 = vadd.f32 %v3296, %v3785
      %v3803 = vadd.f32 %v3297, %v3788
      %v3804 = vadd.f32 %v3298, %v3793
      %s3805 = scalar_lea.vmem %s269, 4
      %v3806 = vld [vmem:[%s3805] sm:$0xf]
      %s3807 = scalar_lea.vmem %s252, 20
      %v3808 = vld [vmem:[%s3807] sm:$0xf]
      %v3809 = vld [vmem:[%s3807 + $0x10] sm:$0xf]
      %v3810 = vld [vmem:[%s3807 + $0x20] sm:$0xf]
      %v3811 = vld [vmem:[%s3807 + $0x30] sm:$0xf]
      %v3812 = vld [vmem:[%s3807 + $0x40] sm:$0xf]
      %v3813 = vld [vmem:[%s3807 + $0x50] sm:$0xf]
      %v3822 = vunpack.c.l.s4 1966171168
      %v3823 = vunpack.c.0.s8 %v3822
      %v3824 = vlaneseq
      %v3825 = vshrl.u32 %v3824, 7
      %v3826 = vsub.s32 %v3823, %v3825
      %v3827 = vrot.slane %v3808, %v3826
      %v3828 = vcombine.high %v3827, %v3827
      %v3830 = vunpack.c.l.s4 1966171168
      %v3831 = vunpack.c.0.s8 %v3830
      %v3832 = vlaneseq
      %v3833 = vshrl.u32 %v3832, 7
      %v3834 = vsub.s32 %v3831, %v3833
      %v3835 = vrot.slane %v3827, %v3834
      %v3837 = vunpack.c.l.s4 1966171168
      %v3838 = vunpack.c.0.s8 %v3837
      %v3839 = vlaneseq
      %v3840 = vshrl.u32 %v3839, 7
      %v3841 = vsub.s32 %v3838, %v3840
      %v3842 = vrot.slane %v3828, %v3841
      %v3843 = vcombine.high %v3835, %v3835
      %v3844 = vcombine.high %v3842, %v3842
      %v3846 = vunpack.c.l.s4 1966171168
      %v3847 = vunpack.c.0.s8 %v3846
      %v3848 = vlaneseq
      %v3849 = vshrl.u32 %v3848, 7
      %v3850 = vsub.s32 %v3847, %v3849
      %v3851 = vrot.slane %v3809, %v3850
      %v3852 = vcombine.high %v3851, %v3851
      %v3854 = vunpack.c.l.s4 1966171168
      %v3855 = vunpack.c.0.s8 %v3854
      %v3856 = vlaneseq
      %v3857 = vshrl.u32 %v3856, 7
      %v3858 = vsub.s32 %v3855, %v3857
      %v3859 = vrot.slane %v3851, %v3858
      %v3861 = vunpack.c.l.s4 1966171168
      %v3862 = vunpack.c.0.s8 %v3861
      %v3863 = vlaneseq
      %v3864 = vshrl.u32 %v3863, 7
      %v3865 = vsub.s32 %v3862, %v3864
      %v3866 = vrot.slane %v3852, %v3865
      %v3867 = vcombine.high %v3859, %v3859
      %v3868 = vcombine.high %v3866, %v3866
      %v3870 = vunpack.c.l.s4 1966171168
      %v3871 = vunpack.c.0.s8 %v3870
      %v3872 = vlaneseq
      %v3873 = vshrl.u32 %v3872, 7
      %v3874 = vsub.s32 %v3871, %v3873
      %v3875 = vrot.slane %v3810, %v3874
      %v3876 = vcombine.high %v3875, %v3875
      %v3878 = vunpack.c.l.s4 1966171168
      %v3879 = vunpack.c.0.s8 %v3878
      %v3880 = vlaneseq
      %v3881 = vshrl.u32 %v3880, 7
      %v3882 = vsub.s32 %v3879, %v3881
      %v3883 = vrot.slane %v3875, %v3882
      %v3885 = vunpack.c.l.s4 1966171168
      %v3886 = vunpack.c.0.s8 %v3885
      %v3887 = vlaneseq
      %v3888 = vshrl.u32 %v3887, 7
      %v3889 = vsub.s32 %v3886, %v3888
      %v3890 = vrot.slane %v3876, %v3889
      %v3891 = vcombine.high %v3883, %v3883
      %v3892 = vcombine.high %v3890, %v3890
      %v3894 = vunpack.c.l.s4 1966171168
      %v3895 = vunpack.c.0.s8 %v3894
      %v3896 = vlaneseq
      %v3897 = vshrl.u32 %v3896, 7
      %v3898 = vsub.s32 %v3895, %v3897
      %v3899 = vrot.slane %v3811, %v3898
      %v3900 = vcombine.high %v3899, %v3899
      %v3902 = vunpack.c.l.s4 1966171168
      %v3903 = vunpack.c.0.s8 %v3902
      %v3904 = vlaneseq
      %v3905 = vshrl.u32 %v3904, 7
      %v3906 = vsub.s32 %v3903, %v3905
      %v3907 = vrot.slane %v3899, %v3906
      %v3909 = vunpack.c.l.s4 1966171168
      %v3910 = vunpack.c.0.s8 %v3909
      %v3911 = vlaneseq
      %v3912 = vshrl.u32 %v3911, 7
      %v3913 = vsub.s32 %v3910, %v3912
      %v3914 = vrot.slane %v3900, %v3913
      %v3915 = vcombine.high %v3907, %v3907
      %v3916 = vcombine.high %v3914, %v3914
      %v3918 = vunpack.c.l.s4 1966171168
      %v3919 = vunpack.c.0.s8 %v3918
      %v3920 = vlaneseq
      %v3921 = vshrl.u32 %v3920, 7
      %v3922 = vsub.s32 %v3919, %v3921
      %v3923 = vrot.slane %v3812, %v3922
      %v3924 = vcombine.high %v3923, %v3923
      %v3926 = vunpack.c.l.s4 1966171168
      %v3927 = vunpack.c.0.s8 %v3926
      %v3928 = vlaneseq
      %v3929 = vshrl.u32 %v3928, 7
      %v3930 = vsub.s32 %v3927, %v3929
      %v3931 = vrot.slane %v3923, %v3930
      %v3933 = vunpack.c.l.s4 1966171168
      %v3934 = vunpack.c.0.s8 %v3933
      %v3935 = vlaneseq
      %v3936 = vshrl.u32 %v3935, 7
      %v3937 = vsub.s32 %v3934, %v3936
      %v3938 = vrot.slane %v3924, %v3937
      %v3939 = vcombine.high %v3931, %v3931
      %v3940 = vcombine.high %v3938, %v3938
      %v3942 = vunpack.c.l.s4 1966171168
      %v3943 = vunpack.c.0.s8 %v3942
      %v3944 = vlaneseq
      %v3945 = vshrl.u32 %v3944, 7
      %v3946 = vsub.s32 %v3943, %v3945
      %v3947 = vrot.slane %v3813, %v3946
      %v3948 = vcombine.high %v3947, %v3947
      %v3950 = vunpack.c.l.s4 1966171168
      %v3951 = vunpack.c.0.s8 %v3950
      %v3952 = vlaneseq
      %v3953 = vshrl.u32 %v3952, 7
      %v3954 = vsub.s32 %v3951, %v3953
      %v3955 = vrot.slane %v3947, %v3954
      %v3957 = vunpack.c.l.s4 1966171168
      %v3958 = vunpack.c.0.s8 %v3957
      %v3959 = vlaneseq
      %v3960 = vshrl.u32 %v3959, 7
      %v3961 = vsub.s32 %v3958, %v3960
      %v3962 = vrot.slane %v3948, %v3961
      %v3963 = vcombine.high %v3955, %v3955
      %v3964 = vcombine.high %v3962, %v3962
      %v3966 = vunpack.c.l.s4 1966171168
      %v3967 = vunpack.c.0.s8 %v3966
      %v3968 = vlaneseq
      %v3969 = vshrl.u32 %v3968, 7
      %v3970 = vsub.s32 %v3967, %v3969
      %v3971 = vrot.slane %v3806, %v3970
      %v3972 = vcombine.high %v3971, %v3971
      %v3974 = vunpack.c.l.s4 1966171168
      %v3975 = vunpack.c.0.s8 %v3974
      %v3976 = vlaneseq
      %v3977 = vshrl.u32 %v3976, 7
      %v3978 = vsub.s32 %v3975, %v3977
      %v3979 = vrot.slane %v3971, %v3978
      %v3981 = vunpack.c.l.s4 1966171168
      %v3982 = vunpack.c.0.s8 %v3981
      %v3983 = vlaneseq
      %v3984 = vshrl.u32 %v3983, 7
      %v3985 = vsub.s32 %v3982, %v3984
      %v3986 = vrot.slane %v3972, %v3985
      %v3987 = vcombine.high %v3979, %v3979
      %v3988 = vcombine.high %v3986, %v3986
      %v3989 = vunpack.i.l.s16 %v3835
      %v3990 = vunpack.i.h.s16 %v3835
      %v3991 = vunpack.i.l.s16 %v3842
      %v3992 = vunpack.i.h.s16 %v3842
      %v3993 = vunpack.i.l.s16 %v3843
      %v3994 = vunpack.i.h.s16 %v3843
      %v3995 = vunpack.i.l.s16 %v3844
      %v3996 = vunpack.i.l.s16 %v3859
      %v3997 = vunpack.i.h.s16 %v3859
      %v3998 = vunpack.i.l.s16 %v3866
      %v3999 = vunpack.i.h.s16 %v3866
      %v4000 = vunpack.i.l.s16 %v3867
      %v4001 = vunpack.i.h.s16 %v3867
      %v4002 = vunpack.i.l.s16 %v3868
      %v4003 = vunpack.i.l.s16 %v3883
      %v4004 = vunpack.i.h.s16 %v3883
      %v4005 = vunpack.i.l.s16 %v3890
      %v4006 = vunpack.i.h.s16 %v3890
      %v4007 = vunpack.i.l.s16 %v3891
      %v4008 = vunpack.i.h.s16 %v3891
      %v4009 = vunpack.i.l.s16 %v3892
      %v4010 = vunpack.i.l.s16 %v3907
      %v4011 = vunpack.i.h.s16 %v3907
      %v4012 = vunpack.i.l.s16 %v3914
      %v4013 = vunpack.i.h.s16 %v3914
      %v4014 = vunpack.i.l.s16 %v3915
      %v4015 = vunpack.i.h.s16 %v3915
      %v4016 = vunpack.i.l.s16 %v3916
      %v4017 = vunpack.i.l.s16 %v3931
      %v4018 = vunpack.i.h.s16 %v3931
      %v4019 = vunpack.i.l.s16 %v3938
      %v4020 = vunpack.i.h.s16 %v3938
      %v4021 = vunpack.i.l.s16 %v3939
      %v4022 = vunpack.i.h.s16 %v3939
      %v4023 = vunpack.i.l.s16 %v3940
      %v4024 = vunpack.i.l.s16 %v3955
      %v4025 = vunpack.i.h.s16 %v3955
      %v4026 = vunpack.i.l.s16 %v3962
      %v4027 = vunpack.i.h.s16 %v3962
      %v4028 = vunpack.i.l.s16 %v3963
      %v4029 = vunpack.i.h.s16 %v3963
      %v4030 = vunpack.i.l.s16 %v3964
      %v4031 = vunpack.i.l.s16 %v3979
      %v4032 = vunpack.i.h.s16 %v3979
      %v4033 = vunpack.i.l.s16 %v3986
      %v4034 = vunpack.i.h.s16 %v3986
      %v4035 = vunpack.i.l.s16 %v3987
      %v4036 = vunpack.i.h.s16 %v3987
      %v4037 = vunpack.i.l.s16 %v3988
      %s4038 = scalar_lea.vmem %s2, 14
      %v4039 = vld [vmem:[%s4038] sm:$0x3]
      %v4040 = vpack.i.b16 %v3990, %v3989
      %v4041 = vpack.i.b16 %v3992, %v3991
      %v4042 = vpack.i.b16 %v3994, %v3993
      %v4043 = vpack.i.b16 %v3996, %v3995
      %v4044 = vpack.i.b16 %v3998, %v3997
      %v4045 = vpack.i.b16 %v4000, %v3999
      %v4046 = vpack.i.b16 %v4002, %v4001
      %v4047 = vpack.i.b16 %v4004, %v4003
      %v4048 = vpack.i.b16 %v4006, %v4005
      %v4049 = vpack.i.b16 %v4008, %v4007
      %v4050 = vpack.i.b16 %v4010, %v4009
      %v4051 = vpack.i.b16 %v4012, %v4011
      %v4052 = vpack.i.b16 %v4014, %v4013
      %v4053 = vpack.i.b16 %v4016, %v4015
      %v4054 = vpack.i.b16 %v4018, %v4017
      %v4055 = vpack.i.b16 %v4020, %v4019
      %v4056 = vpack.i.b16 %v4022, %v4021
      %v4057 = vpack.i.b16 %v4024, %v4023
      %v4058 = vpack.i.b16 %v4026, %v4025
      %v4059 = vpack.i.b16 %v4028, %v4027
      %v4060 = vpack.i.b16 %v4030, %v4029
      %v4061 = vpack.i.b16 %v4032, %v4031
      %v4062 = vpack.i.b16 %v4034, %v4033
      %v4063 = vpack.i.b16 %v4036, %v4035
      %v4065 = vcombine.low %v4040, %v4041
      %v4066 = vcombine.low %v4042, %v4043
      %v4067 = vcombine.low %v4044, %v4045
      %v4068 = vcombine.low %v4046, %v4047
      %v4070 = vunpack.c.l.s4 1966171168
      %v4071 = vunpack.c.0.s8 %v4070
      %v4072 = vlaneseq
      %v4073 = vshrl.u32 %v4072, 7
      %v4074 = vsub.s32 %v4071, %v4073
      %v4075 = vrot.slane %v4065, %v4074
      %v4077 = vunpack.c.l.s4 1966171168
      %v4078 = vunpack.c.0.s8 %v4077
      %v4079 = vlaneseq
      %v4080 = vshrl.u32 %v4079, 7
      %v4081 = vsub.s32 %v4078, %v4080
      %v4082 = vrot.slane %v4066, %v4081
      %v4084 = vunpack.c.l.s4 1966171168
      %v4085 = vunpack.c.0.s8 %v4084
      %v4086 = vlaneseq
      %v4087 = vshrl.u32 %v4086, 7
      %v4088 = vsub.s32 %v4085, %v4087
      %v4089 = vrot.slane %v4067, %v4088
      %v4091 = vunpack.c.l.s4 1966171168
      %v4092 = vunpack.c.0.s8 %v4091
      %v4093 = vlaneseq
      %v4094 = vshrl.u32 %v4093, 7
      %v4095 = vsub.s32 %v4092, %v4094
      %v4096 = vrot.slane %v4068, %v4095
      %v4097 = vcombine.low %v4075, %v4082
      %v4098 = vcombine.low %v4089, %v4096
      %v4100 = vunpack.c.l.s4 1966171168
      %v4101 = vunpack.c.0.s8 %v4100
      %v4102 = vlaneseq
      %v4103 = vshrl.u32 %v4102, 7
      %v4104 = vsub.s32 %v4101, %v4103
      %v4105 = vrot.slane %v4097, %v4104
      %v4107 = vunpack.c.l.s4 1966171168
      %v4108 = vunpack.c.0.s8 %v4107
      %v4109 = vlaneseq
      %v4110 = vshrl.u32 %v4109, 7
      %v4111 = vsub.s32 %v4108, %v4110
      %v4112 = vrot.slane %v4098, %v4111
      %v4113 = vcombine.low %v4105, %v4112
      %v4114 = vcombine.low %v4048, %v4049
      %v4115 = vcombine.low %v4050, %v4051
      %v4116 = vcombine.low %v4052, %v4053
      %v4117 = vcombine.low %v4054, %v4055
      %v4119 = vunpack.c.l.s4 1966171168
      %v4120 = vunpack.c.0.s8 %v4119
      %v4121 = vlaneseq
      %v4122 = vshrl.u32 %v4121, 7
      %v4123 = vsub.s32 %v4120, %v4122
      %v4124 = vrot.slane %v4114, %v4123
      %v4126 = vunpack.c.l.s4 1966171168
      %v4127 = vunpack.c.0.s8 %v4126
      %v4128 = vlaneseq
      %v4129 = vshrl.u32 %v4128, 7
      %v4130 = vsub.s32 %v4127, %v4129
      %v4131 = vrot.slane %v4115, %v4130
      %v4133 = vunpack.c.l.s4 1966171168
      %v4134 = vunpack.c.0.s8 %v4133
      %v4135 = vlaneseq
      %v4136 = vshrl.u32 %v4135, 7
      %v4137 = vsub.s32 %v4134, %v4136
      %v4138 = vrot.slane %v4116, %v4137
      %v4140 = vunpack.c.l.s4 1966171168
      %v4141 = vunpack.c.0.s8 %v4140
      %v4142 = vlaneseq
      %v4143 = vshrl.u32 %v4142, 7
      %v4144 = vsub.s32 %v4141, %v4143
      %v4145 = vrot.slane %v4117, %v4144
      %v4146 = vcombine.low %v4124, %v4131
      %v4147 = vcombine.low %v4138, %v4145
      %v4149 = vunpack.c.l.s4 1966171168
      %v4150 = vunpack.c.0.s8 %v4149
      %v4151 = vlaneseq
      %v4152 = vshrl.u32 %v4151, 7
      %v4153 = vsub.s32 %v4150, %v4152
      %v4154 = vrot.slane %v4146, %v4153
      %v4156 = vunpack.c.l.s4 1966171168
      %v4157 = vunpack.c.0.s8 %v4156
      %v4158 = vlaneseq
      %v4159 = vshrl.u32 %v4158, 7
      %v4160 = vsub.s32 %v4157, %v4159
      %v4161 = vrot.slane %v4147, %v4160
      %v4162 = vcombine.low %v4154, %v4161
      %v4163 = vcombine.low %v4056, %v4057
      %v4164 = vcombine.low %v4058, %v4059
      %v4165 = vcombine.low %v4060, %v4061
      %v4166 = vcombine.low %v4062, %v4063
      %v4168 = vunpack.c.l.s4 1966171168
      %v4169 = vunpack.c.0.s8 %v4168
      %v4170 = vlaneseq
      %v4171 = vshrl.u32 %v4170, 7
      %v4172 = vsub.s32 %v4169, %v4171
      %v4173 = vrot.slane %v4163, %v4172
      %v4175 = vunpack.c.l.s4 1966171168
      %v4176 = vunpack.c.0.s8 %v4175
      %v4177 = vlaneseq
      %v4178 = vshrl.u32 %v4177, 7
      %v4179 = vsub.s32 %v4176, %v4178
      %v4180 = vrot.slane %v4164, %v4179
      %v4182 = vunpack.c.l.s4 1966171168
      %v4183 = vunpack.c.0.s8 %v4182
      %v4184 = vlaneseq
      %v4185 = vshrl.u32 %v4184, 7
      %v4186 = vsub.s32 %v4183, %v4185
      %v4187 = vrot.slane %v4165, %v4186
      %v4189 = vunpack.c.l.s4 1966171168
      %v4190 = vunpack.c.0.s8 %v4189
      %v4191 = vlaneseq
      %v4192 = vshrl.u32 %v4191, 7
      %v4193 = vsub.s32 %v4190, %v4192
      %v4194 = vrot.slane %v4166, %v4193
      %v4195 = vcombine.low %v4173, %v4180
      %v4196 = vcombine.low %v4187, %v4194
      %v4198 = vunpack.c.l.s4 1966171168
      %v4199 = vunpack.c.0.s8 %v4198
      %v4200 = vlaneseq
      %v4201 = vshrl.u32 %v4200, 7
      %v4202 = vsub.s32 %v4199, %v4201
      %v4203 = vrot.slane %v4195, %v4202
      %v4205 = vunpack.c.l.s4 1966171168
      %v4206 = vunpack.c.0.s8 %v4205
      %v4207 = vlaneseq
      %v4208 = vshrl.u32 %v4207, 7
      %v4209 = vsub.s32 %v4206, %v4208
      %v4210 = vrot.slane %v4196, %v4209
      %v4211 = vcombine.low %v4203, %v4210
      %v4213 = vunpack.c.l.s4 1966171168
      %v4214 = vunpack.c.0.s8 %v4213
      %v4215 = vlaneseq
      %v4216 = vshrl.u32 %v4215, 7
      %v4217 = vsub.s32 %v4214, %v4216
      %v4218 = vrot.slane %v4037, %v4217
      %v4220 = vunpack.c.l.s4 1966171168
      %v4221 = vunpack.c.0.s8 %v4220
      %v4222 = vlaneseq
      %v4223 = vshrl.u32 %v4222, 7
      %v4224 = vsub.s32 %v4221, %v4223
      %v4225 = vrot.slane %v4218, %v4224
      %v4227 = vsel %vm931, %v4113, 0
      %v4230 = vsel %vm931, %v4162, 0
      %v4233 = vsel %vm931, %v4211, 0
      %v4236 = vsel %vm931, %v4225, 0
      %v4239 = vsel %vm944, %v4039, 0
      %4241 = vmatprep.subr.bf16.mxu0 0
      %4242 = vmatpush1.bf16.msra.mxu0 0
      %4243 = vmatprep.subr.bf16.mxu0 0
      %4244 = vmatpush1.bf16.msra.mxu0 0
      %4245 = vmatprep.subr.bf16.mxu0 0
      %4246 = vmatpush1.bf16.msra.mxu0 0
      %4247 = vmatprep.subr.bf16.mxu0 0
      %4248 = vmatpush1.bf16.msra.mxu0 0
      %4249 = vmatprep.subr.bf16.mxu0 0
      %4250 = vmatpush1.bf16.msra.mxu0 0
      %4251 = vmatprep.subr.bf16.mxu0 0
      %4252 = vmatpush1.bf16.msra.mxu0 0
      %4253 = vmatprep.subr.bf16.mxu0 0
      %4254 = vmatpush1.bf16.msra.mxu0 0
      %4255 = vmatprep.subr.bf16.mxu0 0
      %4256 = vmatpush1.bf16.msra.mxu0 %v4239
      %4257 = vmatprep.subr.bf16.mxu0 0
      %4258 = vmatpush2.bf16.msra.mxu0 0
      %4259 = vmatprep.subr.bf16.mxu0 0
      %4260 = vmatpush2.bf16.msra.mxu0 0
      %4261 = vmatprep.subr.bf16.mxu0 0
      %4262 = vmatpush2.bf16.msra.mxu0 0
      %4263 = vmatprep.subr.bf16.mxu0 0
      %4264 = vmatpush2.bf16.msra.mxu0 0
      %4265 = vmatprep.subr.bf16.mxu0 0
      %4266 = vmatpush2.bf16.msra.mxu0 0
      %4267 = vmatprep.subr.bf16.mxu0 0
      %4268 = vmatpush2.bf16.msra.mxu0 0
      %4269 = vmatprep.subr.bf16.mxu0 0
      %4270 = vmatpush2.bf16.msra.mxu0 0
      %4271 = vmatprep.subr.bf16.mxu0 0
      %4272 = vmatpush2.bf16.msra.mxu0 0
      %4273 = vmatprep.mubr.bf16.mxu0 0
      %4274 = vmatmul.mubr.bf16.gmra.mxu0 %v4227
      %v4275 = vpop.f32.mrf.mxu0
      %v4276 = vadd.f32 0.0, %v4275
      %v4277 = vpop.f32.mrf.mxu0
      %v4278 = vpop.f32.mrf.mxu0
      %v4279 = vadd.f32 0.0, %v4278
      %v4280 = vpop.f32.mrf.mxu0
      %4281 = vmatprep.mubr.bf16.mxu0 0
      %4282 = vmatmul.mubr.bf16.gmra.mxu0 %v4230
      %v4283 = vpop.f32.mrf.mxu0
      %v4284 = vadd.f32 0.0, %v4283
      %v4285 = vpop.f32.mrf.mxu0
      %v4286 = vpop.f32.mrf.mxu0
      %v4287 = vadd.f32 0.0, %v4286
      %v4288 = vpop.f32.mrf.mxu0
      %4289 = vmatprep.mubr.bf16.mxu0 0
      %4290 = vmatmul.mubr.bf16.gmra.mxu0 %v4233
      %v4291 = vpop.f32.mrf.mxu0
      %v4292 = vadd.f32 0.0, %v4291
      %v4293 = vpop.f32.mrf.mxu0
      %v4294 = vpop.f32.mrf.mxu0
      %v4295 = vadd.f32 0.0, %v4294
      %v4296 = vpop.f32.mrf.mxu0
      %4297 = vmatprep.mubr.bf16.mxu0 0
      %4298 = vmatmul.mubr.bf16.gmra.mxu0 %v4236
      %v4299 = vpop.f32.mrf.mxu0
      %v4300 = vadd.f32 0.0, %v4299
      %v4301 = vpop.f32.mrf.mxu0
      %v4302 = vpop.f32.mrf.mxu0
      %v4303 = vpop.f32.mrf.mxu0
      %4304 = vdwg.mxu0
      %v4305 = vadd.f32 %v3798, %v4276
      %v4306 = vadd.f32 %v3799, %v4279
      %v4307 = vadd.f32 %v3800, %v4284
      %v4308 = vadd.f32 %v3801, %v4287
      %v4309 = vadd.f32 %v3802, %v4292
      %v4310 = vadd.f32 %v3803, %v4295
      %v4311 = vadd.f32 %v3804, %v4300
      %v4312 = vld [vmem:[%s269] sm:$0xf]
      %v4313 = vld [vmem:[%s3300] sm:$0xf]
      %v4314 = vld [vmem:[%s3300 + $0x10] sm:$0xf]
      %v4315 = vld [vmem:[%s3300 + $0x20] sm:$0xf]
      %v4316 = vld [vmem:[%s3300 + $0x30] sm:$0xf]
      %v4317 = vld [vmem:[%s3300 + $0x40] sm:$0xf]
      %v4318 = vld [vmem:[%s3300 + $0x50] sm:$0xf]
      %v4327 = vunpack.c.l.s4 1966171168
      %v4328 = vunpack.c.0.s8 %v4327
      %v4329 = vlaneseq
      %v4330 = vshrl.u32 %v4329, 7
      %v4331 = vsub.s32 %v4328, %v4330
      %v4332 = vrot.slane %v4313, %v4331
      %v4333 = vcombine.high %v4332, %v4332
      %v4335 = vunpack.c.l.s4 1966171168
      %v4336 = vunpack.c.0.s8 %v4335
      %v4337 = vlaneseq
      %v4338 = vshrl.u32 %v4337, 7
      %v4339 = vsub.s32 %v4336, %v4338
      %v4340 = vrot.slane %v4332, %v4339
      %v4342 = vunpack.c.l.s4 1966171168
      %v4343 = vunpack.c.0.s8 %v4342
      %v4344 = vlaneseq
      %v4345 = vshrl.u32 %v4344, 7
      %v4346 = vsub.s32 %v4343, %v4345
      %v4347 = vrot.slane %v4333, %v4346
      %v4348 = vcombine.high %v4340, %v4340
      %v4349 = vcombine.high %v4347, %v4347
      %v4351 = vunpack.c.l.s4 1966171168
      %v4352 = vunpack.c.0.s8 %v4351
      %v4353 = vlaneseq
      %v4354 = vshrl.u32 %v4353, 7
      %v4355 = vsub.s32 %v4352, %v4354
      %v4356 = vrot.slane %v4314, %v4355
      %v4357 = vcombine.high %v4356, %v4356
      %v4359 = vunpack.c.l.s4 1966171168
      %v4360 = vunpack.c.0.s8 %v4359
      %v4361 = vlaneseq
      %v4362 = vshrl.u32 %v4361, 7
      %v4363 = vsub.s32 %v4360, %v4362
      %v4364 = vrot.slane %v4356, %v4363
      %v4366 = vunpack.c.l.s4 1966171168
      %v4367 = vunpack.c.0.s8 %v4366
      %v4368 = vlaneseq
      %v4369 = vshrl.u32 %v4368, 7
      %v4370 = vsub.s32 %v4367, %v4369
      %v4371 = vrot.slane %v4357, %v4370
      %v4372 = vcombine.high %v4364, %v4364
      %v4373 = vcombine.high %v4371, %v4371
      %v4375 = vunpack.c.l.s4 1966171168
      %v4376 = vunpack.c.0.s8 %v4375
      %v4377 = vlaneseq
      %v4378 = vshrl.u32 %v4377, 7
      %v4379 = vsub.s32 %v4376, %v4378
      %v4380 = vrot.slane %v4315, %v4379
      %v4381 = vcombine.high %v4380, %v4380
      %v4383 = vunpack.c.l.s4 1966171168
      %v4384 = vunpack.c.0.s8 %v4383
      %v4385 = vlaneseq
      %v4386 = vshrl.u32 %v4385, 7
      %v4387 = vsub.s32 %v4384, %v4386
      %v4388 = vrot.slane %v4380, %v4387
      %v4390 = vunpack.c.l.s4 1966171168
      %v4391 = vunpack.c.0.s8 %v4390
      %v4392 = vlaneseq
      %v4393 = vshrl.u32 %v4392, 7
      %v4394 = vsub.s32 %v4391, %v4393
      %v4395 = vrot.slane %v4381, %v4394
      %v4396 = vcombine.high %v4388, %v4388
      %v4397 = vcombine.high %v4395, %v4395
      %v4399 = vunpack.c.l.s4 1966171168
      %v4400 = vunpack.c.0.s8 %v4399
      %v4401 = vlaneseq
      %v4402 = vshrl.u32 %v4401, 7
      %v4403 = vsub.s32 %v4400, %v4402
      %v4404 = vrot.slane %v4316, %v4403
      %v4405 = vcombine.high %v4404, %v4404
      %v4407 = vunpack.c.l.s4 1966171168
      %v4408 = vunpack.c.0.s8 %v4407
      %v4409 = vlaneseq
      %v4410 = vshrl.u32 %v4409, 7
      %v4411 = vsub.s32 %v4408, %v4410
      %v4412 = vrot.slane %v4404, %v4411
      %v4414 = vunpack.c.l.s4 1966171168
      %v4415 = vunpack.c.0.s8 %v4414
      %v4416 = vlaneseq
      %v4417 = vshrl.u32 %v4416, 7
      %v4418 = vsub.s32 %v4415, %v4417
      %v4419 = vrot.slane %v4405, %v4418
      %v4420 = vcombine.high %v4412, %v4412
      %v4421 = vcombine.high %v4419, %v4419
      %v4423 = vunpack.c.l.s4 1966171168
      %v4424 = vunpack.c.0.s8 %v4423
      %v4425 = vlaneseq
      %v4426 = vshrl.u32 %v4425, 7
      %v4427 = vsub.s32 %v4424, %v4426
      %v4428 = vrot.slane %v4317, %v4427
      %v4429 = vcombine.high %v4428, %v4428
      %v4431 = vunpack.c.l.s4 1966171168
      %v4432 = vunpack.c.0.s8 %v4431
      %v4433 = vlaneseq
      %v4434 = vshrl.u32 %v4433, 7
      %v4435 = vsub.s32 %v4432, %v4434
      %v4436 = vrot.slane %v4428, %v4435
      %v4438 = vunpack.c.l.s4 1966171168
      %v4439 = vunpack.c.0.s8 %v4438
      %v4440 = vlaneseq
      %v4441 = vshrl.u32 %v4440, 7
      %v4442 = vsub.s32 %v4439, %v4441
      %v4443 = vrot.slane %v4429, %v4442
      %v4444 = vcombine.high %v4436, %v4436
      %v4445 = vcombine.high %v4443, %v4443
      %v4447 = vunpack.c.l.s4 1966171168
      %v4448 = vunpack.c.0.s8 %v4447
      %v4449 = vlaneseq
      %v4450 = vshrl.u32 %v4449, 7
      %v4451 = vsub.s32 %v4448, %v4450
      %v4452 = vrot.slane %v4318, %v4451
      %v4453 = vcombine.high %v4452, %v4452
      %v4455 = vunpack.c.l.s4 1966171168
      %v4456 = vunpack.c.0.s8 %v4455
      %v4457 = vlaneseq
      %v4458 = vshrl.u32 %v4457, 7
      %v4459 = vsub.s32 %v4456, %v4458
      %v4460 = vrot.slane %v4452, %v4459
      %v4462 = vunpack.c.l.s4 1966171168
      %v4463 = vunpack.c.0.s8 %v4462
      %v4464 = vlaneseq
      %v4465 = vshrl.u32 %v4464, 7
      %v4466 = vsub.s32 %v4463, %v4465
      %v4467 = vrot.slane %v4453, %v4466
      %v4468 = vcombine.high %v4460, %v4460
      %v4469 = vcombine.high %v4467, %v4467
      %v4471 = vunpack.c.l.s4 1966171168
      %v4472 = vunpack.c.0.s8 %v4471
      %v4473 = vlaneseq
      %v4474 = vshrl.u32 %v4473, 7
      %v4475 = vsub.s32 %v4472, %v4474
      %v4476 = vrot.slane %v4312, %v4475
      %v4477 = vcombine.high %v4476, %v4476
      %v4479 = vunpack.c.l.s4 1966171168
      %v4480 = vunpack.c.0.s8 %v4479
      %v4481 = vlaneseq
      %v4482 = vshrl.u32 %v4481, 7
      %v4483 = vsub.s32 %v4480, %v4482
      %v4484 = vrot.slane %v4476, %v4483
      %v4486 = vunpack.c.l.s4 1966171168
      %v4487 = vunpack.c.0.s8 %v4486
      %v4488 = vlaneseq
      %v4489 = vshrl.u32 %v4488, 7
      %v4490 = vsub.s32 %v4487, %v4489
      %v4491 = vrot.slane %v4477, %v4490
      %v4492 = vcombine.high %v4484, %v4484
      %v4493 = vcombine.high %v4491, %v4491
      %v4494 = vunpack.i.h.s16 %v4340
      %v4495 = vunpack.i.l.s16 %v4347
      %v4496 = vunpack.i.h.s16 %v4347
      %v4497 = vunpack.i.l.s16 %v4348
      %v4498 = vunpack.i.h.s16 %v4348
      %v4499 = vunpack.i.l.s16 %v4349
      %v4500 = vunpack.i.h.s16 %v4349
      %v4501 = vunpack.i.h.s16 %v4364
      %v4502 = vunpack.i.l.s16 %v4371
      %v4503 = vunpack.i.h.s16 %v4371
      %v4504 = vunpack.i.l.s16 %v4372
      %v4505 = vunpack.i.h.s16 %v4372
      %v4506 = vunpack.i.l.s16 %v4373
      %v4507 = vunpack.i.h.s16 %v4373
      %v4508 = vunpack.i.h.s16 %v4388
      %v4509 = vunpack.i.l.s16 %v4395
      %v4510 = vunpack.i.h.s16 %v4395
      %v4511 = vunpack.i.l.s16 %v4396
      %v4512 = vunpack.i.h.s16 %v4396
      %v4513 = vunpack.i.l.s16 %v4397
      %v4514 = vunpack.i.h.s16 %v4397
      %v4515 = vunpack.i.h.s16 %v4412
      %v4516 = vunpack.i.l.s16 %v4419
      %v4517 = vunpack.i.h.s16 %v4419
      %v4518 = vunpack.i.l.s16 %v4420
      %v4519 = vunpack.i.h.s16 %v4420
      %v4520 = vunpack.i.l.s16 %v4421
      %v4521 = vunpack.i.h.s16 %v4421
      %v4522 = vunpack.i.h.s16 %v4436
      %v4523 = vunpack.i.l.s16 %v4443
      %v4524 = vunpack.i.h.s16 %v4443
      %v4525 = vunpack.i.l.s16 %v4444
      %v4526 = vunpack.i.h.s16 %v4444
      %v4527 = vunpack.i.l.s16 %v4445
      %v4528 = vunpack.i.h.s16 %v4445
      %v4529 = vunpack.i.h.s16 %v4460
      %v4530 = vunpack.i.l.s16 %v4467
      %v4531 = vunpack.i.h.s16 %v4467
      %v4532 = vunpack.i.l.s16 %v4468
      %v4533 = vunpack.i.h.s16 %v4468
      %v4534 = vunpack.i.l.s16 %v4469
      %v4535 = vunpack.i.h.s16 %v4469
      %v4536 = vunpack.i.h.s16 %v4484
      %v4537 = vunpack.i.l.s16 %v4491
      %v4538 = vunpack.i.h.s16 %v4491
      %v4539 = vunpack.i.l.s16 %v4492
      %v4540 = vunpack.i.h.s16 %v4492
      %v4541 = vunpack.i.l.s16 %v4493
      %v4542 = vunpack.i.h.s16 %v4493
      %s4543 = scalar_lea.vmem %s2, 16
      %v4544 = vld [vmem:[%s4543] sm:$0x3]
      %v4545 = vpack.i.b16 %v4495, %v4494
      %v4546 = vpack.i.b16 %v4497, %v4496
      %v4547 = vpack.i.b16 %v4499, %v4498
      %v4548 = vpack.i.b16 %v4501, %v4500
      %v4549 = vpack.i.b16 %v4503, %v4502
      %v4550 = vpack.i.b16 %v4505, %v4504
      %v4551 = vpack.i.b16 %v4507, %v4506
      %v4552 = vpack.i.b16 %v4509, %v4508
      %v4553 = vpack.i.b16 %v4511, %v4510
      %v4554 = vpack.i.b16 %v4513, %v4512
      %v4555 = vpack.i.b16 %v4515, %v4514
      %v4556 = vpack.i.b16 %v4517, %v4516
      %v4557 = vpack.i.b16 %v4519, %v4518
      %v4558 = vpack.i.b16 %v4521, %v4520
      %v4559 = vpack.i.b16 %v4523, %v4522
      %v4560 = vpack.i.b16 %v4525, %v4524
      %v4561 = vpack.i.b16 %v4527, %v4526
      %v4562 = vpack.i.b16 %v4529, %v4528
      %v4563 = vpack.i.b16 %v4531, %v4530
      %v4564 = vpack.i.b16 %v4533, %v4532
      %v4565 = vpack.i.b16 %v4535, %v4534
      %v4566 = vpack.i.b16 %v4537, %v4536
      %v4567 = vpack.i.b16 %v4539, %v4538
      %v4568 = vpack.i.b16 %v4541, %v4540
      %v4570 = vcombine.low %v4545, %v4546
      %v4571 = vcombine.low %v4547, %v4548
      %v4572 = vcombine.low %v4549, %v4550
      %v4573 = vcombine.low %v4551, %v4552
      %v4575 = vunpack.c.l.s4 1966171168
      %v4576 = vunpack.c.0.s8 %v4575
      %v4577 = vlaneseq
      %v4578 = vshrl.u32 %v4577, 7
      %v4579 = vsub.s32 %v4576, %v4578
      %v4580 = vrot.slane %v4570, %v4579
      %v4582 = vunpack.c.l.s4 1966171168
      %v4583 = vunpack.c.0.s8 %v4582
      %v4584 = vlaneseq
      %v4585 = vshrl.u32 %v4584, 7
      %v4586 = vsub.s32 %v4583, %v4585
      %v4587 = vrot.slane %v4571, %v4586
      %v4589 = vunpack.c.l.s4 1966171168
      %v4590 = vunpack.c.0.s8 %v4589
      %v4591 = vlaneseq
      %v4592 = vshrl.u32 %v4591, 7
      %v4593 = vsub.s32 %v4590, %v4592
      %v4594 = vrot.slane %v4572, %v4593
      %v4596 = vunpack.c.l.s4 1966171168
      %v4597 = vunpack.c.0.s8 %v4596
      %v4598 = vlaneseq
      %v4599 = vshrl.u32 %v4598, 7
      %v4600 = vsub.s32 %v4597, %v4599
      %v4601 = vrot.slane %v4573, %v4600
      %v4602 = vcombine.low %v4580, %v4587
      %v4603 = vcombine.low %v4594, %v4601
      %v4605 = vunpack.c.l.s4 1966171168
      %v4606 = vunpack.c.0.s8 %v4605
      %v4607 = vlaneseq
      %v4608 = vshrl.u32 %v4607, 7
      %v4609 = vsub.s32 %v4606, %v4608
      %v4610 = vrot.slane %v4602, %v4609
      %v4612 = vunpack.c.l.s4 1966171168
      %v4613 = vunpack.c.0.s8 %v4612
      %v4614 = vlaneseq
      %v4615 = vshrl.u32 %v4614, 7
      %v4616 = vsub.s32 %v4613, %v4615
      %v4617 = vrot.slane %v4603, %v4616
      %v4618 = vcombine.low %v4610, %v4617
      %v4619 = vcombine.low %v4553, %v4554
      %v4620 = vcombine.low %v4555, %v4556
      %v4621 = vcombine.low %v4557, %v4558
      %v4622 = vcombine.low %v4559, %v4560
      %v4624 = vunpack.c.l.s4 1966171168
      %v4625 = vunpack.c.0.s8 %v4624
      %v4626 = vlaneseq
      %v4627 = vshrl.u32 %v4626, 7
      %v4628 = vsub.s32 %v4625, %v4627
      %v4629 = vrot.slane %v4619, %v4628
      %v4631 = vunpack.c.l.s4 1966171168
      %v4632 = vunpack.c.0.s8 %v4631
      %v4633 = vlaneseq
      %v4634 = vshrl.u32 %v4633, 7
      %v4635 = vsub.s32 %v4632, %v4634
      %v4636 = vrot.slane %v4620, %v4635
      %v4638 = vunpack.c.l.s4 1966171168
      %v4639 = vunpack.c.0.s8 %v4638
      %v4640 = vlaneseq
      %v4641 = vshrl.u32 %v4640, 7
      %v4642 = vsub.s32 %v4639, %v4641
      %v4643 = vrot.slane %v4621, %v4642
      %v4645 = vunpack.c.l.s4 1966171168
      %v4646 = vunpack.c.0.s8 %v4645
      %v4647 = vlaneseq
      %v4648 = vshrl.u32 %v4647, 7
      %v4649 = vsub.s32 %v4646, %v4648
      %v4650 = vrot.slane %v4622, %v4649
      %v4651 = vcombine.low %v4629, %v4636
      %v4652 = vcombine.low %v4643, %v4650
      %v4654 = vunpack.c.l.s4 1966171168
      %v4655 = vunpack.c.0.s8 %v4654
      %v4656 = vlaneseq
      %v4657 = vshrl.u32 %v4656, 7
      %v4658 = vsub.s32 %v4655, %v4657
      %v4659 = vrot.slane %v4651, %v4658
      %v4661 = vunpack.c.l.s4 1966171168
      %v4662 = vunpack.c.0.s8 %v4661
      %v4663 = vlaneseq
      %v4664 = vshrl.u32 %v4663, 7
      %v4665 = vsub.s32 %v4662, %v4664
      %v4666 = vrot.slane %v4652, %v4665
      %v4667 = vcombine.low %v4659, %v4666
      %v4668 = vcombine.low %v4561, %v4562
      %v4669 = vcombine.low %v4563, %v4564
      %v4670 = vcombine.low %v4565, %v4566
      %v4671 = vcombine.low %v4567, %v4568
      %v4673 = vunpack.c.l.s4 1966171168
      %v4674 = vunpack.c.0.s8 %v4673
      %v4675 = vlaneseq
      %v4676 = vshrl.u32 %v4675, 7
      %v4677 = vsub.s32 %v4674, %v4676
      %v4678 = vrot.slane %v4668, %v4677
      %v4680 = vunpack.c.l.s4 1966171168
      %v4681 = vunpack.c.0.s8 %v4680
      %v4682 = vlaneseq
      %v4683 = vshrl.u32 %v4682, 7
      %v4684 = vsub.s32 %v4681, %v4683
      %v4685 = vrot.slane %v4669, %v4684
      %v4687 = vunpack.c.l.s4 1966171168
      %v4688 = vunpack.c.0.s8 %v4687
      %v4689 = vlaneseq
      %v4690 = vshrl.u32 %v4689, 7
      %v4691 = vsub.s32 %v4688, %v4690
      %v4692 = vrot.slane %v4670, %v4691
      %v4694 = vunpack.c.l.s4 1966171168
      %v4695 = vunpack.c.0.s8 %v4694
      %v4696 = vlaneseq
      %v4697 = vshrl.u32 %v4696, 7
      %v4698 = vsub.s32 %v4695, %v4697
      %v4699 = vrot.slane %v4671, %v4698
      %v4700 = vcombine.low %v4678, %v4685
      %v4701 = vcombine.low %v4692, %v4699
      %v4703 = vunpack.c.l.s4 1966171168
      %v4704 = vunpack.c.0.s8 %v4703
      %v4705 = vlaneseq
      %v4706 = vshrl.u32 %v4705, 7
      %v4707 = vsub.s32 %v4704, %v4706
      %v4708 = vrot.slane %v4700, %v4707
      %v4710 = vunpack.c.l.s4 1966171168
      %v4711 = vunpack.c.0.s8 %v4710
      %v4712 = vlaneseq
      %v4713 = vshrl.u32 %v4712, 7
      %v4714 = vsub.s32 %v4711, %v4713
      %v4715 = vrot.slane %v4701, %v4714
      %v4716 = vcombine.low %v4708, %v4715
      %v4718 = vunpack.c.l.s4 1966171168
      %v4719 = vunpack.c.0.s8 %v4718
      %v4720 = vlaneseq
      %v4721 = vshrl.u32 %v4720, 7
      %v4722 = vsub.s32 %v4719, %v4721
      %v4723 = vrot.slane %v4542, %v4722
      %v4725 = vunpack.c.l.s4 1966171168
      %v4726 = vunpack.c.0.s8 %v4725
      %v4727 = vlaneseq
      %v4728 = vshrl.u32 %v4727, 7
      %v4729 = vsub.s32 %v4726, %v4728
      %v4730 = vrot.slane %v4723, %v4729
      %v4732 = vsel %vm931, %v4618, 0
      %v4735 = vsel %vm931, %v4667, 0
      %v4738 = vsel %vm931, %v4716, 0
      %v4741 = vsel %vm931, %v4730, 0
      %v4744 = vsel %vm944, %v4544, 0
      %4746 = vmatprep.subr.bf16.mxu0 0
      %4747 = vmatpush1.bf16.msra.mxu0 0
      %4748 = vmatprep.subr.bf16.mxu0 0
      %4749 = vmatpush1.bf16.msra.mxu0 0
      %4750 = vmatprep.subr.bf16.mxu0 0
      %4751 = vmatpush1.bf16.msra.mxu0 0
      %4752 = vmatprep.subr.bf16.mxu0 0
      %4753 = vmatpush1.bf16.msra.mxu0 0
      %4754 = vmatprep.subr.bf16.mxu0 0
      %4755 = vmatpush1.bf16.msra.mxu0 0
      %4756 = vmatprep.subr.bf16.mxu0 0
      %4757 = vmatpush1.bf16.msra.mxu0 0
      %4758 = vmatprep.subr.bf16.mxu0 0
      %4759 = vmatpush1.bf16.msra.mxu0 0
      %4760 = vmatprep.subr.bf16.mxu0 0
      %4761 = vmatpush1.bf16.msra.mxu0 %v4744
      %4762 = vmatprep.subr.bf16.mxu0 0
      %4763 = vmatpush2.bf16.msra.mxu0 0
      %4764 = vmatprep.subr.bf16.mxu0 0
      %4765 = vmatpush2.bf16.msra.mxu0 0
      %4766 = vmatprep.subr.bf16.mxu0 0
      %4767 = vmatpush2.bf16.msra.mxu0 0
      %4768 = vmatprep.subr.bf16.mxu0 0
      %4769 = vmatpush2.bf16.msra.mxu0 0
      %4770 = vmatprep.subr.bf16.mxu0 0
      %4771 = vmatpush2.bf16.msra.mxu0 0
      %4772 = vmatprep.subr.bf16.mxu0 0
      %4773 = vmatpush2.bf16.msra.mxu0 0
      %4774 = vmatprep.subr.bf16.mxu0 0
      %4775 = vmatpush2.bf16.msra.mxu0 0
      %4776 = vmatprep.subr.bf16.mxu0 0
      %4777 = vmatpush2.bf16.msra.mxu0 0
      %4778 = vmatprep.mubr.bf16.mxu0 0
      %4779 = vmatmul.mubr.bf16.gmra.mxu0 %v4732
      %v4780 = vpop.f32.mrf.mxu0
      %v4781 = vadd.f32 0.0, %v4780
      %v4782 = vpop.f32.mrf.mxu0
      %v4783 = vpop.f32.mrf.mxu0
      %v4784 = vadd.f32 0.0, %v4783
      %v4785 = vpop.f32.mrf.mxu0
      %4786 = vmatprep.mubr.bf16.mxu0 0
      %4787 = vmatmul.mubr.bf16.gmra.mxu0 %v4735
      %v4788 = vpop.f32.mrf.mxu0
      %v4789 = vadd.f32 0.0, %v4788
      %v4790 = vpop.f32.mrf.mxu0
      %v4791 = vpop.f32.mrf.mxu0
      %v4792 = vadd.f32 0.0, %v4791
      %v4793 = vpop.f32.mrf.mxu0
      %4794 = vmatprep.mubr.bf16.mxu0 0
      %4795 = vmatmul.mubr.bf16.gmra.mxu0 %v4738
      %v4796 = vpop.f32.mrf.mxu0
      %v4797 = vadd.f32 0.0, %v4796
      %v4798 = vpop.f32.mrf.mxu0
      %v4799 = vpop.f32.mrf.mxu0
      %v4800 = vadd.f32 0.0, %v4799
      %v4801 = vpop.f32.mrf.mxu0
      %4802 = vmatprep.mubr.bf16.mxu0 0
      %4803 = vmatmul.mubr.bf16.gmra.mxu0 %v4741
      %v4804 = vpop.f32.mrf.mxu0
      %v4805 = vadd.f32 0.0, %v4804
      %v4806 = vpop.f32.mrf.mxu0
      %v4807 = vpop.f32.mrf.mxu0
      %v4808 = vpop.f32.mrf.mxu0
      %4809 = vdwg.mxu0
      %v4810 = vadd.f32 %v4305, %v4781
      %v4811 = vadd.f32 %v4306, %v4784
      %v4812 = vadd.f32 %v4307, %v4789
      %v4813 = vadd.f32 %v4308, %v4792
      %v4814 = vadd.f32 %v4309, %v4797
      %v4815 = vadd.f32 %v4310, %v4800
      %v4816 = vadd.f32 %v4311, %v4805
      %v4817 = vadd.f32 %v4810, %v4811
      %v4818 = vadd.f32 %v4817, %v4812
      %v4819 = vadd.f32 %v4818, %v4813
      %v4820 = vadd.f32 %v4819, %v4814
      %v4821 = vadd.f32 %v4820, %v4815
      %vm4822 = vcmask 1040384
      %v4823 = vsel %vm4822, %v4816, 0.0
      %v4824 = vadd.f32 %v4821, %v4823
      %v4825 = vrot.slane %v4824, 4
      %v4826 = vadd.f32 %v4824, %v4825
      %v4827 = vrot.slane %v4826, 2
      %v4828 = vadd.f32 %v4826, %v4827
      %v4829 = vrot.slane %v4828, 1
      %v4830 = vadd.f32 %v4828, %v4829
      %4831 = vst [vmem:[%s276] sm:$0x1] %v4830
      %v4832 = vmul.f32 %v4810, %v4810
      %v4833 = vmul.f32 %v4811, %v4811
      %v4834 = vmul.f32 %v4812, %v4812
      %v4835 = vmul.f32 %v4813, %v4813
      %v4836 = vmul.f32 %v4814, %v4814
      %v4837 = vmul.f32 %v4815, %v4815
      %v4838 = vmul.f32 %v4816, %v4816
      %v4839 = vadd.f32 %v4832, %v4833
      %v4840 = vadd.f32 %v4839, %v4834
      %v4841 = vadd.f32 %v4840, %v4835
      %v4842 = vadd.f32 %v4841, %v4836
      %v4843 = vadd.f32 %v4842, %v4837
      %v4844 = vsel %vm4822, %v4838, 0.0
      %v4845 = vadd.f32 %v4843, %v4844
      %v4846 = vrot.slane %v4845, 4
      %v4847 = vadd.f32 %v4845, %v4846
      %v4848 = vrot.slane %v4847, 2
      %v4849 = vadd.f32 %v4847, %v4848
      %v4850 = vrot.slane %v4849, 1
      %v4851 = vadd.f32 %v4849, %v4850
      %4852 = vst [vmem:[%s276 + $0x1] sm:$0x1] %v4851
      %s4853 = sadd.s32 %s18, %s19
      %p4854 = scmp.lt.s32.totalorder %s4853, 1
      %s4855 = scalar_select %p4854, %s4853, 1
      %s4856 = smul.addr %s4855, 2
      %s4857 = scalar_lea.vmem %s3, %s4856
      // Predicated region
      $region33: #{_lambda_.2} parent=31 // pred_check
        %p4858 = pneg %p127
      $region34: #{_lambda_.2} parent=31 // pred_check_branch
        %4860 = sbr.rel (%p4858) target = $region36
      $region35: #{_lambda_.2} parent=31 // pred_region
        %s4861 = sadd.s32 %s18, %s19
      $region36: #{_lambda_.2} parent=31 // pred_fallthru
        _
    $region32: #{_lambda_.2} parent=5 // pred_fallthru
      _
    %p4862 = scmp.le.s32.totalorder 2, %s9
    // Predicated region
    $region37: #{_lambda_.2} parent=5 // pred_check
      %p4863 = pneg %p4862
    $region38: #{_lambda_.2} parent=5 // pred_check_branch
      %4865 = sbr.rel (%p4863) target = $region40
    $region39: #{_lambda_.2} parent=5 // pred_region
      %s4866 = ssub.s32 %s9, 2
      // Predicated region
      $region41: #{_lambda_.2} parent=39 // pred_check
        %p4867 = pneg %p133
      $region42: #{_lambda_.2} parent=39 // pred_check_branch
        %4869 = sbr.rel (%p4867) target = $region44
      $region43: #{_lambda_.2} parent=39 // pred_region
        %s4870 = sadd.s32 %s20, %s21
        %p4871 = scmp.lt.s32.totalorder %s4870, 1
        %s4872 = scalar_select %p4871, %s4870, 1
        %s4873 = smul.addr %s4872, 2
        %s4874 = scalar_lea.vmem %s3, %s4873
      $region44: #{_lambda_.2} parent=39 // pred_fallthru
        _
    $region40: #{_lambda_.2} parent=5 // pred_fallthru
      _
  $region6: #{_lambda_.2} parent=0 // loop_footer
    %s13 = sadd.s32 1, %s9
  $region7: #{_lambda_.2} parent=0 // loop_footer_branch
    %8 = sbr.rel target = $region3
  $region8: #{_lambda_.2} parent=0 // loop_exit
    _

</llo_original>
